<compile_context>
chip_gen: v6e
topology: v6e:2x2x1
jax: 0.10.0
libtpu: 0.0.40
codegen_flags: <defaults>
</compile_context>

<pallas_src>
import functools

import numpy as np
import jax
import jax.numpy as jnp
from jax import lax
from jax.experimental import pallas as pl
from jax.experimental.pallas import tpu as pltpu

_SQRT1_2 = np.float32(0.7071067811865476)
_LN_EPS = 1e-5


# --------------------------------------------------------------------------------------
# Tiling / compiler-param helpers
# --------------------------------------------------------------------------------------
def _pick_row_tile(M, cap=512):
    # >=2 grid steps when M allows (so v7x's 2 TensorCores both get work), 8-row aligned,
    # capped at 512 rows for VMEM.  Ragged tails are handled by Pallas partial blocks:
    # LN/erf run on padded garbage rows whose writes are clipped -- harmless, do not
    # switch these stores to pl.ds without masking.
    if M <= 8:
        return M
    half = ((M // 2) + 7) // 8 * 8
    return max(8, min(cap, half, M))


def _pick_window_batch(B_, nW, cap=32):
    # Largest divisor of nW (and B_) that still leaves >=2 grid steps.  Requiring nWb | nW lets
    # the (nW, N, N) mask be indexed modulo instead of materializing a B-times-tiled copy.
    limit = max(1, min(cap, nW, B_ // 2 if B_ >= 2 else 1))
    best = 1
    for d in range(1, limit + 1):
        if nW % d == 0 and B_ % d == 0:
            best = d
    return best


@functools.lru_cache(maxsize=1)
def _vmem_limit_bytes():
    # v5e default scoped VMEM is only 16 MiB and v7x has 64 MiB physical; set an explicit
    # limit with headroom so full-weight blocks never trip the scoped default.
    try:
        cap = int(pltpu.get_tpu_info().vmem_capacity_bytes)
    except Exception:
        cap = 128 * 1024 * 1024
    return max(32 * 1024 * 1024, min(cap * 3 // 4, 96 * 1024 * 1024))


def _cparams():
    return pltpu.CompilerParams(dimension_semantics=("parallel",),
                                vmem_limit_bytes=_vmem_limit_bytes())


def _cost(flops, trans, bytes_acc):
    return pl.CostEstimate(flops=int(flops), transcendentals=int(trans),
                           bytes_accessed=int(bytes_acc))


# --------------------------------------------------------------------------------------
# Pallas kernels
# --------------------------------------------------------------------------------------
def _concat_fc_kernel(x_ref, y_ref, wx_ref, wy_ref, b_ref, o_ref):
    # concat([x, y], -1) @ W  ==  x @ W_top + y @ W_bottom  (concat fused away); bf16 MXU operands.
    xb = x_ref[...].astype(jnp.bfloat16)
    yb = y_ref[...].astype(jnp.bfloat16)
    acc = jnp.dot(xb, wx_ref[...], preferred_element_type=jnp.float32)
    acc = acc + jnp.dot(yb, wy_ref[...], preferred_element_type=jnp.float32)
    o_ref[...] = (acc + b_ref[...]).astype(o_ref.dtype)


def concat_fc_pallas(x2d, y2d, wx, wy, b):
    M, Cx = x2d.shape
    Cy = y2d.shape[1]
    N = wx.shape[1]
    tm = _pick_row_tile(M)
    ce = _cost(2 * M * (Cx + Cy) * N, 0,
               4 * (M * Cx + M * Cy + M * N) + 2 * (Cx + Cy) * N)
    return pl.pallas_call(
        _concat_fc_kernel,
        out_shape=jax.ShapeDtypeStruct((M, N), x2d.dtype),
        grid=(pl.cdiv(M, tm),),
        in_specs=[pl.BlockSpec((tm, Cx), lambda i: (i, 0)),
                  pl.BlockSpec((tm, Cy), lambda i: (i, 0)),
                  pl.BlockSpec((Cx, N), lambda i: (0, 0)),
                  pl.BlockSpec((Cy, N), lambda i: (0, 0)),
                  pl.BlockSpec((1, N), lambda i: (0, 0))],
        out_specs=pl.BlockSpec((tm, N), lambda i: (i, 0)),
        compiler_params=_cparams(),
        cost_estimate=ce,
    )(x2d, y2d, wx.astype(jnp.bfloat16), wy.astype(jnp.bfloat16), b.reshape(1, N))


def _layernorm_kernel(x_ref, g_ref, b_ref, o_ref):
    x = x_ref[...].astype(jnp.float32)
    mu = jnp.mean(x, axis=-1, keepdims=True)
    var = jnp.mean((x - mu) ** 2, axis=-1, keepdims=True)
    o_ref[...] = ((x - mu) * lax.rsqrt(var + _LN_EPS) * g_ref[...] + b_ref[...]).astype(o_ref.dtype)


def layernorm_pallas(x2d, g, b):
    M, C = x2d.shape
    tm = _pick_row_tile(M)
    return pl.pallas_call(
        _layernorm_kernel,
        out_shape=jax.ShapeDtypeStruct((M, C), x2d.dtype),
        grid=(pl.cdiv(M, tm),),
        in_specs=[pl.BlockSpec((tm, C), lambda i: (i, 0)),
                  pl.BlockSpec((1, C), lambda i: (0, 0)),
                  pl.BlockSpec((1, C), lambda i: (0, 0))],
        out_specs=pl.BlockSpec((tm, C), lambda i: (i, 0)),
        compiler_params=_cparams(),
        cost_estimate=_cost(8 * M * C, M, 8 * M * C),
    )(x2d, g.reshape(1, C), b.reshape(1, C))


def _add_ln_mlp_res_kernel(s_ref, a_ref, g_ref, b_ref, w1_ref, b1_ref, w2_ref, b2_ref, o_ref):
    # x = shortcut + attn_out (post-attention residual fused in), then out = x + fc2(GELU(fc1(LN(x))))
    x = s_ref[...].astype(jnp.float32) + a_ref[...].astype(jnp.float32)
    mu = jnp.mean(x, axis=-1, keepdims=True)
    var = jnp.mean((x - mu) ** 2, axis=-1, keepdims=True)
    xn = (x - mu) * lax.rsqrt(var + _LN_EPS) * g_ref[...] + b_ref[...]
    h = jnp.dot(xn.astype(jnp.bfloat16), w1_ref[...], preferred_element_type=jnp.float32) + b1_ref[...]
    h = 0.5 * h * (1.0 + lax.erf(h * _SQRT1_2))          # exact (erf) GELU, matches nn.GELU, f32
    y = jnp.dot(h.astype(jnp.bfloat16), w2_ref[...], preferred_element_type=jnp.float32) + b2_ref[...]
    o_ref[...] = (x + y).astype(o_ref.dtype)


def add_ln_mlp_res_pallas(short2d, attn2d, g, b, w1, b1, w2, b2):
    M, C = short2d.shape
    Hd = w1.shape[1]
    tm = _pick_row_tile(M)
    ce = _cost(4 * M * C * Hd + 10 * M * C, M * Hd + M,
               4 * (3 * M * C) + 2 * (2 * C * Hd))
    return pl.pallas_call(
        _add_ln_mlp_res_kernel,
        out_shape=jax.ShapeDtypeStruct((M, C), short2d.dtype),
        grid=(pl.cdiv(M, tm),),
        in_specs=[pl.BlockSpec((tm, C), lambda i: (i, 0)),
                  pl.BlockSpec((tm, C), lambda i: (i, 0)),
                  pl.BlockSpec((1, C), lambda i: (0, 0)),
                  pl.BlockSpec((1, C), lambda i: (0, 0)),
                  pl.BlockSpec((C, Hd), lambda i: (0, 0)),
                  pl.BlockSpec((1, Hd), lambda i: (0, 0)),
                  pl.BlockSpec((Hd, C), lambda i: (0, 0)),
                  pl.BlockSpec((1, C), lambda i: (0, 0))],
        out_specs=pl.BlockSpec((tm, C), lambda i: (i, 0)),
        compiler_params=_cparams(),
        cost_estimate=ce,
    )(short2d, attn2d, g.reshape(1, C), b.reshape(1, C),
      w1.astype(jnp.bfloat16), b1.reshape(1, Hd), w2.astype(jnp.bfloat16), b2.reshape(1, C))


def _window_attn_kernel(x_ref, g_ref, b_ref, wqkv_ref, relb_ref, *rest,
                        num_heads, scale, fuse_ln, has_mask):
    # Block = a batch of nWb windows.  LN1 fused in (when no spatial padding), one fused QKV
    # matmul over all tokens of the block, per-head attention batched over the window dim,
    # heads concatenated and projected with a single (C,C) matmul.  All matmuls take bf16
    # operands with f32 accumulation; LN/softmax stay f32.
    if has_mask:
        mask_ref, wproj_ref, bproj_ref, o_ref = rest
    else:
        mask_ref = None
        wproj_ref, bproj_ref, o_ref = rest
    nWb, N, C = x_ref.shape
    hd = C // num_heads

    x = x_ref[...].astype(jnp.float32).reshape(nWb * N, C)
    if fuse_ln:
        mu = jnp.mean(x, axis=-1, keepdims=True)
        var = jnp.mean((x - mu) ** 2, axis=-1, keepdims=True)
        xn = (x - mu) * lax.rsqrt(var + _LN_EPS) * g_ref[...] + b_ref[...]
    else:
        xn = x

    qkv = jnp.dot(xn.astype(jnp.bfloat16), wqkv_ref[...],
                  preferred_element_type=jnp.float32)                       # (nWb*N, 3C) f32
    mask = mask_ref[...] if has_mask else None                              # (nWb, N, N) f32

    head_outs = []
    for h in range(num_heads):                                              # static unroll over heads
        q = qkv[:, h * hd:(h + 1) * hd].reshape(nWb, N, hd).astype(jnp.bfloat16)
        k = qkv[:, C + h * hd:C + (h + 1) * hd].reshape(nWb, N, hd).astype(jnp.bfloat16)
        v = qkv[:, 2 * C + h * hd:2 * C + (h + 1) * hd].reshape(nWb, N, hd).astype(jnp.bfloat16)
        s = jnp.einsum('bnd,bmd->bnm', q, k, preferred_element_type=jnp.float32)   # windows batched
        s = s * scale + relb_ref[h]                         # scale folded into f32 scores
        if has_mask:
            s = s + mask
        s = s - jnp.max(s, axis=-1, keepdims=True)
        p = jnp.exp(s)
        p = p * pl.reciprocal(jnp.sum(p, axis=-1, keepdims=True), approx=True)
        o = jnp.einsum('bnm,bmd->bnd', p.astype(jnp.bfloat16), v,
                       preferred_element_type=jnp.float32)                  # (nWb, N, hd) f32
        head_outs.append(o.reshape(nWb * N, hd).astype(jnp.bfloat16))

    o_all = jnp.concatenate(head_outs, axis=-1)                             # (nWb*N, C) bf16
    out = jnp.dot(o_all, wproj_ref[...], preferred_element_type=jnp.float32) + bproj_ref[...]
    o_ref[...] = out.reshape(nWb, N, C).astype(o_ref.dtype)


def window_attention_pallas(xw, ln_g, ln_b, wqkv, relb, mask, wproj, bproj,
                            num_heads, scale, fuse_ln):
    B_, N, C = xw.shape
    hd = C // num_heads
    has_mask = mask is not None
    nW = mask.shape[0] if has_mask else B_
    nWb = _pick_window_batch(B_, nW)
    nblk = max(1, nW // nWb)
    kernel = functools.partial(_window_attn_kernel, num_heads=num_heads, scale=scale,
                               fuse_ln=fuse_ln, has_mask=has_mask)
    in_specs = [
        pl.BlockSpec((nWb, N, C), lambda i: (i, 0, 0)),
        pl.BlockSpec((1, C), lambda i: (0, 0)),
        pl.BlockSpec((1, C), lambda i: (0, 0)),
        pl.BlockSpec((C, 3 * C), lambda i: (0, 0)),
        pl.BlockSpec((num_heads, N, N), lambda i: (0, 0, 0)),
    ]
    args = [xw, ln_g.reshape(1, C), ln_b.reshape(1, C), wqkv.astype(jnp.bfloat16), relb]
    if has_mask:
        # Windows are B-major, so window-block i of the grid maps to mask block i % (nW // nWb):
        # no B-times-tiled mask is ever materialized or DMA'd.
        in_specs.append(pl.BlockSpec((nWb, N, N), lambda i: (i % nblk, 0, 0)))
        args.append(mask)
    in_specs += [pl.BlockSpec((C, C), lambda i: (0, 0)),
                 pl.BlockSpec((1, C), lambda i: (0, 0))]
    args += [wproj.astype(jnp.bfloat16), bproj.reshape(1, C)]

    M3 = B_ * N
    flops = 2 * M3 * C * 3 * C + 4 * B_ * num_heads * N * N * hd + 2 * M3 * C * C
    trans = B_ * num_heads * N * N + M3
    bytes_acc = 4 * 2 * M3 * C + 2 * (4 * C * C) + 4 * num_heads * N * N
    if has_mask:
        bytes_acc += 4 * nW * N * N

    return pl.pallas_call(
        kernel,
        out_shape=jax.ShapeDtypeStruct((B_, N, C), xw.dtype),
        grid=(B_ // nWb,),
        in_specs=in_specs,
        out_specs=pl.BlockSpec((nWb, N, C), lambda i: (i, 0, 0)),
        compiler_params=_cparams(),
        cost_estimate=_cost(flops, trans, bytes_acc),
    )(*args)


# --------------------------------------------------------------------------------------
# Plain-JAX reference primitives (same math, full f32, no Pallas) for correctness checking
# --------------------------------------------------------------------------------------
def concat_fc_ref(x2d, y2d, wx, wy, b):
    return x2d @ wx + y2d @ wy + b


def layernorm_ref(x2d, g, b):
    mu = jnp.mean(x2d, -1, keepdims=True)
    var = jnp.mean((x2d - mu) ** 2, -1, keepdims=True)
    return (x2d - mu) * lax.rsqrt(var + _LN_EPS) * g + b


def add_ln_mlp_res_ref(short2d, attn2d, g, b, w1, b1, w2, b2):
    x = short2d + attn2d
    xn = layernorm_ref(x, g, b)
    h = xn @ w1 + b1
    h = 0.5 * h * (1.0 + lax.erf(h * _SQRT1_2))
    return x + h @ w2 + b2


def window_attention_ref(xw, ln_g, ln_b, wqkv, relb, mask, wproj, bproj,
                         num_heads, scale, fuse_ln):
    B_, N, C = xw.shape
    hd = C // num_heads
    x = xw
    if fuse_ln:
        x = layernorm_ref(x.reshape(B_ * N, C), ln_g, ln_b).reshape(B_, N, C)
    qkv = (x.reshape(B_ * N, C) @ wqkv).reshape(B_, N, 3, num_heads, hd)
    q = jnp.transpose(qkv[:, :, 0], (0, 2, 1, 3)) * scale
    k = jnp.transpose(qkv[:, :, 1], (0, 2, 1, 3))
    v = jnp.transpose(qkv[:, :, 2], (0, 2, 1, 3))
    attn = jnp.einsum('bhnd,bhmd->bhnm', q, k) + relb[None]
    if mask is not None:
        nW = mask.shape[0]
        attn = attn.reshape(B_ // nW, nW, num_heads, N, N) + mask[None, :, None]
        attn = attn.reshape(B_, num_heads, N, N)
    attn = jax.nn.softmax(attn, axis=-1)
    out = jnp.einsum('bhnm,bhmd->bhnd', attn, v)
    out = jnp.transpose(out, (0, 2, 1, 3)).reshape(B_, N, C)
    return out @ wproj + bproj[None, None, :]


# --------------------------------------------------------------------------------------
# Glue (reshapes / rolls / window partition) shared by Pallas and reference paths
# --------------------------------------------------------------------------------------
def window_partition(x, ws):
    B, H, W, C = x.shape
    x = x.reshape(B, H // ws, ws, W // ws, ws, C)
    return x.transpose(0, 1, 3, 2, 4, 5).reshape(-1, ws, ws, C)


def window_reverse(windows, ws, H, W):
    B = windows.shape[0] // (H * W // ws // ws)
    x = windows.reshape(B, H // ws, W // ws, ws, ws, -1)
    return x.transpose(0, 1, 3, 2, 4, 5).reshape(B, H, W, -1)


def swin_block(x, bp, H, W, shift, attn_mask, ws, num_heads, scale, prims):
    ln_fn, attn_fn, add_ln_mlp_fn = prims
    B, L, C = x.shape
    shortcut = x
    pad_r = (ws - W % ws) % ws
    pad_b = (ws - H % ws) % ws
    if pad_r or pad_b:
        # Padded fallback: LN must run before zero-padding for exact reference semantics,
        # so it cannot be fused into the attention kernel on this path.
        xn = ln_fn(x.reshape(B * L, C), bp['ln1_g'], bp['ln1_b']).reshape(B, H, W, C)
        xn = jnp.pad(xn, ((0, 0), (0, pad_b), (0, pad_r), (0, 0)))
        fuse_ln = False
    else:
        xn = x.reshape(B, H, W, C)      # LN1 fused into the attention kernel
        fuse_ln = True
    Hp, Wp = H + pad_b, W + pad_r
    if shift > 0:
        shifted = jnp.roll(xn, shift=(-shift, -shift), axis=(1, 2))
        mask = attn_mask                # (nW, N, N), indexed modulo inside the kernel BlockSpec
    else:
        shifted = xn
        mask = None                     # no zero-mask DMA/add for shift=0 blocks
    # TODO(synk): fold window_partition / window_reverse (and the roll) into BlockSpec index_maps
    # to remove these XLA permutation passes between pallas_calls.
    xw = window_partition(shifted, ws).reshape(-1, ws * ws, C)
    aw = attn_fn(xw, bp['ln1_g'], bp['ln1_b'], bp['wqkv'], bp['relb'], mask,
                 bp['wproj'], bp['bproj'], num_heads, scale, fuse_ln)
    aw = aw.reshape(-1, ws, ws, C)
    sx = window_reverse(aw, ws, Hp, Wp)
    if shift > 0:
        sx = jnp.roll(sx, shift=(shift, shift), axis=(1, 2))
    if pad_r or pad_b:
        sx = sx[:, :H, :W, :]
    # Post-attention residual add + LN2 + MLP + residual fused into one Pallas kernel.
    x = add_ln_mlp_fn(shortcut.reshape(B * L, C), sx.reshape(B * L, C),
                      bp['ln2_g'], bp['ln2_b'], bp['w1'], bp['b1'],
                      bp['w2'], bp['b2']).reshape(B, L, C)
    return x


def decode_layer_forward(x, y, attn_mask, params, *, H, W, H1, W1, ws, num_heads, prims):
    concat_fc_fn, ln_fn, attn_fn, add_ln_mlp_fn = prims
    B = x.shape[0]
    # TODO(synk): optional `upsample` module (PatchExpand) not implemented; default config has upsample=None.
    if H1 != H or W1 != W:
        x = x.reshape(B, H, W, -1)[:, :H1, :W1, :].reshape(B, H1 * W1, -1)
        H, W = H1, W1
    C = x.shape[-1]
    L = H * W
    # merge_type == 'concat': concat along channels + fc(2C -> C), concat fused into the kernel
    x = concat_fc_fn(x.reshape(B * L, C), y.reshape(B * L, C),
                     params['fc_wx'], params['fc_wy'], params['fc_b']).reshape(B, L, C)
    shift = ws // 2
    scale = float((C // num_heads) ** -0.5)
    block_prims = (ln_fn, attn_fn, add_ln_mlp_fn)
    for i, bp in enumerate(params['blocks']):
        s = 0 if i % 2 == 0 else shift
        x = swin_block(x, bp, H, W, s, attn_mask, ws, num_heads, scale, block_prims)
    return x


# --------------------------------------------------------------------------------------
# Attention mask + relative position index (static, numpy) and parameter init
# --------------------------------------------------------------------------------------
def build_attn_mask(H, W, ws, shift):
    Hp = int(np.ceil(H / ws)) * ws
    Wp = int(np.ceil(W / ws)) * ws
    img_mask = np.zeros((1, Hp, Wp, 1), np.float32)
    h_slices = (slice(0, -ws), slice(-ws, -shift), slice(-shift, None))
    w_slices = (slice(0, -ws), slice(-ws, -shift), slice(-shift, None))
    cnt = 0
    for hs in h_slices:
        for wsl in w_slices:
            img_mask[:, hs, wsl, :] = cnt
            cnt += 1
    mw = img_mask.reshape(1, Hp // ws, ws, Wp // ws, ws, 1)
    mw = mw.transpose(0, 1, 3, 2, 4, 5).reshape(-1, ws * ws)
    am = mw[:, None, :] - mw[:, :, None]
    am = np.where(am != 0, np.float32(-100.0), np.float32(0.0)).astype(np.float32)
    return jnp.asarray(am)


def relative_position_index(ws):
    coords = np.stack(np.meshgrid(np.arange(ws), np.arange(ws), indexing='ij'))
    cf = coords.reshape(2, -1)
    rel = cf[:, :, None] - cf[:, None, :]
    rel = rel.transpose(1, 2, 0).copy()
    rel[:, :, 0] += ws - 1
    rel[:, :, 1] += ws - 1
    rel[:, :, 0] *= 2 * ws - 1
    return rel.sum(-1)  # (N, N)


def init_params(key, C, num_heads, ws, depth, mlp_ratio):
    N = ws * ws
    hidden = int(C * mlp_ratio)
    std = 0.1
    rel_idx = relative_position_index(ws)
    keys = jax.random.split(key, depth + 1)
    k0a, k0b = jax.random.split(keys[0])
    fc_w = std * jax.random.normal(k0a, (2 * C, C), jnp.float32)
    params = {
        'fc_wx': fc_w[:C], 'fc_wy': fc_w[C:],
        'fc_b': std * jax.random.normal(k0b, (C,), jnp.float32),
        'blocks': [],
    }
    for i in range(depth):
        bk = jax.random.split(keys[1 + i], 10)

        def w(k, shape):
            return std * jax.random.normal(k, shape, jnp.float32)

        table = 0.02 * jax.random.normal(bk[0], ((2 * ws - 1) ** 2, num_heads), jnp.float32)
        relb = table[jnp.asarray(rel_idx.reshape(-1))].reshape(N, N, num_heads)
        relb = jnp.transpose(relb, (2, 0, 1))                 # (nH, N, N)
        wq, wk, wv = w(bk[1], (C, C)), w(bk[2], (C, C)), w(bk[3], (C, C))
        bp = {
            'ln1_g': jnp.ones((C,), jnp.float32), 'ln1_b': jnp.zeros((C,), jnp.float32),
            'ln2_g': jnp.ones((C,), jnp.float32), 'ln2_b': jnp.zeros((C,), jnp.float32),
            'relb': relb,
            # fused QKV weight (C, 3C): columns = [q | k | v], head-major hd-chunks within each
            'wqkv': jnp.concatenate([wq, wk, wv], axis=1),
            'wproj': w(bk[4], (C, C)),
            'bproj': w(bk[5], (C,)),
            'w1': w(bk[6], (C, hidden)), 'b1': w(bk[7], (hidden,)),
            'w2': w(bk[8], (hidden, C)), 'b2': w(bk[9], (C,)),
        }
        params['blocks'].append(bp)
    return params


prims_pallas = (concat_fc_pallas, layernorm_pallas, window_attention_pallas, add_ln_mlp_res_pallas)
prims_ref = (concat_fc_ref, layernorm_ref, window_attention_ref, add_ln_mlp_res_ref)


# --------------------------------------------------------------------------------------
if __name__ == "__main__":
    B, H, W, C = 2, 8, 8, 32
    ws, num_heads, depth, mlp_ratio = 4, 4, 2, 4
    H1, W1 = H, W                      # upsample=None, skip connection at same resolution
    shift = ws // 2

    key = jax.random.PRNGKey(0)
    kx, ky, kp = jax.random.split(key, 3)
    x = jax.random.normal(kx, (B, H * W, C), jnp.float32)
    y = jax.random.normal(ky, (B, H1 * W1, C), jnp.float32)
    params = init_params(kp, C, num_heads, ws, depth, mlp_ratio)
    attn_mask = build_attn_mask(H1, W1, ws, shift)     # (nW, ws*ws, ws*ws)

    fwd = functools.partial(decode_layer_forward, H=H, W=W, H1=H1, W1=W1,
                            ws=ws, num_heads=num_heads)

    out = jax.jit(functools.partial(fwd, prims=prims_pallas))(x, y, attn_mask, params)
    out = jax.block_until_ready(out)

    ref = jax.jit(functools.partial(fwd, prims=prims_ref))(x, y, attn_mask, params)
    ref = jax.block_until_ready(ref)

    # Tolerance accounts for bf16 MXU operands (f32 accumulation) + approx softmax reciprocal
    # in the Pallas path vs the full-f32 reference.
    np.testing.assert_allclose(np.asarray(out), np.asarray(ref), rtol=5e-2, atol=5e-2)
    print("KERNEL_OK")
</pallas_src>

<mosaic_0001>
module attributes {stable_mosaic.version = 11 : i64} {
  func.func @_concat_fc_kernel(%arg0: i32, %arg1: memref<64x32xf32, #tpu.memory_space<vmem>>, %arg2: memref<64x32xf32, #tpu.memory_space<vmem>>, %arg3: memref<32x32xbf16, #tpu.memory_space<vmem>>, %arg4: memref<32x32xbf16, #tpu.memory_space<vmem>>, %arg5: memref<1x32xf32, #tpu.memory_space<vmem>>, %arg6: memref<64x32xf32, #tpu.memory_space<vmem>>) attributes {dimension_semantics = [#tpu.dimension_semantics<parallel>], iteration_bounds = array<i64: 2>, scalar_prefetch = 0 : i64, scratch_operands = 0 : i64, tpu.core_type = #tpu.core_type<tc>, window_params = [{transform_indices = @transform_0, window_bounds = array<i64: 64, 32>}, {transform_indices = @transform_1, window_bounds = array<i64: 64, 32>}, {pipeline_mode = #tpu.pipeline_mode<synchronous>, transform_indices = @transform_2, window_bounds = array<i64: 32, 32>}, {pipeline_mode = #tpu.pipeline_mode<synchronous>, transform_indices = @transform_3, window_bounds = array<i64: 32, 32>}, {pipeline_mode = #tpu.pipeline_mode<synchronous>, transform_indices = @transform_4, window_bounds = array<i64: 1, 32>}, {transform_indices = @transform_5, window_bounds = array<i64: 64, 32>}]} {
    %c0 = arith.constant 0 : index
    %c0_0 = arith.constant 0 : index
    %0 = vector.load %arg1[%c0, %c0_0] : memref<64x32xf32, #tpu.memory_space<vmem>>, vector<64x32xf32>
    %1 = arith.truncf %0 : vector<64x32xf32> to vector<64x32xbf16>
    %c0_1 = arith.constant 0 : index
    %c0_2 = arith.constant 0 : index
    %2 = vector.load %arg2[%c0_1, %c0_2] : memref<64x32xf32, #tpu.memory_space<vmem>>, vector<64x32xf32>
    %3 = arith.truncf %2 : vector<64x32xf32> to vector<64x32xbf16>
    %c0_3 = arith.constant 0 : index
    %c0_4 = arith.constant 0 : index
    %4 = vector.load %arg3[%c0_3, %c0_4] : memref<32x32xbf16, #tpu.memory_space<vmem>>, vector<32x32xbf16>
    %cst = arith.constant dense<0.000000e+00> : vector<64x32xf32>
    %5 = tpu.matmul %1, %4, %cst {dimension_numbers = #tpu.dot_dimension_numbers<[1], [0], [0], [1], [0, 0, 1, 1], [], []>} : vector<64x32xbf16>, vector<32x32xbf16>, vector<64x32xf32> -> vector<64x32xf32>
    %c0_5 = arith.constant 0 : index
    %c0_6 = arith.constant 0 : index
    %6 = vector.load %arg4[%c0_5, %c0_6] : memref<32x32xbf16, #tpu.memory_space<vmem>>, vector<32x32xbf16>
    %cst_7 = arith.constant dense<0.000000e+00> : vector<64x32xf32>
    %7 = tpu.matmul %3, %6, %cst_7 {dimension_numbers = #tpu.dot_dimension_numbers<[1], [0], [0], [1], [0, 0, 1, 1], [], []>} : vector<64x32xbf16>, vector<32x32xbf16>, vector<64x32xf32> -> vector<64x32xf32>
    %8 = arith.addf %5, %7 : vector<64x32xf32>
    %c0_8 = arith.constant 0 : index
    %c0_9 = arith.constant 0 : index
    %9 = vector.load %arg5[%c0_8, %c0_9] : memref<1x32xf32, #tpu.memory_space<vmem>>, vector<1x32xf32>
    %10 = vector.broadcast %9 : vector<1x32xf32> to vector<64x32xf32>
    %11 = arith.addf %8, %10 : vector<64x32xf32>
    %c0_10 = arith.constant 0 : index
    %c0_11 = arith.constant 0 : index
    %12 = vector.load %arg6[%c0_10, %c0_11] : memref<64x32xf32, #tpu.memory_space<vmem>>, vector<64x32xf32>
    tpu.vector_store %arg6[%c0_10, %c0_11], %11 {strides = array<i32>} : memref<64x32xf32, #tpu.memory_space<vmem>>, vector<64x32xf32>,
    return
  }
  func.func @transform_0(%arg0: i32) -> (i32, i32) {
    %c0_i32 = arith.constant 0 : i32
    %c0_i32_0 = arith.constant 0 : i32
    return %arg0, %c0_i32 : i32, i32
  }
  func.func @transform_1(%arg0: i32) -> (i32, i32) {
    %c0_i32 = arith.constant 0 : i32
    %c0_i32_0 = arith.constant 0 : i32
    return %arg0, %c0_i32 : i32, i32
  }
  func.func @transform_2(%arg0: i32) -> (i32, i32) {
    %c0_i32 = arith.constant 0 : i32
    %c0_i32_0 = arith.constant 0 : i32
    %c0_i32_1 = arith.constant 0 : i32
    return %c0_i32, %c0_i32_0 : i32, i32
  }
  func.func @transform_3(%arg0: i32) -> (i32, i32) {
    %c0_i32 = arith.constant 0 : i32
    %c0_i32_0 = arith.constant 0 : i32
    %c0_i32_1 = arith.constant 0 : i32
    return %c0_i32, %c0_i32_0 : i32, i32
  }
  func.func @transform_4(%arg0: i32) -> (i32, i32) {
    %c0_i32 = arith.constant 0 : i32
    %c0_i32_0 = arith.constant 0 : i32
    %c0_i32_1 = arith.constant 0 : i32
    return %c0_i32, %c0_i32_0 : i32, i32
  }
  func.func @transform_5(%arg0: i32) -> (i32, i32) {
    %c0_i32 = arith.constant 0 : i32
    %c0_i32_0 = arith.constant 0 : i32
    return %arg0, %c0_i32 : i32, i32
  }
}

module attributes {stable_mosaic.version = 11 : i64} {
  func.func @_add_ln_mlp_res_kernel(%arg0: i32, %arg1: memref<64x32xf32, #tpu.memory_space<vmem>>, %arg2: memref<64x32xf32, #tpu.memory_space<vmem>>, %arg3: memref<1x32xf32, #tpu.memory_space<vmem>>, %arg4: memref<1x32xf32, #tpu.memory_space<vmem>>, %arg5: memref<32x128xbf16, #tpu.memory_space<vmem>>, %arg6: memref<1x128xf32, #tpu.memory_space<vmem>>, %arg7: memref<128x32xbf16, #tpu.memory_space<vmem>>, %arg8: memref<1x32xf32, #tpu.memory_space<vmem>>, %arg9: memref<64x32xf32, #tpu.memory_space<vmem>>) attributes {dimension_semantics = [#tpu.dimension_semantics<parallel>], iteration_bounds = array<i64: 2>, scalar_prefetch = 0 : i64, scratch_operands = 0 : i64, tpu.core_type = #tpu.core_type<tc>, window_params = [{transform_indices = @transform_0, window_bounds = array<i64: 64, 32>}, {transform_indices = @transform_1, window_bounds = array<i64: 64, 32>}, {pipeline_mode = #tpu.pipeline_mode<synchronous>, transform_indices = @transform_2, window_bounds = array<i64: 1, 32>}, {pipeline_mode = #tpu.pipeline_mode<synchronous>, transform_indices = @transform_3, window_bounds = array<i64: 1, 32>}, {pipeline_mode = #tpu.pipeline_mode<synchronous>, transform_indices = @transform_4, window_bounds = array<i64: 32, 128>}, {pipeline_mode = #tpu.pipeline_mode<synchronous>, transform_indices = @transform_5, window_bounds = array<i64: 1, 128>}, {pipeline_mode = #tpu.pipeline_mode<synchronous>, transform_indices = @transform_6, window_bounds = array<i64: 128, 32>}, {pipeline_mode = #tpu.pipeline_mode<synchronous>, transform_indices = @transform_7, window_bounds = array<i64: 1, 32>}, {transform_indices = @transform_8, window_bounds = array<i64: 64, 32>}]} {
    %c0 = arith.constant 0 : index
    %c0_0 = arith.constant 0 : index
    %0 = vector.load %arg1[%c0, %c0_0] : memref<64x32xf32, #tpu.memory_space<vmem>>, vector<64x32xf32>
    %c0_1 = arith.constant 0 : index
    %c0_2 = arith.constant 0 : index
    %1 = vector.load %arg2[%c0_1, %c0_2] : memref<64x32xf32, #tpu.memory_space<vmem>>, vector<64x32xf32>
    %2 = arith.addf %0, %1 : vector<64x32xf32>
    %cst = arith.constant dense<0.000000e+00> : vector<64xf32>
    %3 = vector.multi_reduction <add>, %2, %cst [1] : vector<64x32xf32> to vector<64xf32>
    %4 = vector.shape_cast %3 : vector<64xf32> to vector<64x1xf32>
    %cst_3 = arith.constant 3.200000e+01 : f32
    %5 = vector.broadcast %cst_3 : f32 to vector<64x1xf32>
    %6 = arith.divf %4, %5 : vector<64x1xf32>
    %7 = vector.broadcast %6 : vector<64x1xf32> to vector<64x32xf32>
    %8 = arith.subf %2, %7 : vector<64x32xf32>
    %9 = arith.mulf %8, %8 : vector<64x32xf32>
    %cst_4 = arith.constant dense<0.000000e+00> : vector<64xf32>
    %10 = vector.multi_reduction <add>, %9, %cst_4 [1] : vector<64x32xf32> to vector<64xf32>
    %11 = vector.shape_cast %10 : vector<64xf32> to vector<64x1xf32>
    %cst_5 = arith.constant 3.200000e+01 : f32
    %12 = vector.broadcast %cst_5 : f32 to vector<64x1xf32>
    %13 = arith.divf %11, %12 : vector<64x1xf32>
    %14 = vector.broadcast %6 : vector<64x1xf32> to vector<64x32xf32>
    %15 = arith.subf %2, %14 : vector<64x32xf32>
    %cst_6 = arith.constant 9.99999974E-6 : f32
    %16 = vector.broadcast %cst_6 : f32 to vector<64x1xf32>
    %17 = arith.addf %13, %16 : vector<64x1xf32>
    %18 = math.rsqrt %17 : vector<64x1xf32>
    %19 = vector.broadcast %18 : vector<64x1xf32> to vector<64x32xf32>
    %20 = arith.mulf %15, %19 : vector<64x32xf32>
    %c0_7 = arith.constant 0 : index
    %c0_8 = arith.constant 0 : index
    %21 = vector.load %arg3[%c0_7, %c0_8] : memref<1x32xf32, #tpu.memory_space<vmem>>, vector<1x32xf32>
    %22 = vector.broadcast %21 : vector<1x32xf32> to vector<64x32xf32>
    %23 = arith.mulf %20, %22 : vector<64x32xf32>
    %c0_9 = arith.constant 0 : index
    %c0_10 = arith.constant 0 : index
    %24 = vector.load %arg4[%c0_9, %c0_10] : memref<1x32xf32, #tpu.memory_space<vmem>>, vector<1x32xf32>
    %25 = vector.broadcast %24 : vector<1x32xf32> to vector<64x32xf32>
    %26 = arith.addf %23, %25 : vector<64x32xf32>
    %27 = arith.truncf %26 : vector<64x32xf32> to vector<64x32xbf16>
    %c0_11 = arith.constant 0 : index
    %c0_12 = arith.constant 0 : index
    %28 = vector.load %arg5[%c0_11, %c0_12] : memref<32x128xbf16, #tpu.memory_space<vmem>>, vector<32x128xbf16>
    %cst_13 = arith.constant dense<0.000000e+00> : vector<64x128xf32>
    %29 = tpu.matmul %27, %28, %cst_13 {dimension_numbers = #tpu.dot_dimension_numbers<[1], [0], [0], [1], [0, 0, 1, 1], [], []>} : vector<64x32xbf16>, vector<32x128xbf16>, vector<64x128xf32> -> vector<64x128xf32>
    %c0_14 = arith.constant 0 : index
    %c0_15 = arith.constant 0 : index
    %30 = vector.load %arg6[%c0_14, %c0_15] : memref<1x128xf32, #tpu.memory_space<vmem>>, vector<1x128xf32>
    %31 = vector.broadcast %30 : vector<1x128xf32> to vector<64x128xf32>
    %32 = arith.addf %29, %31 : vector<64x128xf32>
    %cst_16 = arith.constant 5.000000e-01 : f32
    %33 = vector.broadcast %cst_16 : f32 to vector<64x128xf32>
    %34 = arith.mulf %33, %32 : vector<64x128xf32>
    %cst_17 = arith.constant 0.707106769 : f32
    %35 = vector.broadcast %cst_17 : f32 to vector<64x128xf32>
    %36 = arith.mulf %32, %35 : vector<64x128xf32>
    %37 = math.erf %36 : vector<64x128xf32>
    %cst_18 = arith.constant 1.000000e+00 : f32
    %38 = vector.broadcast %cst_18 : f32 to vector<64x128xf32>
    %39 = arith.addf %38, %37 : vector<64x128xf32>
    %40 = arith.mulf %34, %39 : vector<64x128xf32>
    %41 = arith.truncf %40 : vector<64x128xf32> to vector<64x128xbf16>
    %c0_19 = arith.constant 0 : index
    %c0_20 = arith.constant 0 : index
    %42 = vector.load %arg7[%c0_19, %c0_20] : memref<128x32xbf16, #tpu.memory_space<vmem>>, vector<128x32xbf16>
    %cst_21 = arith.constant dense<0.000000e+00> : vector<64x32xf32>
    %43 = tpu.matmul %41, %42, %cst_21 {dimension_numbers = #tpu.dot_dimension_numbers<[1], [0], [0], [1], [0, 0, 1, 1], [], []>} : vector<64x128xbf16>, vector<128x32xbf16>, vector<64x32xf32> -> vector<64x32xf32>
    %c0_22 = arith.constant 0 : index
    %c0_23 = arith.constant 0 : index
    %44 = vector.load %arg8[%c0_22, %c0_23] : memref<1x32xf32, #tpu.memory_space<vmem>>, vector<1x32xf32>
    %45 = vector.broadcast %44 : vector<1x32xf32> to vector<64x32xf32>
    %46 = arith.addf %43, %45 : vector<64x32xf32>
    %47 = arith.addf %2, %46 : vector<64x32xf32>
    %c0_24 = arith.constant 0 : index
    %c0_25 = arith.constant 0 : index
    %48 = vector.load %arg9[%c0_24, %c0_25] : memref<64x32xf32, #tpu.memory_space<vmem>>, vector<64x32xf32>
    tpu.vector_store %arg9[%c0_24, %c0_25], %47 {strides = array<i32>} : memref<64x32xf32, #tpu.memory_space<vmem>>, vector<64x32xf32>,
    return
  }
  func.func @transform_0(%arg0: i32) -> (i32, i32) {
    %c0_i32 = arith.constant 0 : i32
    %c0_i32_0 = arith.constant 0 : i32
    return %arg0, %c0_i32 : i32, i32
  }
  func.func @transform_1(%arg0: i32) -> (i32, i32) {
    %c0_i32 = arith.constant 0 : i32
    %c0_i32_0 = arith.constant 0 : i32
    return %arg0, %c0_i32 : i32, i32
  }
  func.func @transform_2(%arg0: i32) -> (i32, i32) {
    %c0_i32 = arith.constant 0 : i32
    %c0_i32_0 = arith.constant 0 : i32
    %c0_i32_1 = arith.constant 0 : i32
    return %c0_i32, %c0_i32_0 : i32, i32
  }
  func.func @transform_3(%arg0: i32) -> (i32, i32) {
    %c0_i32 = arith.constant 0 : i32
    %c0_i32_0 = arith.constant 0 : i32
    %c0_i32_1 = arith.constant 0 : i32
    return %c0_i32, %c0_i32_0 : i32, i32
  }
  func.func @transform_4(%arg0: i32) -> (i32, i32) {
    %c0_i32 = arith.constant 0 : i32
    %c0_i32_0 = arith.constant 0 : i32
    %c0_i32_1 = arith.constant 0 : i32
    return %c0_i32, %c0_i32_0 : i32, i32
  }
  func.func @transform_5(%arg0: i32) -> (i32, i32) {
    %c0_i32 = arith.constant 0 : i32
    %c0_i32_0 = arith.constant 0 : i32
    %c0_i32_1 = arith.constant 0 : i32
    return %c0_i32, %c0_i32_0 : i32, i32
  }
  func.func @transform_6(%arg0: i32) -> (i32, i32) {
    %c0_i32 = arith.constant 0 : i32
    %c0_i32_0 = arith.constant 0 : i32
    %c0_i32_1 = arith.constant 0 : i32
    return %c0_i32, %c0_i32_0 : i32, i32
  }
  func.func @transform_7(%arg0: i32) -> (i32, i32) {
    %c0_i32 = arith.constant 0 : i32
    %c0_i32_0 = arith.constant 0 : i32
    %c0_i32_1 = arith.constant 0 : i32
    return %c0_i32, %c0_i32_0 : i32, i32
  }
  func.func @transform_8(%arg0: i32) -> (i32, i32) {
    %c0_i32 = arith.constant 0 : i32
    %c0_i32_0 = arith.constant 0 : i32
    return %arg0, %c0_i32 : i32, i32
  }
}

module attributes {stable_mosaic.version = 11 : i64} {
  func.func @_window_attn_kernel(%arg0: i32, %arg1: memref<4x16x32xf32, #tpu.memory_space<vmem>>, %arg2: memref<1x32xf32, #tpu.memory_space<vmem>>, %arg3: memref<1x32xf32, #tpu.memory_space<vmem>>, %arg4: memref<32x96xbf16, #tpu.memory_space<vmem>>, %arg5: memref<4x16x16xf32, #tpu.memory_space<vmem>>, %arg6: memref<32x32xbf16, #tpu.memory_space<vmem>>, %arg7: memref<1x32xf32, #tpu.memory_space<vmem>>, %arg8: memref<4x16x32xf32, #tpu.memory_space<vmem>>) attributes {dimension_semantics = [#tpu.dimension_semantics<parallel>], iteration_bounds = array<i64: 2>, scalar_prefetch = 0 : i64, scratch_operands = 0 : i64, tpu.core_type = #tpu.core_type<tc>, window_params = [{transform_indices = @transform_0, window_bounds = array<i64: 4, 16, 32>}, {pipeline_mode = #tpu.pipeline_mode<synchronous>, transform_indices = @transform_1, window_bounds = array<i64: 1, 32>}, {pipeline_mode = #tpu.pipeline_mode<synchronous>, transform_indices = @transform_2, window_bounds = array<i64: 1, 32>}, {pipeline_mode = #tpu.pipeline_mode<synchronous>, transform_indices = @transform_3, window_bounds = array<i64: 32, 96>}, {pipeline_mode = #tpu.pipeline_mode<synchronous>, transform_indices = @transform_4, window_bounds = array<i64: 4, 16, 16>}, {pipeline_mode = #tpu.pipeline_mode<synchronous>, transform_indices = @transform_5, window_bounds = array<i64: 32, 32>}, {pipeline_mode = #tpu.pipeline_mode<synchronous>, transform_indices = @transform_6, window_bounds = array<i64: 1, 32>}, {transform_indices = @transform_7, window_bounds = array<i64: 4, 16, 32>}]} {
    %c0 = arith.constant 0 : index
    %c0_0 = arith.constant 0 : index
    %c0_1 = arith.constant 0 : index
    %0 = vector.load %arg1[%c0, %c0_0, %c0_1] : memref<4x16x32xf32, #tpu.memory_space<vmem>>, vector<4x16x32xf32>
    %1 = vector.shape_cast %0 : vector<4x16x32xf32> to vector<64x32xf32>
    %cst = arith.constant dense<0.000000e+00> : vector<64xf32>
    %2 = vector.multi_reduction <add>, %1, %cst [1] : vector<64x32xf32> to vector<64xf32>
    %3 = vector.shape_cast %2 : vector<64xf32> to vector<64x1xf32>
    %cst_2 = arith.constant 3.200000e+01 : f32
    %4 = vector.broadcast %cst_2 : f32 to vector<64x1xf32>
    %5 = arith.divf %3, %4 : vector<64x1xf32>
    %6 = vector.broadcast %5 : vector<64x1xf32> to vector<64x32xf32>
    %7 = arith.subf %1, %6 : vector<64x32xf32>
    %8 = arith.mulf %7, %7 : vector<64x32xf32>
    %cst_3 = arith.constant dense<0.000000e+00> : vector<64xf32>
    %9 = vector.multi_reduction <add>, %8, %cst_3 [1] : vector<64x32xf32> to vector<64xf32>
    %10 = vector.shape_cast %9 : vector<64xf32> to vector<64x1xf32>
    %cst_4 = arith.constant 3.200000e+01 : f32
    %11 = vector.broadcast %cst_4 : f32 to vector<64x1xf32>
    %12 = arith.divf %10, %11 : vector<64x1xf32>
    %13 = vector.broadcast %5 : vector<64x1xf32> to vector<64x32xf32>
    %14 = arith.subf %1, %13 : vector<64x32xf32>
    %cst_5 = arith.constant 9.99999974E-6 : f32
    %15 = vector.broadcast %cst_5 : f32 to vector<64x1xf32>
    %16 = arith.addf %12, %15 : vector<64x1xf32>
    %17 = math.rsqrt %16 : vector<64x1xf32>
    %18 = vector.broadcast %17 : vector<64x1xf32> to vector<64x32xf32>
    %19 = arith.mulf %14, %18 : vector<64x32xf32>
    %c0_6 = arith.constant 0 : index
    %c0_7 = arith.constant 0 : index
    %20 = vector.load %arg2[%c0_6, %c0_7] : memref<1x32xf32, #tpu.memory_space<vmem>>, vector<1x32xf32>
    %21 = vector.broadcast %20 : vector<1x32xf32> to vector<64x32xf32>
    %22 = arith.mulf %19, %21 : vector<64x32xf32>
    %c0_8 = arith.constant 0 : index
    %c0_9 = arith.constant 0 : index
    %23 = vector.load %arg3[%c0_8, %c0_9] : memref<1x32xf32, #tpu.memory_space<vmem>>, vector<1x32xf32>
    %24 = vector.broadcast %23 : vector<1x32xf32> to vector<64x32xf32>
    %25 = arith.addf %22, %24 : vector<64x32xf32>
    %26 = arith.truncf %25 : vector<64x32xf32> to vector<64x32xbf16>
    %c0_10 = arith.constant 0 : index
    %c0_11 = arith.constant 0 : index
    %27 = vector.load %arg4[%c0_10, %c0_11] : memref<32x96xbf16, #tpu.memory_space<vmem>>, vector<32x96xbf16>
    %cst_12 = arith.constant dense<0.000000e+00> : vector<64x96xf32>
    %28 = tpu.matmul %26, %27, %cst_12 {dimension_numbers = #tpu.dot_dimension_numbers<[1], [0], [0], [1], [0, 0, 1, 1], [], []>} : vector<64x32xbf16>, vector<32x96xbf16>, vector<64x96xf32> -> vector<64x96xf32>
    %29 = vector.extract_strided_slice %28 {offsets = [0, 0], sizes = [64, 8], strides = [1, 1]} : vector<64x96xf32> to vector<64x8xf32>
    %30 = vector.shape_cast %29 : vector<64x8xf32> to vector<4x16x8xf32>
    %31 = arith.truncf %30 : vector<4x16x8xf32> to vector<4x16x8xbf16>
    %32 = vector.extract_strided_slice %28 {offsets = [0, 32], sizes = [64, 8], strides = [1, 1]} : vector<64x96xf32> to vector<64x8xf32>
    %33 = vector.shape_cast %32 : vector<64x8xf32> to vector<4x16x8xf32>
    %34 = arith.truncf %33 : vector<4x16x8xf32> to vector<4x16x8xbf16>
    %35 = vector.extract_strided_slice %28 {offsets = [0, 64], sizes = [64, 8], strides = [1, 1]} : vector<64x96xf32> to vector<64x8xf32>
    %36 = vector.shape_cast %35 : vector<64x8xf32> to vector<4x16x8xf32>
    %37 = arith.truncf %36 : vector<4x16x8xf32> to vector<4x16x8xbf16>
    "tpu.trace_start"() <{level = 10 : i32, message = "bnd,bmd->bnm"}> : () -> ()
    %cst_13 = arith.constant dense<0.000000e+00> : vector<4x16x16xf32>
    %38 = tpu.matmul %31, %34, %cst_13 {dimension_numbers = #tpu.dot_dimension_numbers<[2], [2], [1], [1], [0, 0, 0, 1, 1, 1], [0], [0]>} : vector<4x16x8xbf16>, vector<4x16x8xbf16>, vector<4x16x16xf32> -> vector<4x16x16xf32>
    "tpu.trace_stop"() : () -> ()
    %cst_14 = arith.constant 0.353553385 : f32
    %39 = vector.broadcast %cst_14 : f32 to vector<4x16x16xf32>
    %40 = arith.mulf %38, %39 : vector<4x16x16xf32>
    %c0_15 = arith.constant 0 : index
    %c0_16 = arith.constant 0 : index
    %c0_17 = arith.constant 0 : index
    %41 = vector.load %arg5[%c0_15, %c0_16, %c0_17] : memref<4x16x16xf32, #tpu.memory_space<vmem>>, vector<1x16x16xf32>
    %42 = vector.shape_cast %41 : vector<1x16x16xf32> to vector<16x16xf32>
    %43 = vector.shape_cast %42 : vector<16x16xf32> to vector<1x16x16xf32>
    %44 = vector.broadcast %43 : vector<1x16x16xf32> to vector<4x16x16xf32>
    %45 = arith.addf %40, %44 : vector<4x16x16xf32>
    %cst_18 = arith.constant dense<0xFF800000> : vector<4x16xf32>
    %46 = vector.multi_reduction <maximumf>, %45, %cst_18 [2] : vector<4x16x16xf32> to vector<4x16xf32>
    %47 = vector.shape_cast %46 : vector<4x16xf32> to vector<4x16x1xf32>
    %48 = vector.broadcast %47 : vector<4x16x1xf32> to vector<4x16x16xf32>
    %49 = arith.subf %45, %48 : vector<4x16x16xf32>
    %50 = math.exp %49 : vector<4x16x16xf32>
    %cst_19 = arith.constant dense<0.000000e+00> : vector<4x16xf32>
    %51 = vector.multi_reduction <add>, %50, %cst_19 [2] : vector<4x16x16xf32> to vector<4x16xf32>
    %52 = vector.shape_cast %51 : vector<4x16xf32> to vector<4x16x1xf32>
    %53 = tpu.reciprocal %52 {approx = true} : vector<4x16x1xf32> -> vector<4x16x1xf32>
    %54 = vector.broadcast %53 : vector<4x16x1xf32> to vector<4x16x16xf32>
    %55 = arith.mulf %50, %54 : vector<4x16x16xf32>
    %56 = arith.truncf %55 : vector<4x16x16xf32> to vector<4x16x16xbf16>
    "tpu.trace_start"() <{level = 10 : i32, message = "bnm,bmd->bnd"}> : () -> ()
    %cst_20 = arith.constant dense<0.000000e+00> : vector<4x16x8xf32>
    %57 = tpu.matmul %56, %37, %cst_20 {dimension_numbers = #tpu.dot_dimension_numbers<[2], [1], [1], [2], [0, 0, 0, 1, 1, 2], [0], [0]>} : vector<4x16x16xbf16>, vector<4x16x8xbf16>, vector<4x16x8xf32> -> vector<4x16x8xf32>
    "tpu.trace_stop"() : () -> ()
    %58 = vector.shape_cast %57 : vector<4x16x8xf32> to vector<64x8xf32>
    %59 = arith.truncf %58 : vector<64x8xf32> to vector<64x8xbf16>
    %60 = vector.extract_strided_slice %28 {offsets = [0, 8], sizes = [64, 8], strides = [1, 1]} : vector<64x96xf32> to vector<64x8xf32>
    %61 = vector.shape_cast %60 : vector<64x8xf32> to vector<4x16x8xf32>
    %62 = arith.truncf %61 : vector<4x16x8xf32> to vector<4x16x8xbf16>
    %63 = vector.extract_strided_slice %28 {offsets = [0, 40], sizes = [64, 8], strides = [1, 1]} : vector<64x96xf32> to vector<64x8xf32>
    %64 = vector.shape_cast %63 : vector<64x8xf32> to vector<4x16x8xf32>
    %65 = arith.truncf %64 : vector<4x16x8xf32> to vector<4x16x8xbf16>
    %66 = vector.extract_strided_slice %28 {offsets = [0, 72], sizes = [64, 8], strides = [1, 1]} : vector<64x96xf32> to vector<64x8xf32>
    %67 = vector.shape_cast %66 : vector<64x8xf32> to vector<4x16x8xf32>
    %68 = arith.truncf %67 : vector<4x16x8xf32> to vector<4x16x8xbf16>
    "tpu.trace_start"() <{level = 10 : i32, message = "bnd,bmd->bnm"}> : () -> ()
    %cst_21 = arith.constant dense<0.000000e+00> : vector<4x16x16xf32>
    %69 = tpu.matmul %62, %65, %cst_21 {dimension_numbers = #tpu.dot_dimension_numbers<[2], [2], [1], [1], [0, 0, 0, 1, 1, 1], [0], [0]>} : vector<4x16x8xbf16>, vector<4x16x8xbf16>, vector<4x16x16xf32> -> vector<4x16x16xf32>
    "tpu.trace_stop"() : () -> ()
    %cst_22 = arith.constant 0.353553385 : f32
    %70 = vector.broadcast %cst_22 : f32 to vector<4x16x16xf32>
    %71 = arith.mulf %69, %70 : vector<4x16x16xf32>
    %c1 = arith.constant 1 : index
    %c0_23 = arith.constant 0 : index
    %c0_24 = arith.constant 0 : index
    %72 = vector.load %arg5[%c1, %c0_23, %c0_24] : memref<4x16x16xf32, #tpu.memory_space<vmem>>, vector<1x16x16xf32>
    %73 = vector.shape_cast %72 : vector<1x16x16xf32> to vector<16x16xf32>
    %74 = vector.shape_cast %73 : vector<16x16xf32> to vector<1x16x16xf32>
    %75 = vector.broadcast %74 : vector<1x16x16xf32> to vector<4x16x16xf32>
    %76 = arith.addf %71, %75 : vector<4x16x16xf32>
    %cst_25 = arith.constant dense<0xFF800000> : vector<4x16xf32>
    %77 = vector.multi_reduction <maximumf>, %76, %cst_25 [2] : vector<4x16x16xf32> to vector<4x16xf32>
    %78 = vector.shape_cast %77 : vector<4x16xf32> to vector<4x16x1xf32>
    %79 = vector.broadcast %78 : vector<4x16x1xf32> to vector<4x16x16xf32>
    %80 = arith.subf %76, %79 : vector<4x16x16xf32>
    %81 = math.exp %80 : vector<4x16x16xf32>
    %cst_26 = arith.constant dense<0.000000e+00> : vector<4x16xf32>
    %82 = vector.multi_reduction <add>, %81, %cst_26 [2] : vector<4x16x16xf32> to vector<4x16xf32>
    %83 = vector.shape_cast %82 : vector<4x16xf32> to vector<4x16x1xf32>
    %84 = tpu.reciprocal %83 {approx = true} : vector<4x16x1xf32> -> vector<4x16x1xf32>
    %85 = vector.broadcast %84 : vector<4x16x1xf32> to vector<4x16x16xf32>
    %86 = arith.mulf %81, %85 : vector<4x16x16xf32>
    %87 = arith.truncf %86 : vector<4x16x16xf32> to vector<4x16x16xbf16>
    "tpu.trace_start"() <{level = 10 : i32, message = "bnm,bmd->bnd"}> : () -> ()
    %cst_27 = arith.constant dense<0.000000e+00> : vector<4x16x8xf32>
    %88 = tpu.matmul %87, %68, %cst_27 {dimension_numbers = #tpu.dot_dimension_numbers<[2], [1], [1], [2], [0, 0, 0, 1, 1, 2], [0], [0]>} : vector<4x16x16xbf16>, vector<4x16x8xbf16>, vector<4x16x8xf32> -> vector<4x16x8xf32>
    "tpu.trace_stop"() : () -> ()
    %89 = vector.shape_cast %88 : vector<4x16x8xf32> to vector<64x8xf32>
    %90 = arith.truncf %89 : vector<64x8xf32> to vector<64x8xbf16>
    %91 = vector.extract_strided_slice %28 {offsets = [0, 16], sizes = [64, 8], strides = [1, 1]} : vector<64x96xf32> to vector<64x8xf32>
    %92 = vector.shape_cast %91 : vector<64x8xf32> to vector<4x16x8xf32>
    %93 = arith.truncf %92 : vector<4x16x8xf32> to vector<4x16x8xbf16>
    %94 = vector.extract_strided_slice %28 {offsets = [0, 48], sizes = [64, 8], strides = [1, 1]} : vector<64x96xf32> to vector<64x8xf32>
    %95 = vector.shape_cast %94 : vector<64x8xf32> to vector<4x16x8xf32>
    %96 = arith.truncf %95 : vector<4x16x8xf32> to vector<4x16x8xbf16>
    %97 = vector.extract_strided_slice %28 {offsets = [0, 80], sizes = [64, 8], strides = [1, 1]} : vector<64x96xf32> to vector<64x8xf32>
    %98 = vector.shape_cast %97 : vector<64x8xf32> to vector<4x16x8xf32>
    %99 = arith.truncf %98 : vector<4x16x8xf32> to vector<4x16x8xbf16>
    "tpu.trace_start"() <{level = 10 : i32, message = "bnd,bmd->bnm"}> : () -> ()
    %cst_28 = arith.constant dense<0.000000e+00> : vector<4x16x16xf32>
    %100 = tpu.matmul %93, %96, %cst_28 {dimension_numbers = #tpu.dot_dimension_numbers<[2], [2], [1], [1], [0, 0, 0, 1, 1, 1], [0], [0]>} : vector<4x16x8xbf16>, vector<4x16x8xbf16>, vector<4x16x16xf32> -> vector<4x16x16xf32>
    "tpu.trace_stop"() : () -> ()
    %cst_29 = arith.constant 0.353553385 : f32
    %101 = vector.broadcast %cst_29 : f32 to vector<4x16x16xf32>
    %102 = arith.mulf %100, %101 : vector<4x16x16xf32>
    %c2 = arith.constant 2 : index
    %c0_30 = arith.constant 0 : index
    %c0_31 = arith.constant 0 : index
    %103 = vector.load %arg5[%c2, %c0_30, %c0_31] : memref<4x16x16xf32, #tpu.memory_space<vmem>>, vector<1x16x16xf32>
    %104 = vector.shape_cast %103 : vector<1x16x16xf32> to vector<16x16xf32>
    %105 = vector.shape_cast %104 : vector<16x16xf32> to vector<1x16x16xf32>
    %106 = vector.broadcast %105 : vector<1x16x16xf32> to vector<4x16x16xf32>
    %107 = arith.addf %102, %106 : vector<4x16x16xf32>
    %cst_32 = arith.constant dense<0xFF800000> : vector<4x16xf32>
    %108 = vector.multi_reduction <maximumf>, %107, %cst_32 [2] : vector<4x16x16xf32> to vector<4x16xf32>
    %109 = vector.shape_cast %108 : vector<4x16xf32> to vector<4x16x1xf32>
    %110 = vector.broadcast %109 : vector<4x16x1xf32> to vector<4x16x16xf32>
    %111 = arith.subf %107, %110 : vector<4x16x16xf32>
    %112 = math.exp %111 : vector<4x16x16xf32>
    %cst_33 = arith.constant dense<0.000000e+00> : vector<4x16xf32>
    %113 = vector.multi_reduction <add>, %112, %cst_33 [2] : vector<4x16x16xf32> to vector<4x16xf32>
    %114 = vector.shape_cast %113 : vector<4x16xf32> to vector<4x16x1xf32>
    %115 = tpu.reciprocal %114 {approx = true} : vector<4x16x1xf32> -> vector<4x16x1xf32>
    %116 = vector.broadcast %115 : vector<4x16x1xf32> to vector<4x16x16xf32>
    %117 = arith.mulf %112, %116 : vector<4x16x16xf32>
    %118 = arith.truncf %117 : vector<4x16x16xf32> to vector<4x16x16xbf16>
    "tpu.trace_start"() <{level = 10 : i32, message = "bnm,bmd->bnd"}> : () -> ()
    %cst_34 = arith.constant dense<0.000000e+00> : vector<4x16x8xf32>
    %119 = tpu.matmul %118, %99, %cst_34 {dimension_numbers = #tpu.dot_dimension_numbers<[2], [1], [1], [2], [0, 0, 0, 1, 1, 2], [0], [0]>} : vector<4x16x16xbf16>, vector<4x16x8xbf16>, vector<4x16x8xf32> -> vector<4x16x8xf32>
    "tpu.trace_stop"() : () -> ()
    %120 = vector.shape_cast %119 : vector<4x16x8xf32> to vector<64x8xf32>
    %121 = arith.truncf %120 : vector<64x8xf32> to vector<64x8xbf16>
    %122 = vector.extract_strided_slice %28 {offsets = [0, 24], sizes = [64, 8], strides = [1, 1]} : vector<64x96xf32> to vector<64x8xf32>
    %123 = vector.shape_cast %122 : vector<64x8xf32> to vector<4x16x8xf32>
    %124 = arith.truncf %123 : vector<4x16x8xf32> to vector<4x16x8xbf16>
    %125 = vector.extract_strided_slice %28 {offsets = [0, 56], sizes = [64, 8], strides = [1, 1]} : vector<64x96xf32> to vector<64x8xf32>
    %126 = vector.shape_cast %125 : vector<64x8xf32> to vector<4x16x8xf32>
    %127 = arith.truncf %126 : vector<4x16x8xf32> to vector<4x16x8xbf16>
    %128 = vector.extract_strided_slice %28 {offsets = [0, 88], sizes = [64, 8], strides = [1, 1]} : vector<64x96xf32> to vector<64x8xf32>
    %129 = vector.shape_cast %128 : vector<64x8xf32> to vector<4x16x8xf32>
    %130 = arith.truncf %129 : vector<4x16x8xf32> to vector<4x16x8xbf16>
    "tpu.trace_start"() <{level = 10 : i32, message = "bnd,bmd->bnm"}> : () -> ()
    %cst_35 = arith.constant dense<0.000000e+00> : vector<4x16x16xf32>
    %131 = tpu.matmul %124, %127, %cst_35 {dimension_numbers = #tpu.dot_dimension_numbers<[2], [2], [1], [1], [0, 0, 0, 1, 1, 1], [0], [0]>} : vector<4x16x8xbf16>, vector<4x16x8xbf16>, vector<4x16x16xf32> -> vector<4x16x16xf32>
    "tpu.trace_stop"() : () -> ()
    %cst_36 = arith.constant 0.353553385 : f32
    %132 = vector.broadcast %cst_36 : f32 to vector<4x16x16xf32>
    %133 = arith.mulf %131, %132 : vector<4x16x16xf32>
    %c3 = arith.constant 3 : index
    %c0_37 = arith.constant 0 : index
    %c0_38 = arith.constant 0 : index
    %134 = vector.load %arg5[%c3, %c0_37, %c0_38] : memref<4x16x16xf32, #tpu.memory_space<vmem>>, vector<1x16x16xf32>
    %135 = vector.shape_cast %134 : vector<1x16x16xf32> to vector<16x16xf32>
    %136 = vector.shape_cast %135 : vector<16x16xf32> to vector<1x16x16xf32>
    %137 = vector.broadcast %136 : vector<1x16x16xf32> to vector<4x16x16xf32>
    %138 = arith.addf %133, %137 : vector<4x16x16xf32>
    %cst_39 = arith.constant dense<0xFF800000> : vector<4x16xf32>
    %139 = vector.multi_reduction <maximumf>, %138, %cst_39 [2] : vector<4x16x16xf32> to vector<4x16xf32>
    %140 = vector.shape_cast %139 : vector<4x16xf32> to vector<4x16x1xf32>
    %141 = vector.broadcast %140 : vector<4x16x1xf32> to vector<4x16x16xf32>
    %142 = arith.subf %138, %141 : vector<4x16x16xf32>
    %143 = math.exp %142 : vector<4x16x16xf32>
    %cst_40 = arith.constant dense<0.000000e+00> : vector<4x16xf32>
    %144 = vector.multi_reduction <add>, %143, %cst_40 [2] : vector<4x16x16xf32> to vector<4x16xf32>
    %145 = vector.shape_cast %144 : vector<4x16xf32> to vector<4x16x1xf32>
    %146 = tpu.reciprocal %145 {approx = true} : vector<4x16x1xf32> -> vector<4x16x1xf32>
    %147 = vector.broadcast %146 : vector<4x16x1xf32> to vector<4x16x16xf32>
    %148 = arith.mulf %143, %147 : vector<4x16x16xf32>
    %149 = arith.truncf %148 : vector<4x16x16xf32> to vector<4x16x16xbf16>
    "tpu.trace_start"() <{level = 10 : i32, message = "bnm,bmd->bnd"}> : () -> ()
    %cst_41 = arith.constant dense<0.000000e+00> : vector<4x16x8xf32>
    %150 = tpu.matmul %149, %130, %cst_41 {dimension_numbers = #tpu.dot_dimension_numbers<[2], [1], [1], [2], [0, 0, 0, 1, 1, 2], [0], [0]>} : vector<4x16x16xbf16>, vector<4x16x8xbf16>, vector<4x16x8xf32> -> vector<4x16x8xf32>
    "tpu.trace_stop"() : () -> ()
    %151 = vector.shape_cast %150 : vector<4x16x8xf32> to vector<64x8xf32>
    %152 = arith.truncf %151 : vector<64x8xf32> to vector<64x8xbf16>
    %153 = tpu.concatenate %59, %90, %121, %152 in 1 : vector<64x8xbf16>, vector<64x8xbf16>, vector<64x8xbf16>, vector<64x8xbf16> -> vector<64x32xbf16>
    %c0_42 = arith.constant 0 : index
    %c0_43 = arith.constant 0 : index
    %154 = vector.load %arg6[%c0_42, %c0_43] : memref<32x32xbf16, #tpu.memory_space<vmem>>, vector<32x32xbf16>
    %cst_44 = arith.constant dense<0.000000e+00> : vector<64x32xf32>
    %155 = tpu.matmul %153, %154, %cst_44 {dimension_numbers = #tpu.dot_dimension_numbers<[1], [0], [0], [1], [0, 0, 1, 1], [], []>} : vector<64x32xbf16>, vector<32x32xbf16>, vector<64x32xf32> -> vector<64x32xf32>
    %c0_45 = arith.constant 0 : index
    %c0_46 = arith.constant 0 : index
    %156 = vector.load %arg7[%c0_45, %c0_46] : memref<1x32xf32, #tpu.memory_space<vmem>>, vector<1x32xf32>
    %157 = vector.broadcast %156 : vector<1x32xf32> to vector<64x32xf32>
    %158 = arith.addf %155, %157 : vector<64x32xf32>
    %159 = vector.shape_cast %158 : vector<64x32xf32> to vector<4x16x32xf32>
    %c0_47 = arith.constant 0 : index
    %c0_48 = arith.constant 0 : index
    %c0_49 = arith.constant 0 : index
    %160 = vector.load %arg8[%c0_47, %c0_48, %c0_49] : memref<4x16x32xf32, #tpu.memory_space<vmem>>, vector<4x16x32xf32>
    tpu.vector_store %arg8[%c0_47, %c0_48, %c0_49], %159 {strides = array<i32>} : memref<4x16x32xf32, #tpu.memory_space<vmem>>, vector<4x16x32xf32>,
    return
  }
  func.func @transform_0(%arg0: i32) -> (i32, i32, i32) {
    %c0_i32 = arith.constant 0 : i32
    %c0_i32_0 = arith.constant 0 : i32
    %c0_i32_1 = arith.constant 0 : i32
    return %arg0, %c0_i32, %c0_i32_0 : i32, i32, i32
  }
  func.func @transform_1(%arg0: i32) -> (i32, i32) {
    %c0_i32 = arith.constant 0 : i32
    %c0_i32_0 = arith.constant 0 : i32
    %c0_i32_1 = arith.constant 0 : i32
    return %c0_i32, %c0_i32_0 : i32, i32
  }
  func.func @transform_2(%arg0: i32) -> (i32, i32) {
    %c0_i32 = arith.constant 0 : i32
    %c0_i32_0 = arith.constant 0 : i32
    %c0_i32_1 = arith.constant 0 : i32
    return %c0_i32, %c0_i32_0 : i32, i32
  }
  func.func @transform_3(%arg0: i32) -> (i32, i32) {
    %c0_i32 = arith.constant 0 : i32
    %c0_i32_0 = arith.constant 0 : i32
    %c0_i32_1 = arith.constant 0 : i32
    return %c0_i32, %c0_i32_0 : i32, i32
  }
  func.func @transform_4(%arg0: i32) -> (i32, i32, i32) {
    %c0_i32 = arith.constant 0 : i32
    %c0_i32_0 = arith.constant 0 : i32
    %c0_i32_1 = arith.constant 0 : i32
    %c0_i32_2 = arith.constant 0 : i32
    return %c0_i32, %c0_i32_0, %c0_i32_1 : i32, i32, i32
  }
  func.func @transform_5(%arg0: i32) -> (i32, i32) {
    %c0_i32 = arith.constant 0 : i32
    %c0_i32_0 = arith.constant 0 : i32
    %c0_i32_1 = arith.constant 0 : i32
    return %c0_i32, %c0_i32_0 : i32, i32
  }
  func.func @transform_6(%arg0: i32) -> (i32, i32) {
    %c0_i32 = arith.constant 0 : i32
    %c0_i32_0 = arith.constant 0 : i32
    %c0_i32_1 = arith.constant 0 : i32
    return %c0_i32, %c0_i32_0 : i32, i32
  }
  func.func @transform_7(%arg0: i32) -> (i32, i32, i32) {
    %c0_i32 = arith.constant 0 : i32
    %c0_i32_0 = arith.constant 0 : i32
    %c0_i32_1 = arith.constant 0 : i32
    return %arg0, %c0_i32, %c0_i32_0 : i32, i32, i32
  }
}

module attributes {stable_mosaic.version = 11 : i64} {
  func.func @_window_attn_kernel(%arg0: i32, %arg1: memref<4x16x32xf32, #tpu.memory_space<vmem>>, %arg2: memref<1x32xf32, #tpu.memory_space<vmem>>, %arg3: memref<1x32xf32, #tpu.memory_space<vmem>>, %arg4: memref<32x96xbf16, #tpu.memory_space<vmem>>, %arg5: memref<4x16x16xf32, #tpu.memory_space<vmem>>, %arg6: memref<4x16x16xf32, #tpu.memory_space<vmem>>, %arg7: memref<32x32xbf16, #tpu.memory_space<vmem>>, %arg8: memref<1x32xf32, #tpu.memory_space<vmem>>, %arg9: memref<4x16x32xf32, #tpu.memory_space<vmem>>) attributes {dimension_semantics = [#tpu.dimension_semantics<parallel>], iteration_bounds = array<i64: 2>, scalar_prefetch = 0 : i64, scratch_operands = 0 : i64, tpu.core_type = #tpu.core_type<tc>, window_params = [{transform_indices = @transform_0, window_bounds = array<i64: 4, 16, 32>}, {pipeline_mode = #tpu.pipeline_mode<synchronous>, transform_indices = @transform_1, window_bounds = array<i64: 1, 32>}, {pipeline_mode = #tpu.pipeline_mode<synchronous>, transform_indices = @transform_2, window_bounds = array<i64: 1, 32>}, {pipeline_mode = #tpu.pipeline_mode<synchronous>, transform_indices = @transform_3, window_bounds = array<i64: 32, 96>}, {pipeline_mode = #tpu.pipeline_mode<synchronous>, transform_indices = @transform_4, window_bounds = array<i64: 4, 16, 16>}, {transform_indices = @transform_5, window_bounds = array<i64: 4, 16, 16>}, {pipeline_mode = #tpu.pipeline_mode<synchronous>, transform_indices = @transform_6, window_bounds = array<i64: 32, 32>}, {pipeline_mode = #tpu.pipeline_mode<synchronous>, transform_indices = @transform_7, window_bounds = array<i64: 1, 32>}, {transform_indices = @transform_8, window_bounds = array<i64: 4, 16, 32>}]} {
    %c0 = arith.constant 0 : index
    %c0_0 = arith.constant 0 : index
    %c0_1 = arith.constant 0 : index
    %0 = vector.load %arg1[%c0, %c0_0, %c0_1] : memref<4x16x32xf32, #tpu.memory_space<vmem>>, vector<4x16x32xf32>
    %1 = vector.shape_cast %0 : vector<4x16x32xf32> to vector<64x32xf32>
    %cst = arith.constant dense<0.000000e+00> : vector<64xf32>
    %2 = vector.multi_reduction <add>, %1, %cst [1] : vector<64x32xf32> to vector<64xf32>
    %3 = vector.shape_cast %2 : vector<64xf32> to vector<64x1xf32>
    %cst_2 = arith.constant 3.200000e+01 : f32
    %4 = vector.broadcast %cst_2 : f32 to vector<64x1xf32>
    %5 = arith.divf %3, %4 : vector<64x1xf32>
    %6 = vector.broadcast %5 : vector<64x1xf32> to vector<64x32xf32>
    %7 = arith.subf %1, %6 : vector<64x32xf32>
    %8 = arith.mulf %7, %7 : vector<64x32xf32>
    %cst_3 = arith.constant dense<0.000000e+00> : vector<64xf32>
    %9 = vector.multi_reduction <add>, %8, %cst_3 [1] : vector<64x32xf32> to vector<64xf32>
    %10 = vector.shape_cast %9 : vector<64xf32> to vector<64x1xf32>
    %cst_4 = arith.constant 3.200000e+01 : f32
    %11 = vector.broadcast %cst_4 : f32 to vector<64x1xf32>
    %12 = arith.divf %10, %11 : vector<64x1xf32>
    %13 = vector.broadcast %5 : vector<64x1xf32> to vector<64x32xf32>
    %14 = arith.subf %1, %13 : vector<64x32xf32>
    %cst_5 = arith.constant 9.99999974E-6 : f32
    %15 = vector.broadcast %cst_5 : f32 to vector<64x1xf32>
    %16 = arith.addf %12, %15 : vector<64x1xf32>
    %17 = math.rsqrt %16 : vector<64x1xf32>
    %18 = vector.broadcast %17 : vector<64x1xf32> to vector<64x32xf32>
    %19 = arith.mulf %14, %18 : vector<64x32xf32>
    %c0_6 = arith.constant 0 : index
    %c0_7 = arith.constant 0 : index
    %20 = vector.load %arg2[%c0_6, %c0_7] : memref<1x32xf32, #tpu.memory_space<vmem>>, vector<1x32xf32>
    %21 = vector.broadcast %20 : vector<1x32xf32> to vector<64x32xf32>
    %22 = arith.mulf %19, %21 : vector<64x32xf32>
    %c0_8 = arith.constant 0 : index
    %c0_9 = arith.constant 0 : index
    %23 = vector.load %arg3[%c0_8, %c0_9] : memref<1x32xf32, #tpu.memory_space<vmem>>, vector<1x32xf32>
    %24 = vector.broadcast %23 : vector<1x32xf32> to vector<64x32xf32>
    %25 = arith.addf %22, %24 : vector<64x32xf32>
    %26 = arith.truncf %25 : vector<64x32xf32> to vector<64x32xbf16>
    %c0_10 = arith.constant 0 : index
    %c0_11 = arith.constant 0 : index
    %27 = vector.load %arg4[%c0_10, %c0_11] : memref<32x96xbf16, #tpu.memory_space<vmem>>, vector<32x96xbf16>
    %cst_12 = arith.constant dense<0.000000e+00> : vector<64x96xf32>
    %28 = tpu.matmul %26, %27, %cst_12 {dimension_numbers = #tpu.dot_dimension_numbers<[1], [0], [0], [1], [0, 0, 1, 1], [], []>} : vector<64x32xbf16>, vector<32x96xbf16>, vector<64x96xf32> -> vector<64x96xf32>
    %c0_13 = arith.constant 0 : index
    %c0_14 = arith.constant 0 : index
    %c0_15 = arith.constant 0 : index
    %29 = vector.load %arg6[%c0_13, %c0_14, %c0_15] : memref<4x16x16xf32, #tpu.memory_space<vmem>>, vector<4x16x16xf32>
    %30 = vector.extract_strided_slice %28 {offsets = [0, 0], sizes = [64, 8], strides = [1, 1]} : vector<64x96xf32> to vector<64x8xf32>
    %31 = vector.shape_cast %30 : vector<64x8xf32> to vector<4x16x8xf32>
    %32 = arith.truncf %31 : vector<4x16x8xf32> to vector<4x16x8xbf16>
    %33 = vector.extract_strided_slice %28 {offsets = [0, 32], sizes = [64, 8], strides = [1, 1]} : vector<64x96xf32> to vector<64x8xf32>
    %34 = vector.shape_cast %33 : vector<64x8xf32> to vector<4x16x8xf32>
    %35 = arith.truncf %34 : vector<4x16x8xf32> to vector<4x16x8xbf16>
    %36 = vector.extract_strided_slice %28 {offsets = [0, 64], sizes = [64, 8], strides = [1, 1]} : vector<64x96xf32> to vector<64x8xf32>
    %37 = vector.shape_cast %36 : vector<64x8xf32> to vector<4x16x8xf32>
    %38 = arith.truncf %37 : vector<4x16x8xf32> to vector<4x16x8xbf16>
    "tpu.trace_start"() <{level = 10 : i32, message = "bnd,bmd->bnm"}> : () -> ()
    %cst_16 = arith.constant dense<0.000000e+00> : vector<4x16x16xf32>
    %39 = tpu.matmul %32, %35, %cst_16 {dimension_numbers = #tpu.dot_dimension_numbers<[2], [2], [1], [1], [0, 0, 0, 1, 1, 1], [0], [0]>} : vector<4x16x8xbf16>, vector<4x16x8xbf16>, vector<4x16x16xf32> -> vector<4x16x16xf32>
    "tpu.trace_stop"() : () -> ()
    %cst_17 = arith.constant 0.353553385 : f32
    %40 = vector.broadcast %cst_17 : f32 to vector<4x16x16xf32>
    %41 = arith.mulf %39, %40 : vector<4x16x16xf32>
    %c0_18 = arith.constant 0 : index
    %c0_19 = arith.constant 0 : index
    %c0_20 = arith.constant 0 : index
    %42 = vector.load %arg5[%c0_18, %c0_19, %c0_20] : memref<4x16x16xf32, #tpu.memory_space<vmem>>, vector<1x16x16xf32>
    %43 = vector.shape_cast %42 : vector<1x16x16xf32> to vector<16x16xf32>
    %44 = vector.shape_cast %43 : vector<16x16xf32> to vector<1x16x16xf32>
    %45 = vector.broadcast %44 : vector<1x16x16xf32> to vector<4x16x16xf32>
    %46 = arith.addf %41, %45 : vector<4x16x16xf32>
    %47 = arith.addf %46, %29 : vector<4x16x16xf32>
    %cst_21 = arith.constant dense<0xFF800000> : vector<4x16xf32>
    %48 = vector.multi_reduction <maximumf>, %47, %cst_21 [2] : vector<4x16x16xf32> to vector<4x16xf32>
    %49 = vector.shape_cast %48 : vector<4x16xf32> to vector<4x16x1xf32>
    %50 = vector.broadcast %49 : vector<4x16x1xf32> to vector<4x16x16xf32>
    %51 = arith.subf %47, %50 : vector<4x16x16xf32>
    %52 = math.exp %51 : vector<4x16x16xf32>
    %cst_22 = arith.constant dense<0.000000e+00> : vector<4x16xf32>
    %53 = vector.multi_reduction <add>, %52, %cst_22 [2] : vector<4x16x16xf32> to vector<4x16xf32>
    %54 = vector.shape_cast %53 : vector<4x16xf32> to vector<4x16x1xf32>
    %55 = tpu.reciprocal %54 {approx = true} : vector<4x16x1xf32> -> vector<4x16x1xf32>
    %56 = vector.broadcast %55 : vector<4x16x1xf32> to vector<4x16x16xf32>
    %57 = arith.mulf %52, %56 : vector<4x16x16xf32>
    %58 = arith.truncf %57 : vector<4x16x16xf32> to vector<4x16x16xbf16>
    "tpu.trace_start"() <{level = 10 : i32, message = "bnm,bmd->bnd"}> : () -> ()
    %cst_23 = arith.constant dense<0.000000e+00> : vector<4x16x8xf32>
    %59 = tpu.matmul %58, %38, %cst_23 {dimension_numbers = #tpu.dot_dimension_numbers<[2], [1], [1], [2], [0, 0, 0, 1, 1, 2], [0], [0]>} : vector<4x16x16xbf16>, vector<4x16x8xbf16>, vector<4x16x8xf32> -> vector<4x16x8xf32>
    "tpu.trace_stop"() : () -> ()
    %60 = vector.shape_cast %59 : vector<4x16x8xf32> to vector<64x8xf32>
    %61 = arith.truncf %60 : vector<64x8xf32> to vector<64x8xbf16>
    %62 = vector.extract_strided_slice %28 {offsets = [0, 8], sizes = [64, 8], strides = [1, 1]} : vector<64x96xf32> to vector<64x8xf32>
    %63 = vector.shape_cast %62 : vector<64x8xf32> to vector<4x16x8xf32>
    %64 = arith.truncf %63 : vector<4x16x8xf32> to vector<4x16x8xbf16>
    %65 = vector.extract_strided_slice %28 {offsets = [0, 40], sizes = [64, 8], strides = [1, 1]} : vector<64x96xf32> to vector<64x8xf32>
    %66 = vector.shape_cast %65 : vector<64x8xf32> to vector<4x16x8xf32>
    %67 = arith.truncf %66 : vector<4x16x8xf32> to vector<4x16x8xbf16>
    %68 = vector.extract_strided_slice %28 {offsets = [0, 72], sizes = [64, 8], strides = [1, 1]} : vector<64x96xf32> to vector<64x8xf32>
    %69 = vector.shape_cast %68 : vector<64x8xf32> to vector<4x16x8xf32>
    %70 = arith.truncf %69 : vector<4x16x8xf32> to vector<4x16x8xbf16>
    "tpu.trace_start"() <{level = 10 : i32, message = "bnd,bmd->bnm"}> : () -> ()
    %cst_24 = arith.constant dense<0.000000e+00> : vector<4x16x16xf32>
    %71 = tpu.matmul %64, %67, %cst_24 {dimension_numbers = #tpu.dot_dimension_numbers<[2], [2], [1], [1], [0, 0, 0, 1, 1, 1], [0], [0]>} : vector<4x16x8xbf16>, vector<4x16x8xbf16>, vector<4x16x16xf32> -> vector<4x16x16xf32>
    "tpu.trace_stop"() : () -> ()
    %cst_25 = arith.constant 0.353553385 : f32
    %72 = vector.broadcast %cst_25 : f32 to vector<4x16x16xf32>
    %73 = arith.mulf %71, %72 : vector<4x16x16xf32>
    %c1 = arith.constant 1 : index
    %c0_26 = arith.constant 0 : index
    %c0_27 = arith.constant 0 : index
    %74 = vector.load %arg5[%c1, %c0_26, %c0_27] : memref<4x16x16xf32, #tpu.memory_space<vmem>>, vector<1x16x16xf32>
    %75 = vector.shape_cast %74 : vector<1x16x16xf32> to vector<16x16xf32>
    %76 = vector.shape_cast %75 : vector<16x16xf32> to vector<1x16x16xf32>
    %77 = vector.broadcast %76 : vector<1x16x16xf32> to vector<4x16x16xf32>
    %78 = arith.addf %73, %77 : vector<4x16x16xf32>
    %79 = arith.addf %78, %29 : vector<4x16x16xf32>
    %cst_28 = arith.constant dense<0xFF800000> : vector<4x16xf32>
    %80 = vector.multi_reduction <maximumf>, %79, %cst_28 [2] : vector<4x16x16xf32> to vector<4x16xf32>
    %81 = vector.shape_cast %80 : vector<4x16xf32> to vector<4x16x1xf32>
    %82 = vector.broadcast %81 : vector<4x16x1xf32> to vector<4x16x16xf32>
    %83 = arith.subf %79, %82 : vector<4x16x16xf32>
    %84 = math.exp %83 : vector<4x16x16xf32>
    %cst_29 = arith.constant dense<0.000000e+00> : vector<4x16xf32>
    %85 = vector.multi_reduction <add>, %84, %cst_29 [2] : vector<4x16x16xf32> to vector<4x16xf32>
    %86 = vector.shape_cast %85 : vector<4x16xf32> to vector<4x16x1xf32>
    %87 = tpu.reciprocal %86 {approx = true} : vector<4x16x1xf32> -> vector<4x16x1xf32>
    %88 = vector.broadcast %87 : vector<4x16x1xf32> to vector<4x16x16xf32>
    %89 = arith.mulf %84, %88 : vector<4x16x16xf32>
    %90 = arith.truncf %89 : vector<4x16x16xf32> to vector<4x16x16xbf16>
    "tpu.trace_start"() <{level = 10 : i32, message = "bnm,bmd->bnd"}> : () -> ()
    %cst_30 = arith.constant dense<0.000000e+00> : vector<4x16x8xf32>
    %91 = tpu.matmul %90, %70, %cst_30 {dimension_numbers = #tpu.dot_dimension_numbers<[2], [1], [1], [2], [0, 0, 0, 1, 1, 2], [0], [0]>} : vector<4x16x16xbf16>, vector<4x16x8xbf16>, vector<4x16x8xf32> -> vector<4x16x8xf32>
    "tpu.trace_stop"() : () -> ()
    %92 = vector.shape_cast %91 : vector<4x16x8xf32> to vector<64x8xf32>
    %93 = arith.truncf %92 : vector<64x8xf32> to vector<64x8xbf16>
    %94 = vector.extract_strided_slice %28 {offsets = [0, 16], sizes = [64, 8], strides = [1, 1]} : vector<64x96xf32> to vector<64x8xf32>
    %95 = vector.shape_cast %94 : vector<64x8xf32> to vector<4x16x8xf32>
    %96 = arith.truncf %95 : vector<4x16x8xf32> to vector<4x16x8xbf16>
    %97 = vector.extract_strided_slice %28 {offsets = [0, 48], sizes = [64, 8], strides = [1, 1]} : vector<64x96xf32> to vector<64x8xf32>
    %98 = vector.shape_cast %97 : vector<64x8xf32> to vector<4x16x8xf32>
    %99 = arith.truncf %98 : vector<4x16x8xf32> to vector<4x16x8xbf16>
    %100 = vector.extract_strided_slice %28 {offsets = [0, 80], sizes = [64, 8], strides = [1, 1]} : vector<64x96xf32> to vector<64x8xf32>
    %101 = vector.shape_cast %100 : vector<64x8xf32> to vector<4x16x8xf32>
    %102 = arith.truncf %101 : vector<4x16x8xf32> to vector<4x16x8xbf16>
    "tpu.trace_start"() <{level = 10 : i32, message = "bnd,bmd->bnm"}> : () -> ()
    %cst_31 = arith.constant dense<0.000000e+00> : vector<4x16x16xf32>
    %103 = tpu.matmul %96, %99, %cst_31 {dimension_numbers = #tpu.dot_dimension_numbers<[2], [2], [1], [1], [0, 0, 0, 1, 1, 1], [0], [0]>} : vector<4x16x8xbf16>, vector<4x16x8xbf16>, vector<4x16x16xf32> -> vector<4x16x16xf32>
    "tpu.trace_stop"() : () -> ()
    %cst_32 = arith.constant 0.353553385 : f32
    %104 = vector.broadcast %cst_32 : f32 to vector<4x16x16xf32>
    %105 = arith.mulf %103, %104 : vector<4x16x16xf32>
    %c2 = arith.constant 2 : index
    %c0_33 = arith.constant 0 : index
    %c0_34 = arith.constant 0 : index
    %106 = vector.load %arg5[%c2, %c0_33, %c0_34] : memref<4x16x16xf32, #tpu.memory_space<vmem>>, vector<1x16x16xf32>
    %107 = vector.shape_cast %106 : vector<1x16x16xf32> to vector<16x16xf32>
    %108 = vector.shape_cast %107 : vector<16x16xf32> to vector<1x16x16xf32>
    %109 = vector.broadcast %108 : vector<1x16x16xf32> to vector<4x16x16xf32>
    %110 = arith.addf %105, %109 : vector<4x16x16xf32>
    %111 = arith.addf %110, %29 : vector<4x16x16xf32>
    %cst_35 = arith.constant dense<0xFF800000> : vector<4x16xf32>
    %112 = vector.multi_reduction <maximumf>, %111, %cst_35 [2] : vector<4x16x16xf32> to vector<4x16xf32>
    %113 = vector.shape_cast %112 : vector<4x16xf32> to vector<4x16x1xf32>
    %114 = vector.broadcast %113 : vector<4x16x1xf32> to vector<4x16x16xf32>
    %115 = arith.subf %111, %114 : vector<4x16x16xf32>
    %116 = math.exp %115 : vector<4x16x16xf32>
    %cst_36 = arith.constant dense<0.000000e+00> : vector<4x16xf32>
    %117 = vector.multi_reduction <add>, %116, %cst_36 [2] : vector<4x16x16xf32> to vector<4x16xf32>
    %118 = vector.shape_cast %117 : vector<4x16xf32> to vector<4x16x1xf32>
    %119 = tpu.reciprocal %118 {approx = true} : vector<4x16x1xf32> -> vector<4x16x1xf32>
    %120 = vector.broadcast %119 : vector<4x16x1xf32> to vector<4x16x16xf32>
    %121 = arith.mulf %116, %120 : vector<4x16x16xf32>
    %122 = arith.truncf %121 : vector<4x16x16xf32> to vector<4x16x16xbf16>
    "tpu.trace_start"() <{level = 10 : i32, message = "bnm,bmd->bnd"}> : () -> ()
    %cst_37 = arith.constant dense<0.000000e+00> : vector<4x16x8xf32>
    %123 = tpu.matmul %122, %102, %cst_37 {dimension_numbers = #tpu.dot_dimension_numbers<[2], [1], [1], [2], [0, 0, 0, 1, 1, 2], [0], [0]>} : vector<4x16x16xbf16>, vector<4x16x8xbf16>, vector<4x16x8xf32> -> vector<4x16x8xf32>
    "tpu.trace_stop"() : () -> ()
    %124 = vector.shape_cast %123 : vector<4x16x8xf32> to vector<64x8xf32>
    %125 = arith.truncf %124 : vector<64x8xf32> to vector<64x8xbf16>
    %126 = vector.extract_strided_slice %28 {offsets = [0, 24], sizes = [64, 8], strides = [1, 1]} : vector<64x96xf32> to vector<64x8xf32>
    %127 = vector.shape_cast %126 : vector<64x8xf32> to vector<4x16x8xf32>
    %128 = arith.truncf %127 : vector<4x16x8xf32> to vector<4x16x8xbf16>
    %129 = vector.extract_strided_slice %28 {offsets = [0, 56], sizes = [64, 8], strides = [1, 1]} : vector<64x96xf32> to vector<64x8xf32>
    %130 = vector.shape_cast %129 : vector<64x8xf32> to vector<4x16x8xf32>
    %131 = arith.truncf %130 : vector<4x16x8xf32> to vector<4x16x8xbf16>
    %132 = vector.extract_strided_slice %28 {offsets = [0, 88], sizes = [64, 8], strides = [1, 1]} : vector<64x96xf32> to vector<64x8xf32>
    %133 = vector.shape_cast %132 : vector<64x8xf32> to vector<4x16x8xf32>
    %134 = arith.truncf %133 : vector<4x16x8xf32> to vector<4x16x8xbf16>
    "tpu.trace_start"() <{level = 10 : i32, message = "bnd,bmd->bnm"}> : () -> ()
    %cst_38 = arith.constant dense<0.000000e+00> : vector<4x16x16xf32>
    %135 = tpu.matmul %128, %131, %cst_38 {dimension_numbers = #tpu.dot_dimension_numbers<[2], [2], [1], [1], [0, 0, 0, 1, 1, 1], [0], [0]>} : vector<4x16x8xbf16>, vector<4x16x8xbf16>, vector<4x16x16xf32> -> vector<4x16x16xf32>
    "tpu.trace_stop"() : () -> ()
    %cst_39 = arith.constant 0.353553385 : f32
    %136 = vector.broadcast %cst_39 : f32 to vector<4x16x16xf32>
    %137 = arith.mulf %135, %136 : vector<4x16x16xf32>
    %c3 = arith.constant 3 : index
    %c0_40 = arith.constant 0 : index
    %c0_41 = arith.constant 0 : index
    %138 = vector.load %arg5[%c3, %c0_40, %c0_41] : memref<4x16x16xf32, #tpu.memory_space<vmem>>, vector<1x16x16xf32>
    %139 = vector.shape_cast %138 : vector<1x16x16xf32> to vector<16x16xf32>
    %140 = vector.shape_cast %139 : vector<16x16xf32> to vector<1x16x16xf32>
    %141 = vector.broadcast %140 : vector<1x16x16xf32> to vector<4x16x16xf32>
    %142 = arith.addf %137, %141 : vector<4x16x16xf32>
    %143 = arith.addf %142, %29 : vector<4x16x16xf32>
    %cst_42 = arith.constant dense<0xFF800000> : vector<4x16xf32>
    %144 = vector.multi_reduction <maximumf>, %143, %cst_42 [2] : vector<4x16x16xf32> to vector<4x16xf32>
    %145 = vector.shape_cast %144 : vector<4x16xf32> to vector<4x16x1xf32>
    %146 = vector.broadcast %145 : vector<4x16x1xf32> to vector<4x16x16xf32>
    %147 = arith.subf %143, %146 : vector<4x16x16xf32>
    %148 = math.exp %147 : vector<4x16x16xf32>
    %cst_43 = arith.constant dense<0.000000e+00> : vector<4x16xf32>
    %149 = vector.multi_reduction <add>, %148, %cst_43 [2] : vector<4x16x16xf32> to vector<4x16xf32>
    %150 = vector.shape_cast %149 : vector<4x16xf32> to vector<4x16x1xf32>
    %151 = tpu.reciprocal %150 {approx = true} : vector<4x16x1xf32> -> vector<4x16x1xf32>
    %152 = vector.broadcast %151 : vector<4x16x1xf32> to vector<4x16x16xf32>
    %153 = arith.mulf %148, %152 : vector<4x16x16xf32>
    %154 = arith.truncf %153 : vector<4x16x16xf32> to vector<4x16x16xbf16>
    "tpu.trace_start"() <{level = 10 : i32, message = "bnm,bmd->bnd"}> : () -> ()
    %cst_44 = arith.constant dense<0.000000e+00> : vector<4x16x8xf32>
    %155 = tpu.matmul %154, %134, %cst_44 {dimension_numbers = #tpu.dot_dimension_numbers<[2], [1], [1], [2], [0, 0, 0, 1, 1, 2], [0], [0]>} : vector<4x16x16xbf16>, vector<4x16x8xbf16>, vector<4x16x8xf32> -> vector<4x16x8xf32>
    "tpu.trace_stop"() : () -> ()
    %156 = vector.shape_cast %155 : vector<4x16x8xf32> to vector<64x8xf32>
    %157 = arith.truncf %156 : vector<64x8xf32> to vector<64x8xbf16>
    %158 = tpu.concatenate %61, %93, %125, %157 in 1 : vector<64x8xbf16>, vector<64x8xbf16>, vector<64x8xbf16>, vector<64x8xbf16> -> vector<64x32xbf16>
    %c0_45 = arith.constant 0 : index
    %c0_46 = arith.constant 0 : index
    %159 = vector.load %arg7[%c0_45, %c0_46] : memref<32x32xbf16, #tpu.memory_space<vmem>>, vector<32x32xbf16>
    %cst_47 = arith.constant dense<0.000000e+00> : vector<64x32xf32>
    %160 = tpu.matmul %158, %159, %cst_47 {dimension_numbers = #tpu.dot_dimension_numbers<[1], [0], [0], [1], [0, 0, 1, 1], [], []>} : vector<64x32xbf16>, vector<32x32xbf16>, vector<64x32xf32> -> vector<64x32xf32>
    %c0_48 = arith.constant 0 : index
    %c0_49 = arith.constant 0 : index
    %161 = vector.load %arg8[%c0_48, %c0_49] : memref<1x32xf32, #tpu.memory_space<vmem>>, vector<1x32xf32>
    %162 = vector.broadcast %161 : vector<1x32xf32> to vector<64x32xf32>
    %163 = arith.addf %160, %162 : vector<64x32xf32>
    %164 = vector.shape_cast %163 : vector<64x32xf32> to vector<4x16x32xf32>
    %c0_50 = arith.constant 0 : index
    %c0_51 = arith.constant 0 : index
    %c0_52 = arith.constant 0 : index
    %165 = vector.load %arg9[%c0_50, %c0_51, %c0_52] : memref<4x16x32xf32, #tpu.memory_space<vmem>>, vector<4x16x32xf32>
    tpu.vector_store %arg9[%c0_50, %c0_51, %c0_52], %164 {strides = array<i32>} : memref<4x16x32xf32, #tpu.memory_space<vmem>>, vector<4x16x32xf32>,
    return
  }
  func.func @transform_0(%arg0: i32) -> (i32, i32, i32) {
    %c0_i32 = arith.constant 0 : i32
    %c0_i32_0 = arith.constant 0 : i32
    %c0_i32_1 = arith.constant 0 : i32
    return %arg0, %c0_i32, %c0_i32_0 : i32, i32, i32
  }
  func.func @transform_1(%arg0: i32) -> (i32, i32) {
    %c0_i32 = arith.constant 0 : i32
    %c0_i32_0 = arith.constant 0 : i32
    %c0_i32_1 = arith.constant 0 : i32
    return %c0_i32, %c0_i32_0 : i32, i32
  }
  func.func @transform_2(%arg0: i32) -> (i32, i32) {
    %c0_i32 = arith.constant 0 : i32
    %c0_i32_0 = arith.constant 0 : i32
    %c0_i32_1 = arith.constant 0 : i32
    return %c0_i32, %c0_i32_0 : i32, i32
  }
  func.func @transform_3(%arg0: i32) -> (i32, i32) {
    %c0_i32 = arith.constant 0 : i32
    %c0_i32_0 = arith.constant 0 : i32
    %c0_i32_1 = arith.constant 0 : i32
    return %c0_i32, %c0_i32_0 : i32, i32
  }
  func.func @transform_4(%arg0: i32) -> (i32, i32, i32) {
    %c0_i32 = arith.constant 0 : i32
    %c0_i32_0 = arith.constant 0 : i32
    %c0_i32_1 = arith.constant 0 : i32
    %c0_i32_2 = arith.constant 0 : i32
    return %c0_i32, %c0_i32_0, %c0_i32_1 : i32, i32, i32
  }
  func.func @transform_5(%arg0: i32) -> (i32, i32, i32) {
    %c1_i32 = arith.constant 1 : i32
    %c0_i32 = arith.constant 0 : i32
    %0 = arith.cmpi eq, %c1_i32, %c0_i32 : i32
    %c1_i32_0 = arith.constant 1 : i32
    %1 = arith.select %0, %c1_i32_0, %c1_i32 : i32
    %2 = arith.remsi %arg0, %1 : i32
    %c0_i32_1 = arith.constant 0 : i32
    %3 = arith.cmpi ne, %2, %c0_i32_1 : i32
    %c0_i32_2 = arith.constant 0 : i32
    %4 = arith.cmpi slt, %2, %c0_i32_2 : i32
    %c0_i32_3 = arith.constant 0 : i32
    %5 = arith.cmpi slt, %1, %c0_i32_3 : i32
    %6 = arith.xori %4, %5 : i1
    %7 = arith.andi %6, %3 : i1
    %8 = arith.addi %2, %1 : i32
    %9 = arith.select %7, %8, %2 : i32
    %c0_i32_4 = arith.constant 0 : i32
    %c0_i32_5 = arith.constant 0 : i32
    %c0_i32_6 = arith.constant 0 : i32
    return %9, %c0_i32_4, %c0_i32_5 : i32, i32, i32
  }
  func.func @transform_6(%arg0: i32) -> (i32, i32) {
    %c0_i32 = arith.constant 0 : i32
    %c0_i32_0 = arith.constant 0 : i32
    %c0_i32_1 = arith.constant 0 : i32
    return %c0_i32, %c0_i32_0 : i32, i32
  }
  func.func @transform_7(%arg0: i32) -> (i32, i32) {
    %c0_i32 = arith.constant 0 : i32
    %c0_i32_0 = arith.constant 0 : i32
    %c0_i32_1 = arith.constant 0 : i32
    return %c0_i32, %c0_i32_0 : i32, i32
  }
  func.func @transform_8(%arg0: i32) -> (i32, i32, i32) {
    %c0_i32 = arith.constant 0 : i32
    %c0_i32_0 = arith.constant 0 : i32
    %c0_i32_1 = arith.constant 0 : i32
    return %arg0, %c0_i32, %c0_i32_0 : i32, i32, i32
  }
}

</mosaic_0001>

<llo_original>
// kernel: decode_layer_forward.7
$region0: #{decode_layer_forward.7}
  #allocation0 [shape = 'u32[]', space=smem, size = 0x4, offset = 0x4, fixed_abs, tag = 'smem constant byte address 0x4 - core index']
  #allocation1 [shape = 'u32[144,128]{1,0:T(1,128)}', space=vmem, size = 0x12000, scoped, tag = 'internal scratch']
  %s0 = inlined_call_operand.vmem [shape: f32[128,32], index: 0, kind: input, shape index: {}]
  %s1 = inlined_call_operand.vmem [shape: f32[128,32], index: 1, kind: input, shape index: {}]
  %s2 = inlined_call_operand.vmem [shape: f32[1,32], index: 2, kind: input, shape index: {}]
  %s3 = inlined_call_operand.vmem [shape: f32[1,32], index: 3, kind: input, shape index: {}]
  %s4 = inlined_call_operand.vmem [shape: bf16[32,128], index: 4, kind: input, shape index: {}]
  %s5 = inlined_call_operand.vmem [shape: f32[1,128], index: 5, kind: input, shape index: {}]
  %s6 = inlined_call_operand.vmem [shape: bf16[128,32], index: 6, kind: input, shape index: {}]
  %s7 = inlined_call_operand.vmem [shape: f32[1,32], index: 7, kind: input, shape index: {}]
  %s8 = inlined_call_operand.vmem [shape: f32[128,32], index: 8, kind: output, shape index: {}]
  %s9 = sld [smem:[#allocation0]]
  $region65: #{decode_layer_forward.7} parent=0
    _
  %s11 = ssub.s32 1, %s9
  %s12 = scalar_select 0, %s11, %s9
  loop: start=0, step=1, limit=4
  $region2: #{decode_layer_forward.7} parent=0 // loop_pre_header
    _
  $region3: #{decode_layer_forward.7} parent=0 // loop_header
    %s14 = sphi 0, %s18
    %p15 = scmp.ge.s32.totalorder %s14, 4
    %s24 = sphi 0, %s26
    %s27 = sphi 0, %s24
    %s28 = sphi 0, %s27
    %s44 = sphi 0, %s28
    %s50 = sphi 0, %s52
    %s53 = sphi 0, %s50
    %s54 = sphi 0, %s53
    %s70 = sphi 0, %s54
    %s74 = sphi 0, %s74
    %s76 = sphi 0, %s74
    %s77 = sphi 0, %s76
    %s91 = sphi 0, %s77
    %s95 = sphi 0, %s95
    %s97 = sphi 0, %s95
    %s98 = sphi 0, %s97
    %s112 = sphi 0, %s98
    %s116 = sphi 0, %s116
    %s118 = sphi 0, %s116
    %s119 = sphi 0, %s118
    %s133 = sphi 0, %s119
    %s137 = sphi 0, %s137
    %s139 = sphi 0, %s137
    %s140 = sphi 0, %s139
    %s154 = sphi 0, %s140
    %s158 = sphi 0, %s158
    %s160 = sphi 0, %s158
    %s161 = sphi 0, %s160
    %s175 = sphi 0, %s161
    %s179 = sphi 0, %s179
    %s181 = sphi 0, %s179
    %s182 = sphi 0, %s181
    %s196 = sphi 0, %s182
    %s202 = sphi 0, %s204
    %s205 = sphi 0, %s202
    %s206 = sphi 0, %s205
    %s222 = sphi 0, %s206
  $region4: #{decode_layer_forward.7} parent=0 // loop_header_branch
    %17 = sbr.rel (%p15) target = $region8
  $region5: #{decode_layer_forward.7} parent=0 // loop_body
    %s19 = ssub.s32 %s14, 1
    %s20 = ssub.s32 %s14, 2
    %s21 = sadd.s32 %s14, 1
    %s22 = ssub.s32 %s14, %s21
    %p23 = scmp.eq.s32.totalorder %s22, 0
    %s25 = sadd.s32 %s24, 1
    %s26 = scalar_select %p23, %s24, %s25
    %p29 = pneg %p23
    %p30 = scmp.eq.s32.totalorder %s14, 1
    %p31 = por %p29, %p30
    %p32 = scmp.ne.s32.totalorder %s24, %s27
    %p33 = scmp.eq.s32.totalorder %s14, 0
    %p34 = por %p32, %p33
    %p35 = scmp.ne.s32.totalorder %s24, %s27
    %p36 = scmp.eq.s32.totalorder %s19, 1
    %p37 = por %p35, %p36
    %p38 = scmp.ne.s32.totalorder %s27, %s28
    %p39 = scmp.eq.s32.totalorder %s19, 0
    %p40 = por %p38, %p39
    %p41 = scmp.ne.s32.totalorder %s27, %s28
    %p42 = scmp.eq.s32.totalorder %s20, 1
    %p43 = por %p41, %p42
    %p45 = scmp.ne.s32.totalorder %s28, %s44
    %p46 = scmp.eq.s32.totalorder %s20, 0
    %p47 = por %p45, %p46
    %s48 = ssub.s32 %s14, %s21
    %p49 = scmp.eq.s32.totalorder %s48, 0
    %s51 = sadd.s32 %s50, 1
    %s52 = scalar_select %p49, %s50, %s51
    %p55 = pneg %p49
    %p56 = scmp.eq.s32.totalorder %s14, 1
    %p57 = por %p55, %p56
    %p58 = scmp.ne.s32.totalorder %s50, %s53
    %p59 = scmp.eq.s32.totalorder %s14, 0
    %p60 = por %p58, %p59
    %p61 = scmp.ne.s32.totalorder %s50, %s53
    %p62 = scmp.eq.s32.totalorder %s19, 1
    %p63 = por %p61, %p62
    %p64 = scmp.ne.s32.totalorder %s53, %s54
    %p65 = scmp.eq.s32.totalorder %s19, 0
    %p66 = por %p64, %p65
    %p67 = scmp.ne.s32.totalorder %s53, %s54
    %p68 = scmp.eq.s32.totalorder %s20, 1
    %p69 = por %p67, %p68
    %p71 = scmp.ne.s32.totalorder %s54, %s70
    %p72 = scmp.eq.s32.totalorder %s20, 0
    %p73 = por %p71, %p72
    %s75 = sadd.s32 %s74, 1
    %p78 = scmp.eq.s32.totalorder %s14, 1
    %p79 = scmp.ne.s32.totalorder %s74, %s76
    %p80 = scmp.eq.s32.totalorder %s14, 0
    %p81 = por %p79, %p80
    %p82 = scmp.ne.s32.totalorder %s74, %s76
    %p83 = scmp.eq.s32.totalorder %s19, 1
    %p84 = por %p82, %p83
    %p85 = scmp.ne.s32.totalorder %s76, %s77
    %p86 = scmp.eq.s32.totalorder %s19, 0
    %p87 = por %p85, %p86
    %p88 = scmp.ne.s32.totalorder %s76, %s77
    %p89 = scmp.eq.s32.totalorder %s20, 1
    %p90 = por %p88, %p89
    %p92 = scmp.ne.s32.totalorder %s77, %s91
    %p93 = scmp.eq.s32.totalorder %s20, 0
    %p94 = por %p92, %p93
    %s96 = sadd.s32 %s95, 1
    %p99 = scmp.eq.s32.totalorder %s14, 1
    %p100 = scmp.ne.s32.totalorder %s95, %s97
    %p101 = scmp.eq.s32.totalorder %s14, 0
    %p102 = por %p100, %p101
    %p103 = scmp.ne.s32.totalorder %s95, %s97
    %p104 = scmp.eq.s32.totalorder %s19, 1
    %p105 = por %p103, %p104
    %p106 = scmp.ne.s32.totalorder %s97, %s98
    %p107 = scmp.eq.s32.totalorder %s19, 0
    %p108 = por %p106, %p107
    %p109 = scmp.ne.s32.totalorder %s97, %s98
    %p110 = scmp.eq.s32.totalorder %s20, 1
    %p111 = por %p109, %p110
    %p113 = scmp.ne.s32.totalorder %s98, %s112
    %p114 = scmp.eq.s32.totalorder %s20, 0
    %p115 = por %p113, %p114
    %s117 = sadd.s32 %s116, 1
    %p120 = scmp.eq.s32.totalorder %s14, 1
    %p121 = scmp.ne.s32.totalorder %s116, %s118
    %p122 = scmp.eq.s32.totalorder %s14, 0
    %p123 = por %p121, %p122
    %p124 = scmp.ne.s32.totalorder %s116, %s118
    %p125 = scmp.eq.s32.totalorder %s19, 1
    %p126 = por %p124, %p125
    %p127 = scmp.ne.s32.totalorder %s118, %s119
    %p128 = scmp.eq.s32.totalorder %s19, 0
    %p129 = por %p127, %p128
    %p130 = scmp.ne.s32.totalorder %s118, %s119
    %p131 = scmp.eq.s32.totalorder %s20, 1
    %p132 = por %p130, %p131
    %p134 = scmp.ne.s32.totalorder %s119, %s133
    %p135 = scmp.eq.s32.totalorder %s20, 0
    %p136 = por %p134, %p135
    %s138 = sadd.s32 %s137, 1
    %p141 = scmp.eq.s32.totalorder %s14, 1
    %p142 = scmp.ne.s32.totalorder %s137, %s139
    %p143 = scmp.eq.s32.totalorder %s14, 0
    %p144 = por %p142, %p143
    %p145 = scmp.ne.s32.totalorder %s137, %s139
    %p146 = scmp.eq.s32.totalorder %s19, 1
    %p147 = por %p145, %p146
    %p148 = scmp.ne.s32.totalorder %s139, %s140
    %p149 = scmp.eq.s32.totalorder %s19, 0
    %p150 = por %p148, %p149
    %p151 = scmp.ne.s32.totalorder %s139, %s140
    %p152 = scmp.eq.s32.totalorder %s20, 1
    %p153 = por %p151, %p152
    %p155 = scmp.ne.s32.totalorder %s140, %s154
    %p156 = scmp.eq.s32.totalorder %s20, 0
    %p157 = por %p155, %p156
    %s159 = sadd.s32 %s158, 1
    %p162 = scmp.eq.s32.totalorder %s14, 1
    %p163 = scmp.ne.s32.totalorder %s158, %s160
    %p164 = scmp.eq.s32.totalorder %s14, 0
    %p165 = por %p163, %p164
    %p166 = scmp.ne.s32.totalorder %s158, %s160
    %p167 = scmp.eq.s32.totalorder %s19, 1
    %p168 = por %p166, %p167
    %p169 = scmp.ne.s32.totalorder %s160, %s161
    %p170 = scmp.eq.s32.totalorder %s19, 0
    %p171 = por %p169, %p170
    %p172 = scmp.ne.s32.totalorder %s160, %s161
    %p173 = scmp.eq.s32.totalorder %s20, 1
    %p174 = por %p172, %p173
    %p176 = scmp.ne.s32.totalorder %s161, %s175
    %p177 = scmp.eq.s32.totalorder %s20, 0
    %p178 = por %p176, %p177
    %s180 = sadd.s32 %s179, 1
    %p183 = scmp.eq.s32.totalorder %s14, 1
    %p184 = scmp.ne.s32.totalorder %s179, %s181
    %p185 = scmp.eq.s32.totalorder %s14, 0
    %p186 = por %p184, %p185
    %p187 = scmp.ne.s32.totalorder %s179, %s181
    %p188 = scmp.eq.s32.totalorder %s19, 1
    %p189 = por %p187, %p188
    %p190 = scmp.ne.s32.totalorder %s181, %s182
    %p191 = scmp.eq.s32.totalorder %s19, 0
    %p192 = por %p190, %p191
    %p193 = scmp.ne.s32.totalorder %s181, %s182
    %p194 = scmp.eq.s32.totalorder %s20, 1
    %p195 = por %p193, %p194
    %p197 = scmp.ne.s32.totalorder %s182, %s196
    %p198 = scmp.eq.s32.totalorder %s20, 0
    %p199 = por %p197, %p198
    %s200 = ssub.s32 %s14, %s21
    %p201 = scmp.eq.s32.totalorder %s200, 0
    %s203 = sadd.s32 %s202, 1
    %s204 = scalar_select %p201, %s202, %s203
    %p207 = pneg %p201
    %p208 = scmp.eq.s32.totalorder %s14, 1
    %p209 = por %p207, %p208
    %p210 = scmp.ne.s32.totalorder %s202, %s205
    %p211 = scmp.eq.s32.totalorder %s14, 0
    %p212 = por %p210, %p211
    %p213 = scmp.ne.s32.totalorder %s202, %s205
    %p214 = scmp.eq.s32.totalorder %s19, 1
    %p215 = por %p213, %p214
    %p216 = scmp.ne.s32.totalorder %s205, %s206
    %p217 = scmp.eq.s32.totalorder %s19, 0
    %p218 = por %p216, %p217
    %p219 = scmp.ne.s32.totalorder %s205, %s206
    %p220 = scmp.eq.s32.totalorder %s20, 1
    %p221 = por %p219, %p220
    %p223 = scmp.ne.s32.totalorder %s206, %s222
    %p224 = scmp.eq.s32.totalorder %s20, 0
    %p225 = por %p223, %p224
    %p226 = scmp.le.s32.totalorder 1, %s14
    %p227 = scmp.lt.s32.totalorder %s14, 3
    %p228 = pnand %p226, %p227
    %p229 = pneg %p228
    // Predicated region
    $region9: #{decode_layer_forward.7} parent=5 // pred_check
      _
    $region10: #{decode_layer_forward.7} parent=5 // pred_check_branch
      %231 = sbr.rel (%p228) target = $region12
    $region11: #{decode_layer_forward.7} parent=5 // pred_region
      %s232 = ssub.s32 %s14, 1
      // Predicated region
      $region13: #{decode_layer_forward.7} parent=11 // pred_check
        %p233 = pneg %p87
      $region14: #{decode_layer_forward.7} parent=11 // pred_check_branch
        %235 = sbr.rel (%p233) target = $region16
      $region15: #{decode_layer_forward.7} parent=11 // pred_region
        _
      $region16: #{decode_layer_forward.7} parent=11 // pred_fallthru
        _
      // Predicated region
      $region17: #{decode_layer_forward.7} parent=11 // pred_check
        %p236 = pneg %p108
      $region18: #{decode_layer_forward.7} parent=11 // pred_check_branch
        %238 = sbr.rel (%p236) target = $region20
      $region19: #{decode_layer_forward.7} parent=11 // pred_region
        _
      $region20: #{decode_layer_forward.7} parent=11 // pred_fallthru
        _
      // Predicated region
      $region21: #{decode_layer_forward.7} parent=11 // pred_check
        %p239 = pneg %p129
      $region22: #{decode_layer_forward.7} parent=11 // pred_check_branch
        %241 = sbr.rel (%p239) target = $region24
      $region23: #{decode_layer_forward.7} parent=11 // pred_region
        _
      $region24: #{decode_layer_forward.7} parent=11 // pred_fallthru
        _
      // Predicated region
      $region25: #{decode_layer_forward.7} parent=11 // pred_check
        %p242 = pneg %p150
      $region26: #{decode_layer_forward.7} parent=11 // pred_check_branch
        %244 = sbr.rel (%p242) target = $region28
      $region27: #{decode_layer_forward.7} parent=11 // pred_region
        _
      $region28: #{decode_layer_forward.7} parent=11 // pred_fallthru
        _
      // Predicated region
      $region29: #{decode_layer_forward.7} parent=11 // pred_check
        %p245 = pneg %p171
      $region30: #{decode_layer_forward.7} parent=11 // pred_check_branch
        %247 = sbr.rel (%p245) target = $region32
      $region31: #{decode_layer_forward.7} parent=11 // pred_region
        _
      $region32: #{decode_layer_forward.7} parent=11 // pred_fallthru
        _
      // Predicated region
      $region33: #{decode_layer_forward.7} parent=11 // pred_check
        %p248 = pneg %p192
      $region34: #{decode_layer_forward.7} parent=11 // pred_check_branch
        %250 = sbr.rel (%p248) target = $region36
      $region35: #{decode_layer_forward.7} parent=11 // pred_region
        _
      $region36: #{decode_layer_forward.7} parent=11 // pred_fallthru
        _
    $region12: #{decode_layer_forward.7} parent=5 // pred_fallthru
      _
    %p251 = scmp.lt.s32.totalorder %s14, 2
    // Predicated region
    $region37: #{decode_layer_forward.7} parent=5 // pred_check
      %p252 = pneg %p251
    $region38: #{decode_layer_forward.7} parent=5 // pred_check_branch
      %254 = sbr.rel (%p252) target = $region40
    $region39: #{decode_layer_forward.7} parent=5 // pred_region
      // Predicated region
      $region41: #{decode_layer_forward.7} parent=39 // pred_check
        %p255 = pneg %p34
      $region42: #{decode_layer_forward.7} parent=39 // pred_check_branch
        %257 = sbr.rel (%p255) target = $region44
      $region43: #{decode_layer_forward.7} parent=39 // pred_region
        %s258 = smul.u32 8, %s14
        %p259 = scmp.lt.s32.totalorder %s258, 15
        %s260 = scalar_select %p259, %s258, 15
        %s261 = smul.addr %s260, 8
        %s262 = scalar_lea.vmem %s0, %s261
        %s263 = smul.u32 8, %s14
      $region44: #{decode_layer_forward.7} parent=39 // pred_fallthru
        _
      // Predicated region
      $region45: #{decode_layer_forward.7} parent=39 // pred_check
        %p264 = pneg %p60
      $region46: #{decode_layer_forward.7} parent=39 // pred_check_branch
        %266 = sbr.rel (%p264) target = $region48
      $region47: #{decode_layer_forward.7} parent=39 // pred_region
        %s267 = smul.u32 8, %s14
        %p268 = scmp.lt.s32.totalorder %s267, 15
        %s269 = scalar_select %p268, %s267, 15
        %s270 = smul.addr %s269, 8
        %s271 = scalar_lea.vmem %s1, %s270
        %s272 = smul.u32 8, %s14
      $region48: #{decode_layer_forward.7} parent=39 // pred_fallthru
        _
    $region40: #{decode_layer_forward.7} parent=5 // pred_fallthru
      _
    %p273 = scmp.le.s32.totalorder 1, %s14
    %p274 = scmp.lt.s32.totalorder %s14, 3
    %p275 = pnand %p273, %p274
    %p276 = pneg %p275
    // Predicated region
    $region49: #{decode_layer_forward.7} parent=5 // pred_check
      _
    $region50: #{decode_layer_forward.7} parent=5 // pred_check_branch
      %278 = sbr.rel (%p275) target = $region52
    $region51: #{decode_layer_forward.7} parent=5 // pred_region
      %s279 = ssub.s32 %s14, 1
      %s280 = smul.u32 8, %s19
      %p281 = scmp.lt.s32.totalorder %s280, 15
      %s282 = scalar_select %p281, %s280, 15
      %s283 = smul.addr %s282, 8
      %s284 = scalar_lea.vmem %s0, %s283
      %p285 = pneg %p40
      %p286 = pneg %p37
      %s287 = smul.u32 8, %s19
      %p288 = scmp.lt.s32.totalorder %s287, 15
      %s289 = scalar_select %p288, %s287, 15
      %s290 = smul.addr %s289, 8
      %s291 = scalar_lea.vmem %s1, %s290
      %p292 = pneg %p66
      %p293 = pneg %p63
      %p294 = pneg %p87
      %p295 = pneg %p84
      %p296 = pneg %p108
      %p297 = pneg %p105
      %p298 = pneg %p129
      %p299 = pneg %p126
      %p300 = pneg %p150
      %p301 = pneg %p147
      %p302 = pneg %p171
      %p303 = pneg %p168
      %p304 = pneg %p192
      %p305 = pneg %p189
      %p306 = pneg %p218
      %p307 = pneg %p215
      %s308 = smul.u32 8, %s19
      %p309 = scmp.lt.s32.totalorder %s308, 15
      %s310 = scalar_select %p309, %s308, 15
      %s311 = smul.addr %s310, 8
      %s312 = scalar_lea.vmem %s8, %s311
      %s313 = smul.u32 8, %s19
      %p314 = scmp.lt.s32.totalorder %s313, 15
      %s315 = scalar_select %p314, %s313, 15
      %s316 = smul.addr %s315, 8
      %s317 = scalar_lea.vmem %s0, %s316
      %s318 = smul.u32 8, %s19
      %s319 = smul.u32 8, %s19
      %p320 = scmp.lt.s32.totalorder %s319, 15
      %s321 = scalar_select %p320, %s319, 15
      %s322 = smul.addr %s321, 8
      %s323 = scalar_lea.vmem %s1, %s322
      %s324 = smul.u32 8, %s19
      %s325 = smul.u32 8, %s19
      %p326 = scmp.lt.s32.totalorder %s325, 15
      %s327 = scalar_select %p326, %s325, 15
      %s328 = smul.addr %s327, 8
      %s329 = scalar_lea.vmem %s8, %s328
      %s330 = smul.u32 8, %s19
      %v332 = vld [vmem:[%s317] sm:$0xff]
      %v333 = vld [vmem:[%s317 + $0x8] sm:$0xff]
      %v334 = vld [vmem:[%s317 + $0x10] sm:$0xff]
      %v335 = vld [vmem:[%s317 + $0x18] sm:$0xff]
      %v336 = vld [vmem:[%s317 + $0x20] sm:$0xff]
      %v337 = vld [vmem:[%s317 + $0x28] sm:$0xff]
      %v338 = vld [vmem:[%s317 + $0x30] sm:$0xff]
      %v339 = vld [vmem:[%s317 + $0x38] sm:$0xff]
      %v340 = vld [vmem:[%s323] sm:$0xff]
      %v341 = vld [vmem:[%s323 + $0x8] sm:$0xff]
      %v342 = vld [vmem:[%s323 + $0x10] sm:$0xff]
      %v343 = vld [vmem:[%s323 + $0x18] sm:$0xff]
      %v344 = vld [vmem:[%s323 + $0x20] sm:$0xff]
      %v345 = vld [vmem:[%s323 + $0x28] sm:$0xff]
      %v346 = vld [vmem:[%s323 + $0x30] sm:$0xff]
      %v347 = vld [vmem:[%s323 + $0x38] sm:$0xff]
      %v348 = vadd.f32 %v332, %v340
      %v349 = vadd.f32 %v333, %v341
      %v350 = vadd.f32 %v334, %v342
      %v351 = vadd.f32 %v335, %v343
      %v352 = vadd.f32 %v336, %v344
      %v353 = vadd.f32 %v337, %v345
      %v354 = vadd.f32 %v338, %v346
      %v355 = vadd.f32 %v339, %v347
      %vm356 = vcmask 261120
      %v357 = vsel %vm356, %v348, 0.0
      %358 = vadd.xlane.f32.xlu0 %v357
      %v359 = vpop.xlane.xlu0 %358
      %v360 = vsel %vm356, %v349, 0.0
      %361 = vadd.xlane.f32.xlu0 %v360
      %v362 = vpop.xlane.xlu0 %361
      %v363 = vsel %vm356, %v350, 0.0
      %364 = vadd.xlane.f32.xlu0 %v363
      %v365 = vpop.xlane.xlu0 %364
      %v366 = vsel %vm356, %v351, 0.0
      %367 = vadd.xlane.f32.xlu0 %v366
      %v368 = vpop.xlane.xlu0 %367
      %v369 = vsel %vm356, %v352, 0.0
      %370 = vadd.xlane.f32.xlu0 %v369
      %v371 = vpop.xlane.xlu0 %370
      %v372 = vsel %vm356, %v353, 0.0
      %373 = vadd.xlane.f32.xlu0 %v372
      %v374 = vpop.xlane.xlu0 %373
      %v375 = vsel %vm356, %v354, 0.0
      %376 = vadd.xlane.f32.xlu0 %v375
      %v377 = vpop.xlane.xlu0 %376
      %v378 = vsel %vm356, %v355, 0.0
      %379 = vadd.xlane.f32.xlu0 %v378
      %v380 = vpop.xlane.xlu0 %379
      %v381 = vrcp.pop 32.0
      %v382 = vmul.f32 %v359, %v381
      %v383 = vmul.f32 %v362, %v381
      %v384 = vmul.f32 %v365, %v381
      %v385 = vmul.f32 %v368, %v381
      %v386 = vmul.f32 %v371, %v381
      %v387 = vmul.f32 %v374, %v381
      %v388 = vmul.f32 %v377, %v381
      %v389 = vmul.f32 %v380, %v381
      %v390 = vsub.f32 %v348, %v382
      %v391 = vsub.f32 %v349, %v383
      %v392 = vsub.f32 %v350, %v384
      %v393 = vsub.f32 %v351, %v385
      %v394 = vsub.f32 %v352, %v386
      %v395 = vsub.f32 %v353, %v387
      %v396 = vsub.f32 %v354, %v388
      %v397 = vsub.f32 %v355, %v389
      %v398 = vmul.f32 %v390, %v390
      %v399 = vmul.f32 %v391, %v391
      %v400 = vmul.f32 %v392, %v392
      %v401 = vmul.f32 %v393, %v393
      %v402 = vmul.f32 %v394, %v394
      %v403 = vmul.f32 %v395, %v395
      %v404 = vmul.f32 %v396, %v396
      %v405 = vmul.f32 %v397, %v397
      %v406 = vsel %vm356, %v398, 0.0
      %407 = vadd.xlane.f32.xlu0 %v406
      %v408 = vpop.xlane.xlu0 %407
      %v409 = vsel %vm356, %v399, 0.0
      %410 = vadd.xlane.f32.xlu0 %v409
      %v411 = vpop.xlane.xlu0 %410
      %v412 = vsel %vm356, %v400, 0.0
      %413 = vadd.xlane.f32.xlu0 %v412
      %v414 = vpop.xlane.xlu0 %413
      %v415 = vsel %vm356, %v401, 0.0
      %416 = vadd.xlane.f32.xlu0 %v415
      %v417 = vpop.xlane.xlu0 %416
      %v418 = vsel %vm356, %v402, 0.0
      %419 = vadd.xlane.f32.xlu0 %v418
      %v420 = vpop.xlane.xlu0 %419
      %v421 = vsel %vm356, %v403, 0.0
      %422 = vadd.xlane.f32.xlu0 %v421
      %v423 = vpop.xlane.xlu0 %422
      %v424 = vsel %vm356, %v404, 0.0
      %425 = vadd.xlane.f32.xlu0 %v424
      %v426 = vpop.xlane.xlu0 %425
      %v427 = vsel %vm356, %v405, 0.0
      %428 = vadd.xlane.f32.xlu0 %v427
      %v429 = vpop.xlane.xlu0 %428
      %v430 = vmul.f32 %v408, %v381
      %v431 = vmul.f32 %v411, %v381
      %v432 = vmul.f32 %v414, %v381
      %v433 = vmul.f32 %v417, %v381
      %v434 = vmul.f32 %v420, %v381
      %v435 = vmul.f32 %v423, %v381
      %v436 = vmul.f32 %v426, %v381
      %v437 = vmul.f32 %v429, %v381
      %v438 = vadd.f32 %v430, 1e-05
      %v439 = vadd.f32 %v431, 1e-05
      %v440 = vadd.f32 %v432, 1e-05
      %v441 = vadd.f32 %v433, 1e-05
      %v442 = vadd.f32 %v434, 1e-05
      %v443 = vadd.f32 %v435, 1e-05
      %v444 = vadd.f32 %v436, 1e-05
      %v445 = vadd.f32 %v437, 1e-05
      %v446 = vrsqrt.pop %v438
      %v447 = vrsqrt.pop %v439
      %v448 = vrsqrt.pop %v440
      %v449 = vrsqrt.pop %v441
      %v450 = vrsqrt.pop %v442
      %v451 = vrsqrt.pop %v443
      %v452 = vrsqrt.pop %v444
      %v453 = vrsqrt.pop %v445
      %v454 = vmul.f32 %v390, %v446
      %v455 = vmul.f32 %v391, %v447
      %v456 = vmul.f32 %v392, %v448
      %v457 = vmul.f32 %v393, %v449
      %v458 = vmul.f32 %v394, %v450
      %v459 = vmul.f32 %v395, %v451
      %v460 = vmul.f32 %v396, %v452
      %v461 = vmul.f32 %v397, %v453
      %v462 = vld [vmem:[%s2] sm:$0x1]
      %v464 = vlaneseq
      %v465 = vshrl.u32 %v464, 7
      %v466 = vsub.s32 0, %v465
      %v467 = vrot.slane %v462, %v466
      %v469 = vmul.f32 %v454, %v467
      %v470 = vmul.f32 %v455, %v467
      %v471 = vmul.f32 %v456, %v467
      %v472 = vmul.f32 %v457, %v467
      %v473 = vmul.f32 %v458, %v467
      %v474 = vmul.f32 %v459, %v467
      %v475 = vmul.f32 %v460, %v467
      %v476 = vmul.f32 %v461, %v467
      %v477 = vld [vmem:[%s3] sm:$0x1]
      %v479 = vlaneseq
      %v480 = vshrl.u32 %v479, 7
      %v481 = vsub.s32 0, %v480
      %v482 = vrot.slane %v477, %v481
      %v484 = vadd.f32 %v469, %v482
      %v485 = vadd.f32 %v470, %v482
      %v486 = vadd.f32 %v471, %v482
      %v487 = vadd.f32 %v472, %v482
      %v488 = vadd.f32 %v473, %v482
      %v489 = vadd.f32 %v474, %v482
      %v490 = vadd.f32 %v475, %v482
      %v491 = vadd.f32 %v476, %v482
      %v492 = vpack.c.bf16 %v485, %v484
      %v493 = vpack.c.bf16 %v487, %v486
      %v494 = vpack.c.bf16 %v489, %v488
      %v495 = vpack.c.bf16 %v491, %v490
      %v496 = vld [vmem:[%s4] sm:$0xf]
      %v497 = vld [vmem:[%s4 + $0x4] sm:$0xf]
      %v498 = vld [vmem:[%s4 + $0x8] sm:$0xf]
      %v499 = vld [vmem:[%s4 + $0xc] sm:$0xf]
      %v500 = vld [vmem:[%s5] sm:$0x1]
      %v502 = vlaneseq
      %v503 = vshrl.u32 %v502, 7
      %v504 = vsub.s32 0, %v503
      %v505 = vrot.slane %v500, %v504
      %v511 = vunpack.c.l.b16 %v496
      %v512 = vunpack.c.l.b16 %v497
      %v513 = vunpack.c.l.b16 %v498
      %v514 = vunpack.c.l.b16 %v499
      %v515 = vpack.c.b16 %v512, %v511
      %v516 = vpack.c.b16 %v514, %v513
      %v520 = vsel %vm356, %v492, 0
      %v523 = vsel %vm356, %v493, 0
      %v526 = vsel %vm356, %v494, 0
      %v529 = vsel %vm356, %v495, 0
      %531 = vmatprep.subr.bf16.mxu0 0
      %532 = vmatpush1.bf16.msra.mxu0 0
      %533 = vmatprep.subr.bf16.mxu0 0
      %534 = vmatpush1.bf16.msra.mxu0 0
      %535 = vmatprep.subr.bf16.mxu0 0
      %536 = vmatpush1.bf16.msra.mxu0 0
      %537 = vmatprep.subr.bf16.mxu0 0
      %538 = vmatpush1.bf16.msra.mxu0 0
      %539 = vmatprep.subr.bf16.mxu0 0
      %540 = vmatpush1.bf16.msra.mxu0 0
      %541 = vmatprep.subr.bf16.mxu0 0
      %542 = vmatpush1.bf16.msra.mxu0 0
      %543 = vmatprep.subr.bf16.mxu0 0
      %544 = vmatpush1.bf16.msra.mxu0 %v516
      %545 = vmatprep.subr.bf16.mxu0 0
      %546 = vmatpush1.bf16.msra.mxu0 %v515
      %547 = vmatprep.subr.bf16.mxu0 0
      %548 = vmatpush2.bf16.msra.mxu0 0
      %549 = vmatprep.subr.bf16.mxu0 0
      %550 = vmatpush2.bf16.msra.mxu0 0
      %551 = vmatprep.subr.bf16.mxu0 0
      %552 = vmatpush2.bf16.msra.mxu0 0
      %553 = vmatprep.subr.bf16.mxu0 0
      %554 = vmatpush2.bf16.msra.mxu0 0
      %555 = vmatprep.subr.bf16.mxu0 0
      %556 = vmatpush2.bf16.msra.mxu0 0
      %557 = vmatprep.subr.bf16.mxu0 0
      %558 = vmatpush2.bf16.msra.mxu0 0
      %559 = vmatprep.subr.bf16.mxu0 0
      %560 = vmatpush2.bf16.msra.mxu0 0
      %561 = vmatprep.subr.bf16.mxu0 0
      %562 = vmatpush2.bf16.msra.mxu0 0
      %563 = vmatprep.mubr.bf16.mxu0 0
      %564 = vmatmul.mubr.bf16.gmra.mxu0 %v520
      %v565 = vpop.f32.mrf.mxu0
      %v566 = vadd.f32 %v505, %v565
      %v567 = vpop.f32.mrf.mxu0
      %v568 = vpop.f32.mrf.mxu0
      %v569 = vadd.f32 %v505, %v568
      %v570 = vpop.f32.mrf.mxu0
      %571 = vmatprep.mubr.bf16.mxu0 0
      %572 = vmatmul.mubr.bf16.gmra.mxu0 %v523
      %v573 = vpop.f32.mrf.mxu0
      %v574 = vadd.f32 %v505, %v573
      %v575 = vpop.f32.mrf.mxu0
      %v576 = vpop.f32.mrf.mxu0
      %v577 = vadd.f32 %v505, %v576
      %v578 = vpop.f32.mrf.mxu0
      %579 = vmatprep.mubr.bf16.mxu0 0
      %580 = vmatmul.mubr.bf16.gmra.mxu0 %v526
      %v581 = vpop.f32.mrf.mxu0
      %v582 = vadd.f32 %v505, %v581
      %v583 = vpop.f32.mrf.mxu0
      %v584 = vpop.f32.mrf.mxu0
      %v585 = vadd.f32 %v505, %v584
      %v586 = vpop.f32.mrf.mxu0
      %587 = vmatprep.mubr.bf16.mxu0 0
      %588 = vmatmul.mubr.bf16.gmra.mxu0 %v529
      %v589 = vpop.f32.mrf.mxu0
      %v590 = vadd.f32 %v505, %v589
      %v591 = vpop.f32.mrf.mxu0
      %v592 = vpop.f32.mrf.mxu0
      %v593 = vadd.f32 %v505, %v592
      %v594 = vpop.f32.mrf.mxu0
      %595 = vdwg.mxu0
      %v596 = vmul.f32 %v566, 0.5
      %v597 = vmul.f32 %v569, 0.5
      %v598 = vmul.f32 %v574, 0.5
      %v599 = vmul.f32 %v577, 0.5
      %v600 = vmul.f32 %v582, 0.5
      %v601 = vmul.f32 %v585, 0.5
      %v602 = vmul.f32 %v590, 0.5
      %v603 = vmul.f32 %v593, 0.5
      %v604 = vmul.f32 %v566, 0.70710677
      %v605 = vmul.f32 %v569, 0.70710677
      %v606 = vmul.f32 %v574, 0.70710677
      %v607 = vmul.f32 %v577, 0.70710677
      %v608 = vmul.f32 %v582, 0.70710677
      %v609 = vmul.f32 %v585, 0.70710677
      %v610 = vmul.f32 %v590, 0.70710677
      %v611 = vmul.f32 %v593, 0.70710677
      %v612 = verf.f32.pop %v604
      %v613 = verf.f32.pop %v605
      %v614 = verf.f32.pop %v606
      %v615 = verf.f32.pop %v607
      %v616 = verf.f32.pop %v608
      %v617 = verf.f32.pop %v609
      %v618 = verf.f32.pop %v610
      %v619 = verf.f32.pop %v611
      %v620 = vadd.f32 %v612, 1.0
      %v621 = vadd.f32 %v613, 1.0
      %v622 = vadd.f32 %v614, 1.0
      %v623 = vadd.f32 %v615, 1.0
      %v624 = vadd.f32 %v616, 1.0
      %v625 = vadd.f32 %v617, 1.0
      %v626 = vadd.f32 %v618, 1.0
      %v627 = vadd.f32 %v619, 1.0
      %v628 = vmul.f32 %v596, %v620
      %v629 = vmul.f32 %v597, %v621
      %v630 = vmul.f32 %v598, %v622
      %v631 = vmul.f32 %v599, %v623
      %v632 = vmul.f32 %v600, %v624
      %v633 = vmul.f32 %v601, %v625
      %v634 = vmul.f32 %v602, %v626
      %v635 = vmul.f32 %v603, %v627
      %v636 = vpack.c.bf16 %v629, %v628
      %v637 = vpack.c.bf16 %v631, %v630
      %v638 = vpack.c.bf16 %v633, %v632
      %v639 = vpack.c.bf16 %v635, %v634
      %v640 = vld [vmem:[%s6] sm:$0xf]
      %v641 = vld [vmem:[%s6 + $0x4] sm:$0xf]
      %v642 = vld [vmem:[%s6 + $0x8] sm:$0xf]
      %v643 = vld [vmem:[%s6 + $0xc] sm:$0xf]
      %v644 = vld [vmem:[%s6 + $0x10] sm:$0xf]
      %v645 = vld [vmem:[%s6 + $0x14] sm:$0xf]
      %v646 = vld [vmem:[%s6 + $0x18] sm:$0xf]
      %v647 = vld [vmem:[%s6 + $0x1c] sm:$0xf]
      %v648 = vld [vmem:[%s6 + $0x20] sm:$0xf]
      %v649 = vld [vmem:[%s6 + $0x24] sm:$0xf]
      %v650 = vld [vmem:[%s6 + $0x28] sm:$0xf]
      %v651 = vld [vmem:[%s6 + $0x2c] sm:$0xf]
      %v652 = vld [vmem:[%s6 + $0x30] sm:$0xf]
      %v653 = vld [vmem:[%s6 + $0x34] sm:$0xf]
      %v654 = vld [vmem:[%s6 + $0x38] sm:$0xf]
      %v655 = vld [vmem:[%s6 + $0x3c] sm:$0xf]
      %v656 = vld [vmem:[%s7] sm:$0x1]
      %v658 = vlaneseq
      %v659 = vshrl.u32 %v658, 7
      %v660 = vsub.s32 0, %v659
      %v661 = vrot.slane %v656, %v660
      %v679 = vunpack.c.l.b16 %v640
      %v680 = vunpack.c.l.b16 %v641
      %v681 = vunpack.c.l.b16 %v642
      %v682 = vunpack.c.l.b16 %v643
      %v683 = vunpack.c.l.b16 %v644
      %v684 = vunpack.c.l.b16 %v645
      %v685 = vunpack.c.l.b16 %v646
      %v686 = vunpack.c.l.b16 %v647
      %v687 = vunpack.c.l.b16 %v648
      %v688 = vunpack.c.l.b16 %v649
      %v689 = vunpack.c.l.b16 %v650
      %v690 = vunpack.c.l.b16 %v651
      %v691 = vunpack.c.l.b16 %v652
      %v692 = vunpack.c.l.b16 %v653
      %v693 = vunpack.c.l.b16 %v654
      %v694 = vunpack.c.l.b16 %v655
      %v695 = vpack.c.b16 %v680, %v679
      %v696 = vpack.c.b16 %v682, %v681
      %v697 = vpack.c.b16 %v684, %v683
      %v698 = vpack.c.b16 %v686, %v685
      %v699 = vpack.c.b16 %v688, %v687
      %v700 = vpack.c.b16 %v690, %v689
      %v701 = vpack.c.b16 %v692, %v691
      %v702 = vpack.c.b16 %v694, %v693
      %711 = vmatprep.subr.bf16.mxu0 0
      %712 = vmatpush1.bf16.msra.mxu0 %v702
      %713 = vmatprep.subr.bf16.mxu0 0
      %714 = vmatpush1.bf16.msra.mxu0 %v701
      %715 = vmatprep.subr.bf16.mxu0 0
      %716 = vmatpush1.bf16.msra.mxu0 %v700
      %717 = vmatprep.subr.bf16.mxu0 0
      %718 = vmatpush1.bf16.msra.mxu0 %v699
      %719 = vmatprep.subr.bf16.mxu0 0
      %720 = vmatpush1.bf16.msra.mxu0 %v698
      %721 = vmatprep.subr.bf16.mxu0 0
      %722 = vmatpush1.bf16.msra.mxu0 %v697
      %723 = vmatprep.subr.bf16.mxu0 0
      %724 = vmatpush1.bf16.msra.mxu0 %v696
      %725 = vmatprep.subr.bf16.mxu0 0
      %726 = vmatpush1.bf16.msra.mxu0 %v695
      %727 = vmatprep.subr.bf16.mxu0 0
      %728 = vmatpush2.bf16.msra.mxu0 0
      %729 = vmatprep.subr.bf16.mxu0 0
      %730 = vmatpush2.bf16.msra.mxu0 0
      %731 = vmatprep.subr.bf16.mxu0 0
      %732 = vmatpush2.bf16.msra.mxu0 0
      %733 = vmatprep.subr.bf16.mxu0 0
      %734 = vmatpush2.bf16.msra.mxu0 0
      %735 = vmatprep.subr.bf16.mxu0 0
      %736 = vmatpush2.bf16.msra.mxu0 0
      %737 = vmatprep.subr.bf16.mxu0 0
      %738 = vmatpush2.bf16.msra.mxu0 0
      %739 = vmatprep.subr.bf16.mxu0 0
      %740 = vmatpush2.bf16.msra.mxu0 0
      %741 = vmatprep.subr.bf16.mxu0 0
      %742 = vmatpush2.bf16.msra.mxu0 0
      %743 = vmatprep.mubr.bf16.mxu0 0
      %744 = vmatmul.mubr.bf16.gmra.mxu0 %v636
      %v745 = vpop.f32.mrf.mxu0
      %v746 = vadd.f32 %v661, %v745
      %v747 = vpop.f32.mrf.mxu0
      %v748 = vpop.f32.mrf.mxu0
      %v749 = vadd.f32 %v661, %v748
      %v750 = vpop.f32.mrf.mxu0
      %751 = vmatprep.mubr.bf16.mxu0 0
      %752 = vmatmul.mubr.bf16.gmra.mxu0 %v637
      %v753 = vpop.f32.mrf.mxu0
      %v754 = vadd.f32 %v661, %v753
      %v755 = vpop.f32.mrf.mxu0
      %v756 = vpop.f32.mrf.mxu0
      %v757 = vadd.f32 %v661, %v756
      %v758 = vpop.f32.mrf.mxu0
      %759 = vmatprep.mubr.bf16.mxu0 0
      %760 = vmatmul.mubr.bf16.gmra.mxu0 %v638
      %v761 = vpop.f32.mrf.mxu0
      %v762 = vadd.f32 %v661, %v761
      %v763 = vpop.f32.mrf.mxu0
      %v764 = vpop.f32.mrf.mxu0
      %v765 = vadd.f32 %v661, %v764
      %v766 = vpop.f32.mrf.mxu0
      %767 = vmatprep.mubr.bf16.mxu0 0
      %768 = vmatmul.mubr.bf16.gmra.mxu0 %v639
      %v769 = vpop.f32.mrf.mxu0
      %v770 = vadd.f32 %v661, %v769
      %v771 = vpop.f32.mrf.mxu0
      %v772 = vpop.f32.mrf.mxu0
      %v773 = vadd.f32 %v661, %v772
      %v774 = vpop.f32.mrf.mxu0
      %775 = vdwg.mxu0
      %v776 = vadd.f32 %v348, %v746
      %v777 = vadd.f32 %v349, %v749
      %v778 = vadd.f32 %v350, %v754
      %v779 = vadd.f32 %v351, %v757
      %v780 = vadd.f32 %v352, %v762
      %v781 = vadd.f32 %v353, %v765
      %v782 = vadd.f32 %v354, %v770
      %v783 = vadd.f32 %v355, %v773
      %784 = vst.msk [vmem:[%s329] sm:$0xff] %vm356, %v776
      %785 = vst.msk [vmem:[%s329 + $0x8] sm:$0xff] %vm356, %v777
      %786 = vst.msk [vmem:[%s329 + $0x10] sm:$0xff] %vm356, %v778
      %787 = vst.msk [vmem:[%s329 + $0x18] sm:$0xff] %vm356, %v779
      %788 = vst.msk [vmem:[%s329 + $0x20] sm:$0xff] %vm356, %v780
      %789 = vst.msk [vmem:[%s329 + $0x28] sm:$0xff] %vm356, %v781
      %790 = vst.msk [vmem:[%s329 + $0x30] sm:$0xff] %vm356, %v782
      %791 = vst.msk [vmem:[%s329 + $0x38] sm:$0xff] %vm356, %v783
      %s792 = smul.u32 8, %s19
      %p793 = scmp.lt.s32.totalorder %s792, 15
      %s794 = scalar_select %p793, %s792, 15
      %s795 = smul.addr %s794, 8
      %s796 = scalar_lea.vmem %s8, %s795
      // Predicated region
      $region53: #{decode_layer_forward.7} parent=51 // pred_check
        %p797 = pneg %p215
      $region54: #{decode_layer_forward.7} parent=51 // pred_check_branch
        %799 = sbr.rel (%p797) target = $region56
      $region55: #{decode_layer_forward.7} parent=51 // pred_region
        %s800 = smul.u32 8, %s19
      $region56: #{decode_layer_forward.7} parent=51 // pred_fallthru
        _
    $region52: #{decode_layer_forward.7} parent=5 // pred_fallthru
      _
    %p801 = scmp.le.s32.totalorder 2, %s14
    // Predicated region
    $region57: #{decode_layer_forward.7} parent=5 // pred_check
      %p802 = pneg %p801
    $region58: #{decode_layer_forward.7} parent=5 // pred_check_branch
      %804 = sbr.rel (%p802) target = $region60
    $region59: #{decode_layer_forward.7} parent=5 // pred_region
      %s805 = ssub.s32 %s14, 2
      // Predicated region
      $region61: #{decode_layer_forward.7} parent=59 // pred_check
        %p806 = pneg %p221
      $region62: #{decode_layer_forward.7} parent=59 // pred_check_branch
        %808 = sbr.rel (%p806) target = $region64
      $region63: #{decode_layer_forward.7} parent=59 // pred_region
        %s809 = smul.u32 8, %s20
        %p810 = scmp.lt.s32.totalorder %s809, 15
        %s811 = scalar_select %p810, %s809, 15
        %s812 = smul.addr %s811, 8
        %s813 = scalar_lea.vmem %s8, %s812
      $region64: #{decode_layer_forward.7} parent=59 // pred_fallthru
        _
    $region60: #{decode_layer_forward.7} parent=5 // pred_fallthru
      _
  $region6: #{decode_layer_forward.7} parent=0 // loop_footer
    %s18 = sadd.s32 1, %s14
  $region7: #{decode_layer_forward.7} parent=0 // loop_footer_branch
    %13 = sbr.rel target = $region3
  $region8: #{decode_layer_forward.7} parent=0 // loop_exit
    _

// kernel: decode_layer_forward.5
$region0: #{decode_layer_forward.5}
  #allocation0 [shape = 'u32[]', space=smem, size = 0x4, offset = 0x4, fixed_abs, tag = 'smem constant byte address 0x4 - core index']
  #allocation1 [shape = 'u32[144,128]{1,0:T(1,128)}', space=vmem, size = 0x12000, scoped, tag = 'internal scratch']
  %s0 = inlined_call_operand.vmem [shape: f32[128,32], index: 0, kind: input, shape index: {}]
  %s1 = inlined_call_operand.vmem [shape: f32[128,32], index: 1, kind: input, shape index: {}]
  %s2 = inlined_call_operand.vmem [shape: bf16[32,32], index: 2, kind: input, shape index: {}]
  %s3 = inlined_call_operand.vmem [shape: bf16[32,32], index: 3, kind: input, shape index: {}]
  %s4 = inlined_call_operand.vmem [shape: f32[1,32], index: 4, kind: input, shape index: {}]
  %s5 = inlined_call_operand.vmem [shape: f32[128,32], index: 5, kind: output, shape index: {}]
  %s6 = sld [smem:[#allocation0]]
  $region53: #{decode_layer_forward.5} parent=0
    _
  %s8 = ssub.s32 1, %s6
  %s9 = scalar_select 0, %s8, %s6
  loop: start=0, step=1, limit=4
  $region2: #{decode_layer_forward.5} parent=0 // loop_pre_header
    _
  $region3: #{decode_layer_forward.5} parent=0 // loop_header
    %s11 = sphi 0, %s15
    %p12 = scmp.ge.s32.totalorder %s11, 4
    %s21 = sphi 0, %s23
    %s24 = sphi 0, %s21
    %s25 = sphi 0, %s24
    %s41 = sphi 0, %s25
    %s47 = sphi 0, %s49
    %s50 = sphi 0, %s47
    %s51 = sphi 0, %s50
    %s67 = sphi 0, %s51
    %s71 = sphi 0, %s71
    %s73 = sphi 0, %s71
    %s74 = sphi 0, %s73
    %s88 = sphi 0, %s74
    %s92 = sphi 0, %s92
    %s94 = sphi 0, %s92
    %s95 = sphi 0, %s94
    %s109 = sphi 0, %s95
    %s113 = sphi 0, %s113
    %s115 = sphi 0, %s113
    %s116 = sphi 0, %s115
    %s130 = sphi 0, %s116
    %s136 = sphi 0, %s138
    %s139 = sphi 0, %s136
    %s140 = sphi 0, %s139
    %s156 = sphi 0, %s140
  $region4: #{decode_layer_forward.5} parent=0 // loop_header_branch
    %14 = sbr.rel (%p12) target = $region8
  $region5: #{decode_layer_forward.5} parent=0 // loop_body
    %s16 = ssub.s32 %s11, 1
    %s17 = ssub.s32 %s11, 2
    %s18 = sadd.s32 %s11, 1
    %s19 = ssub.s32 %s11, %s18
    %p20 = scmp.eq.s32.totalorder %s19, 0
    %s22 = sadd.s32 %s21, 1
    %s23 = scalar_select %p20, %s21, %s22
    %p26 = pneg %p20
    %p27 = scmp.eq.s32.totalorder %s11, 1
    %p28 = por %p26, %p27
    %p29 = scmp.ne.s32.totalorder %s21, %s24
    %p30 = scmp.eq.s32.totalorder %s11, 0
    %p31 = por %p29, %p30
    %p32 = scmp.ne.s32.totalorder %s21, %s24
    %p33 = scmp.eq.s32.totalorder %s16, 1
    %p34 = por %p32, %p33
    %p35 = scmp.ne.s32.totalorder %s24, %s25
    %p36 = scmp.eq.s32.totalorder %s16, 0
    %p37 = por %p35, %p36
    %p38 = scmp.ne.s32.totalorder %s24, %s25
    %p39 = scmp.eq.s32.totalorder %s17, 1
    %p40 = por %p38, %p39
    %p42 = scmp.ne.s32.totalorder %s25, %s41
    %p43 = scmp.eq.s32.totalorder %s17, 0
    %p44 = por %p42, %p43
    %s45 = ssub.s32 %s11, %s18
    %p46 = scmp.eq.s32.totalorder %s45, 0
    %s48 = sadd.s32 %s47, 1
    %s49 = scalar_select %p46, %s47, %s48
    %p52 = pneg %p46
    %p53 = scmp.eq.s32.totalorder %s11, 1
    %p54 = por %p52, %p53
    %p55 = scmp.ne.s32.totalorder %s47, %s50
    %p56 = scmp.eq.s32.totalorder %s11, 0
    %p57 = por %p55, %p56
    %p58 = scmp.ne.s32.totalorder %s47, %s50
    %p59 = scmp.eq.s32.totalorder %s16, 1
    %p60 = por %p58, %p59
    %p61 = scmp.ne.s32.totalorder %s50, %s51
    %p62 = scmp.eq.s32.totalorder %s16, 0
    %p63 = por %p61, %p62
    %p64 = scmp.ne.s32.totalorder %s50, %s51
    %p65 = scmp.eq.s32.totalorder %s17, 1
    %p66 = por %p64, %p65
    %p68 = scmp.ne.s32.totalorder %s51, %s67
    %p69 = scmp.eq.s32.totalorder %s17, 0
    %p70 = por %p68, %p69
    %s72 = sadd.s32 %s71, 1
    %p75 = scmp.eq.s32.totalorder %s11, 1
    %p76 = scmp.ne.s32.totalorder %s71, %s73
    %p77 = scmp.eq.s32.totalorder %s11, 0
    %p78 = por %p76, %p77
    %p79 = scmp.ne.s32.totalorder %s71, %s73
    %p80 = scmp.eq.s32.totalorder %s16, 1
    %p81 = por %p79, %p80
    %p82 = scmp.ne.s32.totalorder %s73, %s74
    %p83 = scmp.eq.s32.totalorder %s16, 0
    %p84 = por %p82, %p83
    %p85 = scmp.ne.s32.totalorder %s73, %s74
    %p86 = scmp.eq.s32.totalorder %s17, 1
    %p87 = por %p85, %p86
    %p89 = scmp.ne.s32.totalorder %s74, %s88
    %p90 = scmp.eq.s32.totalorder %s17, 0
    %p91 = por %p89, %p90
    %s93 = sadd.s32 %s92, 1
    %p96 = scmp.eq.s32.totalorder %s11, 1
    %p97 = scmp.ne.s32.totalorder %s92, %s94
    %p98 = scmp.eq.s32.totalorder %s11, 0
    %p99 = por %p97, %p98
    %p100 = scmp.ne.s32.totalorder %s92, %s94
    %p101 = scmp.eq.s32.totalorder %s16, 1
    %p102 = por %p100, %p101
    %p103 = scmp.ne.s32.totalorder %s94, %s95
    %p104 = scmp.eq.s32.totalorder %s16, 0
    %p105 = por %p103, %p104
    %p106 = scmp.ne.s32.totalorder %s94, %s95
    %p107 = scmp.eq.s32.totalorder %s17, 1
    %p108 = por %p106, %p107
    %p110 = scmp.ne.s32.totalorder %s95, %s109
    %p111 = scmp.eq.s32.totalorder %s17, 0
    %p112 = por %p110, %p111
    %s114 = sadd.s32 %s113, 1
    %p117 = scmp.eq.s32.totalorder %s11, 1
    %p118 = scmp.ne.s32.totalorder %s113, %s115
    %p119 = scmp.eq.s32.totalorder %s11, 0
    %p120 = por %p118, %p119
    %p121 = scmp.ne.s32.totalorder %s113, %s115
    %p122 = scmp.eq.s32.totalorder %s16, 1
    %p123 = por %p121, %p122
    %p124 = scmp.ne.s32.totalorder %s115, %s116
    %p125 = scmp.eq.s32.totalorder %s16, 0
    %p126 = por %p124, %p125
    %p127 = scmp.ne.s32.totalorder %s115, %s116
    %p128 = scmp.eq.s32.totalorder %s17, 1
    %p129 = por %p127, %p128
    %p131 = scmp.ne.s32.totalorder %s116, %s130
    %p132 = scmp.eq.s32.totalorder %s17, 0
    %p133 = por %p131, %p132
    %s134 = ssub.s32 %s11, %s18
    %p135 = scmp.eq.s32.totalorder %s134, 0
    %s137 = sadd.s32 %s136, 1
    %s138 = scalar_select %p135, %s136, %s137
    %p141 = pneg %p135
    %p142 = scmp.eq.s32.totalorder %s11, 1
    %p143 = por %p141, %p142
    %p144 = scmp.ne.s32.totalorder %s136, %s139
    %p145 = scmp.eq.s32.totalorder %s11, 0
    %p146 = por %p144, %p145
    %p147 = scmp.ne.s32.totalorder %s136, %s139
    %p148 = scmp.eq.s32.totalorder %s16, 1
    %p149 = por %p147, %p148
    %p150 = scmp.ne.s32.totalorder %s139, %s140
    %p151 = scmp.eq.s32.totalorder %s16, 0
    %p152 = por %p150, %p151
    %p153 = scmp.ne.s32.totalorder %s139, %s140
    %p154 = scmp.eq.s32.totalorder %s17, 1
    %p155 = por %p153, %p154
    %p157 = scmp.ne.s32.totalorder %s140, %s156
    %p158 = scmp.eq.s32.totalorder %s17, 0
    %p159 = por %p157, %p158
    %p160 = scmp.le.s32.totalorder 1, %s11
    %p161 = scmp.lt.s32.totalorder %s11, 3
    %p162 = pnand %p160, %p161
    %p163 = pneg %p162
    // Predicated region
    $region9: #{decode_layer_forward.5} parent=5 // pred_check
      _
    $region10: #{decode_layer_forward.5} parent=5 // pred_check_branch
      %165 = sbr.rel (%p162) target = $region12
    $region11: #{decode_layer_forward.5} parent=5 // pred_region
      %s166 = ssub.s32 %s11, 1
      // Predicated region
      $region13: #{decode_layer_forward.5} parent=11 // pred_check
        %p167 = pneg %p84
      $region14: #{decode_layer_forward.5} parent=11 // pred_check_branch
        %169 = sbr.rel (%p167) target = $region16
      $region15: #{decode_layer_forward.5} parent=11 // pred_region
        _
      $region16: #{decode_layer_forward.5} parent=11 // pred_fallthru
        _
      // Predicated region
      $region17: #{decode_layer_forward.5} parent=11 // pred_check
        %p170 = pneg %p105
      $region18: #{decode_layer_forward.5} parent=11 // pred_check_branch
        %172 = sbr.rel (%p170) target = $region20
      $region19: #{decode_layer_forward.5} parent=11 // pred_region
        _
      $region20: #{decode_layer_forward.5} parent=11 // pred_fallthru
        _
      // Predicated region
      $region21: #{decode_layer_forward.5} parent=11 // pred_check
        %p173 = pneg %p126
      $region22: #{decode_layer_forward.5} parent=11 // pred_check_branch
        %175 = sbr.rel (%p173) target = $region24
      $region23: #{decode_layer_forward.5} parent=11 // pred_region
        _
      $region24: #{decode_layer_forward.5} parent=11 // pred_fallthru
        _
    $region12: #{decode_layer_forward.5} parent=5 // pred_fallthru
      _
    %p176 = scmp.lt.s32.totalorder %s11, 2
    // Predicated region
    $region25: #{decode_layer_forward.5} parent=5 // pred_check
      %p177 = pneg %p176
    $region26: #{decode_layer_forward.5} parent=5 // pred_check_branch
      %179 = sbr.rel (%p177) target = $region28
    $region27: #{decode_layer_forward.5} parent=5 // pred_region
      // Predicated region
      $region29: #{decode_layer_forward.5} parent=27 // pred_check
        %p180 = pneg %p31
      $region30: #{decode_layer_forward.5} parent=27 // pred_check_branch
        %182 = sbr.rel (%p180) target = $region32
      $region31: #{decode_layer_forward.5} parent=27 // pred_region
        %s183 = smul.u32 8, %s11
        %p184 = scmp.lt.s32.totalorder %s183, 15
        %s185 = scalar_select %p184, %s183, 15
        %s186 = smul.addr %s185, 8
        %s187 = scalar_lea.vmem %s0, %s186
        %s188 = smul.u32 8, %s11
      $region32: #{decode_layer_forward.5} parent=27 // pred_fallthru
        _
      // Predicated region
      $region33: #{decode_layer_forward.5} parent=27 // pred_check
        %p189 = pneg %p57
      $region34: #{decode_layer_forward.5} parent=27 // pred_check_branch
        %191 = sbr.rel (%p189) target = $region36
      $region35: #{decode_layer_forward.5} parent=27 // pred_region
        %s192 = smul.u32 8, %s11
        %p193 = scmp.lt.s32.totalorder %s192, 15
        %s194 = scalar_select %p193, %s192, 15
        %s195 = smul.addr %s194, 8
        %s196 = scalar_lea.vmem %s1, %s195
        %s197 = smul.u32 8, %s11
      $region36: #{decode_layer_forward.5} parent=27 // pred_fallthru
        _
    $region28: #{decode_layer_forward.5} parent=5 // pred_fallthru
      _
    %p198 = scmp.le.s32.totalorder 1, %s11
    %p199 = scmp.lt.s32.totalorder %s11, 3
    %p200 = pnand %p198, %p199
    %p201 = pneg %p200
    // Predicated region
    $region37: #{decode_layer_forward.5} parent=5 // pred_check
      _
    $region38: #{decode_layer_forward.5} parent=5 // pred_check_branch
      %203 = sbr.rel (%p200) target = $region40
    $region39: #{decode_layer_forward.5} parent=5 // pred_region
      %s204 = ssub.s32 %s11, 1
      %s205 = smul.u32 8, %s16
      %p206 = scmp.lt.s32.totalorder %s205, 15
      %s207 = scalar_select %p206, %s205, 15
      %s208 = smul.addr %s207, 8
      %s209 = scalar_lea.vmem %s0, %s208
      %p210 = pneg %p37
      %p211 = pneg %p34
      %s212 = smul.u32 8, %s16
      %p213 = scmp.lt.s32.totalorder %s212, 15
      %s214 = scalar_select %p213, %s212, 15
      %s215 = smul.addr %s214, 8
      %s216 = scalar_lea.vmem %s1, %s215
      %p217 = pneg %p63
      %p218 = pneg %p60
      %p219 = pneg %p84
      %p220 = pneg %p81
      %p221 = pneg %p105
      %p222 = pneg %p102
      %p223 = pneg %p126
      %p224 = pneg %p123
      %p225 = pneg %p152
      %p226 = pneg %p149
      %s227 = smul.u32 8, %s16
      %p228 = scmp.lt.s32.totalorder %s227, 15
      %s229 = scalar_select %p228, %s227, 15
      %s230 = smul.addr %s229, 8
      %s231 = scalar_lea.vmem %s5, %s230
      %s232 = smul.u32 8, %s16
      %p233 = scmp.lt.s32.totalorder %s232, 15
      %s234 = scalar_select %p233, %s232, 15
      %s235 = smul.addr %s234, 8
      %s236 = scalar_lea.vmem %s0, %s235
      %s237 = smul.u32 8, %s16
      %s238 = smul.u32 8, %s16
      %p239 = scmp.lt.s32.totalorder %s238, 15
      %s240 = scalar_select %p239, %s238, 15
      %s241 = smul.addr %s240, 8
      %s242 = scalar_lea.vmem %s1, %s241
      %s243 = smul.u32 8, %s16
      %s244 = smul.u32 8, %s16
      %p245 = scmp.lt.s32.totalorder %s244, 15
      %s246 = scalar_select %p245, %s244, 15
      %s247 = smul.addr %s246, 8
      %s248 = scalar_lea.vmem %s5, %s247
      %s249 = smul.u32 8, %s16
      %v251 = vld [vmem:[%s236] sm:$0xff]
      %v252 = vld [vmem:[%s236 + $0x8] sm:$0xff]
      %v253 = vld [vmem:[%s236 + $0x10] sm:$0xff]
      %v254 = vld [vmem:[%s236 + $0x18] sm:$0xff]
      %v255 = vld [vmem:[%s236 + $0x20] sm:$0xff]
      %v256 = vld [vmem:[%s236 + $0x28] sm:$0xff]
      %v257 = vld [vmem:[%s236 + $0x30] sm:$0xff]
      %v258 = vld [vmem:[%s236 + $0x38] sm:$0xff]
      %v259 = vpack.c.bf16 %v252, %v251
      %v260 = vpack.c.bf16 %v254, %v253
      %v261 = vpack.c.bf16 %v256, %v255
      %v262 = vpack.c.bf16 %v258, %v257
      %v263 = vld [vmem:[%s242] sm:$0xff]
      %v264 = vld [vmem:[%s242 + $0x8] sm:$0xff]
      %v265 = vld [vmem:[%s242 + $0x10] sm:$0xff]
      %v266 = vld [vmem:[%s242 + $0x18] sm:$0xff]
      %v267 = vld [vmem:[%s242 + $0x20] sm:$0xff]
      %v268 = vld [vmem:[%s242 + $0x28] sm:$0xff]
      %v269 = vld [vmem:[%s242 + $0x30] sm:$0xff]
      %v270 = vld [vmem:[%s242 + $0x38] sm:$0xff]
      %v271 = vpack.c.bf16 %v264, %v263
      %v272 = vpack.c.bf16 %v266, %v265
      %v273 = vpack.c.bf16 %v268, %v267
      %v274 = vpack.c.bf16 %v270, %v269
      %v275 = vld [vmem:[%s2] sm:$0xf]
      %v276 = vld [vmem:[%s2 + $0x4] sm:$0xf]
      %v277 = vld [vmem:[%s2 + $0x8] sm:$0xf]
      %v278 = vld [vmem:[%s2 + $0xc] sm:$0xf]
      %v279 = vld [vmem:[%s3] sm:$0xf]
      %v280 = vld [vmem:[%s3 + $0x4] sm:$0xf]
      %v281 = vld [vmem:[%s3 + $0x8] sm:$0xf]
      %v282 = vld [vmem:[%s3 + $0xc] sm:$0xf]
      %v287 = vunpack.c.l.b16 %v279
      %v288 = vunpack.c.l.b16 %v280
      %v289 = vunpack.c.l.b16 %v281
      %v290 = vunpack.c.l.b16 %v282
      %v291 = vpack.c.b16 %v288, %v287
      %v292 = vpack.c.b16 %v290, %v289
      %vm295 = vcmask 261120
      %v297 = vsel %vm295, %v271, 0
      %v300 = vsel %vm295, %v272, 0
      %v303 = vsel %vm295, %v273, 0
      %v306 = vsel %vm295, %v274, 0
      %308 = vmatprep.subr.bf16.mxu0 0
      %309 = vmatpush1.bf16.msra.mxu0 0
      %310 = vmatprep.subr.bf16.mxu0 0
      %311 = vmatpush1.bf16.msra.mxu0 0
      %312 = vmatprep.subr.bf16.mxu0 0
      %313 = vmatpush1.bf16.msra.mxu0 0
      %314 = vmatprep.subr.bf16.mxu0 0
      %315 = vmatpush1.bf16.msra.mxu0 0
      %316 = vmatprep.subr.bf16.mxu0 0
      %317 = vmatpush1.bf16.msra.mxu0 0
      %318 = vmatprep.subr.bf16.mxu0 0
      %319 = vmatpush1.bf16.msra.mxu0 0
      %320 = vmatprep.subr.bf16.mxu0 0
      %321 = vmatpush1.bf16.msra.mxu0 %v292
      %322 = vmatprep.subr.bf16.mxu0 0
      %323 = vmatpush1.bf16.msra.mxu0 %v291
      %324 = vmatprep.subr.bf16.mxu0 0
      %325 = vmatpush2.bf16.msra.mxu0 0
      %326 = vmatprep.subr.bf16.mxu0 0
      %327 = vmatpush2.bf16.msra.mxu0 0
      %328 = vmatprep.subr.bf16.mxu0 0
      %329 = vmatpush2.bf16.msra.mxu0 0
      %330 = vmatprep.subr.bf16.mxu0 0
      %331 = vmatpush2.bf16.msra.mxu0 0
      %332 = vmatprep.subr.bf16.mxu0 0
      %333 = vmatpush2.bf16.msra.mxu0 0
      %334 = vmatprep.subr.bf16.mxu0 0
      %335 = vmatpush2.bf16.msra.mxu0 0
      %336 = vmatprep.subr.bf16.mxu0 0
      %337 = vmatpush2.bf16.msra.mxu0 0
      %338 = vmatprep.subr.bf16.mxu0 0
      %339 = vmatpush2.bf16.msra.mxu0 0
      %340 = vmatprep.mubr.bf16.mxu0 0
      %341 = vmatmul.mubr.bf16.gmra.mxu0 %v297
      %v342 = vpop.f32.mrf.mxu0
      %v343 = vadd.f32 0.0, %v342
      %v344 = vpop.f32.mrf.mxu0
      %v345 = vpop.f32.mrf.mxu0
      %v346 = vadd.f32 0.0, %v345
      %v347 = vpop.f32.mrf.mxu0
      %348 = vmatprep.mubr.bf16.mxu0 0
      %349 = vmatmul.mubr.bf16.gmra.mxu0 %v300
      %v350 = vpop.f32.mrf.mxu0
      %v351 = vadd.f32 0.0, %v350
      %v352 = vpop.f32.mrf.mxu0
      %v353 = vpop.f32.mrf.mxu0
      %v354 = vadd.f32 0.0, %v353
      %v355 = vpop.f32.mrf.mxu0
      %356 = vmatprep.mubr.bf16.mxu0 0
      %357 = vmatmul.mubr.bf16.gmra.mxu0 %v303
      %v358 = vpop.f32.mrf.mxu0
      %v359 = vadd.f32 0.0, %v358
      %v360 = vpop.f32.mrf.mxu0
      %v361 = vpop.f32.mrf.mxu0
      %v362 = vadd.f32 0.0, %v361
      %v363 = vpop.f32.mrf.mxu0
      %364 = vmatprep.mubr.bf16.mxu0 0
      %365 = vmatmul.mubr.bf16.gmra.mxu0 %v306
      %v366 = vpop.f32.mrf.mxu0
      %v367 = vadd.f32 0.0, %v366
      %v368 = vpop.f32.mrf.mxu0
      %v369 = vpop.f32.mrf.mxu0
      %v370 = vadd.f32 0.0, %v369
      %v371 = vpop.f32.mrf.mxu0
      %372 = vdwg.mxu0
      %v377 = vunpack.c.l.b16 %v275
      %v378 = vunpack.c.l.b16 %v276
      %v379 = vunpack.c.l.b16 %v277
      %v380 = vunpack.c.l.b16 %v278
      %v381 = vpack.c.b16 %v378, %v377
      %v382 = vpack.c.b16 %v380, %v379
      %v386 = vsel %vm295, %v259, 0
      %v389 = vsel %vm295, %v260, 0
      %v392 = vsel %vm295, %v261, 0
      %v395 = vsel %vm295, %v262, 0
      %397 = vmatprep.subr.bf16.mxu0 0
      %398 = vmatpush1.bf16.msra.mxu0 0
      %399 = vmatprep.subr.bf16.mxu0 0
      %400 = vmatpush1.bf16.msra.mxu0 0
      %401 = vmatprep.subr.bf16.mxu0 0
      %402 = vmatpush1.bf16.msra.mxu0 0
      %403 = vmatprep.subr.bf16.mxu0 0
      %404 = vmatpush1.bf16.msra.mxu0 0
      %405 = vmatprep.subr.bf16.mxu0 0
      %406 = vmatpush1.bf16.msra.mxu0 0
      %407 = vmatprep.subr.bf16.mxu0 0
      %408 = vmatpush1.bf16.msra.mxu0 0
      %409 = vmatprep.subr.bf16.mxu0 0
      %410 = vmatpush1.bf16.msra.mxu0 %v382
      %411 = vmatprep.subr.bf16.mxu0 0
      %412 = vmatpush1.bf16.msra.mxu0 %v381
      %413 = vmatprep.subr.bf16.mxu0 0
      %414 = vmatpush2.bf16.msra.mxu0 0
      %415 = vmatprep.subr.bf16.mxu0 0
      %416 = vmatpush2.bf16.msra.mxu0 0
      %417 = vmatprep.subr.bf16.mxu0 0
      %418 = vmatpush2.bf16.msra.mxu0 0
      %419 = vmatprep.subr.bf16.mxu0 0
      %420 = vmatpush2.bf16.msra.mxu0 0
      %421 = vmatprep.subr.bf16.mxu0 0
      %422 = vmatpush2.bf16.msra.mxu0 0
      %423 = vmatprep.subr.bf16.mxu0 0
      %424 = vmatpush2.bf16.msra.mxu0 0
      %425 = vmatprep.subr.bf16.mxu0 0
      %426 = vmatpush2.bf16.msra.mxu0 0
      %427 = vmatprep.subr.bf16.mxu0 0
      %428 = vmatpush2.bf16.msra.mxu0 0
      %429 = vmatprep.mubr.bf16.mxu0 0
      %430 = vmatmul.mubr.bf16.gmra.mxu0 %v386
      %v431 = vpop.f32.mrf.mxu0
      %v432 = vadd.f32 %v343, %v431
      %v433 = vpop.f32.mrf.mxu0
      %v434 = vpop.f32.mrf.mxu0
      %v435 = vadd.f32 %v346, %v434
      %v436 = vpop.f32.mrf.mxu0
      %437 = vmatprep.mubr.bf16.mxu0 0
      %438 = vmatmul.mubr.bf16.gmra.mxu0 %v389
      %v439 = vpop.f32.mrf.mxu0
      %v440 = vadd.f32 %v351, %v439
      %v441 = vpop.f32.mrf.mxu0
      %v442 = vpop.f32.mrf.mxu0
      %v443 = vadd.f32 %v354, %v442
      %v444 = vpop.f32.mrf.mxu0
      %445 = vmatprep.mubr.bf16.mxu0 0
      %446 = vmatmul.mubr.bf16.gmra.mxu0 %v392
      %v447 = vpop.f32.mrf.mxu0
      %v448 = vadd.f32 %v359, %v447
      %v449 = vpop.f32.mrf.mxu0
      %v450 = vpop.f32.mrf.mxu0
      %v451 = vadd.f32 %v362, %v450
      %v452 = vpop.f32.mrf.mxu0
      %453 = vmatprep.mubr.bf16.mxu0 0
      %454 = vmatmul.mubr.bf16.gmra.mxu0 %v395
      %v455 = vpop.f32.mrf.mxu0
      %v456 = vadd.f32 %v367, %v455
      %v457 = vpop.f32.mrf.mxu0
      %v458 = vpop.f32.mrf.mxu0
      %v459 = vadd.f32 %v370, %v458
      %v460 = vpop.f32.mrf.mxu0
      %461 = vdwg.mxu0
      %v462 = vld [vmem:[%s4] sm:$0x1]
      %v464 = vlaneseq
      %v465 = vshrl.u32 %v464, 7
      %v466 = vsub.s32 0, %v465
      %v467 = vrot.slane %v462, %v466
      %v469 = vadd.f32 %v432, %v467
      %v470 = vadd.f32 %v435, %v467
      %v471 = vadd.f32 %v440, %v467
      %v472 = vadd.f32 %v443, %v467
      %v473 = vadd.f32 %v448, %v467
      %v474 = vadd.f32 %v451, %v467
      %v475 = vadd.f32 %v456, %v467
      %v476 = vadd.f32 %v459, %v467
      %477 = vst.msk [vmem:[%s248] sm:$0xff] %vm295, %v469
      %478 = vst.msk [vmem:[%s248 + $0x8] sm:$0xff] %vm295, %v470
      %479 = vst.msk [vmem:[%s248 + $0x10] sm:$0xff] %vm295, %v471
      %480 = vst.msk [vmem:[%s248 + $0x18] sm:$0xff] %vm295, %v472
      %481 = vst.msk [vmem:[%s248 + $0x20] sm:$0xff] %vm295, %v473
      %482 = vst.msk [vmem:[%s248 + $0x28] sm:$0xff] %vm295, %v474
      %483 = vst.msk [vmem:[%s248 + $0x30] sm:$0xff] %vm295, %v475
      %484 = vst.msk [vmem:[%s248 + $0x38] sm:$0xff] %vm295, %v476
      %s485 = smul.u32 8, %s16
      %p486 = scmp.lt.s32.totalorder %s485, 15
      %s487 = scalar_select %p486, %s485, 15
      %s488 = smul.addr %s487, 8
      %s489 = scalar_lea.vmem %s5, %s488
      // Predicated region
      $region41: #{decode_layer_forward.5} parent=39 // pred_check
        %p490 = pneg %p149
      $region42: #{decode_layer_forward.5} parent=39 // pred_check_branch
        %492 = sbr.rel (%p490) target = $region44
      $region43: #{decode_layer_forward.5} parent=39 // pred_region
        %s493 = smul.u32 8, %s16
      $region44: #{decode_layer_forward.5} parent=39 // pred_fallthru
        _
    $region40: #{decode_layer_forward.5} parent=5 // pred_fallthru
      _
    %p494 = scmp.le.s32.totalorder 2, %s11
    // Predicated region
    $region45: #{decode_layer_forward.5} parent=5 // pred_check
      %p495 = pneg %p494
    $region46: #{decode_layer_forward.5} parent=5 // pred_check_branch
      %497 = sbr.rel (%p495) target = $region48
    $region47: #{decode_layer_forward.5} parent=5 // pred_region
      %s498 = ssub.s32 %s11, 2
      // Predicated region
      $region49: #{decode_layer_forward.5} parent=47 // pred_check
        %p499 = pneg %p155
      $region50: #{decode_layer_forward.5} parent=47 // pred_check_branch
        %501 = sbr.rel (%p499) target = $region52
      $region51: #{decode_layer_forward.5} parent=47 // pred_region
        %s502 = smul.u32 8, %s17
        %p503 = scmp.lt.s32.totalorder %s502, 15
        %s504 = scalar_select %p503, %s502, 15
        %s505 = smul.addr %s504, 8
        %s506 = scalar_lea.vmem %s5, %s505
      $region52: #{decode_layer_forward.5} parent=47 // pred_fallthru
        _
    $region48: #{decode_layer_forward.5} parent=5 // pred_fallthru
      _
  $region6: #{decode_layer_forward.5} parent=0 // loop_footer
    %s15 = sadd.s32 1, %s11
  $region7: #{decode_layer_forward.5} parent=0 // loop_footer_branch
    %10 = sbr.rel target = $region3
  $region8: #{decode_layer_forward.5} parent=0 // loop_exit
    _

// kernel: decode_layer_forward.6
$region0: #{decode_layer_forward.6}
  #allocation0 [shape = 'u32[]', space=smem, size = 0x4, offset = 0x4, fixed_abs, tag = 'smem constant byte address 0x4 - core index']
  #allocation1 [shape = 'u32[144,128]{1,0:T(1,128)}', space=vmem, size = 0x12000, scoped, tag = 'internal scratch']
  %s0 = inlined_call_operand.vmem [shape: f32[8,16,32], index: 0, kind: input, shape index: {}]
  %s1 = inlined_call_operand.vmem [shape: f32[1,32], index: 1, kind: input, shape index: {}]
  %s2 = inlined_call_operand.vmem [shape: f32[1,32], index: 2, kind: input, shape index: {}]
  %s3 = inlined_call_operand.vmem [shape: bf16[32,96], index: 3, kind: input, shape index: {}]
  %s4 = inlined_call_operand.vmem [shape: f32[4,16,16], index: 4, kind: input, shape index: {}]
  %s5 = inlined_call_operand.vmem [shape: bf16[32,32], index: 5, kind: input, shape index: {}]
  %s6 = inlined_call_operand.vmem [shape: f32[1,32], index: 6, kind: input, shape index: {}]
  %s7 = inlined_call_operand.vmem [shape: f32[8,16,32], index: 7, kind: output, shape index: {}]
  %s8 = sld [smem:[#allocation0]]
  $region61: #{decode_layer_forward.6} parent=0
    _
  %s10 = ssub.s32 1, %s8
  %s11 = scalar_select 0, %s10, %s8
  loop: start=0, step=1, limit=4
  $region2: #{decode_layer_forward.6} parent=0 // loop_pre_header
    _
  $region3: #{decode_layer_forward.6} parent=0 // loop_header
    %s13 = sphi 0, %s17
    %p14 = scmp.ge.s32.totalorder %s13, 4
    %s23 = sphi 0, %s25
    %s26 = sphi 0, %s23
    %s27 = sphi 0, %s26
    %s43 = sphi 0, %s27
    %s47 = sphi 0, %s47
    %s49 = sphi 0, %s47
    %s50 = sphi 0, %s49
    %s64 = sphi 0, %s50
    %s68 = sphi 0, %s68
    %s70 = sphi 0, %s68
    %s71 = sphi 0, %s70
    %s85 = sphi 0, %s71
    %s89 = sphi 0, %s89
    %s91 = sphi 0, %s89
    %s92 = sphi 0, %s91
    %s106 = sphi 0, %s92
    %s110 = sphi 0, %s110
    %s112 = sphi 0, %s110
    %s113 = sphi 0, %s112
    %s127 = sphi 0, %s113
    %s131 = sphi 0, %s131
    %s133 = sphi 0, %s131
    %s134 = sphi 0, %s133
    %s148 = sphi 0, %s134
    %s152 = sphi 0, %s152
    %s154 = sphi 0, %s152
    %s155 = sphi 0, %s154
    %s169 = sphi 0, %s155
    %s175 = sphi 0, %s177
    %s178 = sphi 0, %s175
    %s179 = sphi 0, %s178
    %s195 = sphi 0, %s179
  $region4: #{decode_layer_forward.6} parent=0 // loop_header_branch
    %16 = sbr.rel (%p14) target = $region8
  $region5: #{decode_layer_forward.6} parent=0 // loop_body
    %s18 = ssub.s32 %s13, 1
    %s19 = ssub.s32 %s13, 2
    %s20 = sadd.s32 %s13, 1
    %s21 = ssub.s32 %s13, %s20
    %p22 = scmp.eq.s32.totalorder %s21, 0
    %s24 = sadd.s32 %s23, 1
    %s25 = scalar_select %p22, %s23, %s24
    %p28 = pneg %p22
    %p29 = scmp.eq.s32.totalorder %s13, 1
    %p30 = por %p28, %p29
    %p31 = scmp.ne.s32.totalorder %s23, %s26
    %p32 = scmp.eq.s32.totalorder %s13, 0
    %p33 = por %p31, %p32
    %p34 = scmp.ne.s32.totalorder %s23, %s26
    %p35 = scmp.eq.s32.totalorder %s18, 1
    %p36 = por %p34, %p35
    %p37 = scmp.ne.s32.totalorder %s26, %s27
    %p38 = scmp.eq.s32.totalorder %s18, 0
    %p39 = por %p37, %p38
    %p40 = scmp.ne.s32.totalorder %s26, %s27
    %p41 = scmp.eq.s32.totalorder %s19, 1
    %p42 = por %p40, %p41
    %p44 = scmp.ne.s32.totalorder %s27, %s43
    %p45 = scmp.eq.s32.totalorder %s19, 0
    %p46 = por %p44, %p45
    %s48 = sadd.s32 %s47, 1
    %p51 = scmp.eq.s32.totalorder %s13, 1
    %p52 = scmp.ne.s32.totalorder %s47, %s49
    %p53 = scmp.eq.s32.totalorder %s13, 0
    %p54 = por %p52, %p53
    %p55 = scmp.ne.s32.totalorder %s47, %s49
    %p56 = scmp.eq.s32.totalorder %s18, 1
    %p57 = por %p55, %p56
    %p58 = scmp.ne.s32.totalorder %s49, %s50
    %p59 = scmp.eq.s32.totalorder %s18, 0
    %p60 = por %p58, %p59
    %p61 = scmp.ne.s32.totalorder %s49, %s50
    %p62 = scmp.eq.s32.totalorder %s19, 1
    %p63 = por %p61, %p62
    %p65 = scmp.ne.s32.totalorder %s50, %s64
    %p66 = scmp.eq.s32.totalorder %s19, 0
    %p67 = por %p65, %p66
    %s69 = sadd.s32 %s68, 1
    %p72 = scmp.eq.s32.totalorder %s13, 1
    %p73 = scmp.ne.s32.totalorder %s68, %s70
    %p74 = scmp.eq.s32.totalorder %s13, 0
    %p75 = por %p73, %p74
    %p76 = scmp.ne.s32.totalorder %s68, %s70
    %p77 = scmp.eq.s32.totalorder %s18, 1
    %p78 = por %p76, %p77
    %p79 = scmp.ne.s32.totalorder %s70, %s71
    %p80 = scmp.eq.s32.totalorder %s18, 0
    %p81 = por %p79, %p80
    %p82 = scmp.ne.s32.totalorder %s70, %s71
    %p83 = scmp.eq.s32.totalorder %s19, 1
    %p84 = por %p82, %p83
    %p86 = scmp.ne.s32.totalorder %s71, %s85
    %p87 = scmp.eq.s32.totalorder %s19, 0
    %p88 = por %p86, %p87
    %s90 = sadd.s32 %s89, 1
    %p93 = scmp.eq.s32.totalorder %s13, 1
    %p94 = scmp.ne.s32.totalorder %s89, %s91
    %p95 = scmp.eq.s32.totalorder %s13, 0
    %p96 = por %p94, %p95
    %p97 = scmp.ne.s32.totalorder %s89, %s91
    %p98 = scmp.eq.s32.totalorder %s18, 1
    %p99 = por %p97, %p98
    %p100 = scmp.ne.s32.totalorder %s91, %s92
    %p101 = scmp.eq.s32.totalorder %s18, 0
    %p102 = por %p100, %p101
    %p103 = scmp.ne.s32.totalorder %s91, %s92
    %p104 = scmp.eq.s32.totalorder %s19, 1
    %p105 = por %p103, %p104
    %p107 = scmp.ne.s32.totalorder %s92, %s106
    %p108 = scmp.eq.s32.totalorder %s19, 0
    %p109 = por %p107, %p108
    %s111 = sadd.s32 %s110, 1
    %p114 = scmp.eq.s32.totalorder %s13, 1
    %p115 = scmp.ne.s32.totalorder %s110, %s112
    %p116 = scmp.eq.s32.totalorder %s13, 0
    %p117 = por %p115, %p116
    %p118 = scmp.ne.s32.totalorder %s110, %s112
    %p119 = scmp.eq.s32.totalorder %s18, 1
    %p120 = por %p118, %p119
    %p121 = scmp.ne.s32.totalorder %s112, %s113
    %p122 = scmp.eq.s32.totalorder %s18, 0
    %p123 = por %p121, %p122
    %p124 = scmp.ne.s32.totalorder %s112, %s113
    %p125 = scmp.eq.s32.totalorder %s19, 1
    %p126 = por %p124, %p125
    %p128 = scmp.ne.s32.totalorder %s113, %s127
    %p129 = scmp.eq.s32.totalorder %s19, 0
    %p130 = por %p128, %p129
    %s132 = sadd.s32 %s131, 1
    %p135 = scmp.eq.s32.totalorder %s13, 1
    %p136 = scmp.ne.s32.totalorder %s131, %s133
    %p137 = scmp.eq.s32.totalorder %s13, 0
    %p138 = por %p136, %p137
    %p139 = scmp.ne.s32.totalorder %s131, %s133
    %p140 = scmp.eq.s32.totalorder %s18, 1
    %p141 = por %p139, %p140
    %p142 = scmp.ne.s32.totalorder %s133, %s134
    %p143 = scmp.eq.s32.totalorder %s18, 0
    %p144 = por %p142, %p143
    %p145 = scmp.ne.s32.totalorder %s133, %s134
    %p146 = scmp.eq.s32.totalorder %s19, 1
    %p147 = por %p145, %p146
    %p149 = scmp.ne.s32.totalorder %s134, %s148
    %p150 = scmp.eq.s32.totalorder %s19, 0
    %p151 = por %p149, %p150
    %s153 = sadd.s32 %s152, 1
    %p156 = scmp.eq.s32.totalorder %s13, 1
    %p157 = scmp.ne.s32.totalorder %s152, %s154
    %p158 = scmp.eq.s32.totalorder %s13, 0
    %p159 = por %p157, %p158
    %p160 = scmp.ne.s32.totalorder %s152, %s154
    %p161 = scmp.eq.s32.totalorder %s18, 1
    %p162 = por %p160, %p161
    %p163 = scmp.ne.s32.totalorder %s154, %s155
    %p164 = scmp.eq.s32.totalorder %s18, 0
    %p165 = por %p163, %p164
    %p166 = scmp.ne.s32.totalorder %s154, %s155
    %p167 = scmp.eq.s32.totalorder %s19, 1
    %p168 = por %p166, %p167
    %p170 = scmp.ne.s32.totalorder %s155, %s169
    %p171 = scmp.eq.s32.totalorder %s19, 0
    %p172 = por %p170, %p171
    %s173 = ssub.s32 %s13, %s20
    %p174 = scmp.eq.s32.totalorder %s173, 0
    %s176 = sadd.s32 %s175, 1
    %s177 = scalar_select %p174, %s175, %s176
    %p180 = pneg %p174
    %p181 = scmp.eq.s32.totalorder %s13, 1
    %p182 = por %p180, %p181
    %p183 = scmp.ne.s32.totalorder %s175, %s178
    %p184 = scmp.eq.s32.totalorder %s13, 0
    %p185 = por %p183, %p184
    %p186 = scmp.ne.s32.totalorder %s175, %s178
    %p187 = scmp.eq.s32.totalorder %s18, 1
    %p188 = por %p186, %p187
    %p189 = scmp.ne.s32.totalorder %s178, %s179
    %p190 = scmp.eq.s32.totalorder %s18, 0
    %p191 = por %p189, %p190
    %p192 = scmp.ne.s32.totalorder %s178, %s179
    %p193 = scmp.eq.s32.totalorder %s19, 1
    %p194 = por %p192, %p193
    %p196 = scmp.ne.s32.totalorder %s179, %s195
    %p197 = scmp.eq.s32.totalorder %s19, 0
    %p198 = por %p196, %p197
    %p199 = scmp.le.s32.totalorder 1, %s13
    %p200 = scmp.lt.s32.totalorder %s13, 3
    %p201 = pnand %p199, %p200
    %p202 = pneg %p201
    // Predicated region
    $region9: #{decode_layer_forward.6} parent=5 // pred_check
      _
    $region10: #{decode_layer_forward.6} parent=5 // pred_check_branch
      %204 = sbr.rel (%p201) target = $region12
    $region11: #{decode_layer_forward.6} parent=5 // pred_region
      %s205 = ssub.s32 %s13, 1
      // Predicated region
      $region13: #{decode_layer_forward.6} parent=11 // pred_check
        %p206 = pneg %p60
      $region14: #{decode_layer_forward.6} parent=11 // pred_check_branch
        %208 = sbr.rel (%p206) target = $region16
      $region15: #{decode_layer_forward.6} parent=11 // pred_region
        _
      $region16: #{decode_layer_forward.6} parent=11 // pred_fallthru
        _
      // Predicated region
      $region17: #{decode_layer_forward.6} parent=11 // pred_check
        %p209 = pneg %p81
      $region18: #{decode_layer_forward.6} parent=11 // pred_check_branch
        %211 = sbr.rel (%p209) target = $region20
      $region19: #{decode_layer_forward.6} parent=11 // pred_region
        _
      $region20: #{decode_layer_forward.6} parent=11 // pred_fallthru
        _
      // Predicated region
      $region21: #{decode_layer_forward.6} parent=11 // pred_check
        %p212 = pneg %p102
      $region22: #{decode_layer_forward.6} parent=11 // pred_check_branch
        %214 = sbr.rel (%p212) target = $region24
      $region23: #{decode_layer_forward.6} parent=11 // pred_region
        _
      $region24: #{decode_layer_forward.6} parent=11 // pred_fallthru
        _
      // Predicated region
      $region25: #{decode_layer_forward.6} parent=11 // pred_check
        %p215 = pneg %p123
      $region26: #{decode_layer_forward.6} parent=11 // pred_check_branch
        %217 = sbr.rel (%p215) target = $region28
      $region27: #{decode_layer_forward.6} parent=11 // pred_region
        _
      $region28: #{decode_layer_forward.6} parent=11 // pred_fallthru
        _
      // Predicated region
      $region29: #{decode_layer_forward.6} parent=11 // pred_check
        %p218 = pneg %p144
      $region30: #{decode_layer_forward.6} parent=11 // pred_check_branch
        %220 = sbr.rel (%p218) target = $region32
      $region31: #{decode_layer_forward.6} parent=11 // pred_region
        _
      $region32: #{decode_layer_forward.6} parent=11 // pred_fallthru
        _
      // Predicated region
      $region33: #{decode_layer_forward.6} parent=11 // pred_check
        %p221 = pneg %p165
      $region34: #{decode_layer_forward.6} parent=11 // pred_check_branch
        %223 = sbr.rel (%p221) target = $region36
      $region35: #{decode_layer_forward.6} parent=11 // pred_region
        _
      $region36: #{decode_layer_forward.6} parent=11 // pred_fallthru
        _
    $region12: #{decode_layer_forward.6} parent=5 // pred_fallthru
      _
    %p224 = scmp.lt.s32.totalorder %s13, 2
    // Predicated region
    $region37: #{decode_layer_forward.6} parent=5 // pred_check
      %p225 = pneg %p224
    $region38: #{decode_layer_forward.6} parent=5 // pred_check_branch
      %227 = sbr.rel (%p225) target = $region40
    $region39: #{decode_layer_forward.6} parent=5 // pred_region
      // Predicated region
      $region41: #{decode_layer_forward.6} parent=39 // pred_check
        %p228 = pneg %p33
      $region42: #{decode_layer_forward.6} parent=39 // pred_check_branch
        %230 = sbr.rel (%p228) target = $region44
      $region43: #{decode_layer_forward.6} parent=39 // pred_region
        %s231 = smul.u32 4, %s13
        %p232 = scmp.lt.s32.totalorder %s231, 7
        %s233 = scalar_select %p232, %s231, 7
        %s234 = smul.addr %s233, 2
        %s235 = smul.addr %s234, 8
        %s236 = scalar_lea.vmem %s0, %s235
        %s237 = smul.u32 4, %s13
      $region44: #{decode_layer_forward.6} parent=39 // pred_fallthru
        _
    $region40: #{decode_layer_forward.6} parent=5 // pred_fallthru
      _
    %p238 = scmp.le.s32.totalorder 1, %s13
    %p239 = scmp.lt.s32.totalorder %s13, 3
    %p240 = pnand %p238, %p239
    %p241 = pneg %p240
    // Predicated region
    $region45: #{decode_layer_forward.6} parent=5 // pred_check
      _
    $region46: #{decode_layer_forward.6} parent=5 // pred_check_branch
      %243 = sbr.rel (%p240) target = $region48
    $region47: #{decode_layer_forward.6} parent=5 // pred_region
      %s244 = ssub.s32 %s13, 1
      %s245 = smul.u32 4, %s18
      %p246 = scmp.lt.s32.totalorder %s245, 7
      %s247 = scalar_select %p246, %s245, 7
      %s248 = smul.addr %s247, 2
      %s249 = smul.addr %s248, 8
      %s250 = scalar_lea.vmem %s0, %s249
      %p251 = pneg %p39
      %p252 = pneg %p36
      %p253 = pneg %p60
      %p254 = pneg %p57
      %p255 = pneg %p81
      %p256 = pneg %p78
      %p257 = pneg %p102
      %p258 = pneg %p99
      %p259 = pneg %p123
      %p260 = pneg %p120
      %p261 = pneg %p144
      %p262 = pneg %p141
      %p263 = pneg %p165
      %p264 = pneg %p162
      %p265 = pneg %p191
      %p266 = pneg %p188
      %s267 = smul.u32 4, %s18
      %p268 = scmp.lt.s32.totalorder %s267, 7
      %s269 = scalar_select %p268, %s267, 7
      %s270 = smul.addr %s269, 2
      %s271 = smul.addr %s270, 8
      %s272 = scalar_lea.vmem %s7, %s271
      %s273 = smul.u32 4, %s18
      %p274 = scmp.lt.s32.totalorder %s273, 7
      %s275 = scalar_select %p274, %s273, 7
      %s276 = smul.addr %s275, 2
      %s277 = smul.addr %s276, 8
      %s278 = scalar_lea.vmem %s0, %s277
      %s279 = smul.u32 4, %s18
      %s280 = smul.u32 4, %s18
      %p281 = scmp.lt.s32.totalorder %s280, 7
      %s282 = scalar_select %p281, %s280, 7
      %s283 = smul.addr %s282, 2
      %s284 = smul.addr %s283, 8
      %s285 = scalar_lea.vmem %s7, %s284
      %s286 = smul.u32 4, %s18
      %v288 = vld [vmem:[%s278] sm:$0xff]
      %v289 = vld [vmem:[%s278 + $0x8] sm:$0xff]
      %v290 = vld [vmem:[%s278 + $0x10] sm:$0xff]
      %v291 = vld [vmem:[%s278 + $0x18] sm:$0xff]
      %v292 = vld [vmem:[%s278 + $0x20] sm:$0xff]
      %v293 = vld [vmem:[%s278 + $0x28] sm:$0xff]
      %v294 = vld [vmem:[%s278 + $0x30] sm:$0xff]
      %v295 = vld [vmem:[%s278 + $0x38] sm:$0xff]
      %vm296 = vcmask 261120
      %v297 = vsel %vm296, %v288, 0.0
      %298 = vadd.xlane.f32.xlu0 %v297
      %v299 = vpop.xlane.xlu0 %298
      %v300 = vsel %vm296, %v289, 0.0
      %301 = vadd.xlane.f32.xlu0 %v300
      %v302 = vpop.xlane.xlu0 %301
      %v303 = vsel %vm296, %v290, 0.0
      %304 = vadd.xlane.f32.xlu0 %v303
      %v305 = vpop.xlane.xlu0 %304
      %v306 = vsel %vm296, %v291, 0.0
      %307 = vadd.xlane.f32.xlu0 %v306
      %v308 = vpop.xlane.xlu0 %307
      %v309 = vsel %vm296, %v292, 0.0
      %310 = vadd.xlane.f32.xlu0 %v309
      %v311 = vpop.xlane.xlu0 %310
      %v312 = vsel %vm296, %v293, 0.0
      %313 = vadd.xlane.f32.xlu0 %v312
      %v314 = vpop.xlane.xlu0 %313
      %v315 = vsel %vm296, %v294, 0.0
      %316 = vadd.xlane.f32.xlu0 %v315
      %v317 = vpop.xlane.xlu0 %316
      %v318 = vsel %vm296, %v295, 0.0
      %319 = vadd.xlane.f32.xlu0 %v318
      %v320 = vpop.xlane.xlu0 %319
      %v321 = vrcp.pop 32.0
      %v322 = vmul.f32 %v299, %v321
      %v323 = vmul.f32 %v302, %v321
      %v324 = vmul.f32 %v305, %v321
      %v325 = vmul.f32 %v308, %v321
      %v326 = vmul.f32 %v311, %v321
      %v327 = vmul.f32 %v314, %v321
      %v328 = vmul.f32 %v317, %v321
      %v329 = vmul.f32 %v320, %v321
      %v330 = vsub.f32 %v288, %v322
      %v331 = vsub.f32 %v289, %v323
      %v332 = vsub.f32 %v290, %v324
      %v333 = vsub.f32 %v291, %v325
      %v334 = vsub.f32 %v292, %v326
      %v335 = vsub.f32 %v293, %v327
      %v336 = vsub.f32 %v294, %v328
      %v337 = vsub.f32 %v295, %v329
      %v338 = vmul.f32 %v330, %v330
      %v339 = vmul.f32 %v331, %v331
      %v340 = vmul.f32 %v332, %v332
      %v341 = vmul.f32 %v333, %v333
      %v342 = vmul.f32 %v334, %v334
      %v343 = vmul.f32 %v335, %v335
      %v344 = vmul.f32 %v336, %v336
      %v345 = vmul.f32 %v337, %v337
      %v346 = vsel %vm296, %v338, 0.0
      %347 = vadd.xlane.f32.xlu0 %v346
      %v348 = vpop.xlane.xlu0 %347
      %v349 = vsel %vm296, %v339, 0.0
      %350 = vadd.xlane.f32.xlu0 %v349
      %v351 = vpop.xlane.xlu0 %350
      %v352 = vsel %vm296, %v340, 0.0
      %353 = vadd.xlane.f32.xlu0 %v352
      %v354 = vpop.xlane.xlu0 %353
      %v355 = vsel %vm296, %v341, 0.0
      %356 = vadd.xlane.f32.xlu0 %v355
      %v357 = vpop.xlane.xlu0 %356
      %v358 = vsel %vm296, %v342, 0.0
      %359 = vadd.xlane.f32.xlu0 %v358
      %v360 = vpop.xlane.xlu0 %359
      %v361 = vsel %vm296, %v343, 0.0
      %362 = vadd.xlane.f32.xlu0 %v361
      %v363 = vpop.xlane.xlu0 %362
      %v364 = vsel %vm296, %v344, 0.0
      %365 = vadd.xlane.f32.xlu0 %v364
      %v366 = vpop.xlane.xlu0 %365
      %v367 = vsel %vm296, %v345, 0.0
      %368 = vadd.xlane.f32.xlu0 %v367
      %v369 = vpop.xlane.xlu0 %368
      %v370 = vmul.f32 %v348, %v321
      %v371 = vmul.f32 %v351, %v321
      %v372 = vmul.f32 %v354, %v321
      %v373 = vmul.f32 %v357, %v321
      %v374 = vmul.f32 %v360, %v321
      %v375 = vmul.f32 %v363, %v321
      %v376 = vmul.f32 %v366, %v321
      %v377 = vmul.f32 %v369, %v321
      %v378 = vadd.f32 %v370, 1e-05
      %v379 = vadd.f32 %v371, 1e-05
      %v380 = vadd.f32 %v372, 1e-05
      %v381 = vadd.f32 %v373, 1e-05
      %v382 = vadd.f32 %v374, 1e-05
      %v383 = vadd.f32 %v375, 1e-05
      %v384 = vadd.f32 %v376, 1e-05
      %v385 = vadd.f32 %v377, 1e-05
      %v386 = vrsqrt.pop %v378
      %v387 = vrsqrt.pop %v379
      %v388 = vrsqrt.pop %v380
      %v389 = vrsqrt.pop %v381
      %v390 = vrsqrt.pop %v382
      %v391 = vrsqrt.pop %v383
      %v392 = vrsqrt.pop %v384
      %v393 = vrsqrt.pop %v385
      %v394 = vmul.f32 %v330, %v386
      %v395 = vmul.f32 %v331, %v387
      %v396 = vmul.f32 %v332, %v388
      %v397 = vmul.f32 %v333, %v389
      %v398 = vmul.f32 %v334, %v390
      %v399 = vmul.f32 %v335, %v391
      %v400 = vmul.f32 %v336, %v392
      %v401 = vmul.f32 %v337, %v393
      %v402 = vld [vmem:[%s1] sm:$0x1]
      %v404 = vlaneseq
      %v405 = vshrl.u32 %v404, 7
      %v406 = vsub.s32 0, %v405
      %v407 = vrot.slane %v402, %v406
      %v409 = vmul.f32 %v394, %v407
      %v410 = vmul.f32 %v395, %v407
      %v411 = vmul.f32 %v396, %v407
      %v412 = vmul.f32 %v397, %v407
      %v413 = vmul.f32 %v398, %v407
      %v414 = vmul.f32 %v399, %v407
      %v415 = vmul.f32 %v400, %v407
      %v416 = vmul.f32 %v401, %v407
      %v417 = vld [vmem:[%s2] sm:$0x1]
      %v419 = vlaneseq
      %v420 = vshrl.u32 %v419, 7
      %v421 = vsub.s32 0, %v420
      %v422 = vrot.slane %v417, %v421
      %v424 = vadd.f32 %v409, %v422
      %v425 = vadd.f32 %v410, %v422
      %v426 = vadd.f32 %v411, %v422
      %v427 = vadd.f32 %v412, %v422
      %v428 = vadd.f32 %v413, %v422
      %v429 = vadd.f32 %v414, %v422
      %v430 = vadd.f32 %v415, %v422
      %v431 = vadd.f32 %v416, %v422
      %v432 = vpack.c.bf16 %v425, %v424
      %v433 = vpack.c.bf16 %v427, %v426
      %v434 = vpack.c.bf16 %v429, %v428
      %v435 = vpack.c.bf16 %v431, %v430
      %v436 = vld [vmem:[%s3] sm:$0xf]
      %v437 = vld [vmem:[%s3 + $0x4] sm:$0xf]
      %v438 = vld [vmem:[%s3 + $0x8] sm:$0xf]
      %v439 = vld [vmem:[%s3 + $0xc] sm:$0xf]
      %v444 = vunpack.c.l.b16 %v436
      %v445 = vunpack.c.l.b16 %v437
      %v446 = vunpack.c.l.b16 %v438
      %v447 = vunpack.c.l.b16 %v439
      %v448 = vpack.c.b16 %v445, %v444
      %v449 = vpack.c.b16 %v447, %v446
      %v453 = vsel %vm296, %v432, 0
      %v456 = vsel %vm296, %v433, 0
      %v459 = vsel %vm296, %v434, 0
      %v462 = vsel %vm296, %v435, 0
      %464 = vmatprep.subr.bf16.mxu0 0
      %465 = vmatpush1.bf16.msra.mxu0 0
      %466 = vmatprep.subr.bf16.mxu0 0
      %467 = vmatpush1.bf16.msra.mxu0 0
      %468 = vmatprep.subr.bf16.mxu0 0
      %469 = vmatpush1.bf16.msra.mxu0 0
      %470 = vmatprep.subr.bf16.mxu0 0
      %471 = vmatpush1.bf16.msra.mxu0 0
      %472 = vmatprep.subr.bf16.mxu0 0
      %473 = vmatpush1.bf16.msra.mxu0 0
      %474 = vmatprep.subr.bf16.mxu0 0
      %475 = vmatpush1.bf16.msra.mxu0 0
      %476 = vmatprep.subr.bf16.mxu0 0
      %477 = vmatpush1.bf16.msra.mxu0 %v449
      %478 = vmatprep.subr.bf16.mxu0 0
      %479 = vmatpush1.bf16.msra.mxu0 %v448
      %480 = vmatprep.subr.bf16.mxu0 0
      %481 = vmatpush2.bf16.msra.mxu0 0
      %482 = vmatprep.subr.bf16.mxu0 0
      %483 = vmatpush2.bf16.msra.mxu0 0
      %484 = vmatprep.subr.bf16.mxu0 0
      %485 = vmatpush2.bf16.msra.mxu0 0
      %486 = vmatprep.subr.bf16.mxu0 0
      %487 = vmatpush2.bf16.msra.mxu0 0
      %488 = vmatprep.subr.bf16.mxu0 0
      %489 = vmatpush2.bf16.msra.mxu0 0
      %490 = vmatprep.subr.bf16.mxu0 0
      %491 = vmatpush2.bf16.msra.mxu0 0
      %492 = vmatprep.subr.bf16.mxu0 0
      %493 = vmatpush2.bf16.msra.mxu0 0
      %494 = vmatprep.subr.bf16.mxu0 0
      %495 = vmatpush2.bf16.msra.mxu0 0
      %496 = vmatprep.mubr.bf16.mxu0 0
      %497 = vmatmul.mubr.bf16.gmra.mxu0 %v453
      %v498 = vpop.f32.mrf.mxu0
      %v499 = vadd.f32 0.0, %v498
      %v500 = vpop.f32.mrf.mxu0
      %v501 = vpop.f32.mrf.mxu0
      %v502 = vadd.f32 0.0, %v501
      %v503 = vpop.f32.mrf.mxu0
      %504 = vmatprep.mubr.bf16.mxu0 0
      %505 = vmatmul.mubr.bf16.gmra.mxu0 %v456
      %v506 = vpop.f32.mrf.mxu0
      %v507 = vadd.f32 0.0, %v506
      %v508 = vpop.f32.mrf.mxu0
      %v509 = vpop.f32.mrf.mxu0
      %v510 = vadd.f32 0.0, %v509
      %v511 = vpop.f32.mrf.mxu0
      %512 = vmatprep.mubr.bf16.mxu0 0
      %513 = vmatmul.mubr.bf16.gmra.mxu0 %v459
      %v514 = vpop.f32.mrf.mxu0
      %v515 = vadd.f32 0.0, %v514
      %v516 = vpop.f32.mrf.mxu0
      %v517 = vpop.f32.mrf.mxu0
      %v518 = vadd.f32 0.0, %v517
      %v519 = vpop.f32.mrf.mxu0
      %520 = vmatprep.mubr.bf16.mxu0 0
      %521 = vmatmul.mubr.bf16.gmra.mxu0 %v462
      %v522 = vpop.f32.mrf.mxu0
      %v523 = vadd.f32 0.0, %v522
      %v524 = vpop.f32.mrf.mxu0
      %v525 = vpop.f32.mrf.mxu0
      %v526 = vadd.f32 0.0, %v525
      %v527 = vpop.f32.mrf.mxu0
      %528 = vdwg.mxu0
      %v529 = vpack.c.bf16 %v502, %v499
      %v530 = vpack.c.bf16 %v510, %v507
      %v531 = vpack.c.bf16 %v518, %v515
      %v532 = vpack.c.bf16 %v526, %v523
      %534 = vrot.lane.b32.xlu0 %v529, 96
      %v535 = vpop.permute.xlu0 %534
      %vm536 = vcmask 64512
      %v538 = vsel %vm536, %v529, 0
      %v541 = vsel %vm536, %v535, 0
      %543 = vmatprep.subr.bf16.mxu0 0
      %544 = vmatpush1.bf16.xpose.msra.mxu0 0
      %545 = vmatprep.subr.bf16.mxu0 0
      %546 = vmatpush1.bf16.xpose.msra.mxu0 0
      %547 = vmatprep.subr.bf16.mxu0 0
      %548 = vmatpush1.bf16.xpose.msra.mxu0 0
      %549 = vmatprep.subr.bf16.mxu0 0
      %550 = vmatpush1.bf16.xpose.msra.mxu0 0
      %551 = vmatprep.subr.bf16.mxu0 0
      %552 = vmatpush1.bf16.xpose.msra.mxu0 0
      %553 = vmatprep.subr.bf16.mxu0 0
      %554 = vmatpush1.bf16.xpose.msra.mxu0 0
      %555 = vmatprep.subr.bf16.mxu0 0
      %556 = vmatpush1.bf16.xpose.msra.mxu0 0
      %557 = vmatprep.subr.bf16.mxu0 0
      %558 = vmatpush1.bf16.xpose.msra.mxu0 %v541
      %559 = vmatprep.subr.bf16.mxu0 0
      %560 = vmatpush2.bf16.xpose.msra.mxu0 0
      %561 = vmatprep.subr.bf16.mxu0 0
      %562 = vmatpush2.bf16.xpose.msra.mxu0 0
      %563 = vmatprep.subr.bf16.mxu0 0
      %564 = vmatpush2.bf16.xpose.msra.mxu0 0
      %565 = vmatprep.subr.bf16.mxu0 0
      %566 = vmatpush2.bf16.xpose.msra.mxu0 0
      %567 = vmatprep.subr.bf16.mxu0 0
      %568 = vmatpush2.bf16.xpose.msra.mxu0 0
      %569 = vmatprep.subr.bf16.mxu0 0
      %570 = vmatpush2.bf16.xpose.msra.mxu0 0
      %571 = vmatprep.subr.bf16.mxu0 0
      %572 = vmatpush2.bf16.xpose.msra.mxu0 0
      %573 = vmatprep.subr.bf16.mxu0 0
      %574 = vmatpush2.bf16.xpose.msra.mxu0 0
      %575 = vmatprep.mubr.bf16.mxu0 0
      %576 = vmatmul.mubr.bf16.gmra.mxu0 %v538
      %v577 = vpop.f32.mrf.mxu0
      %v578 = vadd.f32 0.0, %v577
      %v579 = vpop.f32.mrf.mxu0
      %v580 = vpop.f32.mrf.mxu0
      %v581 = vadd.f32 0.0, %v580
      %v582 = vpop.f32.mrf.mxu0
      %583 = vdwg.mxu0
      %585 = vrot.lane.b32.xlu0 %v530, 96
      %v586 = vpop.permute.xlu0 %585
      %v588 = vsel %vm536, %v530, 0
      %v591 = vsel %vm536, %v586, 0
      %593 = vmatprep.subr.bf16.mxu0 0
      %594 = vmatpush1.bf16.xpose.msra.mxu0 0
      %595 = vmatprep.subr.bf16.mxu0 0
      %596 = vmatpush1.bf16.xpose.msra.mxu0 0
      %597 = vmatprep.subr.bf16.mxu0 0
      %598 = vmatpush1.bf16.xpose.msra.mxu0 0
      %599 = vmatprep.subr.bf16.mxu0 0
      %600 = vmatpush1.bf16.xpose.msra.mxu0 0
      %601 = vmatprep.subr.bf16.mxu0 0
      %602 = vmatpush1.bf16.xpose.msra.mxu0 0
      %603 = vmatprep.subr.bf16.mxu0 0
      %604 = vmatpush1.bf16.xpose.msra.mxu0 0
      %605 = vmatprep.subr.bf16.mxu0 0
      %606 = vmatpush1.bf16.xpose.msra.mxu0 0
      %607 = vmatprep.subr.bf16.mxu0 0
      %608 = vmatpush1.bf16.xpose.msra.mxu0 %v591
      %609 = vmatprep.subr.bf16.mxu0 0
      %610 = vmatpush2.bf16.xpose.msra.mxu0 0
      %611 = vmatprep.subr.bf16.mxu0 0
      %612 = vmatpush2.bf16.xpose.msra.mxu0 0
      %613 = vmatprep.subr.bf16.mxu0 0
      %614 = vmatpush2.bf16.xpose.msra.mxu0 0
      %615 = vmatprep.subr.bf16.mxu0 0
      %616 = vmatpush2.bf16.xpose.msra.mxu0 0
      %617 = vmatprep.subr.bf16.mxu0 0
      %618 = vmatpush2.bf16.xpose.msra.mxu0 0
      %619 = vmatprep.subr.bf16.mxu0 0
      %620 = vmatpush2.bf16.xpose.msra.mxu0 0
      %621 = vmatprep.subr.bf16.mxu0 0
      %622 = vmatpush2.bf16.xpose.msra.mxu0 0
      %623 = vmatprep.subr.bf16.mxu0 0
      %624 = vmatpush2.bf16.xpose.msra.mxu0 0
      %625 = vmatprep.mubr.bf16.mxu0 0
      %626 = vmatmul.mubr.bf16.gmra.mxu0 %v588
      %v627 = vpop.f32.mrf.mxu0
      %v628 = vadd.f32 0.0, %v627
      %v629 = vpop.f32.mrf.mxu0
      %v630 = vpop.f32.mrf.mxu0
      %v631 = vadd.f32 0.0, %v630
      %v632 = vpop.f32.mrf.mxu0
      %633 = vdwg.mxu0
      %635 = vrot.lane.b32.xlu0 %v531, 96
      %v636 = vpop.permute.xlu0 %635
      %v638 = vsel %vm536, %v531, 0
      %v641 = vsel %vm536, %v636, 0
      %643 = vmatprep.subr.bf16.mxu0 0
      %644 = vmatpush1.bf16.xpose.msra.mxu0 0
      %645 = vmatprep.subr.bf16.mxu0 0
      %646 = vmatpush1.bf16.xpose.msra.mxu0 0
      %647 = vmatprep.subr.bf16.mxu0 0
      %648 = vmatpush1.bf16.xpose.msra.mxu0 0
      %649 = vmatprep.subr.bf16.mxu0 0
      %650 = vmatpush1.bf16.xpose.msra.mxu0 0
      %651 = vmatprep.subr.bf16.mxu0 0
      %652 = vmatpush1.bf16.xpose.msra.mxu0 0
      %653 = vmatprep.subr.bf16.mxu0 0
      %654 = vmatpush1.bf16.xpose.msra.mxu0 0
      %655 = vmatprep.subr.bf16.mxu0 0
      %656 = vmatpush1.bf16.xpose.msra.mxu0 0
      %657 = vmatprep.subr.bf16.mxu0 0
      %658 = vmatpush1.bf16.xpose.msra.mxu0 %v641
      %659 = vmatprep.subr.bf16.mxu0 0
      %660 = vmatpush2.bf16.xpose.msra.mxu0 0
      %661 = vmatprep.subr.bf16.mxu0 0
      %662 = vmatpush2.bf16.xpose.msra.mxu0 0
      %663 = vmatprep.subr.bf16.mxu0 0
      %664 = vmatpush2.bf16.xpose.msra.mxu0 0
      %665 = vmatprep.subr.bf16.mxu0 0
      %666 = vmatpush2.bf16.xpose.msra.mxu0 0
      %667 = vmatprep.subr.bf16.mxu0 0
      %668 = vmatpush2.bf16.xpose.msra.mxu0 0
      %669 = vmatprep.subr.bf16.mxu0 0
      %670 = vmatpush2.bf16.xpose.msra.mxu0 0
      %671 = vmatprep.subr.bf16.mxu0 0
      %672 = vmatpush2.bf16.xpose.msra.mxu0 0
      %673 = vmatprep.subr.bf16.mxu0 0
      %674 = vmatpush2.bf16.xpose.msra.mxu0 0
      %675 = vmatprep.mubr.bf16.mxu0 0
      %676 = vmatmul.mubr.bf16.gmra.mxu0 %v638
      %v677 = vpop.f32.mrf.mxu0
      %v678 = vadd.f32 0.0, %v677
      %v679 = vpop.f32.mrf.mxu0
      %v680 = vpop.f32.mrf.mxu0
      %v681 = vadd.f32 0.0, %v680
      %v682 = vpop.f32.mrf.mxu0
      %683 = vdwg.mxu0
      %685 = vrot.lane.b32.xlu0 %v532, 96
      %v686 = vpop.permute.xlu0 %685
      %v688 = vsel %vm536, %v532, 0
      %v691 = vsel %vm536, %v686, 0
      %693 = vmatprep.subr.bf16.mxu0 0
      %694 = vmatpush1.bf16.xpose.msra.mxu0 0
      %695 = vmatprep.subr.bf16.mxu0 0
      %696 = vmatpush1.bf16.xpose.msra.mxu0 0
      %697 = vmatprep.subr.bf16.mxu0 0
      %698 = vmatpush1.bf16.xpose.msra.mxu0 0
      %699 = vmatprep.subr.bf16.mxu0 0
      %700 = vmatpush1.bf16.xpose.msra.mxu0 0
      %701 = vmatprep.subr.bf16.mxu0 0
      %702 = vmatpush1.bf16.xpose.msra.mxu0 0
      %703 = vmatprep.subr.bf16.mxu0 0
      %704 = vmatpush1.bf16.xpose.msra.mxu0 0
      %705 = vmatprep.subr.bf16.mxu0 0
      %706 = vmatpush1.bf16.xpose.msra.mxu0 0
      %707 = vmatprep.subr.bf16.mxu0 0
      %708 = vmatpush1.bf16.xpose.msra.mxu0 %v691
      %709 = vmatprep.subr.bf16.mxu0 0
      %710 = vmatpush2.bf16.xpose.msra.mxu0 0
      %711 = vmatprep.subr.bf16.mxu0 0
      %712 = vmatpush2.bf16.xpose.msra.mxu0 0
      %713 = vmatprep.subr.bf16.mxu0 0
      %714 = vmatpush2.bf16.xpose.msra.mxu0 0
      %715 = vmatprep.subr.bf16.mxu0 0
      %716 = vmatpush2.bf16.xpose.msra.mxu0 0
      %717 = vmatprep.subr.bf16.mxu0 0
      %718 = vmatpush2.bf16.xpose.msra.mxu0 0
      %719 = vmatprep.subr.bf16.mxu0 0
      %720 = vmatpush2.bf16.xpose.msra.mxu0 0
      %721 = vmatprep.subr.bf16.mxu0 0
      %722 = vmatpush2.bf16.xpose.msra.mxu0 0
      %723 = vmatprep.subr.bf16.mxu0 0
      %724 = vmatpush2.bf16.xpose.msra.mxu0 0
      %725 = vmatprep.mubr.bf16.mxu0 0
      %726 = vmatmul.mubr.bf16.gmra.mxu0 %v688
      %v727 = vpop.f32.mrf.mxu0
      %v728 = vadd.f32 0.0, %v727
      %v729 = vpop.f32.mrf.mxu0
      %v730 = vpop.f32.mrf.mxu0
      %v731 = vadd.f32 0.0, %v730
      %v732 = vpop.f32.mrf.mxu0
      %733 = vdwg.mxu0
      %v734 = vmul.f32 %v578, 0.35355338
      %v735 = vmul.f32 %v581, 0.35355338
      %v736 = vmul.f32 %v628, 0.35355338
      %v737 = vmul.f32 %v631, 0.35355338
      %v738 = vmul.f32 %v678, 0.35355338
      %v739 = vmul.f32 %v681, 0.35355338
      %v740 = vmul.f32 %v728, 0.35355338
      %v741 = vmul.f32 %v731, 0.35355338
      %v742 = vld [vmem:[%s4] sm:$0xff]
      %v743 = vld [vmem:[%s4 + $0x8] sm:$0xff]
      %v744 = vadd.f32 %v734, %v742
      %v745 = vadd.f32 %v735, %v743
      %v746 = vadd.f32 %v736, %v742
      %v747 = vadd.f32 %v737, %v743
      %v748 = vadd.f32 %v738, %v742
      %v749 = vadd.f32 %v739, %v743
      %v750 = vadd.f32 %v740, %v742
      %v751 = vadd.f32 %v741, %v743
      %vm752 = vcmask 130048
      %v753 = vsel %vm752, %v744, -inf
      %754 = vmax.xlane.f32.xlu0 %v753
      %v755 = vpop.xlane.xlu0 %754
      %v756 = vsel %vm752, %v745, -inf
      %757 = vmax.xlane.f32.xlu0 %v756
      %v758 = vpop.xlane.xlu0 %757
      %v759 = vsel %vm752, %v746, -inf
      %760 = vmax.xlane.f32.xlu0 %v759
      %v761 = vpop.xlane.xlu0 %760
      %v762 = vsel %vm752, %v747, -inf
      %763 = vmax.xlane.f32.xlu0 %v762
      %v764 = vpop.xlane.xlu0 %763
      %v765 = vsel %vm752, %v748, -inf
      %766 = vmax.xlane.f32.xlu0 %v765
      %v767 = vpop.xlane.xlu0 %766
      %v768 = vsel %vm752, %v749, -inf
      %769 = vmax.xlane.f32.xlu0 %v768
      %v770 = vpop.xlane.xlu0 %769
      %v771 = vsel %vm752, %v750, -inf
      %772 = vmax.xlane.f32.xlu0 %v771
      %v773 = vpop.xlane.xlu0 %772
      %v774 = vsel %vm752, %v751, -inf
      %775 = vmax.xlane.f32.xlu0 %v774
      %v776 = vpop.xlane.xlu0 %775
      %v777 = vsub.f32 %v744, %v755
      %v778 = vsub.f32 %v745, %v758
      %v779 = vsub.f32 %v746, %v761
      %v780 = vsub.f32 %v747, %v764
      %v781 = vsub.f32 %v748, %v767
      %v782 = vsub.f32 %v749, %v770
      %v783 = vsub.f32 %v750, %v773
      %v784 = vsub.f32 %v751, %v776
      %v785 = vmul.f32 %v777, 1.442695
      %v786 = vpow.pop %v785
      %v787 = vmul.f32 %v778, 1.442695
      %v788 = vpow.pop %v787
      %v789 = vmul.f32 %v779, 1.442695
      %v790 = vpow.pop %v789
      %v791 = vmul.f32 %v780, 1.442695
      %v792 = vpow.pop %v791
      %v793 = vmul.f32 %v781, 1.442695
      %v794 = vpow.pop %v793
      %v795 = vmul.f32 %v782, 1.442695
      %v796 = vpow.pop %v795
      %v797 = vmul.f32 %v783, 1.442695
      %v798 = vpow.pop %v797
      %v799 = vmul.f32 %v784, 1.442695
      %v800 = vpow.pop %v799
      %v801 = vsel %vm752, %v786, 0.0
      %802 = vadd.xlane.f32.xlu0 %v801
      %v803 = vpop.xlane.xlu0 %802
      %v804 = vsel %vm752, %v788, 0.0
      %805 = vadd.xlane.f32.xlu0 %v804
      %v806 = vpop.xlane.xlu0 %805
      %v807 = vsel %vm752, %v790, 0.0
      %808 = vadd.xlane.f32.xlu0 %v807
      %v809 = vpop.xlane.xlu0 %808
      %v810 = vsel %vm752, %v792, 0.0
      %811 = vadd.xlane.f32.xlu0 %v810
      %v812 = vpop.xlane.xlu0 %811
      %v813 = vsel %vm752, %v794, 0.0
      %814 = vadd.xlane.f32.xlu0 %v813
      %v815 = vpop.xlane.xlu0 %814
      %v816 = vsel %vm752, %v796, 0.0
      %817 = vadd.xlane.f32.xlu0 %v816
      %v818 = vpop.xlane.xlu0 %817
      %v819 = vsel %vm752, %v798, 0.0
      %820 = vadd.xlane.f32.xlu0 %v819
      %v821 = vpop.xlane.xlu0 %820
      %v822 = vsel %vm752, %v800, 0.0
      %823 = vadd.xlane.f32.xlu0 %v822
      %v824 = vpop.xlane.xlu0 %823
      %v825 = vrcp.pop %v803
      %v826 = vrcp.pop %v806
      %v827 = vrcp.pop %v809
      %v828 = vrcp.pop %v812
      %v829 = vrcp.pop %v815
      %v830 = vrcp.pop %v818
      %v831 = vrcp.pop %v821
      %v832 = vrcp.pop %v824
      %v833 = vmul.f32 %v786, %v825
      %v834 = vmul.f32 %v788, %v826
      %v835 = vmul.f32 %v790, %v827
      %v836 = vmul.f32 %v792, %v828
      %v837 = vmul.f32 %v794, %v829
      %v838 = vmul.f32 %v796, %v830
      %v839 = vmul.f32 %v798, %v831
      %v840 = vmul.f32 %v800, %v832
      %v841 = vpack.c.bf16 %v834, %v833
      %v842 = vpack.c.bf16 %v836, %v835
      %v843 = vpack.c.bf16 %v838, %v837
      %v844 = vpack.c.bf16 %v840, %v839
      %845 = vrot.lane.b32.xlu0 %v529, 64
      %v846 = vpop.permute.xlu0 %845
      %v849 = vsel %vm752, %v841, 0
      %851 = vmatprep.subr.bf16.mxu0 0
      %852 = vmatpush1.bf16.msra.mxu0 0
      %853 = vmatprep.subr.bf16.mxu0 0
      %854 = vmatpush1.bf16.msra.mxu0 0
      %855 = vmatprep.subr.bf16.mxu0 0
      %856 = vmatpush1.bf16.msra.mxu0 0
      %857 = vmatprep.subr.bf16.mxu0 0
      %858 = vmatpush1.bf16.msra.mxu0 0
      %859 = vmatprep.subr.bf16.mxu0 0
      %860 = vmatpush1.bf16.msra.mxu0 0
      %861 = vmatprep.subr.bf16.mxu0 0
      %862 = vmatpush1.bf16.msra.mxu0 0
      %863 = vmatprep.subr.bf16.mxu0 0
      %864 = vmatpush1.bf16.msra.mxu0 0
      %865 = vmatprep.subr.bf16.mxu0 0
      %866 = vmatpush1.bf16.msra.mxu0 %v846
      %867 = vmatprep.subr.bf16.mxu0 0
      %868 = vmatpush2.bf16.msra.mxu0 0
      %869 = vmatprep.subr.bf16.mxu0 0
      %870 = vmatpush2.bf16.msra.mxu0 0
      %871 = vmatprep.subr.bf16.mxu0 0
      %872 = vmatpush2.bf16.msra.mxu0 0
      %873 = vmatprep.subr.bf16.mxu0 0
      %874 = vmatpush2.bf16.msra.mxu0 0
      %875 = vmatprep.subr.bf16.mxu0 0
      %876 = vmatpush2.bf16.msra.mxu0 0
      %877 = vmatprep.subr.bf16.mxu0 0
      %878 = vmatpush2.bf16.msra.mxu0 0
      %879 = vmatprep.subr.bf16.mxu0 0
      %880 = vmatpush2.bf16.msra.mxu0 0
      %881 = vmatprep.subr.bf16.mxu0 0
      %882 = vmatpush2.bf16.msra.mxu0 0
      %883 = vmatprep.mubr.bf16.mxu0 0
      %884 = vmatmul.mubr.bf16.gmra.mxu0 %v849
      %v885 = vpop.f32.mrf.mxu0
      %v886 = vadd.f32 0.0, %v885
      %v887 = vpop.f32.mrf.mxu0
      %v888 = vpop.f32.mrf.mxu0
      %v889 = vadd.f32 0.0, %v888
      %v890 = vpop.f32.mrf.mxu0
      %891 = vdwg.mxu0
      %892 = vrot.lane.b32.xlu0 %v530, 64
      %v893 = vpop.permute.xlu0 %892
      %v896 = vsel %vm752, %v842, 0
      %898 = vmatprep.subr.bf16.mxu0 0
      %899 = vmatpush1.bf16.msra.mxu0 0
      %900 = vmatprep.subr.bf16.mxu0 0
      %901 = vmatpush1.bf16.msra.mxu0 0
      %902 = vmatprep.subr.bf16.mxu0 0
      %903 = vmatpush1.bf16.msra.mxu0 0
      %904 = vmatprep.subr.bf16.mxu0 0
      %905 = vmatpush1.bf16.msra.mxu0 0
      %906 = vmatprep.subr.bf16.mxu0 0
      %907 = vmatpush1.bf16.msra.mxu0 0
      %908 = vmatprep.subr.bf16.mxu0 0
      %909 = vmatpush1.bf16.msra.mxu0 0
      %910 = vmatprep.subr.bf16.mxu0 0
      %911 = vmatpush1.bf16.msra.mxu0 0
      %912 = vmatprep.subr.bf16.mxu0 0
      %913 = vmatpush1.bf16.msra.mxu0 %v893
      %914 = vmatprep.subr.bf16.mxu0 0
      %915 = vmatpush2.bf16.msra.mxu0 0
      %916 = vmatprep.subr.bf16.mxu0 0
      %917 = vmatpush2.bf16.msra.mxu0 0
      %918 = vmatprep.subr.bf16.mxu0 0
      %919 = vmatpush2.bf16.msra.mxu0 0
      %920 = vmatprep.subr.bf16.mxu0 0
      %921 = vmatpush2.bf16.msra.mxu0 0
      %922 = vmatprep.subr.bf16.mxu0 0
      %923 = vmatpush2.bf16.msra.mxu0 0
      %924 = vmatprep.subr.bf16.mxu0 0
      %925 = vmatpush2.bf16.msra.mxu0 0
      %926 = vmatprep.subr.bf16.mxu0 0
      %927 = vmatpush2.bf16.msra.mxu0 0
      %928 = vmatprep.subr.bf16.mxu0 0
      %929 = vmatpush2.bf16.msra.mxu0 0
      %930 = vmatprep.mubr.bf16.mxu0 0
      %931 = vmatmul.mubr.bf16.gmra.mxu0 %v896
      %v932 = vpop.f32.mrf.mxu0
      %v933 = vadd.f32 0.0, %v932
      %v934 = vpop.f32.mrf.mxu0
      %v935 = vpop.f32.mrf.mxu0
      %v936 = vadd.f32 0.0, %v935
      %v937 = vpop.f32.mrf.mxu0
      %938 = vdwg.mxu0
      %939 = vrot.lane.b32.xlu0 %v531, 64
      %v940 = vpop.permute.xlu0 %939
      %v943 = vsel %vm752, %v843, 0
      %945 = vmatprep.subr.bf16.mxu0 0
      %946 = vmatpush1.bf16.msra.mxu0 0
      %947 = vmatprep.subr.bf16.mxu0 0
      %948 = vmatpush1.bf16.msra.mxu0 0
      %949 = vmatprep.subr.bf16.mxu0 0
      %950 = vmatpush1.bf16.msra.mxu0 0
      %951 = vmatprep.subr.bf16.mxu0 0
      %952 = vmatpush1.bf16.msra.mxu0 0
      %953 = vmatprep.subr.bf16.mxu0 0
      %954 = vmatpush1.bf16.msra.mxu0 0
      %955 = vmatprep.subr.bf16.mxu0 0
      %956 = vmatpush1.bf16.msra.mxu0 0
      %957 = vmatprep.subr.bf16.mxu0 0
      %958 = vmatpush1.bf16.msra.mxu0 0
      %959 = vmatprep.subr.bf16.mxu0 0
      %960 = vmatpush1.bf16.msra.mxu0 %v940
      %961 = vmatprep.subr.bf16.mxu0 0
      %962 = vmatpush2.bf16.msra.mxu0 0
      %963 = vmatprep.subr.bf16.mxu0 0
      %964 = vmatpush2.bf16.msra.mxu0 0
      %965 = vmatprep.subr.bf16.mxu0 0
      %966 = vmatpush2.bf16.msra.mxu0 0
      %967 = vmatprep.subr.bf16.mxu0 0
      %968 = vmatpush2.bf16.msra.mxu0 0
      %969 = vmatprep.subr.bf16.mxu0 0
      %970 = vmatpush2.bf16.msra.mxu0 0
      %971 = vmatprep.subr.bf16.mxu0 0
      %972 = vmatpush2.bf16.msra.mxu0 0
      %973 = vmatprep.subr.bf16.mxu0 0
      %974 = vmatpush2.bf16.msra.mxu0 0
      %975 = vmatprep.subr.bf16.mxu0 0
      %976 = vmatpush2.bf16.msra.mxu0 0
      %977 = vmatprep.mubr.bf16.mxu0 0
      %978 = vmatmul.mubr.bf16.gmra.mxu0 %v943
      %v979 = vpop.f32.mrf.mxu0
      %v980 = vadd.f32 0.0, %v979
      %v981 = vpop.f32.mrf.mxu0
      %v982 = vpop.f32.mrf.mxu0
      %v983 = vadd.f32 0.0, %v982
      %v984 = vpop.f32.mrf.mxu0
      %985 = vdwg.mxu0
      %986 = vrot.lane.b32.xlu0 %v532, 64
      %v987 = vpop.permute.xlu0 %986
      %v990 = vsel %vm752, %v844, 0
      %992 = vmatprep.subr.bf16.mxu0 0
      %993 = vmatpush1.bf16.msra.mxu0 0
      %994 = vmatprep.subr.bf16.mxu0 0
      %995 = vmatpush1.bf16.msra.mxu0 0
      %996 = vmatprep.subr.bf16.mxu0 0
      %997 = vmatpush1.bf16.msra.mxu0 0
      %998 = vmatprep.subr.bf16.mxu0 0
      %999 = vmatpush1.bf16.msra.mxu0 0
      %1000 = vmatprep.subr.bf16.mxu0 0
      %1001 = vmatpush1.bf16.msra.mxu0 0
      %1002 = vmatprep.subr.bf16.mxu0 0
      %1003 = vmatpush1.bf16.msra.mxu0 0
      %1004 = vmatprep.subr.bf16.mxu0 0
      %1005 = vmatpush1.bf16.msra.mxu0 0
      %1006 = vmatprep.subr.bf16.mxu0 0
      %1007 = vmatpush1.bf16.msra.mxu0 %v987
      %1008 = vmatprep.subr.bf16.mxu0 0
      %1009 = vmatpush2.bf16.msra.mxu0 0
      %1010 = vmatprep.subr.bf16.mxu0 0
      %1011 = vmatpush2.bf16.msra.mxu0 0
      %1012 = vmatprep.subr.bf16.mxu0 0
      %1013 = vmatpush2.bf16.msra.mxu0 0
      %1014 = vmatprep.subr.bf16.mxu0 0
      %1015 = vmatpush2.bf16.msra.mxu0 0
      %1016 = vmatprep.subr.bf16.mxu0 0
      %1017 = vmatpush2.bf16.msra.mxu0 0
      %1018 = vmatprep.subr.bf16.mxu0 0
      %1019 = vmatpush2.bf16.msra.mxu0 0
      %1020 = vmatprep.subr.bf16.mxu0 0
      %1021 = vmatpush2.bf16.msra.mxu0 0
      %1022 = vmatprep.subr.bf16.mxu0 0
      %1023 = vmatpush2.bf16.msra.mxu0 0
      %1024 = vmatprep.mubr.bf16.mxu0 0
      %1025 = vmatmul.mubr.bf16.gmra.mxu0 %v990
      %v1026 = vpop.f32.mrf.mxu0
      %v1027 = vadd.f32 0.0, %v1026
      %v1028 = vpop.f32.mrf.mxu0
      %v1029 = vpop.f32.mrf.mxu0
      %v1030 = vadd.f32 0.0, %v1029
      %v1031 = vpop.f32.mrf.mxu0
      %1032 = vdwg.mxu0
      %v1033 = vpack.c.bf16 %v889, %v886
      %v1034 = vpack.c.bf16 %v936, %v933
      %v1035 = vpack.c.bf16 %v983, %v980
      %v1036 = vpack.c.bf16 %v1030, %v1027
      %1037 = vrot.lane.b32.xlu0 %v529, 120
      %v1038 = vpop.permute.xlu0 %1037
      %1039 = vrot.lane.b32.xlu0 %v529, 88
      %v1040 = vpop.permute.xlu0 %1039
      %v1042 = vsel %vm536, %v1038, 0
      %v1045 = vsel %vm536, %v1040, 0
      %1047 = vmatprep.subr.bf16.mxu0 0
      %1048 = vmatpush1.bf16.xpose.msra.mxu0 0
      %1049 = vmatprep.subr.bf16.mxu0 0
      %1050 = vmatpush1.bf16.xpose.msra.mxu0 0
      %1051 = vmatprep.subr.bf16.mxu0 0
      %1052 = vmatpush1.bf16.xpose.msra.mxu0 0
      %1053 = vmatprep.subr.bf16.mxu0 0
      %1054 = vmatpush1.bf16.xpose.msra.mxu0 0
      %1055 = vmatprep.subr.bf16.mxu0 0
      %1056 = vmatpush1.bf16.xpose.msra.mxu0 0
      %1057 = vmatprep.subr.bf16.mxu0 0
      %1058 = vmatpush1.bf16.xpose.msra.mxu0 0
      %1059 = vmatprep.subr.bf16.mxu0 0
      %1060 = vmatpush1.bf16.xpose.msra.mxu0 0
      %1061 = vmatprep.subr.bf16.mxu0 0
      %1062 = vmatpush1.bf16.xpose.msra.mxu0 %v1045
      %1063 = vmatprep.subr.bf16.mxu0 0
      %1064 = vmatpush2.bf16.xpose.msra.mxu0 0
      %1065 = vmatprep.subr.bf16.mxu0 0
      %1066 = vmatpush2.bf16.xpose.msra.mxu0 0
      %1067 = vmatprep.subr.bf16.mxu0 0
      %1068 = vmatpush2.bf16.xpose.msra.mxu0 0
      %1069 = vmatprep.subr.bf16.mxu0 0
      %1070 = vmatpush2.bf16.xpose.msra.mxu0 0
      %1071 = vmatprep.subr.bf16.mxu0 0
      %1072 = vmatpush2.bf16.xpose.msra.mxu0 0
      %1073 = vmatprep.subr.bf16.mxu0 0
      %1074 = vmatpush2.bf16.xpose.msra.mxu0 0
      %1075 = vmatprep.subr.bf16.mxu0 0
      %1076 = vmatpush2.bf16.xpose.msra.mxu0 0
      %1077 = vmatprep.subr.bf16.mxu0 0
      %1078 = vmatpush2.bf16.xpose.msra.mxu0 0
      %1079 = vmatprep.mubr.bf16.mxu0 0
      %1080 = vmatmul.mubr.bf16.gmra.mxu0 %v1042
      %v1081 = vpop.f32.mrf.mxu0
      %v1082 = vadd.f32 0.0, %v1081
      %v1083 = vpop.f32.mrf.mxu0
      %v1084 = vpop.f32.mrf.mxu0
      %v1085 = vadd.f32 0.0, %v1084
      %v1086 = vpop.f32.mrf.mxu0
      %1087 = vdwg.mxu0
      %1088 = vrot.lane.b32.xlu0 %v530, 120
      %v1089 = vpop.permute.xlu0 %1088
      %1090 = vrot.lane.b32.xlu0 %v530, 88
      %v1091 = vpop.permute.xlu0 %1090
      %v1093 = vsel %vm536, %v1089, 0
      %v1096 = vsel %vm536, %v1091, 0
      %1098 = vmatprep.subr.bf16.mxu0 0
      %1099 = vmatpush1.bf16.xpose.msra.mxu0 0
      %1100 = vmatprep.subr.bf16.mxu0 0
      %1101 = vmatpush1.bf16.xpose.msra.mxu0 0
      %1102 = vmatprep.subr.bf16.mxu0 0
      %1103 = vmatpush1.bf16.xpose.msra.mxu0 0
      %1104 = vmatprep.subr.bf16.mxu0 0
      %1105 = vmatpush1.bf16.xpose.msra.mxu0 0
      %1106 = vmatprep.subr.bf16.mxu0 0
      %1107 = vmatpush1.bf16.xpose.msra.mxu0 0
      %1108 = vmatprep.subr.bf16.mxu0 0
      %1109 = vmatpush1.bf16.xpose.msra.mxu0 0
      %1110 = vmatprep.subr.bf16.mxu0 0
      %1111 = vmatpush1.bf16.xpose.msra.mxu0 0
      %1112 = vmatprep.subr.bf16.mxu0 0
      %1113 = vmatpush1.bf16.xpose.msra.mxu0 %v1096
      %1114 = vmatprep.subr.bf16.mxu0 0
      %1115 = vmatpush2.bf16.xpose.msra.mxu0 0
      %1116 = vmatprep.subr.bf16.mxu0 0
      %1117 = vmatpush2.bf16.xpose.msra.mxu0 0
      %1118 = vmatprep.subr.bf16.mxu0 0
      %1119 = vmatpush2.bf16.xpose.msra.mxu0 0
      %1120 = vmatprep.subr.bf16.mxu0 0
      %1121 = vmatpush2.bf16.xpose.msra.mxu0 0
      %1122 = vmatprep.subr.bf16.mxu0 0
      %1123 = vmatpush2.bf16.xpose.msra.mxu0 0
      %1124 = vmatprep.subr.bf16.mxu0 0
      %1125 = vmatpush2.bf16.xpose.msra.mxu0 0
      %1126 = vmatprep.subr.bf16.mxu0 0
      %1127 = vmatpush2.bf16.xpose.msra.mxu0 0
      %1128 = vmatprep.subr.bf16.mxu0 0
      %1129 = vmatpush2.bf16.xpose.msra.mxu0 0
      %1130 = vmatprep.mubr.bf16.mxu0 0
      %1131 = vmatmul.mubr.bf16.gmra.mxu0 %v1093
      %v1132 = vpop.f32.mrf.mxu0
      %v1133 = vadd.f32 0.0, %v1132
      %v1134 = vpop.f32.mrf.mxu0
      %v1135 = vpop.f32.mrf.mxu0
      %v1136 = vadd.f32 0.0, %v1135
      %v1137 = vpop.f32.mrf.mxu0
      %1138 = vdwg.mxu0
      %1139 = vrot.lane.b32.xlu0 %v531, 120
      %v1140 = vpop.permute.xlu0 %1139
      %1141 = vrot.lane.b32.xlu0 %v531, 88
      %v1142 = vpop.permute.xlu0 %1141
      %v1144 = vsel %vm536, %v1140, 0
      %v1147 = vsel %vm536, %v1142, 0
      %1149 = vmatprep.subr.bf16.mxu0 0
      %1150 = vmatpush1.bf16.xpose.msra.mxu0 0
      %1151 = vmatprep.subr.bf16.mxu0 0
      %1152 = vmatpush1.bf16.xpose.msra.mxu0 0
      %1153 = vmatprep.subr.bf16.mxu0 0
      %1154 = vmatpush1.bf16.xpose.msra.mxu0 0
      %1155 = vmatprep.subr.bf16.mxu0 0
      %1156 = vmatpush1.bf16.xpose.msra.mxu0 0
      %1157 = vmatprep.subr.bf16.mxu0 0
      %1158 = vmatpush1.bf16.xpose.msra.mxu0 0
      %1159 = vmatprep.subr.bf16.mxu0 0
      %1160 = vmatpush1.bf16.xpose.msra.mxu0 0
      %1161 = vmatprep.subr.bf16.mxu0 0
      %1162 = vmatpush1.bf16.xpose.msra.mxu0 0
      %1163 = vmatprep.subr.bf16.mxu0 0
      %1164 = vmatpush1.bf16.xpose.msra.mxu0 %v1147
      %1165 = vmatprep.subr.bf16.mxu0 0
      %1166 = vmatpush2.bf16.xpose.msra.mxu0 0
      %1167 = vmatprep.subr.bf16.mxu0 0
      %1168 = vmatpush2.bf16.xpose.msra.mxu0 0
      %1169 = vmatprep.subr.bf16.mxu0 0
      %1170 = vmatpush2.bf16.xpose.msra.mxu0 0
      %1171 = vmatprep.subr.bf16.mxu0 0
      %1172 = vmatpush2.bf16.xpose.msra.mxu0 0
      %1173 = vmatprep.subr.bf16.mxu0 0
      %1174 = vmatpush2.bf16.xpose.msra.mxu0 0
      %1175 = vmatprep.subr.bf16.mxu0 0
      %1176 = vmatpush2.bf16.xpose.msra.mxu0 0
      %1177 = vmatprep.subr.bf16.mxu0 0
      %1178 = vmatpush2.bf16.xpose.msra.mxu0 0
      %1179 = vmatprep.subr.bf16.mxu0 0
      %1180 = vmatpush2.bf16.xpose.msra.mxu0 0
      %1181 = vmatprep.mubr.bf16.mxu0 0
      %1182 = vmatmul.mubr.bf16.gmra.mxu0 %v1144
      %v1183 = vpop.f32.mrf.mxu0
      %v1184 = vadd.f32 0.0, %v1183
      %v1185 = vpop.f32.mrf.mxu0
      %v1186 = vpop.f32.mrf.mxu0
      %v1187 = vadd.f32 0.0, %v1186
      %v1188 = vpop.f32.mrf.mxu0
      %1189 = vdwg.mxu0
      %1190 = vrot.lane.b32.xlu0 %v532, 120
      %v1191 = vpop.permute.xlu0 %1190
      %1192 = vrot.lane.b32.xlu0 %v532, 88
      %v1193 = vpop.permute.xlu0 %1192
      %v1195 = vsel %vm536, %v1191, 0
      %v1198 = vsel %vm536, %v1193, 0
      %1200 = vmatprep.subr.bf16.mxu0 0
      %1201 = vmatpush1.bf16.xpose.msra.mxu0 0
      %1202 = vmatprep.subr.bf16.mxu0 0
      %1203 = vmatpush1.bf16.xpose.msra.mxu0 0
      %1204 = vmatprep.subr.bf16.mxu0 0
      %1205 = vmatpush1.bf16.xpose.msra.mxu0 0
      %1206 = vmatprep.subr.bf16.mxu0 0
      %1207 = vmatpush1.bf16.xpose.msra.mxu0 0
      %1208 = vmatprep.subr.bf16.mxu0 0
      %1209 = vmatpush1.bf16.xpose.msra.mxu0 0
      %1210 = vmatprep.subr.bf16.mxu0 0
      %1211 = vmatpush1.bf16.xpose.msra.mxu0 0
      %1212 = vmatprep.subr.bf16.mxu0 0
      %1213 = vmatpush1.bf16.xpose.msra.mxu0 0
      %1214 = vmatprep.subr.bf16.mxu0 0
      %1215 = vmatpush1.bf16.xpose.msra.mxu0 %v1198
      %1216 = vmatprep.subr.bf16.mxu0 0
      %1217 = vmatpush2.bf16.xpose.msra.mxu0 0
      %1218 = vmatprep.subr.bf16.mxu0 0
      %1219 = vmatpush2.bf16.xpose.msra.mxu0 0
      %1220 = vmatprep.subr.bf16.mxu0 0
      %1221 = vmatpush2.bf16.xpose.msra.mxu0 0
      %1222 = vmatprep.subr.bf16.mxu0 0
      %1223 = vmatpush2.bf16.xpose.msra.mxu0 0
      %1224 = vmatprep.subr.bf16.mxu0 0
      %1225 = vmatpush2.bf16.xpose.msra.mxu0 0
      %1226 = vmatprep.subr.bf16.mxu0 0
      %1227 = vmatpush2.bf16.xpose.msra.mxu0 0
      %1228 = vmatprep.subr.bf16.mxu0 0
      %1229 = vmatpush2.bf16.xpose.msra.mxu0 0
      %1230 = vmatprep.subr.bf16.mxu0 0
      %1231 = vmatpush2.bf16.xpose.msra.mxu0 0
      %1232 = vmatprep.mubr.bf16.mxu0 0
      %1233 = vmatmul.mubr.bf16.gmra.mxu0 %v1195
      %v1234 = vpop.f32.mrf.mxu0
      %v1235 = vadd.f32 0.0, %v1234
      %v1236 = vpop.f32.mrf.mxu0
      %v1237 = vpop.f32.mrf.mxu0
      %v1238 = vadd.f32 0.0, %v1237
      %v1239 = vpop.f32.mrf.mxu0
      %1240 = vdwg.mxu0
      %v1241 = vmul.f32 %v1082, 0.35355338
      %v1242 = vmul.f32 %v1085, 0.35355338
      %v1243 = vmul.f32 %v1133, 0.35355338
      %v1244 = vmul.f32 %v1136, 0.35355338
      %v1245 = vmul.f32 %v1184, 0.35355338
      %v1246 = vmul.f32 %v1187, 0.35355338
      %v1247 = vmul.f32 %v1235, 0.35355338
      %v1248 = vmul.f32 %v1238, 0.35355338
      %s1249 = scalar_lea.vmem %s4, 16
      %v1250 = vld [vmem:[%s1249] sm:$0xff]
      %v1251 = vld [vmem:[%s1249 + $0x8] sm:$0xff]
      %v1252 = vadd.f32 %v1241, %v1250
      %v1253 = vadd.f32 %v1242, %v1251
      %v1254 = vadd.f32 %v1243, %v1250
      %v1255 = vadd.f32 %v1244, %v1251
      %v1256 = vadd.f32 %v1245, %v1250
      %v1257 = vadd.f32 %v1246, %v1251
      %v1258 = vadd.f32 %v1247, %v1250
      %v1259 = vadd.f32 %v1248, %v1251
      %v1260 = vsel %vm752, %v1252, -inf
      %1261 = vmax.xlane.f32.xlu0 %v1260
      %v1262 = vpop.xlane.xlu0 %1261
      %v1263 = vsel %vm752, %v1253, -inf
      %1264 = vmax.xlane.f32.xlu0 %v1263
      %v1265 = vpop.xlane.xlu0 %1264
      %v1266 = vsel %vm752, %v1254, -inf
      %1267 = vmax.xlane.f32.xlu0 %v1266
      %v1268 = vpop.xlane.xlu0 %1267
      %v1269 = vsel %vm752, %v1255, -inf
      %1270 = vmax.xlane.f32.xlu0 %v1269
      %v1271 = vpop.xlane.xlu0 %1270
      %v1272 = vsel %vm752, %v1256, -inf
      %1273 = vmax.xlane.f32.xlu0 %v1272
      %v1274 = vpop.xlane.xlu0 %1273
      %v1275 = vsel %vm752, %v1257, -inf
      %1276 = vmax.xlane.f32.xlu0 %v1275
      %v1277 = vpop.xlane.xlu0 %1276
      %v1278 = vsel %vm752, %v1258, -inf
      %1279 = vmax.xlane.f32.xlu0 %v1278
      %v1280 = vpop.xlane.xlu0 %1279
      %v1281 = vsel %vm752, %v1259, -inf
      %1282 = vmax.xlane.f32.xlu0 %v1281
      %v1283 = vpop.xlane.xlu0 %1282
      %v1284 = vsub.f32 %v1252, %v1262
      %v1285 = vsub.f32 %v1253, %v1265
      %v1286 = vsub.f32 %v1254, %v1268
      %v1287 = vsub.f32 %v1255, %v1271
      %v1288 = vsub.f32 %v1256, %v1274
      %v1289 = vsub.f32 %v1257, %v1277
      %v1290 = vsub.f32 %v1258, %v1280
      %v1291 = vsub.f32 %v1259, %v1283
      %v1292 = vmul.f32 %v1284, 1.442695
      %v1293 = vpow.pop %v1292
      %v1294 = vmul.f32 %v1285, 1.442695
      %v1295 = vpow.pop %v1294
      %v1296 = vmul.f32 %v1286, 1.442695
      %v1297 = vpow.pop %v1296
      %v1298 = vmul.f32 %v1287, 1.442695
      %v1299 = vpow.pop %v1298
      %v1300 = vmul.f32 %v1288, 1.442695
      %v1301 = vpow.pop %v1300
      %v1302 = vmul.f32 %v1289, 1.442695
      %v1303 = vpow.pop %v1302
      %v1304 = vmul.f32 %v1290, 1.442695
      %v1305 = vpow.pop %v1304
      %v1306 = vmul.f32 %v1291, 1.442695
      %v1307 = vpow.pop %v1306
      %v1308 = vsel %vm752, %v1293, 0.0
      %1309 = vadd.xlane.f32.xlu0 %v1308
      %v1310 = vpop.xlane.xlu0 %1309
      %v1311 = vsel %vm752, %v1295, 0.0
      %1312 = vadd.xlane.f32.xlu0 %v1311
      %v1313 = vpop.xlane.xlu0 %1312
      %v1314 = vsel %vm752, %v1297, 0.0
      %1315 = vadd.xlane.f32.xlu0 %v1314
      %v1316 = vpop.xlane.xlu0 %1315
      %v1317 = vsel %vm752, %v1299, 0.0
      %1318 = vadd.xlane.f32.xlu0 %v1317
      %v1319 = vpop.xlane.xlu0 %1318
      %v1320 = vsel %vm752, %v1301, 0.0
      %1321 = vadd.xlane.f32.xlu0 %v1320
      %v1322 = vpop.xlane.xlu0 %1321
      %v1323 = vsel %vm752, %v1303, 0.0
      %1324 = vadd.xlane.f32.xlu0 %v1323
      %v1325 = vpop.xlane.xlu0 %1324
      %v1326 = vsel %vm752, %v1305, 0.0
      %1327 = vadd.xlane.f32.xlu0 %v1326
      %v1328 = vpop.xlane.xlu0 %1327
      %v1329 = vsel %vm752, %v1307, 0.0
      %1330 = vadd.xlane.f32.xlu0 %v1329
      %v1331 = vpop.xlane.xlu0 %1330
      %v1332 = vrcp.pop %v1310
      %v1333 = vrcp.pop %v1313
      %v1334 = vrcp.pop %v1316
      %v1335 = vrcp.pop %v1319
      %v1336 = vrcp.pop %v1322
      %v1337 = vrcp.pop %v1325
      %v1338 = vrcp.pop %v1328
      %v1339 = vrcp.pop %v1331
      %v1340 = vmul.f32 %v1293, %v1332
      %v1341 = vmul.f32 %v1295, %v1333
      %v1342 = vmul.f32 %v1297, %v1334
      %v1343 = vmul.f32 %v1299, %v1335
      %v1344 = vmul.f32 %v1301, %v1336
      %v1345 = vmul.f32 %v1303, %v1337
      %v1346 = vmul.f32 %v1305, %v1338
      %v1347 = vmul.f32 %v1307, %v1339
      %v1348 = vpack.c.bf16 %v1341, %v1340
      %v1349 = vpack.c.bf16 %v1343, %v1342
      %v1350 = vpack.c.bf16 %v1345, %v1344
      %v1351 = vpack.c.bf16 %v1347, %v1346
      %1352 = vrot.lane.b32.xlu0 %v529, 56
      %v1353 = vpop.permute.xlu0 %1352
      %v1356 = vsel %vm752, %v1348, 0
      %1358 = vmatprep.subr.bf16.mxu0 0
      %1359 = vmatpush1.bf16.msra.mxu0 0
      %1360 = vmatprep.subr.bf16.mxu0 0
      %1361 = vmatpush1.bf16.msra.mxu0 0
      %1362 = vmatprep.subr.bf16.mxu0 0
      %1363 = vmatpush1.bf16.msra.mxu0 0
      %1364 = vmatprep.subr.bf16.mxu0 0
      %1365 = vmatpush1.bf16.msra.mxu0 0
      %1366 = vmatprep.subr.bf16.mxu0 0
      %1367 = vmatpush1.bf16.msra.mxu0 0
      %1368 = vmatprep.subr.bf16.mxu0 0
      %1369 = vmatpush1.bf16.msra.mxu0 0
      %1370 = vmatprep.subr.bf16.mxu0 0
      %1371 = vmatpush1.bf16.msra.mxu0 0
      %1372 = vmatprep.subr.bf16.mxu0 0
      %1373 = vmatpush1.bf16.msra.mxu0 %v1353
      %1374 = vmatprep.subr.bf16.mxu0 0
      %1375 = vmatpush2.bf16.msra.mxu0 0
      %1376 = vmatprep.subr.bf16.mxu0 0
      %1377 = vmatpush2.bf16.msra.mxu0 0
      %1378 = vmatprep.subr.bf16.mxu0 0
      %1379 = vmatpush2.bf16.msra.mxu0 0
      %1380 = vmatprep.subr.bf16.mxu0 0
      %1381 = vmatpush2.bf16.msra.mxu0 0
      %1382 = vmatprep.subr.bf16.mxu0 0
      %1383 = vmatpush2.bf16.msra.mxu0 0
      %1384 = vmatprep.subr.bf16.mxu0 0
      %1385 = vmatpush2.bf16.msra.mxu0 0
      %1386 = vmatprep.subr.bf16.mxu0 0
      %1387 = vmatpush2.bf16.msra.mxu0 0
      %1388 = vmatprep.subr.bf16.mxu0 0
      %1389 = vmatpush2.bf16.msra.mxu0 0
      %1390 = vmatprep.mubr.bf16.mxu0 0
      %1391 = vmatmul.mubr.bf16.gmra.mxu0 %v1356
      %v1392 = vpop.f32.mrf.mxu0
      %v1393 = vadd.f32 0.0, %v1392
      %v1394 = vpop.f32.mrf.mxu0
      %v1395 = vpop.f32.mrf.mxu0
      %v1396 = vadd.f32 0.0, %v1395
      %v1397 = vpop.f32.mrf.mxu0
      %1398 = vdwg.mxu0
      %1399 = vrot.lane.b32.xlu0 %v530, 56
      %v1400 = vpop.permute.xlu0 %1399
      %v1403 = vsel %vm752, %v1349, 0
      %1405 = vmatprep.subr.bf16.mxu0 0
      %1406 = vmatpush1.bf16.msra.mxu0 0
      %1407 = vmatprep.subr.bf16.mxu0 0
      %1408 = vmatpush1.bf16.msra.mxu0 0
      %1409 = vmatprep.subr.bf16.mxu0 0
      %1410 = vmatpush1.bf16.msra.mxu0 0
      %1411 = vmatprep.subr.bf16.mxu0 0
      %1412 = vmatpush1.bf16.msra.mxu0 0
      %1413 = vmatprep.subr.bf16.mxu0 0
      %1414 = vmatpush1.bf16.msra.mxu0 0
      %1415 = vmatprep.subr.bf16.mxu0 0
      %1416 = vmatpush1.bf16.msra.mxu0 0
      %1417 = vmatprep.subr.bf16.mxu0 0
      %1418 = vmatpush1.bf16.msra.mxu0 0
      %1419 = vmatprep.subr.bf16.mxu0 0
      %1420 = vmatpush1.bf16.msra.mxu0 %v1400
      %1421 = vmatprep.subr.bf16.mxu0 0
      %1422 = vmatpush2.bf16.msra.mxu0 0
      %1423 = vmatprep.subr.bf16.mxu0 0
      %1424 = vmatpush2.bf16.msra.mxu0 0
      %1425 = vmatprep.subr.bf16.mxu0 0
      %1426 = vmatpush2.bf16.msra.mxu0 0
      %1427 = vmatprep.subr.bf16.mxu0 0
      %1428 = vmatpush2.bf16.msra.mxu0 0
      %1429 = vmatprep.subr.bf16.mxu0 0
      %1430 = vmatpush2.bf16.msra.mxu0 0
      %1431 = vmatprep.subr.bf16.mxu0 0
      %1432 = vmatpush2.bf16.msra.mxu0 0
      %1433 = vmatprep.subr.bf16.mxu0 0
      %1434 = vmatpush2.bf16.msra.mxu0 0
      %1435 = vmatprep.subr.bf16.mxu0 0
      %1436 = vmatpush2.bf16.msra.mxu0 0
      %1437 = vmatprep.mubr.bf16.mxu0 0
      %1438 = vmatmul.mubr.bf16.gmra.mxu0 %v1403
      %v1439 = vpop.f32.mrf.mxu0
      %v1440 = vadd.f32 0.0, %v1439
      %v1441 = vpop.f32.mrf.mxu0
      %v1442 = vpop.f32.mrf.mxu0
      %v1443 = vadd.f32 0.0, %v1442
      %v1444 = vpop.f32.mrf.mxu0
      %1445 = vdwg.mxu0
      %1446 = vrot.lane.b32.xlu0 %v531, 56
      %v1447 = vpop.permute.xlu0 %1446
      %v1450 = vsel %vm752, %v1350, 0
      %1452 = vmatprep.subr.bf16.mxu0 0
      %1453 = vmatpush1.bf16.msra.mxu0 0
      %1454 = vmatprep.subr.bf16.mxu0 0
      %1455 = vmatpush1.bf16.msra.mxu0 0
      %1456 = vmatprep.subr.bf16.mxu0 0
      %1457 = vmatpush1.bf16.msra.mxu0 0
      %1458 = vmatprep.subr.bf16.mxu0 0
      %1459 = vmatpush1.bf16.msra.mxu0 0
      %1460 = vmatprep.subr.bf16.mxu0 0
      %1461 = vmatpush1.bf16.msra.mxu0 0
      %1462 = vmatprep.subr.bf16.mxu0 0
      %1463 = vmatpush1.bf16.msra.mxu0 0
      %1464 = vmatprep.subr.bf16.mxu0 0
      %1465 = vmatpush1.bf16.msra.mxu0 0
      %1466 = vmatprep.subr.bf16.mxu0 0
      %1467 = vmatpush1.bf16.msra.mxu0 %v1447
      %1468 = vmatprep.subr.bf16.mxu0 0
      %1469 = vmatpush2.bf16.msra.mxu0 0
      %1470 = vmatprep.subr.bf16.mxu0 0
      %1471 = vmatpush2.bf16.msra.mxu0 0
      %1472 = vmatprep.subr.bf16.mxu0 0
      %1473 = vmatpush2.bf16.msra.mxu0 0
      %1474 = vmatprep.subr.bf16.mxu0 0
      %1475 = vmatpush2.bf16.msra.mxu0 0
      %1476 = vmatprep.subr.bf16.mxu0 0
      %1477 = vmatpush2.bf16.msra.mxu0 0
      %1478 = vmatprep.subr.bf16.mxu0 0
      %1479 = vmatpush2.bf16.msra.mxu0 0
      %1480 = vmatprep.subr.bf16.mxu0 0
      %1481 = vmatpush2.bf16.msra.mxu0 0
      %1482 = vmatprep.subr.bf16.mxu0 0
      %1483 = vmatpush2.bf16.msra.mxu0 0
      %1484 = vmatprep.mubr.bf16.mxu0 0
      %1485 = vmatmul.mubr.bf16.gmra.mxu0 %v1450
      %v1486 = vpop.f32.mrf.mxu0
      %v1487 = vadd.f32 0.0, %v1486
      %v1488 = vpop.f32.mrf.mxu0
      %v1489 = vpop.f32.mrf.mxu0
      %v1490 = vadd.f32 0.0, %v1489
      %v1491 = vpop.f32.mrf.mxu0
      %1492 = vdwg.mxu0
      %1493 = vrot.lane.b32.xlu0 %v532, 56
      %v1494 = vpop.permute.xlu0 %1493
      %v1497 = vsel %vm752, %v1351, 0
      %1499 = vmatprep.subr.bf16.mxu0 0
      %1500 = vmatpush1.bf16.msra.mxu0 0
      %1501 = vmatprep.subr.bf16.mxu0 0
      %1502 = vmatpush1.bf16.msra.mxu0 0
      %1503 = vmatprep.subr.bf16.mxu0 0
      %1504 = vmatpush1.bf16.msra.mxu0 0
      %1505 = vmatprep.subr.bf16.mxu0 0
      %1506 = vmatpush1.bf16.msra.mxu0 0
      %1507 = vmatprep.subr.bf16.mxu0 0
      %1508 = vmatpush1.bf16.msra.mxu0 0
      %1509 = vmatprep.subr.bf16.mxu0 0
      %1510 = vmatpush1.bf16.msra.mxu0 0
      %1511 = vmatprep.subr.bf16.mxu0 0
      %1512 = vmatpush1.bf16.msra.mxu0 0
      %1513 = vmatprep.subr.bf16.mxu0 0
      %1514 = vmatpush1.bf16.msra.mxu0 %v1494
      %1515 = vmatprep.subr.bf16.mxu0 0
      %1516 = vmatpush2.bf16.msra.mxu0 0
      %1517 = vmatprep.subr.bf16.mxu0 0
      %1518 = vmatpush2.bf16.msra.mxu0 0
      %1519 = vmatprep.subr.bf16.mxu0 0
      %1520 = vmatpush2.bf16.msra.mxu0 0
      %1521 = vmatprep.subr.bf16.mxu0 0
      %1522 = vmatpush2.bf16.msra.mxu0 0
      %1523 = vmatprep.subr.bf16.mxu0 0
      %1524 = vmatpush2.bf16.msra.mxu0 0
      %1525 = vmatprep.subr.bf16.mxu0 0
      %1526 = vmatpush2.bf16.msra.mxu0 0
      %1527 = vmatprep.subr.bf16.mxu0 0
      %1528 = vmatpush2.bf16.msra.mxu0 0
      %1529 = vmatprep.subr.bf16.mxu0 0
      %1530 = vmatpush2.bf16.msra.mxu0 0
      %1531 = vmatprep.mubr.bf16.mxu0 0
      %1532 = vmatmul.mubr.bf16.gmra.mxu0 %v1497
      %v1533 = vpop.f32.mrf.mxu0
      %v1534 = vadd.f32 0.0, %v1533
      %v1535 = vpop.f32.mrf.mxu0
      %v1536 = vpop.f32.mrf.mxu0
      %v1537 = vadd.f32 0.0, %v1536
      %v1538 = vpop.f32.mrf.mxu0
      %1539 = vdwg.mxu0
      %v1540 = vpack.c.bf16 %v1396, %v1393
      %v1541 = vpack.c.bf16 %v1443, %v1440
      %v1542 = vpack.c.bf16 %v1490, %v1487
      %v1543 = vpack.c.bf16 %v1537, %v1534
      %1544 = vrot.lane.b32.xlu0 %v529, 112
      %v1545 = vpop.permute.xlu0 %1544
      %1546 = vrot.lane.b32.xlu0 %v529, 80
      %v1547 = vpop.permute.xlu0 %1546
      %v1549 = vsel %vm536, %v1545, 0
      %v1552 = vsel %vm536, %v1547, 0
      %1554 = vmatprep.subr.bf16.mxu0 0
      %1555 = vmatpush1.bf16.xpose.msra.mxu0 0
      %1556 = vmatprep.subr.bf16.mxu0 0
      %1557 = vmatpush1.bf16.xpose.msra.mxu0 0
      %1558 = vmatprep.subr.bf16.mxu0 0
      %1559 = vmatpush1.bf16.xpose.msra.mxu0 0
      %1560 = vmatprep.subr.bf16.mxu0 0
      %1561 = vmatpush1.bf16.xpose.msra.mxu0 0
      %1562 = vmatprep.subr.bf16.mxu0 0
      %1563 = vmatpush1.bf16.xpose.msra.mxu0 0
      %1564 = vmatprep.subr.bf16.mxu0 0
      %1565 = vmatpush1.bf16.xpose.msra.mxu0 0
      %1566 = vmatprep.subr.bf16.mxu0 0
      %1567 = vmatpush1.bf16.xpose.msra.mxu0 0
      %1568 = vmatprep.subr.bf16.mxu0 0
      %1569 = vmatpush1.bf16.xpose.msra.mxu0 %v1552
      %1570 = vmatprep.subr.bf16.mxu0 0
      %1571 = vmatpush2.bf16.xpose.msra.mxu0 0
      %1572 = vmatprep.subr.bf16.mxu0 0
      %1573 = vmatpush2.bf16.xpose.msra.mxu0 0
      %1574 = vmatprep.subr.bf16.mxu0 0
      %1575 = vmatpush2.bf16.xpose.msra.mxu0 0
      %1576 = vmatprep.subr.bf16.mxu0 0
      %1577 = vmatpush2.bf16.xpose.msra.mxu0 0
      %1578 = vmatprep.subr.bf16.mxu0 0
      %1579 = vmatpush2.bf16.xpose.msra.mxu0 0
      %1580 = vmatprep.subr.bf16.mxu0 0
      %1581 = vmatpush2.bf16.xpose.msra.mxu0 0
      %1582 = vmatprep.subr.bf16.mxu0 0
      %1583 = vmatpush2.bf16.xpose.msra.mxu0 0
      %1584 = vmatprep.subr.bf16.mxu0 0
      %1585 = vmatpush2.bf16.xpose.msra.mxu0 0
      %1586 = vmatprep.mubr.bf16.mxu0 0
      %1587 = vmatmul.mubr.bf16.gmra.mxu0 %v1549
      %v1588 = vpop.f32.mrf.mxu0
      %v1589 = vadd.f32 0.0, %v1588
      %v1590 = vpop.f32.mrf.mxu0
      %v1591 = vpop.f32.mrf.mxu0
      %v1592 = vadd.f32 0.0, %v1591
      %v1593 = vpop.f32.mrf.mxu0
      %1594 = vdwg.mxu0
      %1595 = vrot.lane.b32.xlu0 %v530, 112
      %v1596 = vpop.permute.xlu0 %1595
      %1597 = vrot.lane.b32.xlu0 %v530, 80
      %v1598 = vpop.permute.xlu0 %1597
      %v1600 = vsel %vm536, %v1596, 0
      %v1603 = vsel %vm536, %v1598, 0
      %1605 = vmatprep.subr.bf16.mxu0 0
      %1606 = vmatpush1.bf16.xpose.msra.mxu0 0
      %1607 = vmatprep.subr.bf16.mxu0 0
      %1608 = vmatpush1.bf16.xpose.msra.mxu0 0
      %1609 = vmatprep.subr.bf16.mxu0 0
      %1610 = vmatpush1.bf16.xpose.msra.mxu0 0
      %1611 = vmatprep.subr.bf16.mxu0 0
      %1612 = vmatpush1.bf16.xpose.msra.mxu0 0
      %1613 = vmatprep.subr.bf16.mxu0 0
      %1614 = vmatpush1.bf16.xpose.msra.mxu0 0
      %1615 = vmatprep.subr.bf16.mxu0 0
      %1616 = vmatpush1.bf16.xpose.msra.mxu0 0
      %1617 = vmatprep.subr.bf16.mxu0 0
      %1618 = vmatpush1.bf16.xpose.msra.mxu0 0
      %1619 = vmatprep.subr.bf16.mxu0 0
      %1620 = vmatpush1.bf16.xpose.msra.mxu0 %v1603
      %1621 = vmatprep.subr.bf16.mxu0 0
      %1622 = vmatpush2.bf16.xpose.msra.mxu0 0
      %1623 = vmatprep.subr.bf16.mxu0 0
      %1624 = vmatpush2.bf16.xpose.msra.mxu0 0
      %1625 = vmatprep.subr.bf16.mxu0 0
      %1626 = vmatpush2.bf16.xpose.msra.mxu0 0
      %1627 = vmatprep.subr.bf16.mxu0 0
      %1628 = vmatpush2.bf16.xpose.msra.mxu0 0
      %1629 = vmatprep.subr.bf16.mxu0 0
      %1630 = vmatpush2.bf16.xpose.msra.mxu0 0
      %1631 = vmatprep.subr.bf16.mxu0 0
      %1632 = vmatpush2.bf16.xpose.msra.mxu0 0
      %1633 = vmatprep.subr.bf16.mxu0 0
      %1634 = vmatpush2.bf16.xpose.msra.mxu0 0
      %1635 = vmatprep.subr.bf16.mxu0 0
      %1636 = vmatpush2.bf16.xpose.msra.mxu0 0
      %1637 = vmatprep.mubr.bf16.mxu0 0
      %1638 = vmatmul.mubr.bf16.gmra.mxu0 %v1600
      %v1639 = vpop.f32.mrf.mxu0
      %v1640 = vadd.f32 0.0, %v1639
      %v1641 = vpop.f32.mrf.mxu0
      %v1642 = vpop.f32.mrf.mxu0
      %v1643 = vadd.f32 0.0, %v1642
      %v1644 = vpop.f32.mrf.mxu0
      %1645 = vdwg.mxu0
      %1646 = vrot.lane.b32.xlu0 %v531, 112
      %v1647 = vpop.permute.xlu0 %1646
      %1648 = vrot.lane.b32.xlu0 %v531, 80
      %v1649 = vpop.permute.xlu0 %1648
      %v1651 = vsel %vm536, %v1647, 0
      %v1654 = vsel %vm536, %v1649, 0
      %1656 = vmatprep.subr.bf16.mxu0 0
      %1657 = vmatpush1.bf16.xpose.msra.mxu0 0
      %1658 = vmatprep.subr.bf16.mxu0 0
      %1659 = vmatpush1.bf16.xpose.msra.mxu0 0
      %1660 = vmatprep.subr.bf16.mxu0 0
      %1661 = vmatpush1.bf16.xpose.msra.mxu0 0
      %1662 = vmatprep.subr.bf16.mxu0 0
      %1663 = vmatpush1.bf16.xpose.msra.mxu0 0
      %1664 = vmatprep.subr.bf16.mxu0 0
      %1665 = vmatpush1.bf16.xpose.msra.mxu0 0
      %1666 = vmatprep.subr.bf16.mxu0 0
      %1667 = vmatpush1.bf16.xpose.msra.mxu0 0
      %1668 = vmatprep.subr.bf16.mxu0 0
      %1669 = vmatpush1.bf16.xpose.msra.mxu0 0
      %1670 = vmatprep.subr.bf16.mxu0 0
      %1671 = vmatpush1.bf16.xpose.msra.mxu0 %v1654
      %1672 = vmatprep.subr.bf16.mxu0 0
      %1673 = vmatpush2.bf16.xpose.msra.mxu0 0
      %1674 = vmatprep.subr.bf16.mxu0 0
      %1675 = vmatpush2.bf16.xpose.msra.mxu0 0
      %1676 = vmatprep.subr.bf16.mxu0 0
      %1677 = vmatpush2.bf16.xpose.msra.mxu0 0
      %1678 = vmatprep.subr.bf16.mxu0 0
      %1679 = vmatpush2.bf16.xpose.msra.mxu0 0
      %1680 = vmatprep.subr.bf16.mxu0 0
      %1681 = vmatpush2.bf16.xpose.msra.mxu0 0
      %1682 = vmatprep.subr.bf16.mxu0 0
      %1683 = vmatpush2.bf16.xpose.msra.mxu0 0
      %1684 = vmatprep.subr.bf16.mxu0 0
      %1685 = vmatpush2.bf16.xpose.msra.mxu0 0
      %1686 = vmatprep.subr.bf16.mxu0 0
      %1687 = vmatpush2.bf16.xpose.msra.mxu0 0
      %1688 = vmatprep.mubr.bf16.mxu0 0
      %1689 = vmatmul.mubr.bf16.gmra.mxu0 %v1651
      %v1690 = vpop.f32.mrf.mxu0
      %v1691 = vadd.f32 0.0, %v1690
      %v1692 = vpop.f32.mrf.mxu0
      %v1693 = vpop.f32.mrf.mxu0
      %v1694 = vadd.f32 0.0, %v1693
      %v1695 = vpop.f32.mrf.mxu0
      %1696 = vdwg.mxu0
      %1697 = vrot.lane.b32.xlu0 %v532, 112
      %v1698 = vpop.permute.xlu0 %1697
      %1699 = vrot.lane.b32.xlu0 %v532, 80
      %v1700 = vpop.permute.xlu0 %1699
      %v1702 = vsel %vm536, %v1698, 0
      %v1705 = vsel %vm536, %v1700, 0
      %1707 = vmatprep.subr.bf16.mxu0 0
      %1708 = vmatpush1.bf16.xpose.msra.mxu0 0
      %1709 = vmatprep.subr.bf16.mxu0 0
      %1710 = vmatpush1.bf16.xpose.msra.mxu0 0
      %1711 = vmatprep.subr.bf16.mxu0 0
      %1712 = vmatpush1.bf16.xpose.msra.mxu0 0
      %1713 = vmatprep.subr.bf16.mxu0 0
      %1714 = vmatpush1.bf16.xpose.msra.mxu0 0
      %1715 = vmatprep.subr.bf16.mxu0 0
      %1716 = vmatpush1.bf16.xpose.msra.mxu0 0
      %1717 = vmatprep.subr.bf16.mxu0 0
      %1718 = vmatpush1.bf16.xpose.msra.mxu0 0
      %1719 = vmatprep.subr.bf16.mxu0 0
      %1720 = vmatpush1.bf16.xpose.msra.mxu0 0
      %1721 = vmatprep.subr.bf16.mxu0 0
      %1722 = vmatpush1.bf16.xpose.msra.mxu0 %v1705
      %1723 = vmatprep.subr.bf16.mxu0 0
      %1724 = vmatpush2.bf16.xpose.msra.mxu0 0
      %1725 = vmatprep.subr.bf16.mxu0 0
      %1726 = vmatpush2.bf16.xpose.msra.mxu0 0
      %1727 = vmatprep.subr.bf16.mxu0 0
      %1728 = vmatpush2.bf16.xpose.msra.mxu0 0
      %1729 = vmatprep.subr.bf16.mxu0 0
      %1730 = vmatpush2.bf16.xpose.msra.mxu0 0
      %1731 = vmatprep.subr.bf16.mxu0 0
      %1732 = vmatpush2.bf16.xpose.msra.mxu0 0
      %1733 = vmatprep.subr.bf16.mxu0 0
      %1734 = vmatpush2.bf16.xpose.msra.mxu0 0
      %1735 = vmatprep.subr.bf16.mxu0 0
      %1736 = vmatpush2.bf16.xpose.msra.mxu0 0
      %1737 = vmatprep.subr.bf16.mxu0 0
      %1738 = vmatpush2.bf16.xpose.msra.mxu0 0
      %1739 = vmatprep.mubr.bf16.mxu0 0
      %1740 = vmatmul.mubr.bf16.gmra.mxu0 %v1702
      %v1741 = vpop.f32.mrf.mxu0
      %v1742 = vadd.f32 0.0, %v1741
      %v1743 = vpop.f32.mrf.mxu0
      %v1744 = vpop.f32.mrf.mxu0
      %v1745 = vadd.f32 0.0, %v1744
      %v1746 = vpop.f32.mrf.mxu0
      %1747 = vdwg.mxu0
      %v1748 = vmul.f32 %v1589, 0.35355338
      %v1749 = vmul.f32 %v1592, 0.35355338
      %v1750 = vmul.f32 %v1640, 0.35355338
      %v1751 = vmul.f32 %v1643, 0.35355338
      %v1752 = vmul.f32 %v1691, 0.35355338
      %v1753 = vmul.f32 %v1694, 0.35355338
      %v1754 = vmul.f32 %v1742, 0.35355338
      %v1755 = vmul.f32 %v1745, 0.35355338
      %s1756 = scalar_lea.vmem %s4, 32
      %v1757 = vld [vmem:[%s1756] sm:$0xff]
      %v1758 = vld [vmem:[%s1756 + $0x8] sm:$0xff]
      %v1759 = vadd.f32 %v1748, %v1757
      %v1760 = vadd.f32 %v1749, %v1758
      %v1761 = vadd.f32 %v1750, %v1757
      %v1762 = vadd.f32 %v1751, %v1758
      %v1763 = vadd.f32 %v1752, %v1757
      %v1764 = vadd.f32 %v1753, %v1758
      %v1765 = vadd.f32 %v1754, %v1757
      %v1766 = vadd.f32 %v1755, %v1758
      %v1767 = vsel %vm752, %v1759, -inf
      %1768 = vmax.xlane.f32.xlu0 %v1767
      %v1769 = vpop.xlane.xlu0 %1768
      %v1770 = vsel %vm752, %v1760, -inf
      %1771 = vmax.xlane.f32.xlu0 %v1770
      %v1772 = vpop.xlane.xlu0 %1771
      %v1773 = vsel %vm752, %v1761, -inf
      %1774 = vmax.xlane.f32.xlu0 %v1773
      %v1775 = vpop.xlane.xlu0 %1774
      %v1776 = vsel %vm752, %v1762, -inf
      %1777 = vmax.xlane.f32.xlu0 %v1776
      %v1778 = vpop.xlane.xlu0 %1777
      %v1779 = vsel %vm752, %v1763, -inf
      %1780 = vmax.xlane.f32.xlu0 %v1779
      %v1781 = vpop.xlane.xlu0 %1780
      %v1782 = vsel %vm752, %v1764, -inf
      %1783 = vmax.xlane.f32.xlu0 %v1782
      %v1784 = vpop.xlane.xlu0 %1783
      %v1785 = vsel %vm752, %v1765, -inf
      %1786 = vmax.xlane.f32.xlu0 %v1785
      %v1787 = vpop.xlane.xlu0 %1786
      %v1788 = vsel %vm752, %v1766, -inf
      %1789 = vmax.xlane.f32.xlu0 %v1788
      %v1790 = vpop.xlane.xlu0 %1789
      %v1791 = vsub.f32 %v1759, %v1769
      %v1792 = vsub.f32 %v1760, %v1772
      %v1793 = vsub.f32 %v1761, %v1775
      %v1794 = vsub.f32 %v1762, %v1778
      %v1795 = vsub.f32 %v1763, %v1781
      %v1796 = vsub.f32 %v1764, %v1784
      %v1797 = vsub.f32 %v1765, %v1787
      %v1798 = vsub.f32 %v1766, %v1790
      %v1799 = vmul.f32 %v1791, 1.442695
      %v1800 = vpow.pop %v1799
      %v1801 = vmul.f32 %v1792, 1.442695
      %v1802 = vpow.pop %v1801
      %v1803 = vmul.f32 %v1793, 1.442695
      %v1804 = vpow.pop %v1803
      %v1805 = vmul.f32 %v1794, 1.442695
      %v1806 = vpow.pop %v1805
      %v1807 = vmul.f32 %v1795, 1.442695
      %v1808 = vpow.pop %v1807
      %v1809 = vmul.f32 %v1796, 1.442695
      %v1810 = vpow.pop %v1809
      %v1811 = vmul.f32 %v1797, 1.442695
      %v1812 = vpow.pop %v1811
      %v1813 = vmul.f32 %v1798, 1.442695
      %v1814 = vpow.pop %v1813
      %v1815 = vsel %vm752, %v1800, 0.0
      %1816 = vadd.xlane.f32.xlu0 %v1815
      %v1817 = vpop.xlane.xlu0 %1816
      %v1818 = vsel %vm752, %v1802, 0.0
      %1819 = vadd.xlane.f32.xlu0 %v1818
      %v1820 = vpop.xlane.xlu0 %1819
      %v1821 = vsel %vm752, %v1804, 0.0
      %1822 = vadd.xlane.f32.xlu0 %v1821
      %v1823 = vpop.xlane.xlu0 %1822
      %v1824 = vsel %vm752, %v1806, 0.0
      %1825 = vadd.xlane.f32.xlu0 %v1824
      %v1826 = vpop.xlane.xlu0 %1825
      %v1827 = vsel %vm752, %v1808, 0.0
      %1828 = vadd.xlane.f32.xlu0 %v1827
      %v1829 = vpop.xlane.xlu0 %1828
      %v1830 = vsel %vm752, %v1810, 0.0
      %1831 = vadd.xlane.f32.xlu0 %v1830
      %v1832 = vpop.xlane.xlu0 %1831
      %v1833 = vsel %vm752, %v1812, 0.0
      %1834 = vadd.xlane.f32.xlu0 %v1833
      %v1835 = vpop.xlane.xlu0 %1834
      %v1836 = vsel %vm752, %v1814, 0.0
      %1837 = vadd.xlane.f32.xlu0 %v1836
      %v1838 = vpop.xlane.xlu0 %1837
      %v1839 = vrcp.pop %v1817
      %v1840 = vrcp.pop %v1820
      %v1841 = vrcp.pop %v1823
      %v1842 = vrcp.pop %v1826
      %v1843 = vrcp.pop %v1829
      %v1844 = vrcp.pop %v1832
      %v1845 = vrcp.pop %v1835
      %v1846 = vrcp.pop %v1838
      %v1847 = vmul.f32 %v1800, %v1839
      %v1848 = vmul.f32 %v1802, %v1840
      %v1849 = vmul.f32 %v1804, %v1841
      %v1850 = vmul.f32 %v1806, %v1842
      %v1851 = vmul.f32 %v1808, %v1843
      %v1852 = vmul.f32 %v1810, %v1844
      %v1853 = vmul.f32 %v1812, %v1845
      %v1854 = vmul.f32 %v1814, %v1846
      %v1855 = vpack.c.bf16 %v1848, %v1847
      %v1856 = vpack.c.bf16 %v1850, %v1849
      %v1857 = vpack.c.bf16 %v1852, %v1851
      %v1858 = vpack.c.bf16 %v1854, %v1853
      %1859 = vrot.lane.b32.xlu0 %v529, 48
      %v1860 = vpop.permute.xlu0 %1859
      %v1863 = vsel %vm752, %v1855, 0
      %1865 = vmatprep.subr.bf16.mxu0 0
      %1866 = vmatpush1.bf16.msra.mxu0 0
      %1867 = vmatprep.subr.bf16.mxu0 0
      %1868 = vmatpush1.bf16.msra.mxu0 0
      %1869 = vmatprep.subr.bf16.mxu0 0
      %1870 = vmatpush1.bf16.msra.mxu0 0
      %1871 = vmatprep.subr.bf16.mxu0 0
      %1872 = vmatpush1.bf16.msra.mxu0 0
      %1873 = vmatprep.subr.bf16.mxu0 0
      %1874 = vmatpush1.bf16.msra.mxu0 0
      %1875 = vmatprep.subr.bf16.mxu0 0
      %1876 = vmatpush1.bf16.msra.mxu0 0
      %1877 = vmatprep.subr.bf16.mxu0 0
      %1878 = vmatpush1.bf16.msra.mxu0 0
      %1879 = vmatprep.subr.bf16.mxu0 0
      %1880 = vmatpush1.bf16.msra.mxu0 %v1860
      %1881 = vmatprep.subr.bf16.mxu0 0
      %1882 = vmatpush2.bf16.msra.mxu0 0
      %1883 = vmatprep.subr.bf16.mxu0 0
      %1884 = vmatpush2.bf16.msra.mxu0 0
      %1885 = vmatprep.subr.bf16.mxu0 0
      %1886 = vmatpush2.bf16.msra.mxu0 0
      %1887 = vmatprep.subr.bf16.mxu0 0
      %1888 = vmatpush2.bf16.msra.mxu0 0
      %1889 = vmatprep.subr.bf16.mxu0 0
      %1890 = vmatpush2.bf16.msra.mxu0 0
      %1891 = vmatprep.subr.bf16.mxu0 0
      %1892 = vmatpush2.bf16.msra.mxu0 0
      %1893 = vmatprep.subr.bf16.mxu0 0
      %1894 = vmatpush2.bf16.msra.mxu0 0
      %1895 = vmatprep.subr.bf16.mxu0 0
      %1896 = vmatpush2.bf16.msra.mxu0 0
      %1897 = vmatprep.mubr.bf16.mxu0 0
      %1898 = vmatmul.mubr.bf16.gmra.mxu0 %v1863
      %v1899 = vpop.f32.mrf.mxu0
      %v1900 = vadd.f32 0.0, %v1899
      %v1901 = vpop.f32.mrf.mxu0
      %v1902 = vpop.f32.mrf.mxu0
      %v1903 = vadd.f32 0.0, %v1902
      %v1904 = vpop.f32.mrf.mxu0
      %1905 = vdwg.mxu0
      %1906 = vrot.lane.b32.xlu0 %v530, 48
      %v1907 = vpop.permute.xlu0 %1906
      %v1910 = vsel %vm752, %v1856, 0
      %1912 = vmatprep.subr.bf16.mxu0 0
      %1913 = vmatpush1.bf16.msra.mxu0 0
      %1914 = vmatprep.subr.bf16.mxu0 0
      %1915 = vmatpush1.bf16.msra.mxu0 0
      %1916 = vmatprep.subr.bf16.mxu0 0
      %1917 = vmatpush1.bf16.msra.mxu0 0
      %1918 = vmatprep.subr.bf16.mxu0 0
      %1919 = vmatpush1.bf16.msra.mxu0 0
      %1920 = vmatprep.subr.bf16.mxu0 0
      %1921 = vmatpush1.bf16.msra.mxu0 0
      %1922 = vmatprep.subr.bf16.mxu0 0
      %1923 = vmatpush1.bf16.msra.mxu0 0
      %1924 = vmatprep.subr.bf16.mxu0 0
      %1925 = vmatpush1.bf16.msra.mxu0 0
      %1926 = vmatprep.subr.bf16.mxu0 0
      %1927 = vmatpush1.bf16.msra.mxu0 %v1907
      %1928 = vmatprep.subr.bf16.mxu0 0
      %1929 = vmatpush2.bf16.msra.mxu0 0
      %1930 = vmatprep.subr.bf16.mxu0 0
      %1931 = vmatpush2.bf16.msra.mxu0 0
      %1932 = vmatprep.subr.bf16.mxu0 0
      %1933 = vmatpush2.bf16.msra.mxu0 0
      %1934 = vmatprep.subr.bf16.mxu0 0
      %1935 = vmatpush2.bf16.msra.mxu0 0
      %1936 = vmatprep.subr.bf16.mxu0 0
      %1937 = vmatpush2.bf16.msra.mxu0 0
      %1938 = vmatprep.subr.bf16.mxu0 0
      %1939 = vmatpush2.bf16.msra.mxu0 0
      %1940 = vmatprep.subr.bf16.mxu0 0
      %1941 = vmatpush2.bf16.msra.mxu0 0
      %1942 = vmatprep.subr.bf16.mxu0 0
      %1943 = vmatpush2.bf16.msra.mxu0 0
      %1944 = vmatprep.mubr.bf16.mxu0 0
      %1945 = vmatmul.mubr.bf16.gmra.mxu0 %v1910
      %v1946 = vpop.f32.mrf.mxu0
      %v1947 = vadd.f32 0.0, %v1946
      %v1948 = vpop.f32.mrf.mxu0
      %v1949 = vpop.f32.mrf.mxu0
      %v1950 = vadd.f32 0.0, %v1949
      %v1951 = vpop.f32.mrf.mxu0
      %1952 = vdwg.mxu0
      %1953 = vrot.lane.b32.xlu0 %v531, 48
      %v1954 = vpop.permute.xlu0 %1953
      %v1957 = vsel %vm752, %v1857, 0
      %1959 = vmatprep.subr.bf16.mxu0 0
      %1960 = vmatpush1.bf16.msra.mxu0 0
      %1961 = vmatprep.subr.bf16.mxu0 0
      %1962 = vmatpush1.bf16.msra.mxu0 0
      %1963 = vmatprep.subr.bf16.mxu0 0
      %1964 = vmatpush1.bf16.msra.mxu0 0
      %1965 = vmatprep.subr.bf16.mxu0 0
      %1966 = vmatpush1.bf16.msra.mxu0 0
      %1967 = vmatprep.subr.bf16.mxu0 0
      %1968 = vmatpush1.bf16.msra.mxu0 0
      %1969 = vmatprep.subr.bf16.mxu0 0
      %1970 = vmatpush1.bf16.msra.mxu0 0
      %1971 = vmatprep.subr.bf16.mxu0 0
      %1972 = vmatpush1.bf16.msra.mxu0 0
      %1973 = vmatprep.subr.bf16.mxu0 0
      %1974 = vmatpush1.bf16.msra.mxu0 %v1954
      %1975 = vmatprep.subr.bf16.mxu0 0
      %1976 = vmatpush2.bf16.msra.mxu0 0
      %1977 = vmatprep.subr.bf16.mxu0 0
      %1978 = vmatpush2.bf16.msra.mxu0 0
      %1979 = vmatprep.subr.bf16.mxu0 0
      %1980 = vmatpush2.bf16.msra.mxu0 0
      %1981 = vmatprep.subr.bf16.mxu0 0
      %1982 = vmatpush2.bf16.msra.mxu0 0
      %1983 = vmatprep.subr.bf16.mxu0 0
      %1984 = vmatpush2.bf16.msra.mxu0 0
      %1985 = vmatprep.subr.bf16.mxu0 0
      %1986 = vmatpush2.bf16.msra.mxu0 0
      %1987 = vmatprep.subr.bf16.mxu0 0
      %1988 = vmatpush2.bf16.msra.mxu0 0
      %1989 = vmatprep.subr.bf16.mxu0 0
      %1990 = vmatpush2.bf16.msra.mxu0 0
      %1991 = vmatprep.mubr.bf16.mxu0 0
      %1992 = vmatmul.mubr.bf16.gmra.mxu0 %v1957
      %v1993 = vpop.f32.mrf.mxu0
      %v1994 = vadd.f32 0.0, %v1993
      %v1995 = vpop.f32.mrf.mxu0
      %v1996 = vpop.f32.mrf.mxu0
      %v1997 = vadd.f32 0.0, %v1996
      %v1998 = vpop.f32.mrf.mxu0
      %1999 = vdwg.mxu0
      %2000 = vrot.lane.b32.xlu0 %v532, 48
      %v2001 = vpop.permute.xlu0 %2000
      %v2004 = vsel %vm752, %v1858, 0
      %2006 = vmatprep.subr.bf16.mxu0 0
      %2007 = vmatpush1.bf16.msra.mxu0 0
      %2008 = vmatprep.subr.bf16.mxu0 0
      %2009 = vmatpush1.bf16.msra.mxu0 0
      %2010 = vmatprep.subr.bf16.mxu0 0
      %2011 = vmatpush1.bf16.msra.mxu0 0
      %2012 = vmatprep.subr.bf16.mxu0 0
      %2013 = vmatpush1.bf16.msra.mxu0 0
      %2014 = vmatprep.subr.bf16.mxu0 0
      %2015 = vmatpush1.bf16.msra.mxu0 0
      %2016 = vmatprep.subr.bf16.mxu0 0
      %2017 = vmatpush1.bf16.msra.mxu0 0
      %2018 = vmatprep.subr.bf16.mxu0 0
      %2019 = vmatpush1.bf16.msra.mxu0 0
      %2020 = vmatprep.subr.bf16.mxu0 0
      %2021 = vmatpush1.bf16.msra.mxu0 %v2001
      %2022 = vmatprep.subr.bf16.mxu0 0
      %2023 = vmatpush2.bf16.msra.mxu0 0
      %2024 = vmatprep.subr.bf16.mxu0 0
      %2025 = vmatpush2.bf16.msra.mxu0 0
      %2026 = vmatprep.subr.bf16.mxu0 0
      %2027 = vmatpush2.bf16.msra.mxu0 0
      %2028 = vmatprep.subr.bf16.mxu0 0
      %2029 = vmatpush2.bf16.msra.mxu0 0
      %2030 = vmatprep.subr.bf16.mxu0 0
      %2031 = vmatpush2.bf16.msra.mxu0 0
      %2032 = vmatprep.subr.bf16.mxu0 0
      %2033 = vmatpush2.bf16.msra.mxu0 0
      %2034 = vmatprep.subr.bf16.mxu0 0
      %2035 = vmatpush2.bf16.msra.mxu0 0
      %2036 = vmatprep.subr.bf16.mxu0 0
      %2037 = vmatpush2.bf16.msra.mxu0 0
      %2038 = vmatprep.mubr.bf16.mxu0 0
      %2039 = vmatmul.mubr.bf16.gmra.mxu0 %v2004
      %v2040 = vpop.f32.mrf.mxu0
      %v2041 = vadd.f32 0.0, %v2040
      %v2042 = vpop.f32.mrf.mxu0
      %v2043 = vpop.f32.mrf.mxu0
      %v2044 = vadd.f32 0.0, %v2043
      %v2045 = vpop.f32.mrf.mxu0
      %2046 = vdwg.mxu0
      %v2047 = vpack.c.bf16 %v1903, %v1900
      %v2048 = vpack.c.bf16 %v1950, %v1947
      %v2049 = vpack.c.bf16 %v1997, %v1994
      %v2050 = vpack.c.bf16 %v2044, %v2041
      %2051 = vrot.lane.b32.xlu0 %v529, 104
      %v2052 = vpop.permute.xlu0 %2051
      %2053 = vrot.lane.b32.xlu0 %v529, 72
      %v2054 = vpop.permute.xlu0 %2053
      %v2056 = vsel %vm536, %v2052, 0
      %v2059 = vsel %vm536, %v2054, 0
      %2061 = vmatprep.subr.bf16.mxu0 0
      %2062 = vmatpush1.bf16.xpose.msra.mxu0 0
      %2063 = vmatprep.subr.bf16.mxu0 0
      %2064 = vmatpush1.bf16.xpose.msra.mxu0 0
      %2065 = vmatprep.subr.bf16.mxu0 0
      %2066 = vmatpush1.bf16.xpose.msra.mxu0 0
      %2067 = vmatprep.subr.bf16.mxu0 0
      %2068 = vmatpush1.bf16.xpose.msra.mxu0 0
      %2069 = vmatprep.subr.bf16.mxu0 0
      %2070 = vmatpush1.bf16.xpose.msra.mxu0 0
      %2071 = vmatprep.subr.bf16.mxu0 0
      %2072 = vmatpush1.bf16.xpose.msra.mxu0 0
      %2073 = vmatprep.subr.bf16.mxu0 0
      %2074 = vmatpush1.bf16.xpose.msra.mxu0 0
      %2075 = vmatprep.subr.bf16.mxu0 0
      %2076 = vmatpush1.bf16.xpose.msra.mxu0 %v2059
      %2077 = vmatprep.subr.bf16.mxu0 0
      %2078 = vmatpush2.bf16.xpose.msra.mxu0 0
      %2079 = vmatprep.subr.bf16.mxu0 0
      %2080 = vmatpush2.bf16.xpose.msra.mxu0 0
      %2081 = vmatprep.subr.bf16.mxu0 0
      %2082 = vmatpush2.bf16.xpose.msra.mxu0 0
      %2083 = vmatprep.subr.bf16.mxu0 0
      %2084 = vmatpush2.bf16.xpose.msra.mxu0 0
      %2085 = vmatprep.subr.bf16.mxu0 0
      %2086 = vmatpush2.bf16.xpose.msra.mxu0 0
      %2087 = vmatprep.subr.bf16.mxu0 0
      %2088 = vmatpush2.bf16.xpose.msra.mxu0 0
      %2089 = vmatprep.subr.bf16.mxu0 0
      %2090 = vmatpush2.bf16.xpose.msra.mxu0 0
      %2091 = vmatprep.subr.bf16.mxu0 0
      %2092 = vmatpush2.bf16.xpose.msra.mxu0 0
      %2093 = vmatprep.mubr.bf16.mxu0 0
      %2094 = vmatmul.mubr.bf16.gmra.mxu0 %v2056
      %v2095 = vpop.f32.mrf.mxu0
      %v2096 = vadd.f32 0.0, %v2095
      %v2097 = vpop.f32.mrf.mxu0
      %v2098 = vpop.f32.mrf.mxu0
      %v2099 = vadd.f32 0.0, %v2098
      %v2100 = vpop.f32.mrf.mxu0
      %2101 = vdwg.mxu0
      %2102 = vrot.lane.b32.xlu0 %v530, 104
      %v2103 = vpop.permute.xlu0 %2102
      %2104 = vrot.lane.b32.xlu0 %v530, 72
      %v2105 = vpop.permute.xlu0 %2104
      %v2107 = vsel %vm536, %v2103, 0
      %v2110 = vsel %vm536, %v2105, 0
      %2112 = vmatprep.subr.bf16.mxu0 0
      %2113 = vmatpush1.bf16.xpose.msra.mxu0 0
      %2114 = vmatprep.subr.bf16.mxu0 0
      %2115 = vmatpush1.bf16.xpose.msra.mxu0 0
      %2116 = vmatprep.subr.bf16.mxu0 0
      %2117 = vmatpush1.bf16.xpose.msra.mxu0 0
      %2118 = vmatprep.subr.bf16.mxu0 0
      %2119 = vmatpush1.bf16.xpose.msra.mxu0 0
      %2120 = vmatprep.subr.bf16.mxu0 0
      %2121 = vmatpush1.bf16.xpose.msra.mxu0 0
      %2122 = vmatprep.subr.bf16.mxu0 0
      %2123 = vmatpush1.bf16.xpose.msra.mxu0 0
      %2124 = vmatprep.subr.bf16.mxu0 0
      %2125 = vmatpush1.bf16.xpose.msra.mxu0 0
      %2126 = vmatprep.subr.bf16.mxu0 0
      %2127 = vmatpush1.bf16.xpose.msra.mxu0 %v2110
      %2128 = vmatprep.subr.bf16.mxu0 0
      %2129 = vmatpush2.bf16.xpose.msra.mxu0 0
      %2130 = vmatprep.subr.bf16.mxu0 0
      %2131 = vmatpush2.bf16.xpose.msra.mxu0 0
      %2132 = vmatprep.subr.bf16.mxu0 0
      %2133 = vmatpush2.bf16.xpose.msra.mxu0 0
      %2134 = vmatprep.subr.bf16.mxu0 0
      %2135 = vmatpush2.bf16.xpose.msra.mxu0 0
      %2136 = vmatprep.subr.bf16.mxu0 0
      %2137 = vmatpush2.bf16.xpose.msra.mxu0 0
      %2138 = vmatprep.subr.bf16.mxu0 0
      %2139 = vmatpush2.bf16.xpose.msra.mxu0 0
      %2140 = vmatprep.subr.bf16.mxu0 0
      %2141 = vmatpush2.bf16.xpose.msra.mxu0 0
      %2142 = vmatprep.subr.bf16.mxu0 0
      %2143 = vmatpush2.bf16.xpose.msra.mxu0 0
      %2144 = vmatprep.mubr.bf16.mxu0 0
      %2145 = vmatmul.mubr.bf16.gmra.mxu0 %v2107
      %v2146 = vpop.f32.mrf.mxu0
      %v2147 = vadd.f32 0.0, %v2146
      %v2148 = vpop.f32.mrf.mxu0
      %v2149 = vpop.f32.mrf.mxu0
      %v2150 = vadd.f32 0.0, %v2149
      %v2151 = vpop.f32.mrf.mxu0
      %2152 = vdwg.mxu0
      %2153 = vrot.lane.b32.xlu0 %v531, 104
      %v2154 = vpop.permute.xlu0 %2153
      %2155 = vrot.lane.b32.xlu0 %v531, 72
      %v2156 = vpop.permute.xlu0 %2155
      %v2158 = vsel %vm536, %v2154, 0
      %v2161 = vsel %vm536, %v2156, 0
      %2163 = vmatprep.subr.bf16.mxu0 0
      %2164 = vmatpush1.bf16.xpose.msra.mxu0 0
      %2165 = vmatprep.subr.bf16.mxu0 0
      %2166 = vmatpush1.bf16.xpose.msra.mxu0 0
      %2167 = vmatprep.subr.bf16.mxu0 0
      %2168 = vmatpush1.bf16.xpose.msra.mxu0 0
      %2169 = vmatprep.subr.bf16.mxu0 0
      %2170 = vmatpush1.bf16.xpose.msra.mxu0 0
      %2171 = vmatprep.subr.bf16.mxu0 0
      %2172 = vmatpush1.bf16.xpose.msra.mxu0 0
      %2173 = vmatprep.subr.bf16.mxu0 0
      %2174 = vmatpush1.bf16.xpose.msra.mxu0 0
      %2175 = vmatprep.subr.bf16.mxu0 0
      %2176 = vmatpush1.bf16.xpose.msra.mxu0 0
      %2177 = vmatprep.subr.bf16.mxu0 0
      %2178 = vmatpush1.bf16.xpose.msra.mxu0 %v2161
      %2179 = vmatprep.subr.bf16.mxu0 0
      %2180 = vmatpush2.bf16.xpose.msra.mxu0 0
      %2181 = vmatprep.subr.bf16.mxu0 0
      %2182 = vmatpush2.bf16.xpose.msra.mxu0 0
      %2183 = vmatprep.subr.bf16.mxu0 0
      %2184 = vmatpush2.bf16.xpose.msra.mxu0 0
      %2185 = vmatprep.subr.bf16.mxu0 0
      %2186 = vmatpush2.bf16.xpose.msra.mxu0 0
      %2187 = vmatprep.subr.bf16.mxu0 0
      %2188 = vmatpush2.bf16.xpose.msra.mxu0 0
      %2189 = vmatprep.subr.bf16.mxu0 0
      %2190 = vmatpush2.bf16.xpose.msra.mxu0 0
      %2191 = vmatprep.subr.bf16.mxu0 0
      %2192 = vmatpush2.bf16.xpose.msra.mxu0 0
      %2193 = vmatprep.subr.bf16.mxu0 0
      %2194 = vmatpush2.bf16.xpose.msra.mxu0 0
      %2195 = vmatprep.mubr.bf16.mxu0 0
      %2196 = vmatmul.mubr.bf16.gmra.mxu0 %v2158
      %v2197 = vpop.f32.mrf.mxu0
      %v2198 = vadd.f32 0.0, %v2197
      %v2199 = vpop.f32.mrf.mxu0
      %v2200 = vpop.f32.mrf.mxu0
      %v2201 = vadd.f32 0.0, %v2200
      %v2202 = vpop.f32.mrf.mxu0
      %2203 = vdwg.mxu0
      %2204 = vrot.lane.b32.xlu0 %v532, 104
      %v2205 = vpop.permute.xlu0 %2204
      %2206 = vrot.lane.b32.xlu0 %v532, 72
      %v2207 = vpop.permute.xlu0 %2206
      %v2209 = vsel %vm536, %v2205, 0
      %v2212 = vsel %vm536, %v2207, 0
      %2214 = vmatprep.subr.bf16.mxu0 0
      %2215 = vmatpush1.bf16.xpose.msra.mxu0 0
      %2216 = vmatprep.subr.bf16.mxu0 0
      %2217 = vmatpush1.bf16.xpose.msra.mxu0 0
      %2218 = vmatprep.subr.bf16.mxu0 0
      %2219 = vmatpush1.bf16.xpose.msra.mxu0 0
      %2220 = vmatprep.subr.bf16.mxu0 0
      %2221 = vmatpush1.bf16.xpose.msra.mxu0 0
      %2222 = vmatprep.subr.bf16.mxu0 0
      %2223 = vmatpush1.bf16.xpose.msra.mxu0 0
      %2224 = vmatprep.subr.bf16.mxu0 0
      %2225 = vmatpush1.bf16.xpose.msra.mxu0 0
      %2226 = vmatprep.subr.bf16.mxu0 0
      %2227 = vmatpush1.bf16.xpose.msra.mxu0 0
      %2228 = vmatprep.subr.bf16.mxu0 0
      %2229 = vmatpush1.bf16.xpose.msra.mxu0 %v2212
      %2230 = vmatprep.subr.bf16.mxu0 0
      %2231 = vmatpush2.bf16.xpose.msra.mxu0 0
      %2232 = vmatprep.subr.bf16.mxu0 0
      %2233 = vmatpush2.bf16.xpose.msra.mxu0 0
      %2234 = vmatprep.subr.bf16.mxu0 0
      %2235 = vmatpush2.bf16.xpose.msra.mxu0 0
      %2236 = vmatprep.subr.bf16.mxu0 0
      %2237 = vmatpush2.bf16.xpose.msra.mxu0 0
      %2238 = vmatprep.subr.bf16.mxu0 0
      %2239 = vmatpush2.bf16.xpose.msra.mxu0 0
      %2240 = vmatprep.subr.bf16.mxu0 0
      %2241 = vmatpush2.bf16.xpose.msra.mxu0 0
      %2242 = vmatprep.subr.bf16.mxu0 0
      %2243 = vmatpush2.bf16.xpose.msra.mxu0 0
      %2244 = vmatprep.subr.bf16.mxu0 0
      %2245 = vmatpush2.bf16.xpose.msra.mxu0 0
      %2246 = vmatprep.mubr.bf16.mxu0 0
      %2247 = vmatmul.mubr.bf16.gmra.mxu0 %v2209
      %v2248 = vpop.f32.mrf.mxu0
      %v2249 = vadd.f32 0.0, %v2248
      %v2250 = vpop.f32.mrf.mxu0
      %v2251 = vpop.f32.mrf.mxu0
      %v2252 = vadd.f32 0.0, %v2251
      %v2253 = vpop.f32.mrf.mxu0
      %2254 = vdwg.mxu0
      %v2255 = vmul.f32 %v2096, 0.35355338
      %v2256 = vmul.f32 %v2099, 0.35355338
      %v2257 = vmul.f32 %v2147, 0.35355338
      %v2258 = vmul.f32 %v2150, 0.35355338
      %v2259 = vmul.f32 %v2198, 0.35355338
      %v2260 = vmul.f32 %v2201, 0.35355338
      %v2261 = vmul.f32 %v2249, 0.35355338
      %v2262 = vmul.f32 %v2252, 0.35355338
      %s2263 = scalar_lea.vmem %s4, 48
      %v2264 = vld [vmem:[%s2263] sm:$0xff]
      %v2265 = vld [vmem:[%s2263 + $0x8] sm:$0xff]
      %v2266 = vadd.f32 %v2255, %v2264
      %v2267 = vadd.f32 %v2256, %v2265
      %v2268 = vadd.f32 %v2257, %v2264
      %v2269 = vadd.f32 %v2258, %v2265
      %v2270 = vadd.f32 %v2259, %v2264
      %v2271 = vadd.f32 %v2260, %v2265
      %v2272 = vadd.f32 %v2261, %v2264
      %v2273 = vadd.f32 %v2262, %v2265
      %v2274 = vsel %vm752, %v2266, -inf
      %2275 = vmax.xlane.f32.xlu0 %v2274
      %v2276 = vpop.xlane.xlu0 %2275
      %v2277 = vsel %vm752, %v2267, -inf
      %2278 = vmax.xlane.f32.xlu0 %v2277
      %v2279 = vpop.xlane.xlu0 %2278
      %v2280 = vsel %vm752, %v2268, -inf
      %2281 = vmax.xlane.f32.xlu0 %v2280
      %v2282 = vpop.xlane.xlu0 %2281
      %v2283 = vsel %vm752, %v2269, -inf
      %2284 = vmax.xlane.f32.xlu0 %v2283
      %v2285 = vpop.xlane.xlu0 %2284
      %v2286 = vsel %vm752, %v2270, -inf
      %2287 = vmax.xlane.f32.xlu0 %v2286
      %v2288 = vpop.xlane.xlu0 %2287
      %v2289 = vsel %vm752, %v2271, -inf
      %2290 = vmax.xlane.f32.xlu0 %v2289
      %v2291 = vpop.xlane.xlu0 %2290
      %v2292 = vsel %vm752, %v2272, -inf
      %2293 = vmax.xlane.f32.xlu0 %v2292
      %v2294 = vpop.xlane.xlu0 %2293
      %v2295 = vsel %vm752, %v2273, -inf
      %2296 = vmax.xlane.f32.xlu0 %v2295
      %v2297 = vpop.xlane.xlu0 %2296
      %v2298 = vsub.f32 %v2266, %v2276
      %v2299 = vsub.f32 %v2267, %v2279
      %v2300 = vsub.f32 %v2268, %v2282
      %v2301 = vsub.f32 %v2269, %v2285
      %v2302 = vsub.f32 %v2270, %v2288
      %v2303 = vsub.f32 %v2271, %v2291
      %v2304 = vsub.f32 %v2272, %v2294
      %v2305 = vsub.f32 %v2273, %v2297
      %v2306 = vmul.f32 %v2298, 1.442695
      %v2307 = vpow.pop %v2306
      %v2308 = vmul.f32 %v2299, 1.442695
      %v2309 = vpow.pop %v2308
      %v2310 = vmul.f32 %v2300, 1.442695
      %v2311 = vpow.pop %v2310
      %v2312 = vmul.f32 %v2301, 1.442695
      %v2313 = vpow.pop %v2312
      %v2314 = vmul.f32 %v2302, 1.442695
      %v2315 = vpow.pop %v2314
      %v2316 = vmul.f32 %v2303, 1.442695
      %v2317 = vpow.pop %v2316
      %v2318 = vmul.f32 %v2304, 1.442695
      %v2319 = vpow.pop %v2318
      %v2320 = vmul.f32 %v2305, 1.442695
      %v2321 = vpow.pop %v2320
      %v2322 = vsel %vm752, %v2307, 0.0
      %2323 = vadd.xlane.f32.xlu0 %v2322
      %v2324 = vpop.xlane.xlu0 %2323
      %v2325 = vsel %vm752, %v2309, 0.0
      %2326 = vadd.xlane.f32.xlu0 %v2325
      %v2327 = vpop.xlane.xlu0 %2326
      %v2328 = vsel %vm752, %v2311, 0.0
      %2329 = vadd.xlane.f32.xlu0 %v2328
      %v2330 = vpop.xlane.xlu0 %2329
      %v2331 = vsel %vm752, %v2313, 0.0
      %2332 = vadd.xlane.f32.xlu0 %v2331
      %v2333 = vpop.xlane.xlu0 %2332
      %v2334 = vsel %vm752, %v2315, 0.0
      %2335 = vadd.xlane.f32.xlu0 %v2334
      %v2336 = vpop.xlane.xlu0 %2335
      %v2337 = vsel %vm752, %v2317, 0.0
      %2338 = vadd.xlane.f32.xlu0 %v2337
      %v2339 = vpop.xlane.xlu0 %2338
      %v2340 = vsel %vm752, %v2319, 0.0
      %2341 = vadd.xlane.f32.xlu0 %v2340
      %v2342 = vpop.xlane.xlu0 %2341
      %v2343 = vsel %vm752, %v2321, 0.0
      %2344 = vadd.xlane.f32.xlu0 %v2343
      %v2345 = vpop.xlane.xlu0 %2344
      %v2346 = vrcp.pop %v2324
      %v2347 = vrcp.pop %v2327
      %v2348 = vrcp.pop %v2330
      %v2349 = vrcp.pop %v2333
      %v2350 = vrcp.pop %v2336
      %v2351 = vrcp.pop %v2339
      %v2352 = vrcp.pop %v2342
      %v2353 = vrcp.pop %v2345
      %v2354 = vmul.f32 %v2307, %v2346
      %v2355 = vmul.f32 %v2309, %v2347
      %v2356 = vmul.f32 %v2311, %v2348
      %v2357 = vmul.f32 %v2313, %v2349
      %v2358 = vmul.f32 %v2315, %v2350
      %v2359 = vmul.f32 %v2317, %v2351
      %v2360 = vmul.f32 %v2319, %v2352
      %v2361 = vmul.f32 %v2321, %v2353
      %v2362 = vpack.c.bf16 %v2355, %v2354
      %v2363 = vpack.c.bf16 %v2357, %v2356
      %v2364 = vpack.c.bf16 %v2359, %v2358
      %v2365 = vpack.c.bf16 %v2361, %v2360
      %2366 = vrot.lane.b32.xlu0 %v529, 40
      %v2367 = vpop.permute.xlu0 %2366
      %v2370 = vsel %vm752, %v2362, 0
      %2372 = vmatprep.subr.bf16.mxu0 0
      %2373 = vmatpush1.bf16.msra.mxu0 0
      %2374 = vmatprep.subr.bf16.mxu0 0
      %2375 = vmatpush1.bf16.msra.mxu0 0
      %2376 = vmatprep.subr.bf16.mxu0 0
      %2377 = vmatpush1.bf16.msra.mxu0 0
      %2378 = vmatprep.subr.bf16.mxu0 0
      %2379 = vmatpush1.bf16.msra.mxu0 0
      %2380 = vmatprep.subr.bf16.mxu0 0
      %2381 = vmatpush1.bf16.msra.mxu0 0
      %2382 = vmatprep.subr.bf16.mxu0 0
      %2383 = vmatpush1.bf16.msra.mxu0 0
      %2384 = vmatprep.subr.bf16.mxu0 0
      %2385 = vmatpush1.bf16.msra.mxu0 0
      %2386 = vmatprep.subr.bf16.mxu0 0
      %2387 = vmatpush1.bf16.msra.mxu0 %v2367
      %2388 = vmatprep.subr.bf16.mxu0 0
      %2389 = vmatpush2.bf16.msra.mxu0 0
      %2390 = vmatprep.subr.bf16.mxu0 0
      %2391 = vmatpush2.bf16.msra.mxu0 0
      %2392 = vmatprep.subr.bf16.mxu0 0
      %2393 = vmatpush2.bf16.msra.mxu0 0
      %2394 = vmatprep.subr.bf16.mxu0 0
      %2395 = vmatpush2.bf16.msra.mxu0 0
      %2396 = vmatprep.subr.bf16.mxu0 0
      %2397 = vmatpush2.bf16.msra.mxu0 0
      %2398 = vmatprep.subr.bf16.mxu0 0
      %2399 = vmatpush2.bf16.msra.mxu0 0
      %2400 = vmatprep.subr.bf16.mxu0 0
      %2401 = vmatpush2.bf16.msra.mxu0 0
      %2402 = vmatprep.subr.bf16.mxu0 0
      %2403 = vmatpush2.bf16.msra.mxu0 0
      %2404 = vmatprep.mubr.bf16.mxu0 0
      %2405 = vmatmul.mubr.bf16.gmra.mxu0 %v2370
      %v2406 = vpop.f32.mrf.mxu0
      %v2407 = vadd.f32 0.0, %v2406
      %v2408 = vpop.f32.mrf.mxu0
      %v2409 = vpop.f32.mrf.mxu0
      %v2410 = vadd.f32 0.0, %v2409
      %v2411 = vpop.f32.mrf.mxu0
      %2412 = vdwg.mxu0
      %2413 = vrot.lane.b32.xlu0 %v530, 40
      %v2414 = vpop.permute.xlu0 %2413
      %v2417 = vsel %vm752, %v2363, 0
      %2419 = vmatprep.subr.bf16.mxu0 0
      %2420 = vmatpush1.bf16.msra.mxu0 0
      %2421 = vmatprep.subr.bf16.mxu0 0
      %2422 = vmatpush1.bf16.msra.mxu0 0
      %2423 = vmatprep.subr.bf16.mxu0 0
      %2424 = vmatpush1.bf16.msra.mxu0 0
      %2425 = vmatprep.subr.bf16.mxu0 0
      %2426 = vmatpush1.bf16.msra.mxu0 0
      %2427 = vmatprep.subr.bf16.mxu0 0
      %2428 = vmatpush1.bf16.msra.mxu0 0
      %2429 = vmatprep.subr.bf16.mxu0 0
      %2430 = vmatpush1.bf16.msra.mxu0 0
      %2431 = vmatprep.subr.bf16.mxu0 0
      %2432 = vmatpush1.bf16.msra.mxu0 0
      %2433 = vmatprep.subr.bf16.mxu0 0
      %2434 = vmatpush1.bf16.msra.mxu0 %v2414
      %2435 = vmatprep.subr.bf16.mxu0 0
      %2436 = vmatpush2.bf16.msra.mxu0 0
      %2437 = vmatprep.subr.bf16.mxu0 0
      %2438 = vmatpush2.bf16.msra.mxu0 0
      %2439 = vmatprep.subr.bf16.mxu0 0
      %2440 = vmatpush2.bf16.msra.mxu0 0
      %2441 = vmatprep.subr.bf16.mxu0 0
      %2442 = vmatpush2.bf16.msra.mxu0 0
      %2443 = vmatprep.subr.bf16.mxu0 0
      %2444 = vmatpush2.bf16.msra.mxu0 0
      %2445 = vmatprep.subr.bf16.mxu0 0
      %2446 = vmatpush2.bf16.msra.mxu0 0
      %2447 = vmatprep.subr.bf16.mxu0 0
      %2448 = vmatpush2.bf16.msra.mxu0 0
      %2449 = vmatprep.subr.bf16.mxu0 0
      %2450 = vmatpush2.bf16.msra.mxu0 0
      %2451 = vmatprep.mubr.bf16.mxu0 0
      %2452 = vmatmul.mubr.bf16.gmra.mxu0 %v2417
      %v2453 = vpop.f32.mrf.mxu0
      %v2454 = vadd.f32 0.0, %v2453
      %v2455 = vpop.f32.mrf.mxu0
      %v2456 = vpop.f32.mrf.mxu0
      %v2457 = vadd.f32 0.0, %v2456
      %v2458 = vpop.f32.mrf.mxu0
      %2459 = vdwg.mxu0
      %2460 = vrot.lane.b32.xlu0 %v531, 40
      %v2461 = vpop.permute.xlu0 %2460
      %v2464 = vsel %vm752, %v2364, 0
      %2466 = vmatprep.subr.bf16.mxu0 0
      %2467 = vmatpush1.bf16.msra.mxu0 0
      %2468 = vmatprep.subr.bf16.mxu0 0
      %2469 = vmatpush1.bf16.msra.mxu0 0
      %2470 = vmatprep.subr.bf16.mxu0 0
      %2471 = vmatpush1.bf16.msra.mxu0 0
      %2472 = vmatprep.subr.bf16.mxu0 0
      %2473 = vmatpush1.bf16.msra.mxu0 0
      %2474 = vmatprep.subr.bf16.mxu0 0
      %2475 = vmatpush1.bf16.msra.mxu0 0
      %2476 = vmatprep.subr.bf16.mxu0 0
      %2477 = vmatpush1.bf16.msra.mxu0 0
      %2478 = vmatprep.subr.bf16.mxu0 0
      %2479 = vmatpush1.bf16.msra.mxu0 0
      %2480 = vmatprep.subr.bf16.mxu0 0
      %2481 = vmatpush1.bf16.msra.mxu0 %v2461
      %2482 = vmatprep.subr.bf16.mxu0 0
      %2483 = vmatpush2.bf16.msra.mxu0 0
      %2484 = vmatprep.subr.bf16.mxu0 0
      %2485 = vmatpush2.bf16.msra.mxu0 0
      %2486 = vmatprep.subr.bf16.mxu0 0
      %2487 = vmatpush2.bf16.msra.mxu0 0
      %2488 = vmatprep.subr.bf16.mxu0 0
      %2489 = vmatpush2.bf16.msra.mxu0 0
      %2490 = vmatprep.subr.bf16.mxu0 0
      %2491 = vmatpush2.bf16.msra.mxu0 0
      %2492 = vmatprep.subr.bf16.mxu0 0
      %2493 = vmatpush2.bf16.msra.mxu0 0
      %2494 = vmatprep.subr.bf16.mxu0 0
      %2495 = vmatpush2.bf16.msra.mxu0 0
      %2496 = vmatprep.subr.bf16.mxu0 0
      %2497 = vmatpush2.bf16.msra.mxu0 0
      %2498 = vmatprep.mubr.bf16.mxu0 0
      %2499 = vmatmul.mubr.bf16.gmra.mxu0 %v2464
      %v2500 = vpop.f32.mrf.mxu0
      %v2501 = vadd.f32 0.0, %v2500
      %v2502 = vpop.f32.mrf.mxu0
      %v2503 = vpop.f32.mrf.mxu0
      %v2504 = vadd.f32 0.0, %v2503
      %v2505 = vpop.f32.mrf.mxu0
      %2506 = vdwg.mxu0
      %2507 = vrot.lane.b32.xlu0 %v532, 40
      %v2508 = vpop.permute.xlu0 %2507
      %v2511 = vsel %vm752, %v2365, 0
      %2513 = vmatprep.subr.bf16.mxu0 0
      %2514 = vmatpush1.bf16.msra.mxu0 0
      %2515 = vmatprep.subr.bf16.mxu0 0
      %2516 = vmatpush1.bf16.msra.mxu0 0
      %2517 = vmatprep.subr.bf16.mxu0 0
      %2518 = vmatpush1.bf16.msra.mxu0 0
      %2519 = vmatprep.subr.bf16.mxu0 0
      %2520 = vmatpush1.bf16.msra.mxu0 0
      %2521 = vmatprep.subr.bf16.mxu0 0
      %2522 = vmatpush1.bf16.msra.mxu0 0
      %2523 = vmatprep.subr.bf16.mxu0 0
      %2524 = vmatpush1.bf16.msra.mxu0 0
      %2525 = vmatprep.subr.bf16.mxu0 0
      %2526 = vmatpush1.bf16.msra.mxu0 0
      %2527 = vmatprep.subr.bf16.mxu0 0
      %2528 = vmatpush1.bf16.msra.mxu0 %v2508
      %2529 = vmatprep.subr.bf16.mxu0 0
      %2530 = vmatpush2.bf16.msra.mxu0 0
      %2531 = vmatprep.subr.bf16.mxu0 0
      %2532 = vmatpush2.bf16.msra.mxu0 0
      %2533 = vmatprep.subr.bf16.mxu0 0
      %2534 = vmatpush2.bf16.msra.mxu0 0
      %2535 = vmatprep.subr.bf16.mxu0 0
      %2536 = vmatpush2.bf16.msra.mxu0 0
      %2537 = vmatprep.subr.bf16.mxu0 0
      %2538 = vmatpush2.bf16.msra.mxu0 0
      %2539 = vmatprep.subr.bf16.mxu0 0
      %2540 = vmatpush2.bf16.msra.mxu0 0
      %2541 = vmatprep.subr.bf16.mxu0 0
      %2542 = vmatpush2.bf16.msra.mxu0 0
      %2543 = vmatprep.subr.bf16.mxu0 0
      %2544 = vmatpush2.bf16.msra.mxu0 0
      %2545 = vmatprep.mubr.bf16.mxu0 0
      %2546 = vmatmul.mubr.bf16.gmra.mxu0 %v2511
      %v2547 = vpop.f32.mrf.mxu0
      %v2548 = vadd.f32 0.0, %v2547
      %v2549 = vpop.f32.mrf.mxu0
      %v2550 = vpop.f32.mrf.mxu0
      %v2551 = vadd.f32 0.0, %v2550
      %v2552 = vpop.f32.mrf.mxu0
      %2553 = vdwg.mxu0
      %v2554 = vpack.c.bf16 %v2410, %v2407
      %v2555 = vpack.c.bf16 %v2457, %v2454
      %v2556 = vpack.c.bf16 %v2504, %v2501
      %v2557 = vpack.c.bf16 %v2551, %v2548
      %2562 = vrot.lane.b32.xlu0 %v1540, 8
      %v2563 = vpop.permute.xlu0 %2562
      %2564 = vrot.lane.b32.xlu0 %v1541, 8
      %v2565 = vpop.permute.xlu0 %2564
      %2566 = vrot.lane.b32.xlu0 %v1542, 8
      %v2567 = vpop.permute.xlu0 %2566
      %2568 = vrot.lane.b32.xlu0 %v1543, 8
      %v2569 = vpop.permute.xlu0 %2568
      %2574 = vrot.lane.b32.xlu0 %v2047, 16
      %v2575 = vpop.permute.xlu0 %2574
      %2576 = vrot.lane.b32.xlu0 %v2048, 16
      %v2577 = vpop.permute.xlu0 %2576
      %2578 = vrot.lane.b32.xlu0 %v2049, 16
      %v2579 = vpop.permute.xlu0 %2578
      %2580 = vrot.lane.b32.xlu0 %v2050, 16
      %v2581 = vpop.permute.xlu0 %2580
      %2586 = vrot.lane.b32.xlu0 %v2554, 24
      %v2587 = vpop.permute.xlu0 %2586
      %2588 = vrot.lane.b32.xlu0 %v2555, 24
      %v2589 = vpop.permute.xlu0 %2588
      %2590 = vrot.lane.b32.xlu0 %v2556, 24
      %v2591 = vpop.permute.xlu0 %2590
      %2592 = vrot.lane.b32.xlu0 %v2557, 24
      %v2593 = vpop.permute.xlu0 %2592
      %v2596 = vsel %vm536, %v1033, %v2563
      %v2599 = vsel %vm536, %v1034, %v2565
      %v2602 = vsel %vm536, %v1035, %v2567
      %v2605 = vsel %vm536, %v1036, %v2569
      %v2607 = vsel %vm752, %v2596, %v2575
      %v2609 = vsel %vm752, %v2599, %v2577
      %v2611 = vsel %vm752, %v2602, %v2579
      %v2613 = vsel %vm752, %v2605, %v2581
      %vm2614 = vcmask 195584
      %v2616 = vsel %vm2614, %v2607, %v2587
      %v2618 = vsel %vm2614, %v2609, %v2589
      %v2620 = vsel %vm2614, %v2611, %v2591
      %v2622 = vsel %vm2614, %v2613, %v2593
      %v2623 = vld [vmem:[%s5] sm:$0xf]
      %v2624 = vld [vmem:[%s5 + $0x4] sm:$0xf]
      %v2625 = vld [vmem:[%s5 + $0x8] sm:$0xf]
      %v2626 = vld [vmem:[%s5 + $0xc] sm:$0xf]
      %v2627 = vld [vmem:[%s6] sm:$0x1]
      %v2629 = vlaneseq
      %v2630 = vshrl.u32 %v2629, 7
      %v2631 = vsub.s32 0, %v2630
      %v2632 = vrot.slane %v2627, %v2631
      %v2638 = vunpack.c.l.b16 %v2623
      %v2639 = vunpack.c.l.b16 %v2624
      %v2640 = vunpack.c.l.b16 %v2625
      %v2641 = vunpack.c.l.b16 %v2626
      %v2642 = vpack.c.b16 %v2639, %v2638
      %v2643 = vpack.c.b16 %v2641, %v2640
      %v2646 = vsel %vm296, %v2616, 0
      %v2648 = vsel %vm296, %v2618, 0
      %v2650 = vsel %vm296, %v2620, 0
      %v2652 = vsel %vm296, %v2622, 0
      %2654 = vmatprep.subr.bf16.mxu0 0
      %2655 = vmatpush1.bf16.msra.mxu0 0
      %2656 = vmatprep.subr.bf16.mxu0 0
      %2657 = vmatpush1.bf16.msra.mxu0 0
      %2658 = vmatprep.subr.bf16.mxu0 0
      %2659 = vmatpush1.bf16.msra.mxu0 0
      %2660 = vmatprep.subr.bf16.mxu0 0
      %2661 = vmatpush1.bf16.msra.mxu0 0
      %2662 = vmatprep.subr.bf16.mxu0 0
      %2663 = vmatpush1.bf16.msra.mxu0 0
      %2664 = vmatprep.subr.bf16.mxu0 0
      %2665 = vmatpush1.bf16.msra.mxu0 0
      %2666 = vmatprep.subr.bf16.mxu0 0
      %2667 = vmatpush1.bf16.msra.mxu0 %v2643
      %2668 = vmatprep.subr.bf16.mxu0 0
      %2669 = vmatpush1.bf16.msra.mxu0 %v2642
      %2670 = vmatprep.subr.bf16.mxu0 0
      %2671 = vmatpush2.bf16.msra.mxu0 0
      %2672 = vmatprep.subr.bf16.mxu0 0
      %2673 = vmatpush2.bf16.msra.mxu0 0
      %2674 = vmatprep.subr.bf16.mxu0 0
      %2675 = vmatpush2.bf16.msra.mxu0 0
      %2676 = vmatprep.subr.bf16.mxu0 0
      %2677 = vmatpush2.bf16.msra.mxu0 0
      %2678 = vmatprep.subr.bf16.mxu0 0
      %2679 = vmatpush2.bf16.msra.mxu0 0
      %2680 = vmatprep.subr.bf16.mxu0 0
      %2681 = vmatpush2.bf16.msra.mxu0 0
      %2682 = vmatprep.subr.bf16.mxu0 0
      %2683 = vmatpush2.bf16.msra.mxu0 0
      %2684 = vmatprep.subr.bf16.mxu0 0
      %2685 = vmatpush2.bf16.msra.mxu0 0
      %2686 = vmatprep.mubr.bf16.mxu0 0
      %2687 = vmatmul.mubr.bf16.gmra.mxu0 %v2646
      %v2688 = vpop.f32.mrf.mxu0
      %v2689 = vadd.f32 %v2632, %v2688
      %v2690 = vpop.f32.mrf.mxu0
      %v2691 = vpop.f32.mrf.mxu0
      %v2692 = vadd.f32 %v2632, %v2691
      %v2693 = vpop.f32.mrf.mxu0
      %2694 = vmatprep.mubr.bf16.mxu0 0
      %2695 = vmatmul.mubr.bf16.gmra.mxu0 %v2648
      %v2696 = vpop.f32.mrf.mxu0
      %v2697 = vadd.f32 %v2632, %v2696
      %v2698 = vpop.f32.mrf.mxu0
      %v2699 = vpop.f32.mrf.mxu0
      %v2700 = vadd.f32 %v2632, %v2699
      %v2701 = vpop.f32.mrf.mxu0
      %2702 = vmatprep.mubr.bf16.mxu0 0
      %2703 = vmatmul.mubr.bf16.gmra.mxu0 %v2650
      %v2704 = vpop.f32.mrf.mxu0
      %v2705 = vadd.f32 %v2632, %v2704
      %v2706 = vpop.f32.mrf.mxu0
      %v2707 = vpop.f32.mrf.mxu0
      %v2708 = vadd.f32 %v2632, %v2707
      %v2709 = vpop.f32.mrf.mxu0
      %2710 = vmatprep.mubr.bf16.mxu0 0
      %2711 = vmatmul.mubr.bf16.gmra.mxu0 %v2652
      %v2712 = vpop.f32.mrf.mxu0
      %v2713 = vadd.f32 %v2632, %v2712
      %v2714 = vpop.f32.mrf.mxu0
      %v2715 = vpop.f32.mrf.mxu0
      %v2716 = vadd.f32 %v2632, %v2715
      %v2717 = vpop.f32.mrf.mxu0
      %2718 = vdwg.mxu0
      %2719 = vst.msk [vmem:[%s285] sm:$0xff] %vm296, %v2689
      %2720 = vst.msk [vmem:[%s285 + $0x8] sm:$0xff] %vm296, %v2692
      %2721 = vst.msk [vmem:[%s285 + $0x10] sm:$0xff] %vm296, %v2697
      %2722 = vst.msk [vmem:[%s285 + $0x18] sm:$0xff] %vm296, %v2700
      %2723 = vst.msk [vmem:[%s285 + $0x20] sm:$0xff] %vm296, %v2705
      %2724 = vst.msk [vmem:[%s285 + $0x28] sm:$0xff] %vm296, %v2708
      %2725 = vst.msk [vmem:[%s285 + $0x30] sm:$0xff] %vm296, %v2713
      %2726 = vst.msk [vmem:[%s285 + $0x38] sm:$0xff] %vm296, %v2716
      %s2727 = smul.u32 4, %s18
      %p2728 = scmp.lt.s32.totalorder %s2727, 7
      %s2729 = scalar_select %p2728, %s2727, 7
      %s2730 = smul.addr %s2729, 2
      %s2731 = smul.addr %s2730, 8
      %s2732 = scalar_lea.vmem %s7, %s2731
      // Predicated region
      $region49: #{decode_layer_forward.6} parent=47 // pred_check
        %p2733 = pneg %p188
      $region50: #{decode_layer_forward.6} parent=47 // pred_check_branch
        %2735 = sbr.rel (%p2733) target = $region52
      $region51: #{decode_layer_forward.6} parent=47 // pred_region
        %s2736 = smul.u32 4, %s18
      $region52: #{decode_layer_forward.6} parent=47 // pred_fallthru
        _
    $region48: #{decode_layer_forward.6} parent=5 // pred_fallthru
      _
    %p2737 = scmp.le.s32.totalorder 2, %s13
    // Predicated region
    $region53: #{decode_layer_forward.6} parent=5 // pred_check
      %p2738 = pneg %p2737
    $region54: #{decode_layer_forward.6} parent=5 // pred_check_branch
      %2740 = sbr.rel (%p2738) target = $region56
    $region55: #{decode_layer_forward.6} parent=5 // pred_region
      %s2741 = ssub.s32 %s13, 2
      // Predicated region
      $region57: #{decode_layer_forward.6} parent=55 // pred_check
        %p2742 = pneg %p194
      $region58: #{decode_layer_forward.6} parent=55 // pred_check_branch
        %2744 = sbr.rel (%p2742) target = $region60
      $region59: #{decode_layer_forward.6} parent=55 // pred_region
        %s2745 = smul.u32 4, %s19
        %p2746 = scmp.lt.s32.totalorder %s2745, 7
        %s2747 = scalar_select %p2746, %s2745, 7
        %s2748 = smul.addr %s2747, 2
        %s2749 = smul.addr %s2748, 8
        %s2750 = scalar_lea.vmem %s7, %s2749
      $region60: #{decode_layer_forward.6} parent=55 // pred_fallthru
        _
    $region56: #{decode_layer_forward.6} parent=5 // pred_fallthru
      _
  $region6: #{decode_layer_forward.6} parent=0 // loop_footer
    %s17 = sadd.s32 1, %s13
  $region7: #{decode_layer_forward.6} parent=0 // loop_footer_branch
    %12 = sbr.rel target = $region3
  $region8: #{decode_layer_forward.6} parent=0 // loop_exit
    _

// kernel: decode_layer_forward.8
$region0: #{decode_layer_forward.8}
  #allocation0 [shape = 'u32[]', space=smem, size = 0x4, offset = 0x4, fixed_abs, tag = 'smem constant byte address 0x4 - core index']
  #allocation1 [shape = 'u32[144,128]{1,0:T(1,128)}', space=vmem, size = 0x12000, scoped, tag = 'internal scratch']
  %s0 = inlined_call_operand.vmem [shape: f32[8,16,32], index: 0, kind: input, shape index: {}]
  %s1 = inlined_call_operand.vmem [shape: f32[1,32], index: 1, kind: input, shape index: {}]
  %s2 = inlined_call_operand.vmem [shape: f32[1,32], index: 2, kind: input, shape index: {}]
  %s3 = inlined_call_operand.vmem [shape: bf16[32,96], index: 3, kind: input, shape index: {}]
  %s4 = inlined_call_operand.vmem [shape: f32[4,16,16], index: 4, kind: input, shape index: {}]
  %s5 = inlined_call_operand.vmem [shape: f32[4,16,16], index: 5, kind: input, shape index: {}]
  %s6 = inlined_call_operand.vmem [shape: bf16[32,32], index: 6, kind: input, shape index: {}]
  %s7 = inlined_call_operand.vmem [shape: f32[1,32], index: 7, kind: input, shape index: {}]
  %s8 = inlined_call_operand.vmem [shape: f32[8,16,32], index: 8, kind: output, shape index: {}]
  %s9 = sld [smem:[#allocation0]]
  $region65: #{decode_layer_forward.8} parent=0
    _
  %s11 = ssub.s32 1, %s9
  %s12 = scalar_select 0, %s11, %s9
  loop: start=0, step=1, limit=4
  $region2: #{decode_layer_forward.8} parent=0 // loop_pre_header
    _
  $region3: #{decode_layer_forward.8} parent=0 // loop_header
    %s14 = sphi 0, %s18
    %p15 = scmp.ge.s32.totalorder %s14, 4
    %s24 = sphi 0, %s26
    %s27 = sphi 0, %s24
    %s28 = sphi 0, %s27
    %s44 = sphi 0, %s28
    %s48 = sphi 0, %s48
    %s50 = sphi 0, %s48
    %s51 = sphi 0, %s50
    %s65 = sphi 0, %s51
    %s69 = sphi 0, %s69
    %s71 = sphi 0, %s69
    %s72 = sphi 0, %s71
    %s86 = sphi 0, %s72
    %s90 = sphi 0, %s90
    %s92 = sphi 0, %s90
    %s93 = sphi 0, %s92
    %s107 = sphi 0, %s93
    %s111 = sphi 0, %s111
    %s113 = sphi 0, %s111
    %s114 = sphi 0, %s113
    %s128 = sphi 0, %s114
    %s132 = sphi 0, %s132
    %s134 = sphi 0, %s132
    %s135 = sphi 0, %s134
    %s149 = sphi 0, %s135
    %s153 = sphi 0, %s153
    %s155 = sphi 0, %s153
    %s156 = sphi 0, %s155
    %s170 = sphi 0, %s156
    %s174 = sphi 0, %s174
    %s176 = sphi 0, %s174
    %s177 = sphi 0, %s176
    %s191 = sphi 0, %s177
    %s197 = sphi 0, %s199
    %s200 = sphi 0, %s197
    %s201 = sphi 0, %s200
    %s217 = sphi 0, %s201
  $region4: #{decode_layer_forward.8} parent=0 // loop_header_branch
    %17 = sbr.rel (%p15) target = $region8
  $region5: #{decode_layer_forward.8} parent=0 // loop_body
    %s19 = ssub.s32 %s14, 1
    %s20 = ssub.s32 %s14, 2
    %s21 = sadd.s32 %s14, 1
    %s22 = ssub.s32 %s14, %s21
    %p23 = scmp.eq.s32.totalorder %s22, 0
    %s25 = sadd.s32 %s24, 1
    %s26 = scalar_select %p23, %s24, %s25
    %p29 = pneg %p23
    %p30 = scmp.eq.s32.totalorder %s14, 1
    %p31 = por %p29, %p30
    %p32 = scmp.ne.s32.totalorder %s24, %s27
    %p33 = scmp.eq.s32.totalorder %s14, 0
    %p34 = por %p32, %p33
    %p35 = scmp.ne.s32.totalorder %s24, %s27
    %p36 = scmp.eq.s32.totalorder %s19, 1
    %p37 = por %p35, %p36
    %p38 = scmp.ne.s32.totalorder %s27, %s28
    %p39 = scmp.eq.s32.totalorder %s19, 0
    %p40 = por %p38, %p39
    %p41 = scmp.ne.s32.totalorder %s27, %s28
    %p42 = scmp.eq.s32.totalorder %s20, 1
    %p43 = por %p41, %p42
    %p45 = scmp.ne.s32.totalorder %s28, %s44
    %p46 = scmp.eq.s32.totalorder %s20, 0
    %p47 = por %p45, %p46
    %s49 = sadd.s32 %s48, 1
    %p52 = scmp.eq.s32.totalorder %s14, 1
    %p53 = scmp.ne.s32.totalorder %s48, %s50
    %p54 = scmp.eq.s32.totalorder %s14, 0
    %p55 = por %p53, %p54
    %p56 = scmp.ne.s32.totalorder %s48, %s50
    %p57 = scmp.eq.s32.totalorder %s19, 1
    %p58 = por %p56, %p57
    %p59 = scmp.ne.s32.totalorder %s50, %s51
    %p60 = scmp.eq.s32.totalorder %s19, 0
    %p61 = por %p59, %p60
    %p62 = scmp.ne.s32.totalorder %s50, %s51
    %p63 = scmp.eq.s32.totalorder %s20, 1
    %p64 = por %p62, %p63
    %p66 = scmp.ne.s32.totalorder %s51, %s65
    %p67 = scmp.eq.s32.totalorder %s20, 0
    %p68 = por %p66, %p67
    %s70 = sadd.s32 %s69, 1
    %p73 = scmp.eq.s32.totalorder %s14, 1
    %p74 = scmp.ne.s32.totalorder %s69, %s71
    %p75 = scmp.eq.s32.totalorder %s14, 0
    %p76 = por %p74, %p75
    %p77 = scmp.ne.s32.totalorder %s69, %s71
    %p78 = scmp.eq.s32.totalorder %s19, 1
    %p79 = por %p77, %p78
    %p80 = scmp.ne.s32.totalorder %s71, %s72
    %p81 = scmp.eq.s32.totalorder %s19, 0
    %p82 = por %p80, %p81
    %p83 = scmp.ne.s32.totalorder %s71, %s72
    %p84 = scmp.eq.s32.totalorder %s20, 1
    %p85 = por %p83, %p84
    %p87 = scmp.ne.s32.totalorder %s72, %s86
    %p88 = scmp.eq.s32.totalorder %s20, 0
    %p89 = por %p87, %p88
    %s91 = sadd.s32 %s90, 1
    %p94 = scmp.eq.s32.totalorder %s14, 1
    %p95 = scmp.ne.s32.totalorder %s90, %s92
    %p96 = scmp.eq.s32.totalorder %s14, 0
    %p97 = por %p95, %p96
    %p98 = scmp.ne.s32.totalorder %s90, %s92
    %p99 = scmp.eq.s32.totalorder %s19, 1
    %p100 = por %p98, %p99
    %p101 = scmp.ne.s32.totalorder %s92, %s93
    %p102 = scmp.eq.s32.totalorder %s19, 0
    %p103 = por %p101, %p102
    %p104 = scmp.ne.s32.totalorder %s92, %s93
    %p105 = scmp.eq.s32.totalorder %s20, 1
    %p106 = por %p104, %p105
    %p108 = scmp.ne.s32.totalorder %s93, %s107
    %p109 = scmp.eq.s32.totalorder %s20, 0
    %p110 = por %p108, %p109
    %s112 = sadd.s32 %s111, 1
    %p115 = scmp.eq.s32.totalorder %s14, 1
    %p116 = scmp.ne.s32.totalorder %s111, %s113
    %p117 = scmp.eq.s32.totalorder %s14, 0
    %p118 = por %p116, %p117
    %p119 = scmp.ne.s32.totalorder %s111, %s113
    %p120 = scmp.eq.s32.totalorder %s19, 1
    %p121 = por %p119, %p120
    %p122 = scmp.ne.s32.totalorder %s113, %s114
    %p123 = scmp.eq.s32.totalorder %s19, 0
    %p124 = por %p122, %p123
    %p125 = scmp.ne.s32.totalorder %s113, %s114
    %p126 = scmp.eq.s32.totalorder %s20, 1
    %p127 = por %p125, %p126
    %p129 = scmp.ne.s32.totalorder %s114, %s128
    %p130 = scmp.eq.s32.totalorder %s20, 0
    %p131 = por %p129, %p130
    %s133 = sadd.s32 %s132, 1
    %p136 = scmp.eq.s32.totalorder %s14, 1
    %p137 = scmp.ne.s32.totalorder %s132, %s134
    %p138 = scmp.eq.s32.totalorder %s14, 0
    %p139 = por %p137, %p138
    %p140 = scmp.ne.s32.totalorder %s132, %s134
    %p141 = scmp.eq.s32.totalorder %s19, 1
    %p142 = por %p140, %p141
    %p143 = scmp.ne.s32.totalorder %s134, %s135
    %p144 = scmp.eq.s32.totalorder %s19, 0
    %p145 = por %p143, %p144
    %p146 = scmp.ne.s32.totalorder %s134, %s135
    %p147 = scmp.eq.s32.totalorder %s20, 1
    %p148 = por %p146, %p147
    %p150 = scmp.ne.s32.totalorder %s135, %s149
    %p151 = scmp.eq.s32.totalorder %s20, 0
    %p152 = por %p150, %p151
    %s154 = sadd.s32 %s153, 1
    %p157 = scmp.eq.s32.totalorder %s14, 1
    %p158 = scmp.ne.s32.totalorder %s153, %s155
    %p159 = scmp.eq.s32.totalorder %s14, 0
    %p160 = por %p158, %p159
    %p161 = scmp.ne.s32.totalorder %s153, %s155
    %p162 = scmp.eq.s32.totalorder %s19, 1
    %p163 = por %p161, %p162
    %p164 = scmp.ne.s32.totalorder %s155, %s156
    %p165 = scmp.eq.s32.totalorder %s19, 0
    %p166 = por %p164, %p165
    %p167 = scmp.ne.s32.totalorder %s155, %s156
    %p168 = scmp.eq.s32.totalorder %s20, 1
    %p169 = por %p167, %p168
    %p171 = scmp.ne.s32.totalorder %s156, %s170
    %p172 = scmp.eq.s32.totalorder %s20, 0
    %p173 = por %p171, %p172
    %s175 = sadd.s32 %s174, 1
    %p178 = scmp.eq.s32.totalorder %s14, 1
    %p179 = scmp.ne.s32.totalorder %s174, %s176
    %p180 = scmp.eq.s32.totalorder %s14, 0
    %p181 = por %p179, %p180
    %p182 = scmp.ne.s32.totalorder %s174, %s176
    %p183 = scmp.eq.s32.totalorder %s19, 1
    %p184 = por %p182, %p183
    %p185 = scmp.ne.s32.totalorder %s176, %s177
    %p186 = scmp.eq.s32.totalorder %s19, 0
    %p187 = por %p185, %p186
    %p188 = scmp.ne.s32.totalorder %s176, %s177
    %p189 = scmp.eq.s32.totalorder %s20, 1
    %p190 = por %p188, %p189
    %p192 = scmp.ne.s32.totalorder %s177, %s191
    %p193 = scmp.eq.s32.totalorder %s20, 0
    %p194 = por %p192, %p193
    %s195 = ssub.s32 %s14, %s21
    %p196 = scmp.eq.s32.totalorder %s195, 0
    %s198 = sadd.s32 %s197, 1
    %s199 = scalar_select %p196, %s197, %s198
    %p202 = pneg %p196
    %p203 = scmp.eq.s32.totalorder %s14, 1
    %p204 = por %p202, %p203
    %p205 = scmp.ne.s32.totalorder %s197, %s200
    %p206 = scmp.eq.s32.totalorder %s14, 0
    %p207 = por %p205, %p206
    %p208 = scmp.ne.s32.totalorder %s197, %s200
    %p209 = scmp.eq.s32.totalorder %s19, 1
    %p210 = por %p208, %p209
    %p211 = scmp.ne.s32.totalorder %s200, %s201
    %p212 = scmp.eq.s32.totalorder %s19, 0
    %p213 = por %p211, %p212
    %p214 = scmp.ne.s32.totalorder %s200, %s201
    %p215 = scmp.eq.s32.totalorder %s20, 1
    %p216 = por %p214, %p215
    %p218 = scmp.ne.s32.totalorder %s201, %s217
    %p219 = scmp.eq.s32.totalorder %s20, 0
    %p220 = por %p218, %p219
    %p221 = scmp.le.s32.totalorder 1, %s14
    %p222 = scmp.lt.s32.totalorder %s14, 3
    %p223 = pnand %p221, %p222
    %p224 = pneg %p223
    // Predicated region
    $region9: #{decode_layer_forward.8} parent=5 // pred_check
      _
    $region10: #{decode_layer_forward.8} parent=5 // pred_check_branch
      %226 = sbr.rel (%p223) target = $region12
    $region11: #{decode_layer_forward.8} parent=5 // pred_region
      %s227 = ssub.s32 %s14, 1
      // Predicated region
      $region13: #{decode_layer_forward.8} parent=11 // pred_check
        %p228 = pneg %p61
      $region14: #{decode_layer_forward.8} parent=11 // pred_check_branch
        %230 = sbr.rel (%p228) target = $region16
      $region15: #{decode_layer_forward.8} parent=11 // pred_region
        _
      $region16: #{decode_layer_forward.8} parent=11 // pred_fallthru
        _
      // Predicated region
      $region17: #{decode_layer_forward.8} parent=11 // pred_check
        %p231 = pneg %p82
      $region18: #{decode_layer_forward.8} parent=11 // pred_check_branch
        %233 = sbr.rel (%p231) target = $region20
      $region19: #{decode_layer_forward.8} parent=11 // pred_region
        _
      $region20: #{decode_layer_forward.8} parent=11 // pred_fallthru
        _
      // Predicated region
      $region21: #{decode_layer_forward.8} parent=11 // pred_check
        %p234 = pneg %p103
      $region22: #{decode_layer_forward.8} parent=11 // pred_check_branch
        %236 = sbr.rel (%p234) target = $region24
      $region23: #{decode_layer_forward.8} parent=11 // pred_region
        _
      $region24: #{decode_layer_forward.8} parent=11 // pred_fallthru
        _
      // Predicated region
      $region25: #{decode_layer_forward.8} parent=11 // pred_check
        %p237 = pneg %p124
      $region26: #{decode_layer_forward.8} parent=11 // pred_check_branch
        %239 = sbr.rel (%p237) target = $region28
      $region27: #{decode_layer_forward.8} parent=11 // pred_region
        _
      $region28: #{decode_layer_forward.8} parent=11 // pred_fallthru
        _
      // Predicated region
      $region29: #{decode_layer_forward.8} parent=11 // pred_check
        %p240 = pneg %p145
      $region30: #{decode_layer_forward.8} parent=11 // pred_check_branch
        %242 = sbr.rel (%p240) target = $region32
      $region31: #{decode_layer_forward.8} parent=11 // pred_region
        _
      $region32: #{decode_layer_forward.8} parent=11 // pred_fallthru
        _
      // Predicated region
      $region33: #{decode_layer_forward.8} parent=11 // pred_check
        %p243 = pneg %p166
      $region34: #{decode_layer_forward.8} parent=11 // pred_check_branch
        %245 = sbr.rel (%p243) target = $region36
      $region35: #{decode_layer_forward.8} parent=11 // pred_region
        _
      $region36: #{decode_layer_forward.8} parent=11 // pred_fallthru
        _
      // Predicated region
      $region37: #{decode_layer_forward.8} parent=11 // pred_check
        %p246 = pneg %p187
      $region38: #{decode_layer_forward.8} parent=11 // pred_check_branch
        %248 = sbr.rel (%p246) target = $region40
      $region39: #{decode_layer_forward.8} parent=11 // pred_region
        _
      $region40: #{decode_layer_forward.8} parent=11 // pred_fallthru
        _
    $region12: #{decode_layer_forward.8} parent=5 // pred_fallthru
      _
    %p249 = scmp.lt.s32.totalorder %s14, 2
    // Predicated region
    $region41: #{decode_layer_forward.8} parent=5 // pred_check
      %p250 = pneg %p249
    $region42: #{decode_layer_forward.8} parent=5 // pred_check_branch
      %252 = sbr.rel (%p250) target = $region44
    $region43: #{decode_layer_forward.8} parent=5 // pred_region
      // Predicated region
      $region45: #{decode_layer_forward.8} parent=43 // pred_check
        %p253 = pneg %p34
      $region46: #{decode_layer_forward.8} parent=43 // pred_check_branch
        %255 = sbr.rel (%p253) target = $region48
      $region47: #{decode_layer_forward.8} parent=43 // pred_region
        %s256 = smul.u32 4, %s14
        %p257 = scmp.lt.s32.totalorder %s256, 7
        %s258 = scalar_select %p257, %s256, 7
        %s259 = smul.addr %s258, 2
        %s260 = smul.addr %s259, 8
        %s261 = scalar_lea.vmem %s0, %s260
        %s262 = smul.u32 4, %s14
      $region48: #{decode_layer_forward.8} parent=43 // pred_fallthru
        _
    $region44: #{decode_layer_forward.8} parent=5 // pred_fallthru
      _
    %p263 = scmp.le.s32.totalorder 1, %s14
    %p264 = scmp.lt.s32.totalorder %s14, 3
    %p265 = pnand %p263, %p264
    %p266 = pneg %p265
    // Predicated region
    $region49: #{decode_layer_forward.8} parent=5 // pred_check
      _
    $region50: #{decode_layer_forward.8} parent=5 // pred_check_branch
      %268 = sbr.rel (%p265) target = $region52
    $region51: #{decode_layer_forward.8} parent=5 // pred_region
      %s269 = ssub.s32 %s14, 1
      %s270 = smul.u32 4, %s19
      %p271 = scmp.lt.s32.totalorder %s270, 7
      %s272 = scalar_select %p271, %s270, 7
      %s273 = smul.addr %s272, 2
      %s274 = smul.addr %s273, 8
      %s275 = scalar_lea.vmem %s0, %s274
      %p276 = pneg %p40
      %p277 = pneg %p37
      %p278 = pneg %p61
      %p279 = pneg %p58
      %p280 = pneg %p82
      %p281 = pneg %p79
      %p282 = pneg %p103
      %p283 = pneg %p100
      %p284 = pneg %p124
      %p285 = pneg %p121
      %p286 = pneg %p145
      %p287 = pneg %p142
      %p288 = pneg %p166
      %p289 = pneg %p163
      %p290 = pneg %p187
      %p291 = pneg %p184
      %p292 = pneg %p213
      %p293 = pneg %p210
      %s294 = smul.u32 4, %s19
      %p295 = scmp.lt.s32.totalorder %s294, 7
      %s296 = scalar_select %p295, %s294, 7
      %s297 = smul.addr %s296, 2
      %s298 = smul.addr %s297, 8
      %s299 = scalar_lea.vmem %s8, %s298
      %s300 = smul.u32 4, %s19
      %p301 = scmp.lt.s32.totalorder %s300, 7
      %s302 = scalar_select %p301, %s300, 7
      %s303 = smul.addr %s302, 2
      %s304 = smul.addr %s303, 8
      %s305 = scalar_lea.vmem %s0, %s304
      %s306 = smul.u32 4, %s19
      %s307 = smul.u32 4, %s19
      %p308 = scmp.lt.s32.totalorder %s307, 7
      %s309 = scalar_select %p308, %s307, 7
      %s310 = smul.addr %s309, 2
      %s311 = smul.addr %s310, 8
      %s312 = scalar_lea.vmem %s8, %s311
      %s313 = smul.u32 4, %s19
      %v315 = vld [vmem:[%s305] sm:$0xff]
      %v316 = vld [vmem:[%s305 + $0x8] sm:$0xff]
      %v317 = vld [vmem:[%s305 + $0x10] sm:$0xff]
      %v318 = vld [vmem:[%s305 + $0x18] sm:$0xff]
      %v319 = vld [vmem:[%s305 + $0x20] sm:$0xff]
      %v320 = vld [vmem:[%s305 + $0x28] sm:$0xff]
      %v321 = vld [vmem:[%s305 + $0x30] sm:$0xff]
      %v322 = vld [vmem:[%s305 + $0x38] sm:$0xff]
      %vm323 = vcmask 261120
      %v324 = vsel %vm323, %v315, 0.0
      %325 = vadd.xlane.f32.xlu0 %v324
      %v326 = vpop.xlane.xlu0 %325
      %v327 = vsel %vm323, %v316, 0.0
      %328 = vadd.xlane.f32.xlu0 %v327
      %v329 = vpop.xlane.xlu0 %328
      %v330 = vsel %vm323, %v317, 0.0
      %331 = vadd.xlane.f32.xlu0 %v330
      %v332 = vpop.xlane.xlu0 %331
      %v333 = vsel %vm323, %v318, 0.0
      %334 = vadd.xlane.f32.xlu0 %v333
      %v335 = vpop.xlane.xlu0 %334
      %v336 = vsel %vm323, %v319, 0.0
      %337 = vadd.xlane.f32.xlu0 %v336
      %v338 = vpop.xlane.xlu0 %337
      %v339 = vsel %vm323, %v320, 0.0
      %340 = vadd.xlane.f32.xlu0 %v339
      %v341 = vpop.xlane.xlu0 %340
      %v342 = vsel %vm323, %v321, 0.0
      %343 = vadd.xlane.f32.xlu0 %v342
      %v344 = vpop.xlane.xlu0 %343
      %v345 = vsel %vm323, %v322, 0.0
      %346 = vadd.xlane.f32.xlu0 %v345
      %v347 = vpop.xlane.xlu0 %346
      %v348 = vrcp.pop 32.0
      %v349 = vmul.f32 %v326, %v348
      %v350 = vmul.f32 %v329, %v348
      %v351 = vmul.f32 %v332, %v348
      %v352 = vmul.f32 %v335, %v348
      %v353 = vmul.f32 %v338, %v348
      %v354 = vmul.f32 %v341, %v348
      %v355 = vmul.f32 %v344, %v348
      %v356 = vmul.f32 %v347, %v348
      %v357 = vsub.f32 %v315, %v349
      %v358 = vsub.f32 %v316, %v350
      %v359 = vsub.f32 %v317, %v351
      %v360 = vsub.f32 %v318, %v352
      %v361 = vsub.f32 %v319, %v353
      %v362 = vsub.f32 %v320, %v354
      %v363 = vsub.f32 %v321, %v355
      %v364 = vsub.f32 %v322, %v356
      %v365 = vmul.f32 %v357, %v357
      %v366 = vmul.f32 %v358, %v358
      %v367 = vmul.f32 %v359, %v359
      %v368 = vmul.f32 %v360, %v360
      %v369 = vmul.f32 %v361, %v361
      %v370 = vmul.f32 %v362, %v362
      %v371 = vmul.f32 %v363, %v363
      %v372 = vmul.f32 %v364, %v364
      %v373 = vsel %vm323, %v365, 0.0
      %374 = vadd.xlane.f32.xlu0 %v373
      %v375 = vpop.xlane.xlu0 %374
      %v376 = vsel %vm323, %v366, 0.0
      %377 = vadd.xlane.f32.xlu0 %v376
      %v378 = vpop.xlane.xlu0 %377
      %v379 = vsel %vm323, %v367, 0.0
      %380 = vadd.xlane.f32.xlu0 %v379
      %v381 = vpop.xlane.xlu0 %380
      %v382 = vsel %vm323, %v368, 0.0
      %383 = vadd.xlane.f32.xlu0 %v382
      %v384 = vpop.xlane.xlu0 %383
      %v385 = vsel %vm323, %v369, 0.0
      %386 = vadd.xlane.f32.xlu0 %v385
      %v387 = vpop.xlane.xlu0 %386
      %v388 = vsel %vm323, %v370, 0.0
      %389 = vadd.xlane.f32.xlu0 %v388
      %v390 = vpop.xlane.xlu0 %389
      %v391 = vsel %vm323, %v371, 0.0
      %392 = vadd.xlane.f32.xlu0 %v391
      %v393 = vpop.xlane.xlu0 %392
      %v394 = vsel %vm323, %v372, 0.0
      %395 = vadd.xlane.f32.xlu0 %v394
      %v396 = vpop.xlane.xlu0 %395
      %v397 = vmul.f32 %v375, %v348
      %v398 = vmul.f32 %v378, %v348
      %v399 = vmul.f32 %v381, %v348
      %v400 = vmul.f32 %v384, %v348
      %v401 = vmul.f32 %v387, %v348
      %v402 = vmul.f32 %v390, %v348
      %v403 = vmul.f32 %v393, %v348
      %v404 = vmul.f32 %v396, %v348
      %v405 = vadd.f32 %v397, 1e-05
      %v406 = vadd.f32 %v398, 1e-05
      %v407 = vadd.f32 %v399, 1e-05
      %v408 = vadd.f32 %v400, 1e-05
      %v409 = vadd.f32 %v401, 1e-05
      %v410 = vadd.f32 %v402, 1e-05
      %v411 = vadd.f32 %v403, 1e-05
      %v412 = vadd.f32 %v404, 1e-05
      %v413 = vrsqrt.pop %v405
      %v414 = vrsqrt.pop %v406
      %v415 = vrsqrt.pop %v407
      %v416 = vrsqrt.pop %v408
      %v417 = vrsqrt.pop %v409
      %v418 = vrsqrt.pop %v410
      %v419 = vrsqrt.pop %v411
      %v420 = vrsqrt.pop %v412
      %v421 = vmul.f32 %v357, %v413
      %v422 = vmul.f32 %v358, %v414
      %v423 = vmul.f32 %v359, %v415
      %v424 = vmul.f32 %v360, %v416
      %v425 = vmul.f32 %v361, %v417
      %v426 = vmul.f32 %v362, %v418
      %v427 = vmul.f32 %v363, %v419
      %v428 = vmul.f32 %v364, %v420
      %v429 = vld [vmem:[%s1] sm:$0x1]
      %v431 = vlaneseq
      %v432 = vshrl.u32 %v431, 7
      %v433 = vsub.s32 0, %v432
      %v434 = vrot.slane %v429, %v433
      %v436 = vmul.f32 %v421, %v434
      %v437 = vmul.f32 %v422, %v434
      %v438 = vmul.f32 %v423, %v434
      %v439 = vmul.f32 %v424, %v434
      %v440 = vmul.f32 %v425, %v434
      %v441 = vmul.f32 %v426, %v434
      %v442 = vmul.f32 %v427, %v434
      %v443 = vmul.f32 %v428, %v434
      %v444 = vld [vmem:[%s2] sm:$0x1]
      %v446 = vlaneseq
      %v447 = vshrl.u32 %v446, 7
      %v448 = vsub.s32 0, %v447
      %v449 = vrot.slane %v444, %v448
      %v451 = vadd.f32 %v436, %v449
      %v452 = vadd.f32 %v437, %v449
      %v453 = vadd.f32 %v438, %v449
      %v454 = vadd.f32 %v439, %v449
      %v455 = vadd.f32 %v440, %v449
      %v456 = vadd.f32 %v441, %v449
      %v457 = vadd.f32 %v442, %v449
      %v458 = vadd.f32 %v443, %v449
      %v459 = vpack.c.bf16 %v452, %v451
      %v460 = vpack.c.bf16 %v454, %v453
      %v461 = vpack.c.bf16 %v456, %v455
      %v462 = vpack.c.bf16 %v458, %v457
      %v463 = vld [vmem:[%s3] sm:$0xf]
      %v464 = vld [vmem:[%s3 + $0x4] sm:$0xf]
      %v465 = vld [vmem:[%s3 + $0x8] sm:$0xf]
      %v466 = vld [vmem:[%s3 + $0xc] sm:$0xf]
      %v471 = vunpack.c.l.b16 %v463
      %v472 = vunpack.c.l.b16 %v464
      %v473 = vunpack.c.l.b16 %v465
      %v474 = vunpack.c.l.b16 %v466
      %v475 = vpack.c.b16 %v472, %v471
      %v476 = vpack.c.b16 %v474, %v473
      %v480 = vsel %vm323, %v459, 0
      %v483 = vsel %vm323, %v460, 0
      %v486 = vsel %vm323, %v461, 0
      %v489 = vsel %vm323, %v462, 0
      %491 = vmatprep.subr.bf16.mxu0 0
      %492 = vmatpush1.bf16.msra.mxu0 0
      %493 = vmatprep.subr.bf16.mxu0 0
      %494 = vmatpush1.bf16.msra.mxu0 0
      %495 = vmatprep.subr.bf16.mxu0 0
      %496 = vmatpush1.bf16.msra.mxu0 0
      %497 = vmatprep.subr.bf16.mxu0 0
      %498 = vmatpush1.bf16.msra.mxu0 0
      %499 = vmatprep.subr.bf16.mxu0 0
      %500 = vmatpush1.bf16.msra.mxu0 0
      %501 = vmatprep.subr.bf16.mxu0 0
      %502 = vmatpush1.bf16.msra.mxu0 0
      %503 = vmatprep.subr.bf16.mxu0 0
      %504 = vmatpush1.bf16.msra.mxu0 %v476
      %505 = vmatprep.subr.bf16.mxu0 0
      %506 = vmatpush1.bf16.msra.mxu0 %v475
      %507 = vmatprep.subr.bf16.mxu0 0
      %508 = vmatpush2.bf16.msra.mxu0 0
      %509 = vmatprep.subr.bf16.mxu0 0
      %510 = vmatpush2.bf16.msra.mxu0 0
      %511 = vmatprep.subr.bf16.mxu0 0
      %512 = vmatpush2.bf16.msra.mxu0 0
      %513 = vmatprep.subr.bf16.mxu0 0
      %514 = vmatpush2.bf16.msra.mxu0 0
      %515 = vmatprep.subr.bf16.mxu0 0
      %516 = vmatpush2.bf16.msra.mxu0 0
      %517 = vmatprep.subr.bf16.mxu0 0
      %518 = vmatpush2.bf16.msra.mxu0 0
      %519 = vmatprep.subr.bf16.mxu0 0
      %520 = vmatpush2.bf16.msra.mxu0 0
      %521 = vmatprep.subr.bf16.mxu0 0
      %522 = vmatpush2.bf16.msra.mxu0 0
      %523 = vmatprep.mubr.bf16.mxu0 0
      %524 = vmatmul.mubr.bf16.gmra.mxu0 %v480
      %v525 = vpop.f32.mrf.mxu0
      %v526 = vadd.f32 0.0, %v525
      %v527 = vpop.f32.mrf.mxu0
      %v528 = vpop.f32.mrf.mxu0
      %v529 = vadd.f32 0.0, %v528
      %v530 = vpop.f32.mrf.mxu0
      %531 = vmatprep.mubr.bf16.mxu0 0
      %532 = vmatmul.mubr.bf16.gmra.mxu0 %v483
      %v533 = vpop.f32.mrf.mxu0
      %v534 = vadd.f32 0.0, %v533
      %v535 = vpop.f32.mrf.mxu0
      %v536 = vpop.f32.mrf.mxu0
      %v537 = vadd.f32 0.0, %v536
      %v538 = vpop.f32.mrf.mxu0
      %539 = vmatprep.mubr.bf16.mxu0 0
      %540 = vmatmul.mubr.bf16.gmra.mxu0 %v486
      %v541 = vpop.f32.mrf.mxu0
      %v542 = vadd.f32 0.0, %v541
      %v543 = vpop.f32.mrf.mxu0
      %v544 = vpop.f32.mrf.mxu0
      %v545 = vadd.f32 0.0, %v544
      %v546 = vpop.f32.mrf.mxu0
      %547 = vmatprep.mubr.bf16.mxu0 0
      %548 = vmatmul.mubr.bf16.gmra.mxu0 %v489
      %v549 = vpop.f32.mrf.mxu0
      %v550 = vadd.f32 0.0, %v549
      %v551 = vpop.f32.mrf.mxu0
      %v552 = vpop.f32.mrf.mxu0
      %v553 = vadd.f32 0.0, %v552
      %v554 = vpop.f32.mrf.mxu0
      %555 = vdwg.mxu0
      %v556 = vld [vmem:[%s5] sm:$0xff]
      %v557 = vld [vmem:[%s5 + $0x8] sm:$0xff]
      %v558 = vld [vmem:[%s5 + $0x10] sm:$0xff]
      %v559 = vld [vmem:[%s5 + $0x18] sm:$0xff]
      %v560 = vld [vmem:[%s5 + $0x20] sm:$0xff]
      %v561 = vld [vmem:[%s5 + $0x28] sm:$0xff]
      %v562 = vld [vmem:[%s5 + $0x30] sm:$0xff]
      %v563 = vld [vmem:[%s5 + $0x38] sm:$0xff]
      %v564 = vpack.c.bf16 %v529, %v526
      %v565 = vpack.c.bf16 %v537, %v534
      %v566 = vpack.c.bf16 %v545, %v542
      %v567 = vpack.c.bf16 %v553, %v550
      %569 = vrot.lane.b32.xlu0 %v564, 96
      %v570 = vpop.permute.xlu0 %569
      %vm571 = vcmask 64512
      %v573 = vsel %vm571, %v564, 0
      %v576 = vsel %vm571, %v570, 0
      %578 = vmatprep.subr.bf16.mxu0 0
      %579 = vmatpush1.bf16.xpose.msra.mxu0 0
      %580 = vmatprep.subr.bf16.mxu0 0
      %581 = vmatpush1.bf16.xpose.msra.mxu0 0
      %582 = vmatprep.subr.bf16.mxu0 0
      %583 = vmatpush1.bf16.xpose.msra.mxu0 0
      %584 = vmatprep.subr.bf16.mxu0 0
      %585 = vmatpush1.bf16.xpose.msra.mxu0 0
      %586 = vmatprep.subr.bf16.mxu0 0
      %587 = vmatpush1.bf16.xpose.msra.mxu0 0
      %588 = vmatprep.subr.bf16.mxu0 0
      %589 = vmatpush1.bf16.xpose.msra.mxu0 0
      %590 = vmatprep.subr.bf16.mxu0 0
      %591 = vmatpush1.bf16.xpose.msra.mxu0 0
      %592 = vmatprep.subr.bf16.mxu0 0
      %593 = vmatpush1.bf16.xpose.msra.mxu0 %v576
      %594 = vmatprep.subr.bf16.mxu0 0
      %595 = vmatpush2.bf16.xpose.msra.mxu0 0
      %596 = vmatprep.subr.bf16.mxu0 0
      %597 = vmatpush2.bf16.xpose.msra.mxu0 0
      %598 = vmatprep.subr.bf16.mxu0 0
      %599 = vmatpush2.bf16.xpose.msra.mxu0 0
      %600 = vmatprep.subr.bf16.mxu0 0
      %601 = vmatpush2.bf16.xpose.msra.mxu0 0
      %602 = vmatprep.subr.bf16.mxu0 0
      %603 = vmatpush2.bf16.xpose.msra.mxu0 0
      %604 = vmatprep.subr.bf16.mxu0 0
      %605 = vmatpush2.bf16.xpose.msra.mxu0 0
      %606 = vmatprep.subr.bf16.mxu0 0
      %607 = vmatpush2.bf16.xpose.msra.mxu0 0
      %608 = vmatprep.subr.bf16.mxu0 0
      %609 = vmatpush2.bf16.xpose.msra.mxu0 0
      %610 = vmatprep.mubr.bf16.mxu0 0
      %611 = vmatmul.mubr.bf16.gmra.mxu0 %v573
      %v612 = vpop.f32.mrf.mxu0
      %v613 = vadd.f32 0.0, %v612
      %v614 = vpop.f32.mrf.mxu0
      %v615 = vpop.f32.mrf.mxu0
      %v616 = vadd.f32 0.0, %v615
      %v617 = vpop.f32.mrf.mxu0
      %618 = vdwg.mxu0
      %620 = vrot.lane.b32.xlu0 %v565, 96
      %v621 = vpop.permute.xlu0 %620
      %v623 = vsel %vm571, %v565, 0
      %v626 = vsel %vm571, %v621, 0
      %628 = vmatprep.subr.bf16.mxu0 0
      %629 = vmatpush1.bf16.xpose.msra.mxu0 0
      %630 = vmatprep.subr.bf16.mxu0 0
      %631 = vmatpush1.bf16.xpose.msra.mxu0 0
      %632 = vmatprep.subr.bf16.mxu0 0
      %633 = vmatpush1.bf16.xpose.msra.mxu0 0
      %634 = vmatprep.subr.bf16.mxu0 0
      %635 = vmatpush1.bf16.xpose.msra.mxu0 0
      %636 = vmatprep.subr.bf16.mxu0 0
      %637 = vmatpush1.bf16.xpose.msra.mxu0 0
      %638 = vmatprep.subr.bf16.mxu0 0
      %639 = vmatpush1.bf16.xpose.msra.mxu0 0
      %640 = vmatprep.subr.bf16.mxu0 0
      %641 = vmatpush1.bf16.xpose.msra.mxu0 0
      %642 = vmatprep.subr.bf16.mxu0 0
      %643 = vmatpush1.bf16.xpose.msra.mxu0 %v626
      %644 = vmatprep.subr.bf16.mxu0 0
      %645 = vmatpush2.bf16.xpose.msra.mxu0 0
      %646 = vmatprep.subr.bf16.mxu0 0
      %647 = vmatpush2.bf16.xpose.msra.mxu0 0
      %648 = vmatprep.subr.bf16.mxu0 0
      %649 = vmatpush2.bf16.xpose.msra.mxu0 0
      %650 = vmatprep.subr.bf16.mxu0 0
      %651 = vmatpush2.bf16.xpose.msra.mxu0 0
      %652 = vmatprep.subr.bf16.mxu0 0
      %653 = vmatpush2.bf16.xpose.msra.mxu0 0
      %654 = vmatprep.subr.bf16.mxu0 0
      %655 = vmatpush2.bf16.xpose.msra.mxu0 0
      %656 = vmatprep.subr.bf16.mxu0 0
      %657 = vmatpush2.bf16.xpose.msra.mxu0 0
      %658 = vmatprep.subr.bf16.mxu0 0
      %659 = vmatpush2.bf16.xpose.msra.mxu0 0
      %660 = vmatprep.mubr.bf16.mxu0 0
      %661 = vmatmul.mubr.bf16.gmra.mxu0 %v623
      %v662 = vpop.f32.mrf.mxu0
      %v663 = vadd.f32 0.0, %v662
      %v664 = vpop.f32.mrf.mxu0
      %v665 = vpop.f32.mrf.mxu0
      %v666 = vadd.f32 0.0, %v665
      %v667 = vpop.f32.mrf.mxu0
      %668 = vdwg.mxu0
      %670 = vrot.lane.b32.xlu0 %v566, 96
      %v671 = vpop.permute.xlu0 %670
      %v673 = vsel %vm571, %v566, 0
      %v676 = vsel %vm571, %v671, 0
      %678 = vmatprep.subr.bf16.mxu0 0
      %679 = vmatpush1.bf16.xpose.msra.mxu0 0
      %680 = vmatprep.subr.bf16.mxu0 0
      %681 = vmatpush1.bf16.xpose.msra.mxu0 0
      %682 = vmatprep.subr.bf16.mxu0 0
      %683 = vmatpush1.bf16.xpose.msra.mxu0 0
      %684 = vmatprep.subr.bf16.mxu0 0
      %685 = vmatpush1.bf16.xpose.msra.mxu0 0
      %686 = vmatprep.subr.bf16.mxu0 0
      %687 = vmatpush1.bf16.xpose.msra.mxu0 0
      %688 = vmatprep.subr.bf16.mxu0 0
      %689 = vmatpush1.bf16.xpose.msra.mxu0 0
      %690 = vmatprep.subr.bf16.mxu0 0
      %691 = vmatpush1.bf16.xpose.msra.mxu0 0
      %692 = vmatprep.subr.bf16.mxu0 0
      %693 = vmatpush1.bf16.xpose.msra.mxu0 %v676
      %694 = vmatprep.subr.bf16.mxu0 0
      %695 = vmatpush2.bf16.xpose.msra.mxu0 0
      %696 = vmatprep.subr.bf16.mxu0 0
      %697 = vmatpush2.bf16.xpose.msra.mxu0 0
      %698 = vmatprep.subr.bf16.mxu0 0
      %699 = vmatpush2.bf16.xpose.msra.mxu0 0
      %700 = vmatprep.subr.bf16.mxu0 0
      %701 = vmatpush2.bf16.xpose.msra.mxu0 0
      %702 = vmatprep.subr.bf16.mxu0 0
      %703 = vmatpush2.bf16.xpose.msra.mxu0 0
      %704 = vmatprep.subr.bf16.mxu0 0
      %705 = vmatpush2.bf16.xpose.msra.mxu0 0
      %706 = vmatprep.subr.bf16.mxu0 0
      %707 = vmatpush2.bf16.xpose.msra.mxu0 0
      %708 = vmatprep.subr.bf16.mxu0 0
      %709 = vmatpush2.bf16.xpose.msra.mxu0 0
      %710 = vmatprep.mubr.bf16.mxu0 0
      %711 = vmatmul.mubr.bf16.gmra.mxu0 %v673
      %v712 = vpop.f32.mrf.mxu0
      %v713 = vadd.f32 0.0, %v712
      %v714 = vpop.f32.mrf.mxu0
      %v715 = vpop.f32.mrf.mxu0
      %v716 = vadd.f32 0.0, %v715
      %v717 = vpop.f32.mrf.mxu0
      %718 = vdwg.mxu0
      %720 = vrot.lane.b32.xlu0 %v567, 96
      %v721 = vpop.permute.xlu0 %720
      %v723 = vsel %vm571, %v567, 0
      %v726 = vsel %vm571, %v721, 0
      %728 = vmatprep.subr.bf16.mxu0 0
      %729 = vmatpush1.bf16.xpose.msra.mxu0 0
      %730 = vmatprep.subr.bf16.mxu0 0
      %731 = vmatpush1.bf16.xpose.msra.mxu0 0
      %732 = vmatprep.subr.bf16.mxu0 0
      %733 = vmatpush1.bf16.xpose.msra.mxu0 0
      %734 = vmatprep.subr.bf16.mxu0 0
      %735 = vmatpush1.bf16.xpose.msra.mxu0 0
      %736 = vmatprep.subr.bf16.mxu0 0
      %737 = vmatpush1.bf16.xpose.msra.mxu0 0
      %738 = vmatprep.subr.bf16.mxu0 0
      %739 = vmatpush1.bf16.xpose.msra.mxu0 0
      %740 = vmatprep.subr.bf16.mxu0 0
      %741 = vmatpush1.bf16.xpose.msra.mxu0 0
      %742 = vmatprep.subr.bf16.mxu0 0
      %743 = vmatpush1.bf16.xpose.msra.mxu0 %v726
      %744 = vmatprep.subr.bf16.mxu0 0
      %745 = vmatpush2.bf16.xpose.msra.mxu0 0
      %746 = vmatprep.subr.bf16.mxu0 0
      %747 = vmatpush2.bf16.xpose.msra.mxu0 0
      %748 = vmatprep.subr.bf16.mxu0 0
      %749 = vmatpush2.bf16.xpose.msra.mxu0 0
      %750 = vmatprep.subr.bf16.mxu0 0
      %751 = vmatpush2.bf16.xpose.msra.mxu0 0
      %752 = vmatprep.subr.bf16.mxu0 0
      %753 = vmatpush2.bf16.xpose.msra.mxu0 0
      %754 = vmatprep.subr.bf16.mxu0 0
      %755 = vmatpush2.bf16.xpose.msra.mxu0 0
      %756 = vmatprep.subr.bf16.mxu0 0
      %757 = vmatpush2.bf16.xpose.msra.mxu0 0
      %758 = vmatprep.subr.bf16.mxu0 0
      %759 = vmatpush2.bf16.xpose.msra.mxu0 0
      %760 = vmatprep.mubr.bf16.mxu0 0
      %761 = vmatmul.mubr.bf16.gmra.mxu0 %v723
      %v762 = vpop.f32.mrf.mxu0
      %v763 = vadd.f32 0.0, %v762
      %v764 = vpop.f32.mrf.mxu0
      %v765 = vpop.f32.mrf.mxu0
      %v766 = vadd.f32 0.0, %v765
      %v767 = vpop.f32.mrf.mxu0
      %768 = vdwg.mxu0
      %v769 = vmul.f32 %v613, 0.35355338
      %v770 = vmul.f32 %v616, 0.35355338
      %v771 = vmul.f32 %v663, 0.35355338
      %v772 = vmul.f32 %v666, 0.35355338
      %v773 = vmul.f32 %v713, 0.35355338
      %v774 = vmul.f32 %v716, 0.35355338
      %v775 = vmul.f32 %v763, 0.35355338
      %v776 = vmul.f32 %v766, 0.35355338
      %v777 = vld [vmem:[%s4] sm:$0xff]
      %v778 = vld [vmem:[%s4 + $0x8] sm:$0xff]
      %v779 = vadd.f32 %v769, %v777
      %v780 = vadd.f32 %v770, %v778
      %v781 = vadd.f32 %v771, %v777
      %v782 = vadd.f32 %v772, %v778
      %v783 = vadd.f32 %v773, %v777
      %v784 = vadd.f32 %v774, %v778
      %v785 = vadd.f32 %v775, %v777
      %v786 = vadd.f32 %v776, %v778
      %v787 = vadd.f32 %v779, %v556
      %v788 = vadd.f32 %v780, %v557
      %v789 = vadd.f32 %v781, %v558
      %v790 = vadd.f32 %v782, %v559
      %v791 = vadd.f32 %v783, %v560
      %v792 = vadd.f32 %v784, %v561
      %v793 = vadd.f32 %v785, %v562
      %v794 = vadd.f32 %v786, %v563
      %vm795 = vcmask 130048
      %v796 = vsel %vm795, %v787, -inf
      %797 = vmax.xlane.f32.xlu0 %v796
      %v798 = vpop.xlane.xlu0 %797
      %v799 = vsel %vm795, %v788, -inf
      %800 = vmax.xlane.f32.xlu0 %v799
      %v801 = vpop.xlane.xlu0 %800
      %v802 = vsel %vm795, %v789, -inf
      %803 = vmax.xlane.f32.xlu0 %v802
      %v804 = vpop.xlane.xlu0 %803
      %v805 = vsel %vm795, %v790, -inf
      %806 = vmax.xlane.f32.xlu0 %v805
      %v807 = vpop.xlane.xlu0 %806
      %v808 = vsel %vm795, %v791, -inf
      %809 = vmax.xlane.f32.xlu0 %v808
      %v810 = vpop.xlane.xlu0 %809
      %v811 = vsel %vm795, %v792, -inf
      %812 = vmax.xlane.f32.xlu0 %v811
      %v813 = vpop.xlane.xlu0 %812
      %v814 = vsel %vm795, %v793, -inf
      %815 = vmax.xlane.f32.xlu0 %v814
      %v816 = vpop.xlane.xlu0 %815
      %v817 = vsel %vm795, %v794, -inf
      %818 = vmax.xlane.f32.xlu0 %v817
      %v819 = vpop.xlane.xlu0 %818
      %v820 = vsub.f32 %v787, %v798
      %v821 = vsub.f32 %v788, %v801
      %v822 = vsub.f32 %v789, %v804
      %v823 = vsub.f32 %v790, %v807
      %v824 = vsub.f32 %v791, %v810
      %v825 = vsub.f32 %v792, %v813
      %v826 = vsub.f32 %v793, %v816
      %v827 = vsub.f32 %v794, %v819
      %v828 = vmul.f32 %v820, 1.442695
      %v829 = vpow.pop %v828
      %v830 = vmul.f32 %v821, 1.442695
      %v831 = vpow.pop %v830
      %v832 = vmul.f32 %v822, 1.442695
      %v833 = vpow.pop %v832
      %v834 = vmul.f32 %v823, 1.442695
      %v835 = vpow.pop %v834
      %v836 = vmul.f32 %v824, 1.442695
      %v837 = vpow.pop %v836
      %v838 = vmul.f32 %v825, 1.442695
      %v839 = vpow.pop %v838
      %v840 = vmul.f32 %v826, 1.442695
      %v841 = vpow.pop %v840
      %v842 = vmul.f32 %v827, 1.442695
      %v843 = vpow.pop %v842
      %v844 = vsel %vm795, %v829, 0.0
      %845 = vadd.xlane.f32.xlu0 %v844
      %v846 = vpop.xlane.xlu0 %845
      %v847 = vsel %vm795, %v831, 0.0
      %848 = vadd.xlane.f32.xlu0 %v847
      %v849 = vpop.xlane.xlu0 %848
      %v850 = vsel %vm795, %v833, 0.0
      %851 = vadd.xlane.f32.xlu0 %v850
      %v852 = vpop.xlane.xlu0 %851
      %v853 = vsel %vm795, %v835, 0.0
      %854 = vadd.xlane.f32.xlu0 %v853
      %v855 = vpop.xlane.xlu0 %854
      %v856 = vsel %vm795, %v837, 0.0
      %857 = vadd.xlane.f32.xlu0 %v856
      %v858 = vpop.xlane.xlu0 %857
      %v859 = vsel %vm795, %v839, 0.0
      %860 = vadd.xlane.f32.xlu0 %v859
      %v861 = vpop.xlane.xlu0 %860
      %v862 = vsel %vm795, %v841, 0.0
      %863 = vadd.xlane.f32.xlu0 %v862
      %v864 = vpop.xlane.xlu0 %863
      %v865 = vsel %vm795, %v843, 0.0
      %866 = vadd.xlane.f32.xlu0 %v865
      %v867 = vpop.xlane.xlu0 %866
      %v868 = vrcp.pop %v846
      %v869 = vrcp.pop %v849
      %v870 = vrcp.pop %v852
      %v871 = vrcp.pop %v855
      %v872 = vrcp.pop %v858
      %v873 = vrcp.pop %v861
      %v874 = vrcp.pop %v864
      %v875 = vrcp.pop %v867
      %v876 = vmul.f32 %v829, %v868
      %v877 = vmul.f32 %v831, %v869
      %v878 = vmul.f32 %v833, %v870
      %v879 = vmul.f32 %v835, %v871
      %v880 = vmul.f32 %v837, %v872
      %v881 = vmul.f32 %v839, %v873
      %v882 = vmul.f32 %v841, %v874
      %v883 = vmul.f32 %v843, %v875
      %v884 = vpack.c.bf16 %v877, %v876
      %v885 = vpack.c.bf16 %v879, %v878
      %v886 = vpack.c.bf16 %v881, %v880
      %v887 = vpack.c.bf16 %v883, %v882
      %888 = vrot.lane.b32.xlu0 %v564, 64
      %v889 = vpop.permute.xlu0 %888
      %v892 = vsel %vm795, %v884, 0
      %894 = vmatprep.subr.bf16.mxu0 0
      %895 = vmatpush1.bf16.msra.mxu0 0
      %896 = vmatprep.subr.bf16.mxu0 0
      %897 = vmatpush1.bf16.msra.mxu0 0
      %898 = vmatprep.subr.bf16.mxu0 0
      %899 = vmatpush1.bf16.msra.mxu0 0
      %900 = vmatprep.subr.bf16.mxu0 0
      %901 = vmatpush1.bf16.msra.mxu0 0
      %902 = vmatprep.subr.bf16.mxu0 0
      %903 = vmatpush1.bf16.msra.mxu0 0
      %904 = vmatprep.subr.bf16.mxu0 0
      %905 = vmatpush1.bf16.msra.mxu0 0
      %906 = vmatprep.subr.bf16.mxu0 0
      %907 = vmatpush1.bf16.msra.mxu0 0
      %908 = vmatprep.subr.bf16.mxu0 0
      %909 = vmatpush1.bf16.msra.mxu0 %v889
      %910 = vmatprep.subr.bf16.mxu0 0
      %911 = vmatpush2.bf16.msra.mxu0 0
      %912 = vmatprep.subr.bf16.mxu0 0
      %913 = vmatpush2.bf16.msra.mxu0 0
      %914 = vmatprep.subr.bf16.mxu0 0
      %915 = vmatpush2.bf16.msra.mxu0 0
      %916 = vmatprep.subr.bf16.mxu0 0
      %917 = vmatpush2.bf16.msra.mxu0 0
      %918 = vmatprep.subr.bf16.mxu0 0
      %919 = vmatpush2.bf16.msra.mxu0 0
      %920 = vmatprep.subr.bf16.mxu0 0
      %921 = vmatpush2.bf16.msra.mxu0 0
      %922 = vmatprep.subr.bf16.mxu0 0
      %923 = vmatpush2.bf16.msra.mxu0 0
      %924 = vmatprep.subr.bf16.mxu0 0
      %925 = vmatpush2.bf16.msra.mxu0 0
      %926 = vmatprep.mubr.bf16.mxu0 0
      %927 = vmatmul.mubr.bf16.gmra.mxu0 %v892
      %v928 = vpop.f32.mrf.mxu0
      %v929 = vadd.f32 0.0, %v928
      %v930 = vpop.f32.mrf.mxu0
      %v931 = vpop.f32.mrf.mxu0
      %v932 = vadd.f32 0.0, %v931
      %v933 = vpop.f32.mrf.mxu0
      %934 = vdwg.mxu0
      %935 = vrot.lane.b32.xlu0 %v565, 64
      %v936 = vpop.permute.xlu0 %935
      %v939 = vsel %vm795, %v885, 0
      %941 = vmatprep.subr.bf16.mxu0 0
      %942 = vmatpush1.bf16.msra.mxu0 0
      %943 = vmatprep.subr.bf16.mxu0 0
      %944 = vmatpush1.bf16.msra.mxu0 0
      %945 = vmatprep.subr.bf16.mxu0 0
      %946 = vmatpush1.bf16.msra.mxu0 0
      %947 = vmatprep.subr.bf16.mxu0 0
      %948 = vmatpush1.bf16.msra.mxu0 0
      %949 = vmatprep.subr.bf16.mxu0 0
      %950 = vmatpush1.bf16.msra.mxu0 0
      %951 = vmatprep.subr.bf16.mxu0 0
      %952 = vmatpush1.bf16.msra.mxu0 0
      %953 = vmatprep.subr.bf16.mxu0 0
      %954 = vmatpush1.bf16.msra.mxu0 0
      %955 = vmatprep.subr.bf16.mxu0 0
      %956 = vmatpush1.bf16.msra.mxu0 %v936
      %957 = vmatprep.subr.bf16.mxu0 0
      %958 = vmatpush2.bf16.msra.mxu0 0
      %959 = vmatprep.subr.bf16.mxu0 0
      %960 = vmatpush2.bf16.msra.mxu0 0
      %961 = vmatprep.subr.bf16.mxu0 0
      %962 = vmatpush2.bf16.msra.mxu0 0
      %963 = vmatprep.subr.bf16.mxu0 0
      %964 = vmatpush2.bf16.msra.mxu0 0
      %965 = vmatprep.subr.bf16.mxu0 0
      %966 = vmatpush2.bf16.msra.mxu0 0
      %967 = vmatprep.subr.bf16.mxu0 0
      %968 = vmatpush2.bf16.msra.mxu0 0
      %969 = vmatprep.subr.bf16.mxu0 0
      %970 = vmatpush2.bf16.msra.mxu0 0
      %971 = vmatprep.subr.bf16.mxu0 0
      %972 = vmatpush2.bf16.msra.mxu0 0
      %973 = vmatprep.mubr.bf16.mxu0 0
      %974 = vmatmul.mubr.bf16.gmra.mxu0 %v939
      %v975 = vpop.f32.mrf.mxu0
      %v976 = vadd.f32 0.0, %v975
      %v977 = vpop.f32.mrf.mxu0
      %v978 = vpop.f32.mrf.mxu0
      %v979 = vadd.f32 0.0, %v978
      %v980 = vpop.f32.mrf.mxu0
      %981 = vdwg.mxu0
      %982 = vrot.lane.b32.xlu0 %v566, 64
      %v983 = vpop.permute.xlu0 %982
      %v986 = vsel %vm795, %v886, 0
      %988 = vmatprep.subr.bf16.mxu0 0
      %989 = vmatpush1.bf16.msra.mxu0 0
      %990 = vmatprep.subr.bf16.mxu0 0
      %991 = vmatpush1.bf16.msra.mxu0 0
      %992 = vmatprep.subr.bf16.mxu0 0
      %993 = vmatpush1.bf16.msra.mxu0 0
      %994 = vmatprep.subr.bf16.mxu0 0
      %995 = vmatpush1.bf16.msra.mxu0 0
      %996 = vmatprep.subr.bf16.mxu0 0
      %997 = vmatpush1.bf16.msra.mxu0 0
      %998 = vmatprep.subr.bf16.mxu0 0
      %999 = vmatpush1.bf16.msra.mxu0 0
      %1000 = vmatprep.subr.bf16.mxu0 0
      %1001 = vmatpush1.bf16.msra.mxu0 0
      %1002 = vmatprep.subr.bf16.mxu0 0
      %1003 = vmatpush1.bf16.msra.mxu0 %v983
      %1004 = vmatprep.subr.bf16.mxu0 0
      %1005 = vmatpush2.bf16.msra.mxu0 0
      %1006 = vmatprep.subr.bf16.mxu0 0
      %1007 = vmatpush2.bf16.msra.mxu0 0
      %1008 = vmatprep.subr.bf16.mxu0 0
      %1009 = vmatpush2.bf16.msra.mxu0 0
      %1010 = vmatprep.subr.bf16.mxu0 0
      %1011 = vmatpush2.bf16.msra.mxu0 0
      %1012 = vmatprep.subr.bf16.mxu0 0
      %1013 = vmatpush2.bf16.msra.mxu0 0
      %1014 = vmatprep.subr.bf16.mxu0 0
      %1015 = vmatpush2.bf16.msra.mxu0 0
      %1016 = vmatprep.subr.bf16.mxu0 0
      %1017 = vmatpush2.bf16.msra.mxu0 0
      %1018 = vmatprep.subr.bf16.mxu0 0
      %1019 = vmatpush2.bf16.msra.mxu0 0
      %1020 = vmatprep.mubr.bf16.mxu0 0
      %1021 = vmatmul.mubr.bf16.gmra.mxu0 %v986
      %v1022 = vpop.f32.mrf.mxu0
      %v1023 = vadd.f32 0.0, %v1022
      %v1024 = vpop.f32.mrf.mxu0
      %v1025 = vpop.f32.mrf.mxu0
      %v1026 = vadd.f32 0.0, %v1025
      %v1027 = vpop.f32.mrf.mxu0
      %1028 = vdwg.mxu0
      %1029 = vrot.lane.b32.xlu0 %v567, 64
      %v1030 = vpop.permute.xlu0 %1029
      %v1033 = vsel %vm795, %v887, 0
      %1035 = vmatprep.subr.bf16.mxu0 0
      %1036 = vmatpush1.bf16.msra.mxu0 0
      %1037 = vmatprep.subr.bf16.mxu0 0
      %1038 = vmatpush1.bf16.msra.mxu0 0
      %1039 = vmatprep.subr.bf16.mxu0 0
      %1040 = vmatpush1.bf16.msra.mxu0 0
      %1041 = vmatprep.subr.bf16.mxu0 0
      %1042 = vmatpush1.bf16.msra.mxu0 0
      %1043 = vmatprep.subr.bf16.mxu0 0
      %1044 = vmatpush1.bf16.msra.mxu0 0
      %1045 = vmatprep.subr.bf16.mxu0 0
      %1046 = vmatpush1.bf16.msra.mxu0 0
      %1047 = vmatprep.subr.bf16.mxu0 0
      %1048 = vmatpush1.bf16.msra.mxu0 0
      %1049 = vmatprep.subr.bf16.mxu0 0
      %1050 = vmatpush1.bf16.msra.mxu0 %v1030
      %1051 = vmatprep.subr.bf16.mxu0 0
      %1052 = vmatpush2.bf16.msra.mxu0 0
      %1053 = vmatprep.subr.bf16.mxu0 0
      %1054 = vmatpush2.bf16.msra.mxu0 0
      %1055 = vmatprep.subr.bf16.mxu0 0
      %1056 = vmatpush2.bf16.msra.mxu0 0
      %1057 = vmatprep.subr.bf16.mxu0 0
      %1058 = vmatpush2.bf16.msra.mxu0 0
      %1059 = vmatprep.subr.bf16.mxu0 0
      %1060 = vmatpush2.bf16.msra.mxu0 0
      %1061 = vmatprep.subr.bf16.mxu0 0
      %1062 = vmatpush2.bf16.msra.mxu0 0
      %1063 = vmatprep.subr.bf16.mxu0 0
      %1064 = vmatpush2.bf16.msra.mxu0 0
      %1065 = vmatprep.subr.bf16.mxu0 0
      %1066 = vmatpush2.bf16.msra.mxu0 0
      %1067 = vmatprep.mubr.bf16.mxu0 0
      %1068 = vmatmul.mubr.bf16.gmra.mxu0 %v1033
      %v1069 = vpop.f32.mrf.mxu0
      %v1070 = vadd.f32 0.0, %v1069
      %v1071 = vpop.f32.mrf.mxu0
      %v1072 = vpop.f32.mrf.mxu0
      %v1073 = vadd.f32 0.0, %v1072
      %v1074 = vpop.f32.mrf.mxu0
      %1075 = vdwg.mxu0
      %v1076 = vpack.c.bf16 %v932, %v929
      %v1077 = vpack.c.bf16 %v979, %v976
      %v1078 = vpack.c.bf16 %v1026, %v1023
      %v1079 = vpack.c.bf16 %v1073, %v1070
      %1080 = vrot.lane.b32.xlu0 %v564, 120
      %v1081 = vpop.permute.xlu0 %1080
      %1082 = vrot.lane.b32.xlu0 %v564, 88
      %v1083 = vpop.permute.xlu0 %1082
      %v1085 = vsel %vm571, %v1081, 0
      %v1088 = vsel %vm571, %v1083, 0
      %1090 = vmatprep.subr.bf16.mxu0 0
      %1091 = vmatpush1.bf16.xpose.msra.mxu0 0
      %1092 = vmatprep.subr.bf16.mxu0 0
      %1093 = vmatpush1.bf16.xpose.msra.mxu0 0
      %1094 = vmatprep.subr.bf16.mxu0 0
      %1095 = vmatpush1.bf16.xpose.msra.mxu0 0
      %1096 = vmatprep.subr.bf16.mxu0 0
      %1097 = vmatpush1.bf16.xpose.msra.mxu0 0
      %1098 = vmatprep.subr.bf16.mxu0 0
      %1099 = vmatpush1.bf16.xpose.msra.mxu0 0
      %1100 = vmatprep.subr.bf16.mxu0 0
      %1101 = vmatpush1.bf16.xpose.msra.mxu0 0
      %1102 = vmatprep.subr.bf16.mxu0 0
      %1103 = vmatpush1.bf16.xpose.msra.mxu0 0
      %1104 = vmatprep.subr.bf16.mxu0 0
      %1105 = vmatpush1.bf16.xpose.msra.mxu0 %v1088
      %1106 = vmatprep.subr.bf16.mxu0 0
      %1107 = vmatpush2.bf16.xpose.msra.mxu0 0
      %1108 = vmatprep.subr.bf16.mxu0 0
      %1109 = vmatpush2.bf16.xpose.msra.mxu0 0
      %1110 = vmatprep.subr.bf16.mxu0 0
      %1111 = vmatpush2.bf16.xpose.msra.mxu0 0
      %1112 = vmatprep.subr.bf16.mxu0 0
      %1113 = vmatpush2.bf16.xpose.msra.mxu0 0
      %1114 = vmatprep.subr.bf16.mxu0 0
      %1115 = vmatpush2.bf16.xpose.msra.mxu0 0
      %1116 = vmatprep.subr.bf16.mxu0 0
      %1117 = vmatpush2.bf16.xpose.msra.mxu0 0
      %1118 = vmatprep.subr.bf16.mxu0 0
      %1119 = vmatpush2.bf16.xpose.msra.mxu0 0
      %1120 = vmatprep.subr.bf16.mxu0 0
      %1121 = vmatpush2.bf16.xpose.msra.mxu0 0
      %1122 = vmatprep.mubr.bf16.mxu0 0
      %1123 = vmatmul.mubr.bf16.gmra.mxu0 %v1085
      %v1124 = vpop.f32.mrf.mxu0
      %v1125 = vadd.f32 0.0, %v1124
      %v1126 = vpop.f32.mrf.mxu0
      %v1127 = vpop.f32.mrf.mxu0
      %v1128 = vadd.f32 0.0, %v1127
      %v1129 = vpop.f32.mrf.mxu0
      %1130 = vdwg.mxu0
      %1131 = vrot.lane.b32.xlu0 %v565, 120
      %v1132 = vpop.permute.xlu0 %1131
      %1133 = vrot.lane.b32.xlu0 %v565, 88
      %v1134 = vpop.permute.xlu0 %1133
      %v1136 = vsel %vm571, %v1132, 0
      %v1139 = vsel %vm571, %v1134, 0
      %1141 = vmatprep.subr.bf16.mxu0 0
      %1142 = vmatpush1.bf16.xpose.msra.mxu0 0
      %1143 = vmatprep.subr.bf16.mxu0 0
      %1144 = vmatpush1.bf16.xpose.msra.mxu0 0
      %1145 = vmatprep.subr.bf16.mxu0 0
      %1146 = vmatpush1.bf16.xpose.msra.mxu0 0
      %1147 = vmatprep.subr.bf16.mxu0 0
      %1148 = vmatpush1.bf16.xpose.msra.mxu0 0
      %1149 = vmatprep.subr.bf16.mxu0 0
      %1150 = vmatpush1.bf16.xpose.msra.mxu0 0
      %1151 = vmatprep.subr.bf16.mxu0 0
      %1152 = vmatpush1.bf16.xpose.msra.mxu0 0
      %1153 = vmatprep.subr.bf16.mxu0 0
      %1154 = vmatpush1.bf16.xpose.msra.mxu0 0
      %1155 = vmatprep.subr.bf16.mxu0 0
      %1156 = vmatpush1.bf16.xpose.msra.mxu0 %v1139
      %1157 = vmatprep.subr.bf16.mxu0 0
      %1158 = vmatpush2.bf16.xpose.msra.mxu0 0
      %1159 = vmatprep.subr.bf16.mxu0 0
      %1160 = vmatpush2.bf16.xpose.msra.mxu0 0
      %1161 = vmatprep.subr.bf16.mxu0 0
      %1162 = vmatpush2.bf16.xpose.msra.mxu0 0
      %1163 = vmatprep.subr.bf16.mxu0 0
      %1164 = vmatpush2.bf16.xpose.msra.mxu0 0
      %1165 = vmatprep.subr.bf16.mxu0 0
      %1166 = vmatpush2.bf16.xpose.msra.mxu0 0
      %1167 = vmatprep.subr.bf16.mxu0 0
      %1168 = vmatpush2.bf16.xpose.msra.mxu0 0
      %1169 = vmatprep.subr.bf16.mxu0 0
      %1170 = vmatpush2.bf16.xpose.msra.mxu0 0
      %1171 = vmatprep.subr.bf16.mxu0 0
      %1172 = vmatpush2.bf16.xpose.msra.mxu0 0
      %1173 = vmatprep.mubr.bf16.mxu0 0
      %1174 = vmatmul.mubr.bf16.gmra.mxu0 %v1136
      %v1175 = vpop.f32.mrf.mxu0
      %v1176 = vadd.f32 0.0, %v1175
      %v1177 = vpop.f32.mrf.mxu0
      %v1178 = vpop.f32.mrf.mxu0
      %v1179 = vadd.f32 0.0, %v1178
      %v1180 = vpop.f32.mrf.mxu0
      %1181 = vdwg.mxu0
      %1182 = vrot.lane.b32.xlu0 %v566, 120
      %v1183 = vpop.permute.xlu0 %1182
      %1184 = vrot.lane.b32.xlu0 %v566, 88
      %v1185 = vpop.permute.xlu0 %1184
      %v1187 = vsel %vm571, %v1183, 0
      %v1190 = vsel %vm571, %v1185, 0
      %1192 = vmatprep.subr.bf16.mxu0 0
      %1193 = vmatpush1.bf16.xpose.msra.mxu0 0
      %1194 = vmatprep.subr.bf16.mxu0 0
      %1195 = vmatpush1.bf16.xpose.msra.mxu0 0
      %1196 = vmatprep.subr.bf16.mxu0 0
      %1197 = vmatpush1.bf16.xpose.msra.mxu0 0
      %1198 = vmatprep.subr.bf16.mxu0 0
      %1199 = vmatpush1.bf16.xpose.msra.mxu0 0
      %1200 = vmatprep.subr.bf16.mxu0 0
      %1201 = vmatpush1.bf16.xpose.msra.mxu0 0
      %1202 = vmatprep.subr.bf16.mxu0 0
      %1203 = vmatpush1.bf16.xpose.msra.mxu0 0
      %1204 = vmatprep.subr.bf16.mxu0 0
      %1205 = vmatpush1.bf16.xpose.msra.mxu0 0
      %1206 = vmatprep.subr.bf16.mxu0 0
      %1207 = vmatpush1.bf16.xpose.msra.mxu0 %v1190
      %1208 = vmatprep.subr.bf16.mxu0 0
      %1209 = vmatpush2.bf16.xpose.msra.mxu0 0
      %1210 = vmatprep.subr.bf16.mxu0 0
      %1211 = vmatpush2.bf16.xpose.msra.mxu0 0
      %1212 = vmatprep.subr.bf16.mxu0 0
      %1213 = vmatpush2.bf16.xpose.msra.mxu0 0
      %1214 = vmatprep.subr.bf16.mxu0 0
      %1215 = vmatpush2.bf16.xpose.msra.mxu0 0
      %1216 = vmatprep.subr.bf16.mxu0 0
      %1217 = vmatpush2.bf16.xpose.msra.mxu0 0
      %1218 = vmatprep.subr.bf16.mxu0 0
      %1219 = vmatpush2.bf16.xpose.msra.mxu0 0
      %1220 = vmatprep.subr.bf16.mxu0 0
      %1221 = vmatpush2.bf16.xpose.msra.mxu0 0
      %1222 = vmatprep.subr.bf16.mxu0 0
      %1223 = vmatpush2.bf16.xpose.msra.mxu0 0
      %1224 = vmatprep.mubr.bf16.mxu0 0
      %1225 = vmatmul.mubr.bf16.gmra.mxu0 %v1187
      %v1226 = vpop.f32.mrf.mxu0
      %v1227 = vadd.f32 0.0, %v1226
      %v1228 = vpop.f32.mrf.mxu0
      %v1229 = vpop.f32.mrf.mxu0
      %v1230 = vadd.f32 0.0, %v1229
      %v1231 = vpop.f32.mrf.mxu0
      %1232 = vdwg.mxu0
      %1233 = vrot.lane.b32.xlu0 %v567, 120
      %v1234 = vpop.permute.xlu0 %1233
      %1235 = vrot.lane.b32.xlu0 %v567, 88
      %v1236 = vpop.permute.xlu0 %1235
      %v1238 = vsel %vm571, %v1234, 0
      %v1241 = vsel %vm571, %v1236, 0
      %1243 = vmatprep.subr.bf16.mxu0 0
      %1244 = vmatpush1.bf16.xpose.msra.mxu0 0
      %1245 = vmatprep.subr.bf16.mxu0 0
      %1246 = vmatpush1.bf16.xpose.msra.mxu0 0
      %1247 = vmatprep.subr.bf16.mxu0 0
      %1248 = vmatpush1.bf16.xpose.msra.mxu0 0
      %1249 = vmatprep.subr.bf16.mxu0 0
      %1250 = vmatpush1.bf16.xpose.msra.mxu0 0
      %1251 = vmatprep.subr.bf16.mxu0 0
      %1252 = vmatpush1.bf16.xpose.msra.mxu0 0
      %1253 = vmatprep.subr.bf16.mxu0 0
      %1254 = vmatpush1.bf16.xpose.msra.mxu0 0
      %1255 = vmatprep.subr.bf16.mxu0 0
      %1256 = vmatpush1.bf16.xpose.msra.mxu0 0
      %1257 = vmatprep.subr.bf16.mxu0 0
      %1258 = vmatpush1.bf16.xpose.msra.mxu0 %v1241
      %1259 = vmatprep.subr.bf16.mxu0 0
      %1260 = vmatpush2.bf16.xpose.msra.mxu0 0
      %1261 = vmatprep.subr.bf16.mxu0 0
      %1262 = vmatpush2.bf16.xpose.msra.mxu0 0
      %1263 = vmatprep.subr.bf16.mxu0 0
      %1264 = vmatpush2.bf16.xpose.msra.mxu0 0
      %1265 = vmatprep.subr.bf16.mxu0 0
      %1266 = vmatpush2.bf16.xpose.msra.mxu0 0
      %1267 = vmatprep.subr.bf16.mxu0 0
      %1268 = vmatpush2.bf16.xpose.msra.mxu0 0
      %1269 = vmatprep.subr.bf16.mxu0 0
      %1270 = vmatpush2.bf16.xpose.msra.mxu0 0
      %1271 = vmatprep.subr.bf16.mxu0 0
      %1272 = vmatpush2.bf16.xpose.msra.mxu0 0
      %1273 = vmatprep.subr.bf16.mxu0 0
      %1274 = vmatpush2.bf16.xpose.msra.mxu0 0
      %1275 = vmatprep.mubr.bf16.mxu0 0
      %1276 = vmatmul.mubr.bf16.gmra.mxu0 %v1238
      %v1277 = vpop.f32.mrf.mxu0
      %v1278 = vadd.f32 0.0, %v1277
      %v1279 = vpop.f32.mrf.mxu0
      %v1280 = vpop.f32.mrf.mxu0
      %v1281 = vadd.f32 0.0, %v1280
      %v1282 = vpop.f32.mrf.mxu0
      %1283 = vdwg.mxu0
      %v1284 = vmul.f32 %v1125, 0.35355338
      %v1285 = vmul.f32 %v1128, 0.35355338
      %v1286 = vmul.f32 %v1176, 0.35355338
      %v1287 = vmul.f32 %v1179, 0.35355338
      %v1288 = vmul.f32 %v1227, 0.35355338
      %v1289 = vmul.f32 %v1230, 0.35355338
      %v1290 = vmul.f32 %v1278, 0.35355338
      %v1291 = vmul.f32 %v1281, 0.35355338
      %s1292 = scalar_lea.vmem %s4, 16
      %v1293 = vld [vmem:[%s1292] sm:$0xff]
      %v1294 = vld [vmem:[%s1292 + $0x8] sm:$0xff]
      %v1295 = vadd.f32 %v1284, %v1293
      %v1296 = vadd.f32 %v1285, %v1294
      %v1297 = vadd.f32 %v1286, %v1293
      %v1298 = vadd.f32 %v1287, %v1294
      %v1299 = vadd.f32 %v1288, %v1293
      %v1300 = vadd.f32 %v1289, %v1294
      %v1301 = vadd.f32 %v1290, %v1293
      %v1302 = vadd.f32 %v1291, %v1294
      %v1303 = vadd.f32 %v1295, %v556
      %v1304 = vadd.f32 %v1296, %v557
      %v1305 = vadd.f32 %v1297, %v558
      %v1306 = vadd.f32 %v1298, %v559
      %v1307 = vadd.f32 %v1299, %v560
      %v1308 = vadd.f32 %v1300, %v561
      %v1309 = vadd.f32 %v1301, %v562
      %v1310 = vadd.f32 %v1302, %v563
      %v1311 = vsel %vm795, %v1303, -inf
      %1312 = vmax.xlane.f32.xlu0 %v1311
      %v1313 = vpop.xlane.xlu0 %1312
      %v1314 = vsel %vm795, %v1304, -inf
      %1315 = vmax.xlane.f32.xlu0 %v1314
      %v1316 = vpop.xlane.xlu0 %1315
      %v1317 = vsel %vm795, %v1305, -inf
      %1318 = vmax.xlane.f32.xlu0 %v1317
      %v1319 = vpop.xlane.xlu0 %1318
      %v1320 = vsel %vm795, %v1306, -inf
      %1321 = vmax.xlane.f32.xlu0 %v1320
      %v1322 = vpop.xlane.xlu0 %1321
      %v1323 = vsel %vm795, %v1307, -inf
      %1324 = vmax.xlane.f32.xlu0 %v1323
      %v1325 = vpop.xlane.xlu0 %1324
      %v1326 = vsel %vm795, %v1308, -inf
      %1327 = vmax.xlane.f32.xlu0 %v1326
      %v1328 = vpop.xlane.xlu0 %1327
      %v1329 = vsel %vm795, %v1309, -inf
      %1330 = vmax.xlane.f32.xlu0 %v1329
      %v1331 = vpop.xlane.xlu0 %1330
      %v1332 = vsel %vm795, %v1310, -inf
      %1333 = vmax.xlane.f32.xlu0 %v1332
      %v1334 = vpop.xlane.xlu0 %1333
      %v1335 = vsub.f32 %v1303, %v1313
      %v1336 = vsub.f32 %v1304, %v1316
      %v1337 = vsub.f32 %v1305, %v1319
      %v1338 = vsub.f32 %v1306, %v1322
      %v1339 = vsub.f32 %v1307, %v1325
      %v1340 = vsub.f32 %v1308, %v1328
      %v1341 = vsub.f32 %v1309, %v1331
      %v1342 = vsub.f32 %v1310, %v1334
      %v1343 = vmul.f32 %v1335, 1.442695
      %v1344 = vpow.pop %v1343
      %v1345 = vmul.f32 %v1336, 1.442695
      %v1346 = vpow.pop %v1345
      %v1347 = vmul.f32 %v1337, 1.442695
      %v1348 = vpow.pop %v1347
      %v1349 = vmul.f32 %v1338, 1.442695
      %v1350 = vpow.pop %v1349
      %v1351 = vmul.f32 %v1339, 1.442695
      %v1352 = vpow.pop %v1351
      %v1353 = vmul.f32 %v1340, 1.442695
      %v1354 = vpow.pop %v1353
      %v1355 = vmul.f32 %v1341, 1.442695
      %v1356 = vpow.pop %v1355
      %v1357 = vmul.f32 %v1342, 1.442695
      %v1358 = vpow.pop %v1357
      %v1359 = vsel %vm795, %v1344, 0.0
      %1360 = vadd.xlane.f32.xlu0 %v1359
      %v1361 = vpop.xlane.xlu0 %1360
      %v1362 = vsel %vm795, %v1346, 0.0
      %1363 = vadd.xlane.f32.xlu0 %v1362
      %v1364 = vpop.xlane.xlu0 %1363
      %v1365 = vsel %vm795, %v1348, 0.0
      %1366 = vadd.xlane.f32.xlu0 %v1365
      %v1367 = vpop.xlane.xlu0 %1366
      %v1368 = vsel %vm795, %v1350, 0.0
      %1369 = vadd.xlane.f32.xlu0 %v1368
      %v1370 = vpop.xlane.xlu0 %1369
      %v1371 = vsel %vm795, %v1352, 0.0
      %1372 = vadd.xlane.f32.xlu0 %v1371
      %v1373 = vpop.xlane.xlu0 %1372
      %v1374 = vsel %vm795, %v1354, 0.0
      %1375 = vadd.xlane.f32.xlu0 %v1374
      %v1376 = vpop.xlane.xlu0 %1375
      %v1377 = vsel %vm795, %v1356, 0.0
      %1378 = vadd.xlane.f32.xlu0 %v1377
      %v1379 = vpop.xlane.xlu0 %1378
      %v1380 = vsel %vm795, %v1358, 0.0
      %1381 = vadd.xlane.f32.xlu0 %v1380
      %v1382 = vpop.xlane.xlu0 %1381
      %v1383 = vrcp.pop %v1361
      %v1384 = vrcp.pop %v1364
      %v1385 = vrcp.pop %v1367
      %v1386 = vrcp.pop %v1370
      %v1387 = vrcp.pop %v1373
      %v1388 = vrcp.pop %v1376
      %v1389 = vrcp.pop %v1379
      %v1390 = vrcp.pop %v1382
      %v1391 = vmul.f32 %v1344, %v1383
      %v1392 = vmul.f32 %v1346, %v1384
      %v1393 = vmul.f32 %v1348, %v1385
      %v1394 = vmul.f32 %v1350, %v1386
      %v1395 = vmul.f32 %v1352, %v1387
      %v1396 = vmul.f32 %v1354, %v1388
      %v1397 = vmul.f32 %v1356, %v1389
      %v1398 = vmul.f32 %v1358, %v1390
      %v1399 = vpack.c.bf16 %v1392, %v1391
      %v1400 = vpack.c.bf16 %v1394, %v1393
      %v1401 = vpack.c.bf16 %v1396, %v1395
      %v1402 = vpack.c.bf16 %v1398, %v1397
      %1403 = vrot.lane.b32.xlu0 %v564, 56
      %v1404 = vpop.permute.xlu0 %1403
      %v1407 = vsel %vm795, %v1399, 0
      %1409 = vmatprep.subr.bf16.mxu0 0
      %1410 = vmatpush1.bf16.msra.mxu0 0
      %1411 = vmatprep.subr.bf16.mxu0 0
      %1412 = vmatpush1.bf16.msra.mxu0 0
      %1413 = vmatprep.subr.bf16.mxu0 0
      %1414 = vmatpush1.bf16.msra.mxu0 0
      %1415 = vmatprep.subr.bf16.mxu0 0
      %1416 = vmatpush1.bf16.msra.mxu0 0
      %1417 = vmatprep.subr.bf16.mxu0 0
      %1418 = vmatpush1.bf16.msra.mxu0 0
      %1419 = vmatprep.subr.bf16.mxu0 0
      %1420 = vmatpush1.bf16.msra.mxu0 0
      %1421 = vmatprep.subr.bf16.mxu0 0
      %1422 = vmatpush1.bf16.msra.mxu0 0
      %1423 = vmatprep.subr.bf16.mxu0 0
      %1424 = vmatpush1.bf16.msra.mxu0 %v1404
      %1425 = vmatprep.subr.bf16.mxu0 0
      %1426 = vmatpush2.bf16.msra.mxu0 0
      %1427 = vmatprep.subr.bf16.mxu0 0
      %1428 = vmatpush2.bf16.msra.mxu0 0
      %1429 = vmatprep.subr.bf16.mxu0 0
      %1430 = vmatpush2.bf16.msra.mxu0 0
      %1431 = vmatprep.subr.bf16.mxu0 0
      %1432 = vmatpush2.bf16.msra.mxu0 0
      %1433 = vmatprep.subr.bf16.mxu0 0
      %1434 = vmatpush2.bf16.msra.mxu0 0
      %1435 = vmatprep.subr.bf16.mxu0 0
      %1436 = vmatpush2.bf16.msra.mxu0 0
      %1437 = vmatprep.subr.bf16.mxu0 0
      %1438 = vmatpush2.bf16.msra.mxu0 0
      %1439 = vmatprep.subr.bf16.mxu0 0
      %1440 = vmatpush2.bf16.msra.mxu0 0
      %1441 = vmatprep.mubr.bf16.mxu0 0
      %1442 = vmatmul.mubr.bf16.gmra.mxu0 %v1407
      %v1443 = vpop.f32.mrf.mxu0
      %v1444 = vadd.f32 0.0, %v1443
      %v1445 = vpop.f32.mrf.mxu0
      %v1446 = vpop.f32.mrf.mxu0
      %v1447 = vadd.f32 0.0, %v1446
      %v1448 = vpop.f32.mrf.mxu0
      %1449 = vdwg.mxu0
      %1450 = vrot.lane.b32.xlu0 %v565, 56
      %v1451 = vpop.permute.xlu0 %1450
      %v1454 = vsel %vm795, %v1400, 0
      %1456 = vmatprep.subr.bf16.mxu0 0
      %1457 = vmatpush1.bf16.msra.mxu0 0
      %1458 = vmatprep.subr.bf16.mxu0 0
      %1459 = vmatpush1.bf16.msra.mxu0 0
      %1460 = vmatprep.subr.bf16.mxu0 0
      %1461 = vmatpush1.bf16.msra.mxu0 0
      %1462 = vmatprep.subr.bf16.mxu0 0
      %1463 = vmatpush1.bf16.msra.mxu0 0
      %1464 = vmatprep.subr.bf16.mxu0 0
      %1465 = vmatpush1.bf16.msra.mxu0 0
      %1466 = vmatprep.subr.bf16.mxu0 0
      %1467 = vmatpush1.bf16.msra.mxu0 0
      %1468 = vmatprep.subr.bf16.mxu0 0
      %1469 = vmatpush1.bf16.msra.mxu0 0
      %1470 = vmatprep.subr.bf16.mxu0 0
      %1471 = vmatpush1.bf16.msra.mxu0 %v1451
      %1472 = vmatprep.subr.bf16.mxu0 0
      %1473 = vmatpush2.bf16.msra.mxu0 0
      %1474 = vmatprep.subr.bf16.mxu0 0
      %1475 = vmatpush2.bf16.msra.mxu0 0
      %1476 = vmatprep.subr.bf16.mxu0 0
      %1477 = vmatpush2.bf16.msra.mxu0 0
      %1478 = vmatprep.subr.bf16.mxu0 0
      %1479 = vmatpush2.bf16.msra.mxu0 0
      %1480 = vmatprep.subr.bf16.mxu0 0
      %1481 = vmatpush2.bf16.msra.mxu0 0
      %1482 = vmatprep.subr.bf16.mxu0 0
      %1483 = vmatpush2.bf16.msra.mxu0 0
      %1484 = vmatprep.subr.bf16.mxu0 0
      %1485 = vmatpush2.bf16.msra.mxu0 0
      %1486 = vmatprep.subr.bf16.mxu0 0
      %1487 = vmatpush2.bf16.msra.mxu0 0
      %1488 = vmatprep.mubr.bf16.mxu0 0
      %1489 = vmatmul.mubr.bf16.gmra.mxu0 %v1454
      %v1490 = vpop.f32.mrf.mxu0
      %v1491 = vadd.f32 0.0, %v1490
      %v1492 = vpop.f32.mrf.mxu0
      %v1493 = vpop.f32.mrf.mxu0
      %v1494 = vadd.f32 0.0, %v1493
      %v1495 = vpop.f32.mrf.mxu0
      %1496 = vdwg.mxu0
      %1497 = vrot.lane.b32.xlu0 %v566, 56
      %v1498 = vpop.permute.xlu0 %1497
      %v1501 = vsel %vm795, %v1401, 0
      %1503 = vmatprep.subr.bf16.mxu0 0
      %1504 = vmatpush1.bf16.msra.mxu0 0
      %1505 = vmatprep.subr.bf16.mxu0 0
      %1506 = vmatpush1.bf16.msra.mxu0 0
      %1507 = vmatprep.subr.bf16.mxu0 0
      %1508 = vmatpush1.bf16.msra.mxu0 0
      %1509 = vmatprep.subr.bf16.mxu0 0
      %1510 = vmatpush1.bf16.msra.mxu0 0
      %1511 = vmatprep.subr.bf16.mxu0 0
      %1512 = vmatpush1.bf16.msra.mxu0 0
      %1513 = vmatprep.subr.bf16.mxu0 0
      %1514 = vmatpush1.bf16.msra.mxu0 0
      %1515 = vmatprep.subr.bf16.mxu0 0
      %1516 = vmatpush1.bf16.msra.mxu0 0
      %1517 = vmatprep.subr.bf16.mxu0 0
      %1518 = vmatpush1.bf16.msra.mxu0 %v1498
      %1519 = vmatprep.subr.bf16.mxu0 0
      %1520 = vmatpush2.bf16.msra.mxu0 0
      %1521 = vmatprep.subr.bf16.mxu0 0
      %1522 = vmatpush2.bf16.msra.mxu0 0
      %1523 = vmatprep.subr.bf16.mxu0 0
      %1524 = vmatpush2.bf16.msra.mxu0 0
      %1525 = vmatprep.subr.bf16.mxu0 0
      %1526 = vmatpush2.bf16.msra.mxu0 0
      %1527 = vmatprep.subr.bf16.mxu0 0
      %1528 = vmatpush2.bf16.msra.mxu0 0
      %1529 = vmatprep.subr.bf16.mxu0 0
      %1530 = vmatpush2.bf16.msra.mxu0 0
      %1531 = vmatprep.subr.bf16.mxu0 0
      %1532 = vmatpush2.bf16.msra.mxu0 0
      %1533 = vmatprep.subr.bf16.mxu0 0
      %1534 = vmatpush2.bf16.msra.mxu0 0
      %1535 = vmatprep.mubr.bf16.mxu0 0
      %1536 = vmatmul.mubr.bf16.gmra.mxu0 %v1501
      %v1537 = vpop.f32.mrf.mxu0
      %v1538 = vadd.f32 0.0, %v1537
      %v1539 = vpop.f32.mrf.mxu0
      %v1540 = vpop.f32.mrf.mxu0
      %v1541 = vadd.f32 0.0, %v1540
      %v1542 = vpop.f32.mrf.mxu0
      %1543 = vdwg.mxu0
      %1544 = vrot.lane.b32.xlu0 %v567, 56
      %v1545 = vpop.permute.xlu0 %1544
      %v1548 = vsel %vm795, %v1402, 0
      %1550 = vmatprep.subr.bf16.mxu0 0
      %1551 = vmatpush1.bf16.msra.mxu0 0
      %1552 = vmatprep.subr.bf16.mxu0 0
      %1553 = vmatpush1.bf16.msra.mxu0 0
      %1554 = vmatprep.subr.bf16.mxu0 0
      %1555 = vmatpush1.bf16.msra.mxu0 0
      %1556 = vmatprep.subr.bf16.mxu0 0
      %1557 = vmatpush1.bf16.msra.mxu0 0
      %1558 = vmatprep.subr.bf16.mxu0 0
      %1559 = vmatpush1.bf16.msra.mxu0 0
      %1560 = vmatprep.subr.bf16.mxu0 0
      %1561 = vmatpush1.bf16.msra.mxu0 0
      %1562 = vmatprep.subr.bf16.mxu0 0
      %1563 = vmatpush1.bf16.msra.mxu0 0
      %1564 = vmatprep.subr.bf16.mxu0 0
      %1565 = vmatpush1.bf16.msra.mxu0 %v1545
      %1566 = vmatprep.subr.bf16.mxu0 0
      %1567 = vmatpush2.bf16.msra.mxu0 0
      %1568 = vmatprep.subr.bf16.mxu0 0
      %1569 = vmatpush2.bf16.msra.mxu0 0
      %1570 = vmatprep.subr.bf16.mxu0 0
      %1571 = vmatpush2.bf16.msra.mxu0 0
      %1572 = vmatprep.subr.bf16.mxu0 0
      %1573 = vmatpush2.bf16.msra.mxu0 0
      %1574 = vmatprep.subr.bf16.mxu0 0
      %1575 = vmatpush2.bf16.msra.mxu0 0
      %1576 = vmatprep.subr.bf16.mxu0 0
      %1577 = vmatpush2.bf16.msra.mxu0 0
      %1578 = vmatprep.subr.bf16.mxu0 0
      %1579 = vmatpush2.bf16.msra.mxu0 0
      %1580 = vmatprep.subr.bf16.mxu0 0
      %1581 = vmatpush2.bf16.msra.mxu0 0
      %1582 = vmatprep.mubr.bf16.mxu0 0
      %1583 = vmatmul.mubr.bf16.gmra.mxu0 %v1548
      %v1584 = vpop.f32.mrf.mxu0
      %v1585 = vadd.f32 0.0, %v1584
      %v1586 = vpop.f32.mrf.mxu0
      %v1587 = vpop.f32.mrf.mxu0
      %v1588 = vadd.f32 0.0, %v1587
      %v1589 = vpop.f32.mrf.mxu0
      %1590 = vdwg.mxu0
      %v1591 = vpack.c.bf16 %v1447, %v1444
      %v1592 = vpack.c.bf16 %v1494, %v1491
      %v1593 = vpack.c.bf16 %v1541, %v1538
      %v1594 = vpack.c.bf16 %v1588, %v1585
      %1595 = vrot.lane.b32.xlu0 %v564, 112
      %v1596 = vpop.permute.xlu0 %1595
      %1597 = vrot.lane.b32.xlu0 %v564, 80
      %v1598 = vpop.permute.xlu0 %1597
      %v1600 = vsel %vm571, %v1596, 0
      %v1603 = vsel %vm571, %v1598, 0
      %1605 = vmatprep.subr.bf16.mxu0 0
      %1606 = vmatpush1.bf16.xpose.msra.mxu0 0
      %1607 = vmatprep.subr.bf16.mxu0 0
      %1608 = vmatpush1.bf16.xpose.msra.mxu0 0
      %1609 = vmatprep.subr.bf16.mxu0 0
      %1610 = vmatpush1.bf16.xpose.msra.mxu0 0
      %1611 = vmatprep.subr.bf16.mxu0 0
      %1612 = vmatpush1.bf16.xpose.msra.mxu0 0
      %1613 = vmatprep.subr.bf16.mxu0 0
      %1614 = vmatpush1.bf16.xpose.msra.mxu0 0
      %1615 = vmatprep.subr.bf16.mxu0 0
      %1616 = vmatpush1.bf16.xpose.msra.mxu0 0
      %1617 = vmatprep.subr.bf16.mxu0 0
      %1618 = vmatpush1.bf16.xpose.msra.mxu0 0
      %1619 = vmatprep.subr.bf16.mxu0 0
      %1620 = vmatpush1.bf16.xpose.msra.mxu0 %v1603
      %1621 = vmatprep.subr.bf16.mxu0 0
      %1622 = vmatpush2.bf16.xpose.msra.mxu0 0
      %1623 = vmatprep.subr.bf16.mxu0 0
      %1624 = vmatpush2.bf16.xpose.msra.mxu0 0
      %1625 = vmatprep.subr.bf16.mxu0 0
      %1626 = vmatpush2.bf16.xpose.msra.mxu0 0
      %1627 = vmatprep.subr.bf16.mxu0 0
      %1628 = vmatpush2.bf16.xpose.msra.mxu0 0
      %1629 = vmatprep.subr.bf16.mxu0 0
      %1630 = vmatpush2.bf16.xpose.msra.mxu0 0
      %1631 = vmatprep.subr.bf16.mxu0 0
      %1632 = vmatpush2.bf16.xpose.msra.mxu0 0
      %1633 = vmatprep.subr.bf16.mxu0 0
      %1634 = vmatpush2.bf16.xpose.msra.mxu0 0
      %1635 = vmatprep.subr.bf16.mxu0 0
      %1636 = vmatpush2.bf16.xpose.msra.mxu0 0
      %1637 = vmatprep.mubr.bf16.mxu0 0
      %1638 = vmatmul.mubr.bf16.gmra.mxu0 %v1600
      %v1639 = vpop.f32.mrf.mxu0
      %v1640 = vadd.f32 0.0, %v1639
      %v1641 = vpop.f32.mrf.mxu0
      %v1642 = vpop.f32.mrf.mxu0
      %v1643 = vadd.f32 0.0, %v1642
      %v1644 = vpop.f32.mrf.mxu0
      %1645 = vdwg.mxu0
      %1646 = vrot.lane.b32.xlu0 %v565, 112
      %v1647 = vpop.permute.xlu0 %1646
      %1648 = vrot.lane.b32.xlu0 %v565, 80
      %v1649 = vpop.permute.xlu0 %1648
      %v1651 = vsel %vm571, %v1647, 0
      %v1654 = vsel %vm571, %v1649, 0
      %1656 = vmatprep.subr.bf16.mxu0 0
      %1657 = vmatpush1.bf16.xpose.msra.mxu0 0
      %1658 = vmatprep.subr.bf16.mxu0 0
      %1659 = vmatpush1.bf16.xpose.msra.mxu0 0
      %1660 = vmatprep.subr.bf16.mxu0 0
      %1661 = vmatpush1.bf16.xpose.msra.mxu0 0
      %1662 = vmatprep.subr.bf16.mxu0 0
      %1663 = vmatpush1.bf16.xpose.msra.mxu0 0
      %1664 = vmatprep.subr.bf16.mxu0 0
      %1665 = vmatpush1.bf16.xpose.msra.mxu0 0
      %1666 = vmatprep.subr.bf16.mxu0 0
      %1667 = vmatpush1.bf16.xpose.msra.mxu0 0
      %1668 = vmatprep.subr.bf16.mxu0 0
      %1669 = vmatpush1.bf16.xpose.msra.mxu0 0
      %1670 = vmatprep.subr.bf16.mxu0 0
      %1671 = vmatpush1.bf16.xpose.msra.mxu0 %v1654
      %1672 = vmatprep.subr.bf16.mxu0 0
      %1673 = vmatpush2.bf16.xpose.msra.mxu0 0
      %1674 = vmatprep.subr.bf16.mxu0 0
      %1675 = vmatpush2.bf16.xpose.msra.mxu0 0
      %1676 = vmatprep.subr.bf16.mxu0 0
      %1677 = vmatpush2.bf16.xpose.msra.mxu0 0
      %1678 = vmatprep.subr.bf16.mxu0 0
      %1679 = vmatpush2.bf16.xpose.msra.mxu0 0
      %1680 = vmatprep.subr.bf16.mxu0 0
      %1681 = vmatpush2.bf16.xpose.msra.mxu0 0
      %1682 = vmatprep.subr.bf16.mxu0 0
      %1683 = vmatpush2.bf16.xpose.msra.mxu0 0
      %1684 = vmatprep.subr.bf16.mxu0 0
      %1685 = vmatpush2.bf16.xpose.msra.mxu0 0
      %1686 = vmatprep.subr.bf16.mxu0 0
      %1687 = vmatpush2.bf16.xpose.msra.mxu0 0
      %1688 = vmatprep.mubr.bf16.mxu0 0
      %1689 = vmatmul.mubr.bf16.gmra.mxu0 %v1651
      %v1690 = vpop.f32.mrf.mxu0
      %v1691 = vadd.f32 0.0, %v1690
      %v1692 = vpop.f32.mrf.mxu0
      %v1693 = vpop.f32.mrf.mxu0
      %v1694 = vadd.f32 0.0, %v1693
      %v1695 = vpop.f32.mrf.mxu0
      %1696 = vdwg.mxu0
      %1697 = vrot.lane.b32.xlu0 %v566, 112
      %v1698 = vpop.permute.xlu0 %1697
      %1699 = vrot.lane.b32.xlu0 %v566, 80
      %v1700 = vpop.permute.xlu0 %1699
      %v1702 = vsel %vm571, %v1698, 0
      %v1705 = vsel %vm571, %v1700, 0
      %1707 = vmatprep.subr.bf16.mxu0 0
      %1708 = vmatpush1.bf16.xpose.msra.mxu0 0
      %1709 = vmatprep.subr.bf16.mxu0 0
      %1710 = vmatpush1.bf16.xpose.msra.mxu0 0
      %1711 = vmatprep.subr.bf16.mxu0 0
      %1712 = vmatpush1.bf16.xpose.msra.mxu0 0
      %1713 = vmatprep.subr.bf16.mxu0 0
      %1714 = vmatpush1.bf16.xpose.msra.mxu0 0
      %1715 = vmatprep.subr.bf16.mxu0 0
      %1716 = vmatpush1.bf16.xpose.msra.mxu0 0
      %1717 = vmatprep.subr.bf16.mxu0 0
      %1718 = vmatpush1.bf16.xpose.msra.mxu0 0
      %1719 = vmatprep.subr.bf16.mxu0 0
      %1720 = vmatpush1.bf16.xpose.msra.mxu0 0
      %1721 = vmatprep.subr.bf16.mxu0 0
      %1722 = vmatpush1.bf16.xpose.msra.mxu0 %v1705
      %1723 = vmatprep.subr.bf16.mxu0 0
      %1724 = vmatpush2.bf16.xpose.msra.mxu0 0
      %1725 = vmatprep.subr.bf16.mxu0 0
      %1726 = vmatpush2.bf16.xpose.msra.mxu0 0
      %1727 = vmatprep.subr.bf16.mxu0 0
      %1728 = vmatpush2.bf16.xpose.msra.mxu0 0
      %1729 = vmatprep.subr.bf16.mxu0 0
      %1730 = vmatpush2.bf16.xpose.msra.mxu0 0
      %1731 = vmatprep.subr.bf16.mxu0 0
      %1732 = vmatpush2.bf16.xpose.msra.mxu0 0
      %1733 = vmatprep.subr.bf16.mxu0 0
      %1734 = vmatpush2.bf16.xpose.msra.mxu0 0
      %1735 = vmatprep.subr.bf16.mxu0 0
      %1736 = vmatpush2.bf16.xpose.msra.mxu0 0
      %1737 = vmatprep.subr.bf16.mxu0 0
      %1738 = vmatpush2.bf16.xpose.msra.mxu0 0
      %1739 = vmatprep.mubr.bf16.mxu0 0
      %1740 = vmatmul.mubr.bf16.gmra.mxu0 %v1702
      %v1741 = vpop.f32.mrf.mxu0
      %v1742 = vadd.f32 0.0, %v1741
      %v1743 = vpop.f32.mrf.mxu0
      %v1744 = vpop.f32.mrf.mxu0
      %v1745 = vadd.f32 0.0, %v1744
      %v1746 = vpop.f32.mrf.mxu0
      %1747 = vdwg.mxu0
      %1748 = vrot.lane.b32.xlu0 %v567, 112
      %v1749 = vpop.permute.xlu0 %1748
      %1750 = vrot.lane.b32.xlu0 %v567, 80
      %v1751 = vpop.permute.xlu0 %1750
      %v1753 = vsel %vm571, %v1749, 0
      %v1756 = vsel %vm571, %v1751, 0
      %1758 = vmatprep.subr.bf16.mxu0 0
      %1759 = vmatpush1.bf16.xpose.msra.mxu0 0
      %1760 = vmatprep.subr.bf16.mxu0 0
      %1761 = vmatpush1.bf16.xpose.msra.mxu0 0
      %1762 = vmatprep.subr.bf16.mxu0 0
      %1763 = vmatpush1.bf16.xpose.msra.mxu0 0
      %1764 = vmatprep.subr.bf16.mxu0 0
      %1765 = vmatpush1.bf16.xpose.msra.mxu0 0
      %1766 = vmatprep.subr.bf16.mxu0 0
      %1767 = vmatpush1.bf16.xpose.msra.mxu0 0
      %1768 = vmatprep.subr.bf16.mxu0 0
      %1769 = vmatpush1.bf16.xpose.msra.mxu0 0
      %1770 = vmatprep.subr.bf16.mxu0 0
      %1771 = vmatpush1.bf16.xpose.msra.mxu0 0
      %1772 = vmatprep.subr.bf16.mxu0 0
      %1773 = vmatpush1.bf16.xpose.msra.mxu0 %v1756
      %1774 = vmatprep.subr.bf16.mxu0 0
      %1775 = vmatpush2.bf16.xpose.msra.mxu0 0
      %1776 = vmatprep.subr.bf16.mxu0 0
      %1777 = vmatpush2.bf16.xpose.msra.mxu0 0
      %1778 = vmatprep.subr.bf16.mxu0 0
      %1779 = vmatpush2.bf16.xpose.msra.mxu0 0
      %1780 = vmatprep.subr.bf16.mxu0 0
      %1781 = vmatpush2.bf16.xpose.msra.mxu0 0
      %1782 = vmatprep.subr.bf16.mxu0 0
      %1783 = vmatpush2.bf16.xpose.msra.mxu0 0
      %1784 = vmatprep.subr.bf16.mxu0 0
      %1785 = vmatpush2.bf16.xpose.msra.mxu0 0
      %1786 = vmatprep.subr.bf16.mxu0 0
      %1787 = vmatpush2.bf16.xpose.msra.mxu0 0
      %1788 = vmatprep.subr.bf16.mxu0 0
      %1789 = vmatpush2.bf16.xpose.msra.mxu0 0
      %1790 = vmatprep.mubr.bf16.mxu0 0
      %1791 = vmatmul.mubr.bf16.gmra.mxu0 %v1753
      %v1792 = vpop.f32.mrf.mxu0
      %v1793 = vadd.f32 0.0, %v1792
      %v1794 = vpop.f32.mrf.mxu0
      %v1795 = vpop.f32.mrf.mxu0
      %v1796 = vadd.f32 0.0, %v1795
      %v1797 = vpop.f32.mrf.mxu0
      %1798 = vdwg.mxu0
      %v1799 = vmul.f32 %v1640, 0.35355338
      %v1800 = vmul.f32 %v1643, 0.35355338
      %v1801 = vmul.f32 %v1691, 0.35355338
      %v1802 = vmul.f32 %v1694, 0.35355338
      %v1803 = vmul.f32 %v1742, 0.35355338
      %v1804 = vmul.f32 %v1745, 0.35355338
      %v1805 = vmul.f32 %v1793, 0.35355338
      %v1806 = vmul.f32 %v1796, 0.35355338
      %s1807 = scalar_lea.vmem %s4, 32
      %v1808 = vld [vmem:[%s1807] sm:$0xff]
      %v1809 = vld [vmem:[%s1807 + $0x8] sm:$0xff]
      %v1810 = vadd.f32 %v1799, %v1808
      %v1811 = vadd.f32 %v1800, %v1809
      %v1812 = vadd.f32 %v1801, %v1808
      %v1813 = vadd.f32 %v1802, %v1809
      %v1814 = vadd.f32 %v1803, %v1808
      %v1815 = vadd.f32 %v1804, %v1809
      %v1816 = vadd.f32 %v1805, %v1808
      %v1817 = vadd.f32 %v1806, %v1809
      %v1818 = vadd.f32 %v1810, %v556
      %v1819 = vadd.f32 %v1811, %v557
      %v1820 = vadd.f32 %v1812, %v558
      %v1821 = vadd.f32 %v1813, %v559
      %v1822 = vadd.f32 %v1814, %v560
      %v1823 = vadd.f32 %v1815, %v561
      %v1824 = vadd.f32 %v1816, %v562
      %v1825 = vadd.f32 %v1817, %v563
      %v1826 = vsel %vm795, %v1818, -inf
      %1827 = vmax.xlane.f32.xlu0 %v1826
      %v1828 = vpop.xlane.xlu0 %1827
      %v1829 = vsel %vm795, %v1819, -inf
      %1830 = vmax.xlane.f32.xlu0 %v1829
      %v1831 = vpop.xlane.xlu0 %1830
      %v1832 = vsel %vm795, %v1820, -inf
      %1833 = vmax.xlane.f32.xlu0 %v1832
      %v1834 = vpop.xlane.xlu0 %1833
      %v1835 = vsel %vm795, %v1821, -inf
      %1836 = vmax.xlane.f32.xlu0 %v1835
      %v1837 = vpop.xlane.xlu0 %1836
      %v1838 = vsel %vm795, %v1822, -inf
      %1839 = vmax.xlane.f32.xlu0 %v1838
      %v1840 = vpop.xlane.xlu0 %1839
      %v1841 = vsel %vm795, %v1823, -inf
      %1842 = vmax.xlane.f32.xlu0 %v1841
      %v1843 = vpop.xlane.xlu0 %1842
      %v1844 = vsel %vm795, %v1824, -inf
      %1845 = vmax.xlane.f32.xlu0 %v1844
      %v1846 = vpop.xlane.xlu0 %1845
      %v1847 = vsel %vm795, %v1825, -inf
      %1848 = vmax.xlane.f32.xlu0 %v1847
      %v1849 = vpop.xlane.xlu0 %1848
      %v1850 = vsub.f32 %v1818, %v1828
      %v1851 = vsub.f32 %v1819, %v1831
      %v1852 = vsub.f32 %v1820, %v1834
      %v1853 = vsub.f32 %v1821, %v1837
      %v1854 = vsub.f32 %v1822, %v1840
      %v1855 = vsub.f32 %v1823, %v1843
      %v1856 = vsub.f32 %v1824, %v1846
      %v1857 = vsub.f32 %v1825, %v1849
      %v1858 = vmul.f32 %v1850, 1.442695
      %v1859 = vpow.pop %v1858
      %v1860 = vmul.f32 %v1851, 1.442695
      %v1861 = vpow.pop %v1860
      %v1862 = vmul.f32 %v1852, 1.442695
      %v1863 = vpow.pop %v1862
      %v1864 = vmul.f32 %v1853, 1.442695
      %v1865 = vpow.pop %v1864
      %v1866 = vmul.f32 %v1854, 1.442695
      %v1867 = vpow.pop %v1866
      %v1868 = vmul.f32 %v1855, 1.442695
      %v1869 = vpow.pop %v1868
      %v1870 = vmul.f32 %v1856, 1.442695
      %v1871 = vpow.pop %v1870
      %v1872 = vmul.f32 %v1857, 1.442695
      %v1873 = vpow.pop %v1872
      %v1874 = vsel %vm795, %v1859, 0.0
      %1875 = vadd.xlane.f32.xlu0 %v1874
      %v1876 = vpop.xlane.xlu0 %1875
      %v1877 = vsel %vm795, %v1861, 0.0
      %1878 = vadd.xlane.f32.xlu0 %v1877
      %v1879 = vpop.xlane.xlu0 %1878
      %v1880 = vsel %vm795, %v1863, 0.0
      %1881 = vadd.xlane.f32.xlu0 %v1880
      %v1882 = vpop.xlane.xlu0 %1881
      %v1883 = vsel %vm795, %v1865, 0.0
      %1884 = vadd.xlane.f32.xlu0 %v1883
      %v1885 = vpop.xlane.xlu0 %1884
      %v1886 = vsel %vm795, %v1867, 0.0
      %1887 = vadd.xlane.f32.xlu0 %v1886
      %v1888 = vpop.xlane.xlu0 %1887
      %v1889 = vsel %vm795, %v1869, 0.0
      %1890 = vadd.xlane.f32.xlu0 %v1889
      %v1891 = vpop.xlane.xlu0 %1890
      %v1892 = vsel %vm795, %v1871, 0.0
      %1893 = vadd.xlane.f32.xlu0 %v1892
      %v1894 = vpop.xlane.xlu0 %1893
      %v1895 = vsel %vm795, %v1873, 0.0
      %1896 = vadd.xlane.f32.xlu0 %v1895
      %v1897 = vpop.xlane.xlu0 %1896
      %v1898 = vrcp.pop %v1876
      %v1899 = vrcp.pop %v1879
      %v1900 = vrcp.pop %v1882
      %v1901 = vrcp.pop %v1885
      %v1902 = vrcp.pop %v1888
      %v1903 = vrcp.pop %v1891
      %v1904 = vrcp.pop %v1894
      %v1905 = vrcp.pop %v1897
      %v1906 = vmul.f32 %v1859, %v1898
      %v1907 = vmul.f32 %v1861, %v1899
      %v1908 = vmul.f32 %v1863, %v1900
      %v1909 = vmul.f32 %v1865, %v1901
      %v1910 = vmul.f32 %v1867, %v1902
      %v1911 = vmul.f32 %v1869, %v1903
      %v1912 = vmul.f32 %v1871, %v1904
      %v1913 = vmul.f32 %v1873, %v1905
      %v1914 = vpack.c.bf16 %v1907, %v1906
      %v1915 = vpack.c.bf16 %v1909, %v1908
      %v1916 = vpack.c.bf16 %v1911, %v1910
      %v1917 = vpack.c.bf16 %v1913, %v1912
      %1918 = vrot.lane.b32.xlu0 %v564, 48
      %v1919 = vpop.permute.xlu0 %1918
      %v1922 = vsel %vm795, %v1914, 0
      %1924 = vmatprep.subr.bf16.mxu0 0
      %1925 = vmatpush1.bf16.msra.mxu0 0
      %1926 = vmatprep.subr.bf16.mxu0 0
      %1927 = vmatpush1.bf16.msra.mxu0 0
      %1928 = vmatprep.subr.bf16.mxu0 0
      %1929 = vmatpush1.bf16.msra.mxu0 0
      %1930 = vmatprep.subr.bf16.mxu0 0
      %1931 = vmatpush1.bf16.msra.mxu0 0
      %1932 = vmatprep.subr.bf16.mxu0 0
      %1933 = vmatpush1.bf16.msra.mxu0 0
      %1934 = vmatprep.subr.bf16.mxu0 0
      %1935 = vmatpush1.bf16.msra.mxu0 0
      %1936 = vmatprep.subr.bf16.mxu0 0
      %1937 = vmatpush1.bf16.msra.mxu0 0
      %1938 = vmatprep.subr.bf16.mxu0 0
      %1939 = vmatpush1.bf16.msra.mxu0 %v1919
      %1940 = vmatprep.subr.bf16.mxu0 0
      %1941 = vmatpush2.bf16.msra.mxu0 0
      %1942 = vmatprep.subr.bf16.mxu0 0
      %1943 = vmatpush2.bf16.msra.mxu0 0
      %1944 = vmatprep.subr.bf16.mxu0 0
      %1945 = vmatpush2.bf16.msra.mxu0 0
      %1946 = vmatprep.subr.bf16.mxu0 0
      %1947 = vmatpush2.bf16.msra.mxu0 0
      %1948 = vmatprep.subr.bf16.mxu0 0
      %1949 = vmatpush2.bf16.msra.mxu0 0
      %1950 = vmatprep.subr.bf16.mxu0 0
      %1951 = vmatpush2.bf16.msra.mxu0 0
      %1952 = vmatprep.subr.bf16.mxu0 0
      %1953 = vmatpush2.bf16.msra.mxu0 0
      %1954 = vmatprep.subr.bf16.mxu0 0
      %1955 = vmatpush2.bf16.msra.mxu0 0
      %1956 = vmatprep.mubr.bf16.mxu0 0
      %1957 = vmatmul.mubr.bf16.gmra.mxu0 %v1922
      %v1958 = vpop.f32.mrf.mxu0
      %v1959 = vadd.f32 0.0, %v1958
      %v1960 = vpop.f32.mrf.mxu0
      %v1961 = vpop.f32.mrf.mxu0
      %v1962 = vadd.f32 0.0, %v1961
      %v1963 = vpop.f32.mrf.mxu0
      %1964 = vdwg.mxu0
      %1965 = vrot.lane.b32.xlu0 %v565, 48
      %v1966 = vpop.permute.xlu0 %1965
      %v1969 = vsel %vm795, %v1915, 0
      %1971 = vmatprep.subr.bf16.mxu0 0
      %1972 = vmatpush1.bf16.msra.mxu0 0
      %1973 = vmatprep.subr.bf16.mxu0 0
      %1974 = vmatpush1.bf16.msra.mxu0 0
      %1975 = vmatprep.subr.bf16.mxu0 0
      %1976 = vmatpush1.bf16.msra.mxu0 0
      %1977 = vmatprep.subr.bf16.mxu0 0
      %1978 = vmatpush1.bf16.msra.mxu0 0
      %1979 = vmatprep.subr.bf16.mxu0 0
      %1980 = vmatpush1.bf16.msra.mxu0 0
      %1981 = vmatprep.subr.bf16.mxu0 0
      %1982 = vmatpush1.bf16.msra.mxu0 0
      %1983 = vmatprep.subr.bf16.mxu0 0
      %1984 = vmatpush1.bf16.msra.mxu0 0
      %1985 = vmatprep.subr.bf16.mxu0 0
      %1986 = vmatpush1.bf16.msra.mxu0 %v1966
      %1987 = vmatprep.subr.bf16.mxu0 0
      %1988 = vmatpush2.bf16.msra.mxu0 0
      %1989 = vmatprep.subr.bf16.mxu0 0
      %1990 = vmatpush2.bf16.msra.mxu0 0
      %1991 = vmatprep.subr.bf16.mxu0 0
      %1992 = vmatpush2.bf16.msra.mxu0 0
      %1993 = vmatprep.subr.bf16.mxu0 0
      %1994 = vmatpush2.bf16.msra.mxu0 0
      %1995 = vmatprep.subr.bf16.mxu0 0
      %1996 = vmatpush2.bf16.msra.mxu0 0
      %1997 = vmatprep.subr.bf16.mxu0 0
      %1998 = vmatpush2.bf16.msra.mxu0 0
      %1999 = vmatprep.subr.bf16.mxu0 0
      %2000 = vmatpush2.bf16.msra.mxu0 0
      %2001 = vmatprep.subr.bf16.mxu0 0
      %2002 = vmatpush2.bf16.msra.mxu0 0
      %2003 = vmatprep.mubr.bf16.mxu0 0
      %2004 = vmatmul.mubr.bf16.gmra.mxu0 %v1969
      %v2005 = vpop.f32.mrf.mxu0
      %v2006 = vadd.f32 0.0, %v2005
      %v2007 = vpop.f32.mrf.mxu0
      %v2008 = vpop.f32.mrf.mxu0
      %v2009 = vadd.f32 0.0, %v2008
      %v2010 = vpop.f32.mrf.mxu0
      %2011 = vdwg.mxu0
      %2012 = vrot.lane.b32.xlu0 %v566, 48
      %v2013 = vpop.permute.xlu0 %2012
      %v2016 = vsel %vm795, %v1916, 0
      %2018 = vmatprep.subr.bf16.mxu0 0
      %2019 = vmatpush1.bf16.msra.mxu0 0
      %2020 = vmatprep.subr.bf16.mxu0 0
      %2021 = vmatpush1.bf16.msra.mxu0 0
      %2022 = vmatprep.subr.bf16.mxu0 0
      %2023 = vmatpush1.bf16.msra.mxu0 0
      %2024 = vmatprep.subr.bf16.mxu0 0
      %2025 = vmatpush1.bf16.msra.mxu0 0
      %2026 = vmatprep.subr.bf16.mxu0 0
      %2027 = vmatpush1.bf16.msra.mxu0 0
      %2028 = vmatprep.subr.bf16.mxu0 0
      %2029 = vmatpush1.bf16.msra.mxu0 0
      %2030 = vmatprep.subr.bf16.mxu0 0
      %2031 = vmatpush1.bf16.msra.mxu0 0
      %2032 = vmatprep.subr.bf16.mxu0 0
      %2033 = vmatpush1.bf16.msra.mxu0 %v2013
      %2034 = vmatprep.subr.bf16.mxu0 0
      %2035 = vmatpush2.bf16.msra.mxu0 0
      %2036 = vmatprep.subr.bf16.mxu0 0
      %2037 = vmatpush2.bf16.msra.mxu0 0
      %2038 = vmatprep.subr.bf16.mxu0 0
      %2039 = vmatpush2.bf16.msra.mxu0 0
      %2040 = vmatprep.subr.bf16.mxu0 0
      %2041 = vmatpush2.bf16.msra.mxu0 0
      %2042 = vmatprep.subr.bf16.mxu0 0
      %2043 = vmatpush2.bf16.msra.mxu0 0
      %2044 = vmatprep.subr.bf16.mxu0 0
      %2045 = vmatpush2.bf16.msra.mxu0 0
      %2046 = vmatprep.subr.bf16.mxu0 0
      %2047 = vmatpush2.bf16.msra.mxu0 0
      %2048 = vmatprep.subr.bf16.mxu0 0
      %2049 = vmatpush2.bf16.msra.mxu0 0
      %2050 = vmatprep.mubr.bf16.mxu0 0
      %2051 = vmatmul.mubr.bf16.gmra.mxu0 %v2016
      %v2052 = vpop.f32.mrf.mxu0
      %v2053 = vadd.f32 0.0, %v2052
      %v2054 = vpop.f32.mrf.mxu0
      %v2055 = vpop.f32.mrf.mxu0
      %v2056 = vadd.f32 0.0, %v2055
      %v2057 = vpop.f32.mrf.mxu0
      %2058 = vdwg.mxu0
      %2059 = vrot.lane.b32.xlu0 %v567, 48
      %v2060 = vpop.permute.xlu0 %2059
      %v2063 = vsel %vm795, %v1917, 0
      %2065 = vmatprep.subr.bf16.mxu0 0
      %2066 = vmatpush1.bf16.msra.mxu0 0
      %2067 = vmatprep.subr.bf16.mxu0 0
      %2068 = vmatpush1.bf16.msra.mxu0 0
      %2069 = vmatprep.subr.bf16.mxu0 0
      %2070 = vmatpush1.bf16.msra.mxu0 0
      %2071 = vmatprep.subr.bf16.mxu0 0
      %2072 = vmatpush1.bf16.msra.mxu0 0
      %2073 = vmatprep.subr.bf16.mxu0 0
      %2074 = vmatpush1.bf16.msra.mxu0 0
      %2075 = vmatprep.subr.bf16.mxu0 0
      %2076 = vmatpush1.bf16.msra.mxu0 0
      %2077 = vmatprep.subr.bf16.mxu0 0
      %2078 = vmatpush1.bf16.msra.mxu0 0
      %2079 = vmatprep.subr.bf16.mxu0 0
      %2080 = vmatpush1.bf16.msra.mxu0 %v2060
      %2081 = vmatprep.subr.bf16.mxu0 0
      %2082 = vmatpush2.bf16.msra.mxu0 0
      %2083 = vmatprep.subr.bf16.mxu0 0
      %2084 = vmatpush2.bf16.msra.mxu0 0
      %2085 = vmatprep.subr.bf16.mxu0 0
      %2086 = vmatpush2.bf16.msra.mxu0 0
      %2087 = vmatprep.subr.bf16.mxu0 0
      %2088 = vmatpush2.bf16.msra.mxu0 0
      %2089 = vmatprep.subr.bf16.mxu0 0
      %2090 = vmatpush2.bf16.msra.mxu0 0
      %2091 = vmatprep.subr.bf16.mxu0 0
      %2092 = vmatpush2.bf16.msra.mxu0 0
      %2093 = vmatprep.subr.bf16.mxu0 0
      %2094 = vmatpush2.bf16.msra.mxu0 0
      %2095 = vmatprep.subr.bf16.mxu0 0
      %2096 = vmatpush2.bf16.msra.mxu0 0
      %2097 = vmatprep.mubr.bf16.mxu0 0
      %2098 = vmatmul.mubr.bf16.gmra.mxu0 %v2063
      %v2099 = vpop.f32.mrf.mxu0
      %v2100 = vadd.f32 0.0, %v2099
      %v2101 = vpop.f32.mrf.mxu0
      %v2102 = vpop.f32.mrf.mxu0
      %v2103 = vadd.f32 0.0, %v2102
      %v2104 = vpop.f32.mrf.mxu0
      %2105 = vdwg.mxu0
      %v2106 = vpack.c.bf16 %v1962, %v1959
      %v2107 = vpack.c.bf16 %v2009, %v2006
      %v2108 = vpack.c.bf16 %v2056, %v2053
      %v2109 = vpack.c.bf16 %v2103, %v2100
      %2110 = vrot.lane.b32.xlu0 %v564, 104
      %v2111 = vpop.permute.xlu0 %2110
      %2112 = vrot.lane.b32.xlu0 %v564, 72
      %v2113 = vpop.permute.xlu0 %2112
      %v2115 = vsel %vm571, %v2111, 0
      %v2118 = vsel %vm571, %v2113, 0
      %2120 = vmatprep.subr.bf16.mxu0 0
      %2121 = vmatpush1.bf16.xpose.msra.mxu0 0
      %2122 = vmatprep.subr.bf16.mxu0 0
      %2123 = vmatpush1.bf16.xpose.msra.mxu0 0
      %2124 = vmatprep.subr.bf16.mxu0 0
      %2125 = vmatpush1.bf16.xpose.msra.mxu0 0
      %2126 = vmatprep.subr.bf16.mxu0 0
      %2127 = vmatpush1.bf16.xpose.msra.mxu0 0
      %2128 = vmatprep.subr.bf16.mxu0 0
      %2129 = vmatpush1.bf16.xpose.msra.mxu0 0
      %2130 = vmatprep.subr.bf16.mxu0 0
      %2131 = vmatpush1.bf16.xpose.msra.mxu0 0
      %2132 = vmatprep.subr.bf16.mxu0 0
      %2133 = vmatpush1.bf16.xpose.msra.mxu0 0
      %2134 = vmatprep.subr.bf16.mxu0 0
      %2135 = vmatpush1.bf16.xpose.msra.mxu0 %v2118
      %2136 = vmatprep.subr.bf16.mxu0 0
      %2137 = vmatpush2.bf16.xpose.msra.mxu0 0
      %2138 = vmatprep.subr.bf16.mxu0 0
      %2139 = vmatpush2.bf16.xpose.msra.mxu0 0
      %2140 = vmatprep.subr.bf16.mxu0 0
      %2141 = vmatpush2.bf16.xpose.msra.mxu0 0
      %2142 = vmatprep.subr.bf16.mxu0 0
      %2143 = vmatpush2.bf16.xpose.msra.mxu0 0
      %2144 = vmatprep.subr.bf16.mxu0 0
      %2145 = vmatpush2.bf16.xpose.msra.mxu0 0
      %2146 = vmatprep.subr.bf16.mxu0 0
      %2147 = vmatpush2.bf16.xpose.msra.mxu0 0
      %2148 = vmatprep.subr.bf16.mxu0 0
      %2149 = vmatpush2.bf16.xpose.msra.mxu0 0
      %2150 = vmatprep.subr.bf16.mxu0 0
      %2151 = vmatpush2.bf16.xpose.msra.mxu0 0
      %2152 = vmatprep.mubr.bf16.mxu0 0
      %2153 = vmatmul.mubr.bf16.gmra.mxu0 %v2115
      %v2154 = vpop.f32.mrf.mxu0
      %v2155 = vadd.f32 0.0, %v2154
      %v2156 = vpop.f32.mrf.mxu0
      %v2157 = vpop.f32.mrf.mxu0
      %v2158 = vadd.f32 0.0, %v2157
      %v2159 = vpop.f32.mrf.mxu0
      %2160 = vdwg.mxu0
      %2161 = vrot.lane.b32.xlu0 %v565, 104
      %v2162 = vpop.permute.xlu0 %2161
      %2163 = vrot.lane.b32.xlu0 %v565, 72
      %v2164 = vpop.permute.xlu0 %2163
      %v2166 = vsel %vm571, %v2162, 0
      %v2169 = vsel %vm571, %v2164, 0
      %2171 = vmatprep.subr.bf16.mxu0 0
      %2172 = vmatpush1.bf16.xpose.msra.mxu0 0
      %2173 = vmatprep.subr.bf16.mxu0 0
      %2174 = vmatpush1.bf16.xpose.msra.mxu0 0
      %2175 = vmatprep.subr.bf16.mxu0 0
      %2176 = vmatpush1.bf16.xpose.msra.mxu0 0
      %2177 = vmatprep.subr.bf16.mxu0 0
      %2178 = vmatpush1.bf16.xpose.msra.mxu0 0
      %2179 = vmatprep.subr.bf16.mxu0 0
      %2180 = vmatpush1.bf16.xpose.msra.mxu0 0
      %2181 = vmatprep.subr.bf16.mxu0 0
      %2182 = vmatpush1.bf16.xpose.msra.mxu0 0
      %2183 = vmatprep.subr.bf16.mxu0 0
      %2184 = vmatpush1.bf16.xpose.msra.mxu0 0
      %2185 = vmatprep.subr.bf16.mxu0 0
      %2186 = vmatpush1.bf16.xpose.msra.mxu0 %v2169
      %2187 = vmatprep.subr.bf16.mxu0 0
      %2188 = vmatpush2.bf16.xpose.msra.mxu0 0
      %2189 = vmatprep.subr.bf16.mxu0 0
      %2190 = vmatpush2.bf16.xpose.msra.mxu0 0
      %2191 = vmatprep.subr.bf16.mxu0 0
      %2192 = vmatpush2.bf16.xpose.msra.mxu0 0
      %2193 = vmatprep.subr.bf16.mxu0 0
      %2194 = vmatpush2.bf16.xpose.msra.mxu0 0
      %2195 = vmatprep.subr.bf16.mxu0 0
      %2196 = vmatpush2.bf16.xpose.msra.mxu0 0
      %2197 = vmatprep.subr.bf16.mxu0 0
      %2198 = vmatpush2.bf16.xpose.msra.mxu0 0
      %2199 = vmatprep.subr.bf16.mxu0 0
      %2200 = vmatpush2.bf16.xpose.msra.mxu0 0
      %2201 = vmatprep.subr.bf16.mxu0 0
      %2202 = vmatpush2.bf16.xpose.msra.mxu0 0
      %2203 = vmatprep.mubr.bf16.mxu0 0
      %2204 = vmatmul.mubr.bf16.gmra.mxu0 %v2166
      %v2205 = vpop.f32.mrf.mxu0
      %v2206 = vadd.f32 0.0, %v2205
      %v2207 = vpop.f32.mrf.mxu0
      %v2208 = vpop.f32.mrf.mxu0
      %v2209 = vadd.f32 0.0, %v2208
      %v2210 = vpop.f32.mrf.mxu0
      %2211 = vdwg.mxu0
      %2212 = vrot.lane.b32.xlu0 %v566, 104
      %v2213 = vpop.permute.xlu0 %2212
      %2214 = vrot.lane.b32.xlu0 %v566, 72
      %v2215 = vpop.permute.xlu0 %2214
      %v2217 = vsel %vm571, %v2213, 0
      %v2220 = vsel %vm571, %v2215, 0
      %2222 = vmatprep.subr.bf16.mxu0 0
      %2223 = vmatpush1.bf16.xpose.msra.mxu0 0
      %2224 = vmatprep.subr.bf16.mxu0 0
      %2225 = vmatpush1.bf16.xpose.msra.mxu0 0
      %2226 = vmatprep.subr.bf16.mxu0 0
      %2227 = vmatpush1.bf16.xpose.msra.mxu0 0
      %2228 = vmatprep.subr.bf16.mxu0 0
      %2229 = vmatpush1.bf16.xpose.msra.mxu0 0
      %2230 = vmatprep.subr.bf16.mxu0 0
      %2231 = vmatpush1.bf16.xpose.msra.mxu0 0
      %2232 = vmatprep.subr.bf16.mxu0 0
      %2233 = vmatpush1.bf16.xpose.msra.mxu0 0
      %2234 = vmatprep.subr.bf16.mxu0 0
      %2235 = vmatpush1.bf16.xpose.msra.mxu0 0
      %2236 = vmatprep.subr.bf16.mxu0 0
      %2237 = vmatpush1.bf16.xpose.msra.mxu0 %v2220
      %2238 = vmatprep.subr.bf16.mxu0 0
      %2239 = vmatpush2.bf16.xpose.msra.mxu0 0
      %2240 = vmatprep.subr.bf16.mxu0 0
      %2241 = vmatpush2.bf16.xpose.msra.mxu0 0
      %2242 = vmatprep.subr.bf16.mxu0 0
      %2243 = vmatpush2.bf16.xpose.msra.mxu0 0
      %2244 = vmatprep.subr.bf16.mxu0 0
      %2245 = vmatpush2.bf16.xpose.msra.mxu0 0
      %2246 = vmatprep.subr.bf16.mxu0 0
      %2247 = vmatpush2.bf16.xpose.msra.mxu0 0
      %2248 = vmatprep.subr.bf16.mxu0 0
      %2249 = vmatpush2.bf16.xpose.msra.mxu0 0
      %2250 = vmatprep.subr.bf16.mxu0 0
      %2251 = vmatpush2.bf16.xpose.msra.mxu0 0
      %2252 = vmatprep.subr.bf16.mxu0 0
      %2253 = vmatpush2.bf16.xpose.msra.mxu0 0
      %2254 = vmatprep.mubr.bf16.mxu0 0
      %2255 = vmatmul.mubr.bf16.gmra.mxu0 %v2217
      %v2256 = vpop.f32.mrf.mxu0
      %v2257 = vadd.f32 0.0, %v2256
      %v2258 = vpop.f32.mrf.mxu0
      %v2259 = vpop.f32.mrf.mxu0
      %v2260 = vadd.f32 0.0, %v2259
      %v2261 = vpop.f32.mrf.mxu0
      %2262 = vdwg.mxu0
      %2263 = vrot.lane.b32.xlu0 %v567, 104
      %v2264 = vpop.permute.xlu0 %2263
      %2265 = vrot.lane.b32.xlu0 %v567, 72
      %v2266 = vpop.permute.xlu0 %2265
      %v2268 = vsel %vm571, %v2264, 0
      %v2271 = vsel %vm571, %v2266, 0
      %2273 = vmatprep.subr.bf16.mxu0 0
      %2274 = vmatpush1.bf16.xpose.msra.mxu0 0
      %2275 = vmatprep.subr.bf16.mxu0 0
      %2276 = vmatpush1.bf16.xpose.msra.mxu0 0
      %2277 = vmatprep.subr.bf16.mxu0 0
      %2278 = vmatpush1.bf16.xpose.msra.mxu0 0
      %2279 = vmatprep.subr.bf16.mxu0 0
      %2280 = vmatpush1.bf16.xpose.msra.mxu0 0
      %2281 = vmatprep.subr.bf16.mxu0 0
      %2282 = vmatpush1.bf16.xpose.msra.mxu0 0
      %2283 = vmatprep.subr.bf16.mxu0 0
      %2284 = vmatpush1.bf16.xpose.msra.mxu0 0
      %2285 = vmatprep.subr.bf16.mxu0 0
      %2286 = vmatpush1.bf16.xpose.msra.mxu0 0
      %2287 = vmatprep.subr.bf16.mxu0 0
      %2288 = vmatpush1.bf16.xpose.msra.mxu0 %v2271
      %2289 = vmatprep.subr.bf16.mxu0 0
      %2290 = vmatpush2.bf16.xpose.msra.mxu0 0
      %2291 = vmatprep.subr.bf16.mxu0 0
      %2292 = vmatpush2.bf16.xpose.msra.mxu0 0
      %2293 = vmatprep.subr.bf16.mxu0 0
      %2294 = vmatpush2.bf16.xpose.msra.mxu0 0
      %2295 = vmatprep.subr.bf16.mxu0 0
      %2296 = vmatpush2.bf16.xpose.msra.mxu0 0
      %2297 = vmatprep.subr.bf16.mxu0 0
      %2298 = vmatpush2.bf16.xpose.msra.mxu0 0
      %2299 = vmatprep.subr.bf16.mxu0 0
      %2300 = vmatpush2.bf16.xpose.msra.mxu0 0
      %2301 = vmatprep.subr.bf16.mxu0 0
      %2302 = vmatpush2.bf16.xpose.msra.mxu0 0
      %2303 = vmatprep.subr.bf16.mxu0 0
      %2304 = vmatpush2.bf16.xpose.msra.mxu0 0
      %2305 = vmatprep.mubr.bf16.mxu0 0
      %2306 = vmatmul.mubr.bf16.gmra.mxu0 %v2268
      %v2307 = vpop.f32.mrf.mxu0
      %v2308 = vadd.f32 0.0, %v2307
      %v2309 = vpop.f32.mrf.mxu0
      %v2310 = vpop.f32.mrf.mxu0
      %v2311 = vadd.f32 0.0, %v2310
      %v2312 = vpop.f32.mrf.mxu0
      %2313 = vdwg.mxu0
      %v2314 = vmul.f32 %v2155, 0.35355338
      %v2315 = vmul.f32 %v2158, 0.35355338
      %v2316 = vmul.f32 %v2206, 0.35355338
      %v2317 = vmul.f32 %v2209, 0.35355338
      %v2318 = vmul.f32 %v2257, 0.35355338
      %v2319 = vmul.f32 %v2260, 0.35355338
      %v2320 = vmul.f32 %v2308, 0.35355338
      %v2321 = vmul.f32 %v2311, 0.35355338
      %s2322 = scalar_lea.vmem %s4, 48
      %v2323 = vld [vmem:[%s2322] sm:$0xff]
      %v2324 = vld [vmem:[%s2322 + $0x8] sm:$0xff]
      %v2325 = vadd.f32 %v2314, %v2323
      %v2326 = vadd.f32 %v2315, %v2324
      %v2327 = vadd.f32 %v2316, %v2323
      %v2328 = vadd.f32 %v2317, %v2324
      %v2329 = vadd.f32 %v2318, %v2323
      %v2330 = vadd.f32 %v2319, %v2324
      %v2331 = vadd.f32 %v2320, %v2323
      %v2332 = vadd.f32 %v2321, %v2324
      %v2333 = vadd.f32 %v2325, %v556
      %v2334 = vadd.f32 %v2326, %v557
      %v2335 = vadd.f32 %v2327, %v558
      %v2336 = vadd.f32 %v2328, %v559
      %v2337 = vadd.f32 %v2329, %v560
      %v2338 = vadd.f32 %v2330, %v561
      %v2339 = vadd.f32 %v2331, %v562
      %v2340 = vadd.f32 %v2332, %v563
      %v2341 = vsel %vm795, %v2333, -inf
      %2342 = vmax.xlane.f32.xlu0 %v2341
      %v2343 = vpop.xlane.xlu0 %2342
      %v2344 = vsel %vm795, %v2334, -inf
      %2345 = vmax.xlane.f32.xlu0 %v2344
      %v2346 = vpop.xlane.xlu0 %2345
      %v2347 = vsel %vm795, %v2335, -inf
      %2348 = vmax.xlane.f32.xlu0 %v2347
      %v2349 = vpop.xlane.xlu0 %2348
      %v2350 = vsel %vm795, %v2336, -inf
      %2351 = vmax.xlane.f32.xlu0 %v2350
      %v2352 = vpop.xlane.xlu0 %2351
      %v2353 = vsel %vm795, %v2337, -inf
      %2354 = vmax.xlane.f32.xlu0 %v2353
      %v2355 = vpop.xlane.xlu0 %2354
      %v2356 = vsel %vm795, %v2338, -inf
      %2357 = vmax.xlane.f32.xlu0 %v2356
      %v2358 = vpop.xlane.xlu0 %2357
      %v2359 = vsel %vm795, %v2339, -inf
      %2360 = vmax.xlane.f32.xlu0 %v2359
      %v2361 = vpop.xlane.xlu0 %2360
      %v2362 = vsel %vm795, %v2340, -inf
      %2363 = vmax.xlane.f32.xlu0 %v2362
      %v2364 = vpop.xlane.xlu0 %2363
      %v2365 = vsub.f32 %v2333, %v2343
      %v2366 = vsub.f32 %v2334, %v2346
      %v2367 = vsub.f32 %v2335, %v2349
      %v2368 = vsub.f32 %v2336, %v2352
      %v2369 = vsub.f32 %v2337, %v2355
      %v2370 = vsub.f32 %v2338, %v2358
      %v2371 = vsub.f32 %v2339, %v2361
      %v2372 = vsub.f32 %v2340, %v2364
      %v2373 = vmul.f32 %v2365, 1.442695
      %v2374 = vpow.pop %v2373
      %v2375 = vmul.f32 %v2366, 1.442695
      %v2376 = vpow.pop %v2375
      %v2377 = vmul.f32 %v2367, 1.442695
      %v2378 = vpow.pop %v2377
      %v2379 = vmul.f32 %v2368, 1.442695
      %v2380 = vpow.pop %v2379
      %v2381 = vmul.f32 %v2369, 1.442695
      %v2382 = vpow.pop %v2381
      %v2383 = vmul.f32 %v2370, 1.442695
      %v2384 = vpow.pop %v2383
      %v2385 = vmul.f32 %v2371, 1.442695
      %v2386 = vpow.pop %v2385
      %v2387 = vmul.f32 %v2372, 1.442695
      %v2388 = vpow.pop %v2387
      %v2389 = vsel %vm795, %v2374, 0.0
      %2390 = vadd.xlane.f32.xlu0 %v2389
      %v2391 = vpop.xlane.xlu0 %2390
      %v2392 = vsel %vm795, %v2376, 0.0
      %2393 = vadd.xlane.f32.xlu0 %v2392
      %v2394 = vpop.xlane.xlu0 %2393
      %v2395 = vsel %vm795, %v2378, 0.0
      %2396 = vadd.xlane.f32.xlu0 %v2395
      %v2397 = vpop.xlane.xlu0 %2396
      %v2398 = vsel %vm795, %v2380, 0.0
      %2399 = vadd.xlane.f32.xlu0 %v2398
      %v2400 = vpop.xlane.xlu0 %2399
      %v2401 = vsel %vm795, %v2382, 0.0
      %2402 = vadd.xlane.f32.xlu0 %v2401
      %v2403 = vpop.xlane.xlu0 %2402
      %v2404 = vsel %vm795, %v2384, 0.0
      %2405 = vadd.xlane.f32.xlu0 %v2404
      %v2406 = vpop.xlane.xlu0 %2405
      %v2407 = vsel %vm795, %v2386, 0.0
      %2408 = vadd.xlane.f32.xlu0 %v2407
      %v2409 = vpop.xlane.xlu0 %2408
      %v2410 = vsel %vm795, %v2388, 0.0
      %2411 = vadd.xlane.f32.xlu0 %v2410
      %v2412 = vpop.xlane.xlu0 %2411
      %v2413 = vrcp.pop %v2391
      %v2414 = vrcp.pop %v2394
      %v2415 = vrcp.pop %v2397
      %v2416 = vrcp.pop %v2400
      %v2417 = vrcp.pop %v2403
      %v2418 = vrcp.pop %v2406
      %v2419 = vrcp.pop %v2409
      %v2420 = vrcp.pop %v2412
      %v2421 = vmul.f32 %v2374, %v2413
      %v2422 = vmul.f32 %v2376, %v2414
      %v2423 = vmul.f32 %v2378, %v2415
      %v2424 = vmul.f32 %v2380, %v2416
      %v2425 = vmul.f32 %v2382, %v2417
      %v2426 = vmul.f32 %v2384, %v2418
      %v2427 = vmul.f32 %v2386, %v2419
      %v2428 = vmul.f32 %v2388, %v2420
      %v2429 = vpack.c.bf16 %v2422, %v2421
      %v2430 = vpack.c.bf16 %v2424, %v2423
      %v2431 = vpack.c.bf16 %v2426, %v2425
      %v2432 = vpack.c.bf16 %v2428, %v2427
      %2433 = vrot.lane.b32.xlu0 %v564, 40
      %v2434 = vpop.permute.xlu0 %2433
      %v2437 = vsel %vm795, %v2429, 0
      %2439 = vmatprep.subr.bf16.mxu0 0
      %2440 = vmatpush1.bf16.msra.mxu0 0
      %2441 = vmatprep.subr.bf16.mxu0 0
      %2442 = vmatpush1.bf16.msra.mxu0 0
      %2443 = vmatprep.subr.bf16.mxu0 0
      %2444 = vmatpush1.bf16.msra.mxu0 0
      %2445 = vmatprep.subr.bf16.mxu0 0
      %2446 = vmatpush1.bf16.msra.mxu0 0
      %2447 = vmatprep.subr.bf16.mxu0 0
      %2448 = vmatpush1.bf16.msra.mxu0 0
      %2449 = vmatprep.subr.bf16.mxu0 0
      %2450 = vmatpush1.bf16.msra.mxu0 0
      %2451 = vmatprep.subr.bf16.mxu0 0
      %2452 = vmatpush1.bf16.msra.mxu0 0
      %2453 = vmatprep.subr.bf16.mxu0 0
      %2454 = vmatpush1.bf16.msra.mxu0 %v2434
      %2455 = vmatprep.subr.bf16.mxu0 0
      %2456 = vmatpush2.bf16.msra.mxu0 0
      %2457 = vmatprep.subr.bf16.mxu0 0
      %2458 = vmatpush2.bf16.msra.mxu0 0
      %2459 = vmatprep.subr.bf16.mxu0 0
      %2460 = vmatpush2.bf16.msra.mxu0 0
      %2461 = vmatprep.subr.bf16.mxu0 0
      %2462 = vmatpush2.bf16.msra.mxu0 0
      %2463 = vmatprep.subr.bf16.mxu0 0
      %2464 = vmatpush2.bf16.msra.mxu0 0
      %2465 = vmatprep.subr.bf16.mxu0 0
      %2466 = vmatpush2.bf16.msra.mxu0 0
      %2467 = vmatprep.subr.bf16.mxu0 0
      %2468 = vmatpush2.bf16.msra.mxu0 0
      %2469 = vmatprep.subr.bf16.mxu0 0
      %2470 = vmatpush2.bf16.msra.mxu0 0
      %2471 = vmatprep.mubr.bf16.mxu0 0
      %2472 = vmatmul.mubr.bf16.gmra.mxu0 %v2437
      %v2473 = vpop.f32.mrf.mxu0
      %v2474 = vadd.f32 0.0, %v2473
      %v2475 = vpop.f32.mrf.mxu0
      %v2476 = vpop.f32.mrf.mxu0
      %v2477 = vadd.f32 0.0, %v2476
      %v2478 = vpop.f32.mrf.mxu0
      %2479 = vdwg.mxu0
      %2480 = vrot.lane.b32.xlu0 %v565, 40
      %v2481 = vpop.permute.xlu0 %2480
      %v2484 = vsel %vm795, %v2430, 0
      %2486 = vmatprep.subr.bf16.mxu0 0
      %2487 = vmatpush1.bf16.msra.mxu0 0
      %2488 = vmatprep.subr.bf16.mxu0 0
      %2489 = vmatpush1.bf16.msra.mxu0 0
      %2490 = vmatprep.subr.bf16.mxu0 0
      %2491 = vmatpush1.bf16.msra.mxu0 0
      %2492 = vmatprep.subr.bf16.mxu0 0
      %2493 = vmatpush1.bf16.msra.mxu0 0
      %2494 = vmatprep.subr.bf16.mxu0 0
      %2495 = vmatpush1.bf16.msra.mxu0 0
      %2496 = vmatprep.subr.bf16.mxu0 0
      %2497 = vmatpush1.bf16.msra.mxu0 0
      %2498 = vmatprep.subr.bf16.mxu0 0
      %2499 = vmatpush1.bf16.msra.mxu0 0
      %2500 = vmatprep.subr.bf16.mxu0 0
      %2501 = vmatpush1.bf16.msra.mxu0 %v2481
      %2502 = vmatprep.subr.bf16.mxu0 0
      %2503 = vmatpush2.bf16.msra.mxu0 0
      %2504 = vmatprep.subr.bf16.mxu0 0
      %2505 = vmatpush2.bf16.msra.mxu0 0
      %2506 = vmatprep.subr.bf16.mxu0 0
      %2507 = vmatpush2.bf16.msra.mxu0 0
      %2508 = vmatprep.subr.bf16.mxu0 0
      %2509 = vmatpush2.bf16.msra.mxu0 0
      %2510 = vmatprep.subr.bf16.mxu0 0
      %2511 = vmatpush2.bf16.msra.mxu0 0
      %2512 = vmatprep.subr.bf16.mxu0 0
      %2513 = vmatpush2.bf16.msra.mxu0 0
      %2514 = vmatprep.subr.bf16.mxu0 0
      %2515 = vmatpush2.bf16.msra.mxu0 0
      %2516 = vmatprep.subr.bf16.mxu0 0
      %2517 = vmatpush2.bf16.msra.mxu0 0
      %2518 = vmatprep.mubr.bf16.mxu0 0
      %2519 = vmatmul.mubr.bf16.gmra.mxu0 %v2484
      %v2520 = vpop.f32.mrf.mxu0
      %v2521 = vadd.f32 0.0, %v2520
      %v2522 = vpop.f32.mrf.mxu0
      %v2523 = vpop.f32.mrf.mxu0
      %v2524 = vadd.f32 0.0, %v2523
      %v2525 = vpop.f32.mrf.mxu0
      %2526 = vdwg.mxu0
      %2527 = vrot.lane.b32.xlu0 %v566, 40
      %v2528 = vpop.permute.xlu0 %2527
      %v2531 = vsel %vm795, %v2431, 0
      %2533 = vmatprep.subr.bf16.mxu0 0
      %2534 = vmatpush1.bf16.msra.mxu0 0
      %2535 = vmatprep.subr.bf16.mxu0 0
      %2536 = vmatpush1.bf16.msra.mxu0 0
      %2537 = vmatprep.subr.bf16.mxu0 0
      %2538 = vmatpush1.bf16.msra.mxu0 0
      %2539 = vmatprep.subr.bf16.mxu0 0
      %2540 = vmatpush1.bf16.msra.mxu0 0
      %2541 = vmatprep.subr.bf16.mxu0 0
      %2542 = vmatpush1.bf16.msra.mxu0 0
      %2543 = vmatprep.subr.bf16.mxu0 0
      %2544 = vmatpush1.bf16.msra.mxu0 0
      %2545 = vmatprep.subr.bf16.mxu0 0
      %2546 = vmatpush1.bf16.msra.mxu0 0
      %2547 = vmatprep.subr.bf16.mxu0 0
      %2548 = vmatpush1.bf16.msra.mxu0 %v2528
      %2549 = vmatprep.subr.bf16.mxu0 0
      %2550 = vmatpush2.bf16.msra.mxu0 0
      %2551 = vmatprep.subr.bf16.mxu0 0
      %2552 = vmatpush2.bf16.msra.mxu0 0
      %2553 = vmatprep.subr.bf16.mxu0 0
      %2554 = vmatpush2.bf16.msra.mxu0 0
      %2555 = vmatprep.subr.bf16.mxu0 0
      %2556 = vmatpush2.bf16.msra.mxu0 0
      %2557 = vmatprep.subr.bf16.mxu0 0
      %2558 = vmatpush2.bf16.msra.mxu0 0
      %2559 = vmatprep.subr.bf16.mxu0 0
      %2560 = vmatpush2.bf16.msra.mxu0 0
      %2561 = vmatprep.subr.bf16.mxu0 0
      %2562 = vmatpush2.bf16.msra.mxu0 0
      %2563 = vmatprep.subr.bf16.mxu0 0
      %2564 = vmatpush2.bf16.msra.mxu0 0
      %2565 = vmatprep.mubr.bf16.mxu0 0
      %2566 = vmatmul.mubr.bf16.gmra.mxu0 %v2531
      %v2567 = vpop.f32.mrf.mxu0
      %v2568 = vadd.f32 0.0, %v2567
      %v2569 = vpop.f32.mrf.mxu0
      %v2570 = vpop.f32.mrf.mxu0
      %v2571 = vadd.f32 0.0, %v2570
      %v2572 = vpop.f32.mrf.mxu0
      %2573 = vdwg.mxu0
      %2574 = vrot.lane.b32.xlu0 %v567, 40
      %v2575 = vpop.permute.xlu0 %2574
      %v2578 = vsel %vm795, %v2432, 0
      %2580 = vmatprep.subr.bf16.mxu0 0
      %2581 = vmatpush1.bf16.msra.mxu0 0
      %2582 = vmatprep.subr.bf16.mxu0 0
      %2583 = vmatpush1.bf16.msra.mxu0 0
      %2584 = vmatprep.subr.bf16.mxu0 0
      %2585 = vmatpush1.bf16.msra.mxu0 0
      %2586 = vmatprep.subr.bf16.mxu0 0
      %2587 = vmatpush1.bf16.msra.mxu0 0
      %2588 = vmatprep.subr.bf16.mxu0 0
      %2589 = vmatpush1.bf16.msra.mxu0 0
      %2590 = vmatprep.subr.bf16.mxu0 0
      %2591 = vmatpush1.bf16.msra.mxu0 0
      %2592 = vmatprep.subr.bf16.mxu0 0
      %2593 = vmatpush1.bf16.msra.mxu0 0
      %2594 = vmatprep.subr.bf16.mxu0 0
      %2595 = vmatpush1.bf16.msra.mxu0 %v2575
      %2596 = vmatprep.subr.bf16.mxu0 0
      %2597 = vmatpush2.bf16.msra.mxu0 0
      %2598 = vmatprep.subr.bf16.mxu0 0
      %2599 = vmatpush2.bf16.msra.mxu0 0
      %2600 = vmatprep.subr.bf16.mxu0 0
      %2601 = vmatpush2.bf16.msra.mxu0 0
      %2602 = vmatprep.subr.bf16.mxu0 0
      %2603 = vmatpush2.bf16.msra.mxu0 0
      %2604 = vmatprep.subr.bf16.mxu0 0
      %2605 = vmatpush2.bf16.msra.mxu0 0
      %2606 = vmatprep.subr.bf16.mxu0 0
      %2607 = vmatpush2.bf16.msra.mxu0 0
      %2608 = vmatprep.subr.bf16.mxu0 0
      %2609 = vmatpush2.bf16.msra.mxu0 0
      %2610 = vmatprep.subr.bf16.mxu0 0
      %2611 = vmatpush2.bf16.msra.mxu0 0
      %2612 = vmatprep.mubr.bf16.mxu0 0
      %2613 = vmatmul.mubr.bf16.gmra.mxu0 %v2578
      %v2614 = vpop.f32.mrf.mxu0
      %v2615 = vadd.f32 0.0, %v2614
      %v2616 = vpop.f32.mrf.mxu0
      %v2617 = vpop.f32.mrf.mxu0
      %v2618 = vadd.f32 0.0, %v2617
      %v2619 = vpop.f32.mrf.mxu0
      %2620 = vdwg.mxu0
      %v2621 = vpack.c.bf16 %v2477, %v2474
      %v2622 = vpack.c.bf16 %v2524, %v2521
      %v2623 = vpack.c.bf16 %v2571, %v2568
      %v2624 = vpack.c.bf16 %v2618, %v2615
      %2629 = vrot.lane.b32.xlu0 %v1591, 8
      %v2630 = vpop.permute.xlu0 %2629
      %2631 = vrot.lane.b32.xlu0 %v1592, 8
      %v2632 = vpop.permute.xlu0 %2631
      %2633 = vrot.lane.b32.xlu0 %v1593, 8
      %v2634 = vpop.permute.xlu0 %2633
      %2635 = vrot.lane.b32.xlu0 %v1594, 8
      %v2636 = vpop.permute.xlu0 %2635
      %2641 = vrot.lane.b32.xlu0 %v2106, 16
      %v2642 = vpop.permute.xlu0 %2641
      %2643 = vrot.lane.b32.xlu0 %v2107, 16
      %v2644 = vpop.permute.xlu0 %2643
      %2645 = vrot.lane.b32.xlu0 %v2108, 16
      %v2646 = vpop.permute.xlu0 %2645
      %2647 = vrot.lane.b32.xlu0 %v2109, 16
      %v2648 = vpop.permute.xlu0 %2647
      %2653 = vrot.lane.b32.xlu0 %v2621, 24
      %v2654 = vpop.permute.xlu0 %2653
      %2655 = vrot.lane.b32.xlu0 %v2622, 24
      %v2656 = vpop.permute.xlu0 %2655
      %2657 = vrot.lane.b32.xlu0 %v2623, 24
      %v2658 = vpop.permute.xlu0 %2657
      %2659 = vrot.lane.b32.xlu0 %v2624, 24
      %v2660 = vpop.permute.xlu0 %2659
      %v2663 = vsel %vm571, %v1076, %v2630
      %v2666 = vsel %vm571, %v1077, %v2632
      %v2669 = vsel %vm571, %v1078, %v2634
      %v2672 = vsel %vm571, %v1079, %v2636
      %v2674 = vsel %vm795, %v2663, %v2642
      %v2676 = vsel %vm795, %v2666, %v2644
      %v2678 = vsel %vm795, %v2669, %v2646
      %v2680 = vsel %vm795, %v2672, %v2648
      %vm2681 = vcmask 195584
      %v2683 = vsel %vm2681, %v2674, %v2654
      %v2685 = vsel %vm2681, %v2676, %v2656
      %v2687 = vsel %vm2681, %v2678, %v2658
      %v2689 = vsel %vm2681, %v2680, %v2660
      %v2690 = vld [vmem:[%s6] sm:$0xf]
      %v2691 = vld [vmem:[%s6 + $0x4] sm:$0xf]
      %v2692 = vld [vmem:[%s6 + $0x8] sm:$0xf]
      %v2693 = vld [vmem:[%s6 + $0xc] sm:$0xf]
      %v2694 = vld [vmem:[%s7] sm:$0x1]
      %v2696 = vlaneseq
      %v2697 = vshrl.u32 %v2696, 7
      %v2698 = vsub.s32 0, %v2697
      %v2699 = vrot.slane %v2694, %v2698
      %v2705 = vunpack.c.l.b16 %v2690
      %v2706 = vunpack.c.l.b16 %v2691
      %v2707 = vunpack.c.l.b16 %v2692
      %v2708 = vunpack.c.l.b16 %v2693
      %v2709 = vpack.c.b16 %v2706, %v2705
      %v2710 = vpack.c.b16 %v2708, %v2707
      %v2713 = vsel %vm323, %v2683, 0
      %v2715 = vsel %vm323, %v2685, 0
      %v2717 = vsel %vm323, %v2687, 0
      %v2719 = vsel %vm323, %v2689, 0
      %2721 = vmatprep.subr.bf16.mxu0 0
      %2722 = vmatpush1.bf16.msra.mxu0 0
      %2723 = vmatprep.subr.bf16.mxu0 0
      %2724 = vmatpush1.bf16.msra.mxu0 0
      %2725 = vmatprep.subr.bf16.mxu0 0
      %2726 = vmatpush1.bf16.msra.mxu0 0
      %2727 = vmatprep.subr.bf16.mxu0 0
      %2728 = vmatpush1.bf16.msra.mxu0 0
      %2729 = vmatprep.subr.bf16.mxu0 0
      %2730 = vmatpush1.bf16.msra.mxu0 0
      %2731 = vmatprep.subr.bf16.mxu0 0
      %2732 = vmatpush1.bf16.msra.mxu0 0
      %2733 = vmatprep.subr.bf16.mxu0 0
      %2734 = vmatpush1.bf16.msra.mxu0 %v2710
      %2735 = vmatprep.subr.bf16.mxu0 0
      %2736 = vmatpush1.bf16.msra.mxu0 %v2709
      %2737 = vmatprep.subr.bf16.mxu0 0
      %2738 = vmatpush2.bf16.msra.mxu0 0
      %2739 = vmatprep.subr.bf16.mxu0 0
      %2740 = vmatpush2.bf16.msra.mxu0 0
      %2741 = vmatprep.subr.bf16.mxu0 0
      %2742 = vmatpush2.bf16.msra.mxu0 0
      %2743 = vmatprep.subr.bf16.mxu0 0
      %2744 = vmatpush2.bf16.msra.mxu0 0
      %2745 = vmatprep.subr.bf16.mxu0 0
      %2746 = vmatpush2.bf16.msra.mxu0 0
      %2747 = vmatprep.subr.bf16.mxu0 0
      %2748 = vmatpush2.bf16.msra.mxu0 0
      %2749 = vmatprep.subr.bf16.mxu0 0
      %2750 = vmatpush2.bf16.msra.mxu0 0
      %2751 = vmatprep.subr.bf16.mxu0 0
      %2752 = vmatpush2.bf16.msra.mxu0 0
      %2753 = vmatprep.mubr.bf16.mxu0 0
      %2754 = vmatmul.mubr.bf16.gmra.mxu0 %v2713
      %v2755 = vpop.f32.mrf.mxu0
      %v2756 = vadd.f32 %v2699, %v2755
      %v2757 = vpop.f32.mrf.mxu0
      %v2758 = vpop.f32.mrf.mxu0
      %v2759 = vadd.f32 %v2699, %v2758
      %v2760 = vpop.f32.mrf.mxu0
      %2761 = vmatprep.mubr.bf16.mxu0 0
      %2762 = vmatmul.mubr.bf16.gmra.mxu0 %v2715
      %v2763 = vpop.f32.mrf.mxu0
      %v2764 = vadd.f32 %v2699, %v2763
      %v2765 = vpop.f32.mrf.mxu0
      %v2766 = vpop.f32.mrf.mxu0
      %v2767 = vadd.f32 %v2699, %v2766
      %v2768 = vpop.f32.mrf.mxu0
      %2769 = vmatprep.mubr.bf16.mxu0 0
      %2770 = vmatmul.mubr.bf16.gmra.mxu0 %v2717
      %v2771 = vpop.f32.mrf.mxu0
      %v2772 = vadd.f32 %v2699, %v2771
      %v2773 = vpop.f32.mrf.mxu0
      %v2774 = vpop.f32.mrf.mxu0
      %v2775 = vadd.f32 %v2699, %v2774
      %v2776 = vpop.f32.mrf.mxu0
      %2777 = vmatprep.mubr.bf16.mxu0 0
      %2778 = vmatmul.mubr.bf16.gmra.mxu0 %v2719
      %v2779 = vpop.f32.mrf.mxu0
      %v2780 = vadd.f32 %v2699, %v2779
      %v2781 = vpop.f32.mrf.mxu0
      %v2782 = vpop.f32.mrf.mxu0
      %v2783 = vadd.f32 %v2699, %v2782
      %v2784 = vpop.f32.mrf.mxu0
      %2785 = vdwg.mxu0
      %2786 = vst.msk [vmem:[%s312] sm:$0xff] %vm323, %v2756
      %2787 = vst.msk [vmem:[%s312 + $0x8] sm:$0xff] %vm323, %v2759
      %2788 = vst.msk [vmem:[%s312 + $0x10] sm:$0xff] %vm323, %v2764
      %2789 = vst.msk [vmem:[%s312 + $0x18] sm:$0xff] %vm323, %v2767
      %2790 = vst.msk [vmem:[%s312 + $0x20] sm:$0xff] %vm323, %v2772
      %2791 = vst.msk [vmem:[%s312 + $0x28] sm:$0xff] %vm323, %v2775
      %2792 = vst.msk [vmem:[%s312 + $0x30] sm:$0xff] %vm323, %v2780
      %2793 = vst.msk [vmem:[%s312 + $0x38] sm:$0xff] %vm323, %v2783
      %s2794 = smul.u32 4, %s19
      %p2795 = scmp.lt.s32.totalorder %s2794, 7
      %s2796 = scalar_select %p2795, %s2794, 7
      %s2797 = smul.addr %s2796, 2
      %s2798 = smul.addr %s2797, 8
      %s2799 = scalar_lea.vmem %s8, %s2798
      // Predicated region
      $region53: #{decode_layer_forward.8} parent=51 // pred_check
        %p2800 = pneg %p210
      $region54: #{decode_layer_forward.8} parent=51 // pred_check_branch
        %2802 = sbr.rel (%p2800) target = $region56
      $region55: #{decode_layer_forward.8} parent=51 // pred_region
        %s2803 = smul.u32 4, %s19
      $region56: #{decode_layer_forward.8} parent=51 // pred_fallthru
        _
    $region52: #{decode_layer_forward.8} parent=5 // pred_fallthru
      _
    %p2804 = scmp.le.s32.totalorder 2, %s14
    // Predicated region
    $region57: #{decode_layer_forward.8} parent=5 // pred_check
      %p2805 = pneg %p2804
    $region58: #{decode_layer_forward.8} parent=5 // pred_check_branch
      %2807 = sbr.rel (%p2805) target = $region60
    $region59: #{decode_layer_forward.8} parent=5 // pred_region
      %s2808 = ssub.s32 %s14, 2
      // Predicated region
      $region61: #{decode_layer_forward.8} parent=59 // pred_check
        %p2809 = pneg %p216
      $region62: #{decode_layer_forward.8} parent=59 // pred_check_branch
        %2811 = sbr.rel (%p2809) target = $region64
      $region63: #{decode_layer_forward.8} parent=59 // pred_region
        %s2812 = smul.u32 4, %s20
        %p2813 = scmp.lt.s32.totalorder %s2812, 7
        %s2814 = scalar_select %p2813, %s2812, 7
        %s2815 = smul.addr %s2814, 2
        %s2816 = smul.addr %s2815, 8
        %s2817 = scalar_lea.vmem %s8, %s2816
      $region64: #{decode_layer_forward.8} parent=59 // pred_fallthru
        _
    $region60: #{decode_layer_forward.8} parent=5 // pred_fallthru
      _
  $region6: #{decode_layer_forward.8} parent=0 // loop_footer
    %s18 = sadd.s32 1, %s14
  $region7: #{decode_layer_forward.8} parent=0 // loop_footer_branch
    %13 = sbr.rel target = $region3
  $region8: #{decode_layer_forward.8} parent=0 // loop_exit
    _

</llo_original>
